<compile_context>
chip_gen: v7x
topology: tpu7x:2x2x1
jax: 0.10.0
libtpu: 0.0.40
codegen_flags: <defaults>
</compile_context>

<pallas_src>
import functools
import math

import jax
import jax.numpy as jnp
from jax.experimental import pallas as pl
from jax.experimental.pallas import tpu as pltpu


# ----------------------------------------------------------------------------
# Small helpers used inside kernels (pure functions of loaded VMEM values)
# ----------------------------------------------------------------------------
def _layernorm(x, w, b, eps=1e-5):
    mu = jnp.mean(x, axis=-1, keepdims=True)
    xc = x - mu
    var = jnp.mean(xc * xc, axis=-1, keepdims=True)
    return xc * jax.lax.rsqrt(var + eps) * w + b


def _gelu_exact(x):
    # Exact (erf-based) GELU, matching PyTorch activation='gelu'.
    # erf via Abramowitz-Stegun 7.1.26 (|err| < 1.5e-7); uses only exp / abs / where,
    # which have guaranteed Mosaic lowerings.
    z = x * (1.0 / math.sqrt(2.0))
    az = jnp.abs(z)
    t = 1.0 / (1.0 + 0.3275911 * az)
    poly = ((((1.061405429 * t - 1.453152027) * t + 1.421413741) * t
             - 0.284496736) * t + 0.254829592) * t
    erf_abs = 1.0 - poly * jnp.exp(-az * az)
    erf = jnp.where(z >= 0.0, erf_abs, -erf_abs)
    return 0.5 * x * (1.0 + erf)


def _encoder_layer(x, wqkv, wo, w1, w2, vec, mask_bias, n_heads):
    """One post-norm nn.TransformerEncoderLayer on a 2-D token slab x: (M, E).

    Sequence batching is expressed via `mask_bias` (M, M): 0 where token j may attend
    to token i (same sequence), -1e30 elsewhere (block-diagonal attention).
    vec rows: 0=bqkv(3E) 1=bo(E) 2=b1(F) 3=b2(E) 4=ln1w 5=ln1b 6=ln2w 7=ln2b.
    """
    M, E = x.shape
    F = w1.shape[1]
    dh = E // n_heads
    scale = 1.0 / math.sqrt(dh)

    # fused QKV projection: one (M, E) @ (E, 3E) MXU pass
    qkv = jnp.dot(x, wqkv, preferred_element_type=jnp.float32) + vec[0:1, :3 * E]

    # per-head attention over the whole slab at once (all sequences batched via the
    # block-diagonal mask); head outputs folded through W_out rows -> no concatenate.
    attn = jnp.zeros((M, E), jnp.float32)
    for h in range(n_heads):
        lo, hi = h * dh, (h + 1) * dh
        qh = qkv[:, lo:hi] * scale                      # (M, dh)
        kh = qkv[:, E + lo:E + hi]                      # (M, dh)
        vh = qkv[:, 2 * E + lo:2 * E + hi]              # (M, dh)
        s = jax.lax.dot_general(qh, kh, (((1,), (1,)), ((), ())),
                                preferred_element_type=jnp.float32)   # (M, M) = q @ k^T
        s = s + mask_bias
        s = s - jnp.max(s, axis=-1, keepdims=True)
        p = jnp.exp(s)
        p = p / jnp.sum(p, axis=-1, keepdims=True)      # masked entries contribute 0
        ctx = jnp.dot(p, vh, preferred_element_type=jnp.float32)      # (M, dh)
        attn = attn + jnp.dot(ctx, wo[lo:hi, :], preferred_element_type=jnp.float32)
    attn = attn + vec[1:2, :E]

    # post-norm residual blocks (dropout = identity at inference)
    h1 = _layernorm(x + attn, vec[4:5, :E], vec[5:6, :E])
    ff = jnp.dot(h1, w1, preferred_element_type=jnp.float32) + vec[2:3, :F]
    ff = _gelu_exact(ff)
    ff = jnp.dot(ff, w2, preferred_element_type=jnp.float32) + vec[3:4, :E]
    return _layernorm(h1 + ff, vec[6:7, :E], vec[7:8, :E])


# ----------------------------------------------------------------------------
# Pallas kernel 1: fused decoder stack
#   decompress 1x1-conv + n_layers DecoderBlocks + ReLU + output 1x1-conv
#   grid = (B, n_layers); per-layer weights stacked on a leading axis; the activation
#   slab lives in a VMEM scratch across the layer axis.
# ----------------------------------------------------------------------------
def _decoder_stack_kernel(tok_ref, cond_ref, tbias_ref, fbias_ref, dec_w_ref, dec_b_ref,
                          t_wqkv_ref, t_wo_ref, t_w1_ref, t_w2_ref, t_vec_ref,
                          f_wqkv_ref, f_wo_ref, f_w1_ref, f_w2_ref, f_vec_ref,
                          wmid_ref, wcond_ref, wout_ref, cvec_ref,
                          outp_w_ref, outp_b_ref,
                          pred_ref, x_scr, *, n_heads):
    l = pl.program_id(1)

    # layer 0: decompress_encoded Conv1d(enc_ch, C, 1) as a channels-last token matmul,
    # result kept resident in VMEM scratch for the whole layer loop of this batch element.
    @pl.when(l == 0)
    def _():
        x_scr[...] = (jnp.dot(tok_ref[...], dec_w_ref[...],
                              preferred_element_type=jnp.float32) + dec_b_ref[...])

    x = x_scr[...]                                   # (K*L, C) tokens of one batch element
    C = x.shape[1]
    C2 = wmid_ref.shape[2]                           # 2*C
    cvec = cvec_ref[0]                               # (3, 2C)

    # forward_time: attention over L within each (b, k) group  (block-diag mask)
    y = _encoder_layer(x, t_wqkv_ref[0], t_wo_ref[0], t_w1_ref[0], t_w2_ref[0],
                       t_vec_ref[0], tbias_ref[...], n_heads)
    # forward_feature: attention over K within each (b, l) group (strided mask)
    y = _encoder_layer(y, f_wqkv_ref[0], f_wo_ref[0], f_w1_ref[0], f_w2_ref[0],
                       f_vec_ref[0], fbias_ref[...], n_heads)

    # mid_projection(y) + cond_projection(cond) then output_projection, all in VMEM
    z = (jnp.dot(y, wmid_ref[0], preferred_element_type=jnp.float32) + cvec[0:1, :C2]
         + jnp.dot(cond_ref[...], wcond_ref[0], preferred_element_type=jnp.float32)
         + cvec[1:2, :C2])
    xn = jnp.dot(z, wout_ref[0], preferred_element_type=jnp.float32) + cvec[2:3, :C]
    x_scr[...] = xn

    # last layer: F.relu + output_projection Conv1d(C, input_dim, 1), lane-dense output
    @pl.when(l == pl.num_programs(1) - 1)
    def _():
        xr = jnp.maximum(xn, 0.0)                    # (K*L, C)
        # pred[o, m] = sum_c w[o, c] * relu(x)[m, c]  -> (input_dim, K*L): tokens on lanes
        pred = jax.lax.dot_general(outp_w_ref[...], xr, (((1,), (1,)), ((), ())),
                                   preferred_element_type=jnp.float32) + outp_b_ref[...]
        pred_ref[...] = pred[None, :, :]


def decoder_stack(tok, cond, tbias, fbias, params, *, B, KL, n_heads):
    """tok: (B*KL, enc_ch) decompressed token slab, cond: (B*KL, side).

    Runs the full decoder (decompress conv, all DecoderBlocks, relu + output conv)
    in a single pallas_call.  Returns (B, input_dim, KL) f32.
    """
    enc_ch = tok.shape[1]
    side = cond.shape[1]
    C = params['dec_w'].shape[1]
    blk = params['blocks']
    n_layers = blk['wmid'].shape[0]
    input_dim = params['outp_w'].shape[0]

    def tok_spec(width):
        return pl.BlockSpec((KL, width), lambda b, l: (b, 0))

    def const2(arr):
        return pl.BlockSpec(arr.shape, lambda b, l: (0, 0))

    def layer3(arr):
        return pl.BlockSpec((1,) + arr.shape[1:], lambda b, l: (l, 0, 0))

    in_arrays = [tok, cond, tbias, fbias, params['dec_w'], params['dec_b'],
                 blk['time']['wqkv'], blk['time']['wo'], blk['time']['w1'],
                 blk['time']['w2'], blk['time']['vec'],
                 blk['feat']['wqkv'], blk['feat']['wo'], blk['feat']['w1'],
                 blk['feat']['w2'], blk['feat']['vec'],
                 blk['wmid'], blk['wcond'], blk['wout'], blk['cvec'],
                 params['outp_w'], params['outp_b']]
    in_specs = ([tok_spec(enc_ch), tok_spec(side), const2(tbias), const2(fbias),
                 const2(params['dec_w']), const2(params['dec_b'])]
                + [layer3(a) for a in in_arrays[6:20]]
                + [const2(params['outp_w']), const2(params['outp_b'])])

    return pl.pallas_call(
        functools.partial(_decoder_stack_kernel, n_heads=n_heads),
        grid=(B, n_layers),
        in_specs=in_specs,
        out_specs=pl.BlockSpec((1, input_dim, KL), lambda b, l: (b, 0, 0)),
        out_shape=jax.ShapeDtypeStruct((B, input_dim, KL), jnp.float32),
        scratch_shapes=[pltpu.VMEM((KL, C), jnp.float32)],
        compiler_params=pltpu.CompilerParams(
            dimension_semantics=("parallel", "arbitrary")),
    )(*in_arrays)


# ----------------------------------------------------------------------------
# Pallas kernel 2: matmul + bias (decompress_encoded1 Linear)
# ----------------------------------------------------------------------------
# NOTE: untiled whole-array-in-VMEM; fine at these sizes.  If the model is ever scaled
# up, add a grid + M-tiled BlockSpec (256-512 rows) and budget for v7x's 64 MiB VMEM.
def _matmul_bias_kernel(x_ref, w_ref, b_ref, o_ref):
    o_ref[...] = jnp.dot(x_ref[...], w_ref[...], preferred_element_type=jnp.float32) + b_ref[...]


def matmul_bias(x, w, b):
    """x: (M, K), w: (K, N), b: (1, N) -> (M, N), all f32."""
    M = x.shape[0]
    N = w.shape[1]
    return pl.pallas_call(
        _matmul_bias_kernel,
        out_shape=jax.ShapeDtypeStruct((M, N), jnp.float32),
    )(x, w, b)


# ----------------------------------------------------------------------------
# Module composition (remaining XLA glue: reshapes / two one-time transposes)
# ----------------------------------------------------------------------------
def csdi_decoder_forward(encoded, cond_info, params, cfg):
    B, K, enc_in = encoded.shape                         # (B, n_features, 16)
    L = cfg['max_seq_len']
    enc_ch = cfg['encoded_channels']
    KL = K * L

    # decompress_encoded1: Linear(16, latent_dim)
    lin = matmul_bias(encoded.reshape(B * K, enc_in), params['lin_w'], params['lin_b'])
    # PyTorch: .reshape(B, enc_ch, K*L)  (row-major, latent == enc_ch * L)
    dec_ncl = lin.reshape(B, enc_ch, KL)
    # channels-last token slab for the decompress conv; rows ordered (b, k, l)
    tok = jnp.transpose(dec_ncl, (0, 2, 1)).reshape(B * KL, enc_ch)

    # cond_info -> channels-last token slab, done ONCE (constant across decoder blocks)
    side = cond_info.shape[1]
    cond_slab = jnp.transpose(cond_info, (0, 2, 3, 1)).reshape(B * KL, side)

    # Block-diagonal attention masks over one batch element's K*L tokens (row = k*L + l):
    #   time attention:    tokens with the same k attend to each other (over l)
    #   feature attention: tokens with the same l attend to each other (over k)
    r = jnp.arange(KL)
    tbias = jnp.where((r[:, None] // L) == (r[None, :] // L), 0.0, -1e30).astype(jnp.float32)
    fbias = jnp.where((r[:, None] % L) == (r[None, :] % L), 0.0, -1e30).astype(jnp.float32)

    pred = decoder_stack(tok, cond_slab, tbias, fbias, params,
                         B=B, KL=KL, n_heads=cfg['n_heads'])      # (B, input_dim, KL)
    return pred.reshape(B, K, L)                          # valid since input_dim == 1 (as in PyTorch)


# ----------------------------------------------------------------------------
# Deterministic synthetic parameter init (shapes follow the PyTorch __init__)
# ----------------------------------------------------------------------------
def init_params(key, cfg):
    C = cfg['channels']
    E = C
    F = 64                                   # dim_feedforward in get_torch_trans
    side = cfg['dim_val']
    enc_ch = cfg['encoded_channels']
    latent = cfg['clap_latent_dim']
    input_dim = cfg['input_dim']
    VW = max(3 * E, F)                       # packed-vector width per encoder layer

    keys = iter(jax.random.split(key, 1024))

    def nrm(shape, scale=0.1):
        return scale * jax.random.normal(next(keys), shape, dtype=jnp.float32)

    def pad_row(v, width):
        return jnp.pad(v.reshape(1, -1), ((0, 0), (0, width - v.shape[-1])))

    def trans_params():
        bqkv = nrm((3 * E,), 0.02)
        bo = nrm((E,), 0.02)
        b1 = nrm((F,), 0.02)
        b2 = nrm((E,), 0.02)
        ln1w = jnp.ones((E,), jnp.float32)
        ln1b = jnp.zeros((E,), jnp.float32)
        ln2w = jnp.ones((E,), jnp.float32)
        ln2b = jnp.zeros((E,), jnp.float32)
        vec = jnp.concatenate(
            [pad_row(v, VW) for v in (bqkv, bo, b1, b2, ln1w, ln1b, ln2w, ln2b)], axis=0)
        return dict(wqkv=nrm((E, 3 * E)),    # in_proj_weight.T (fused q|k|v)
                    wo=nrm((E, E)),          # out_proj.weight.T
                    w1=nrm((E, F)), w2=nrm((F, E)),
                    vec=vec)

    def block_params():
        bmid = nrm((2 * C,), 0.02)
        bcond = nrm((2 * C,), 0.02)
        bout = nrm((C,), 0.02)
        cvec = jnp.concatenate([pad_row(v, 2 * C) for v in (bmid, bcond, bout)], axis=0)
        return dict(
            wmid=nrm((C, 2 * C)),            # mid_projection.weight[:, :, 0].T
            wcond=nrm((side, 2 * C)),        # cond_projection.weight[:, :, 0].T
            wout=nrm((2 * C, C)),            # output_projection.weight[:, :, 0].T
            cvec=cvec,
            time=trans_params(), feat=trans_params(),
        )

    layer_dicts = [block_params() for _ in range(cfg['n_encoder_layers'])]
    # stack every per-layer leaf along a leading n_layers axis (selected via index_map)
    blocks = jax.tree_util.tree_map(lambda *xs: jnp.stack(xs, axis=0), *layer_dicts)

    return dict(
        lin_w=nrm((16, latent)), lin_b=nrm((1, latent), 0.02),       # Linear(16, latent).weight.T
        dec_w=nrm((enc_ch, C)), dec_b=nrm((1, C), 0.02),             # decompress conv, (Cin, Cout)
        outp_w=nrm((input_dim, C)), outp_b=nrm((input_dim, 1), 0.02),
        blocks=blocks,
    )


if __name__ == "__main__":
    # model_config: channels=32, n_heads=4, dim_val=16, max_seq_len=8, n_features=4,
    #               clap_latent_dim=32, n_encoder_layers=2 ; input_dim=1
    cfg = dict(channels=32, n_heads=4, dim_val=16, max_seq_len=8, n_features=4,
               clap_latent_dim=32, n_encoder_layers=2, input_dim=1)
    cfg['encoded_channels'] = cfg['clap_latent_dim'] // cfg['max_seq_len']   # = 4

    key = jax.random.PRNGKey(0)
    kp, ke, kc = jax.random.split(key, 3)
    params = init_params(kp, cfg)

    B = 2
    encoded = jax.random.normal(ke, (B, cfg['n_features'], 16), dtype=jnp.float32)
    cond_info = jax.random.normal(
        kc, (B, cfg['dim_val'], cfg['n_features'], cfg['max_seq_len']), dtype=jnp.float32)

    fwd = jax.jit(lambda e, c, p: csdi_decoder_forward(e, c, p, cfg))
    out = jax.block_until_ready(fwd(encoded, cond_info, params))

    assert out.shape == (B, cfg['n_features'], cfg['max_seq_len'])
    assert bool(jnp.all(jnp.isfinite(out)))
    print("KERNEL_OK")
</pallas_src>

<mosaic_0001>
module attributes {stable_mosaic.version = 11 : i64} {
  func.func @_matmul_bias_kernel(%arg0: memref<8x16xf32, #tpu.memory_space<vmem>>, %arg1: memref<16x32xf32, #tpu.memory_space<vmem>>, %arg2: memref<1x32xf32, #tpu.memory_space<vmem>>, %arg3: memref<8x32xf32, #tpu.memory_space<vmem>>) attributes {dimension_semantics = [], scalar_prefetch = 0 : i64, scratch_operands = 0 : i64, tpu.core_type = #tpu.core_type<tc>} {
    %c0 = arith.constant 0 : index
    %c0_0 = arith.constant 0 : index
    %0 = vector.load %arg0[%c0, %c0_0] : memref<8x16xf32, #tpu.memory_space<vmem>>, vector<8x16xf32>
    %c0_1 = arith.constant 0 : index
    %c0_2 = arith.constant 0 : index
    %1 = vector.load %arg1[%c0_1, %c0_2] : memref<16x32xf32, #tpu.memory_space<vmem>>, vector<16x32xf32>
    %cst = arith.constant dense<0.000000e+00> : vector<8x32xf32>
    %2 = tpu.matmul %0, %1, %cst {dimension_numbers = #tpu.dot_dimension_numbers<[1], [0], [0], [1], [0, 0, 1, 1], [], []>} : vector<8x16xf32>, vector<16x32xf32>, vector<8x32xf32> -> vector<8x32xf32>
    %c0_3 = arith.constant 0 : index
    %c0_4 = arith.constant 0 : index
    %3 = vector.load %arg2[%c0_3, %c0_4] : memref<1x32xf32, #tpu.memory_space<vmem>>, vector<1x32xf32>
    %4 = vector.broadcast %3 : vector<1x32xf32> to vector<8x32xf32>
    %5 = arith.addf %2, %4 : vector<8x32xf32>
    %c0_5 = arith.constant 0 : index
    %c0_6 = arith.constant 0 : index
    %6 = vector.load %arg3[%c0_5, %c0_6] : memref<8x32xf32, #tpu.memory_space<vmem>>, vector<8x32xf32>
    tpu.vector_store %arg3[%c0_5, %c0_6], %5 {strides = array<i32>} : memref<8x32xf32, #tpu.memory_space<vmem>>, vector<8x32xf32>,
    return
  }
}

module attributes {stable_mosaic.version = 11 : i64} {
  func.func @_decoder_stack_kernel(%arg0: i32, %arg1: i32, %arg2: memref<32x4xf32, #tpu.memory_space<vmem>>, %arg3: memref<32x16xf32, #tpu.memory_space<vmem>>, %arg4: memref<32x32xf32, #tpu.memory_space<vmem>>, %arg5: memref<32x32xf32, #tpu.memory_space<vmem>>, %arg6: memref<4x32xf32, #tpu.memory_space<vmem>>, %arg7: memref<1x32xf32, #tpu.memory_space<vmem>>, %arg8: memref<1x32x96xf32, #tpu.memory_space<vmem>>, %arg9: memref<1x32x32xf32, #tpu.memory_space<vmem>>, %arg10: memref<1x32x64xf32, #tpu.memory_space<vmem>>, %arg11: memref<1x64x32xf32, #tpu.memory_space<vmem>>, %arg12: memref<1x8x96xf32, #tpu.memory_space<vmem>>, %arg13: memref<1x32x96xf32, #tpu.memory_space<vmem>>, %arg14: memref<1x32x32xf32, #tpu.memory_space<vmem>>, %arg15: memref<1x32x64xf32, #tpu.memory_space<vmem>>, %arg16: memref<1x64x32xf32, #tpu.memory_space<vmem>>, %arg17: memref<1x8x96xf32, #tpu.memory_space<vmem>>, %arg18: memref<1x32x64xf32, #tpu.memory_space<vmem>>, %arg19: memref<1x16x64xf32, #tpu.memory_space<vmem>>, %arg20: memref<1x64x32xf32, #tpu.memory_space<vmem>>, %arg21: memref<1x3x64xf32, #tpu.memory_space<vmem>>, %arg22: memref<1x32xf32, #tpu.memory_space<vmem>>, %arg23: memref<1x1xf32, #tpu.memory_space<vmem>>, %arg24: memref<1x1x32xf32, #tpu.memory_space<vmem>>, %arg25: memref<32x32xf32, #tpu.memory_space<vmem>>) attributes {dimension_semantics = [#tpu.dimension_semantics<parallel>, #tpu.dimension_semantics<arbitrary>], iteration_bounds = array<i64: 2, 2>, scalar_prefetch = 0 : i64, scratch_operands = 1 : i64, tpu.core_type = #tpu.core_type<tc>, window_params = [{transform_indices = @transform_0, window_bounds = array<i64: 32, 4>}, {transform_indices = @transform_1, window_bounds = array<i64: 32, 16>}, {pipeline_mode = #tpu.pipeline_mode<synchronous>, transform_indices = @transform_2, window_bounds = array<i64: 32, 32>}, {pipeline_mode = #tpu.pipeline_mode<synchronous>, transform_indices = @transform_3, window_bounds = array<i64: 32, 32>}, {pipeline_mode = #tpu.pipeline_mode<synchronous>, transform_indices = @transform_4, window_bounds = array<i64: 4, 32>}, {pipeline_mode = #tpu.pipeline_mode<synchronous>, transform_indices = @transform_5, window_bounds = array<i64: 1, 32>}, {transform_indices = @transform_6, window_bounds = array<i64: 1, 32, 96>}, {transform_indices = @transform_7, window_bounds = array<i64: 1, 32, 32>}, {transform_indices = @transform_8, window_bounds = array<i64: 1, 32, 64>}, {transform_indices = @transform_9, window_bounds = array<i64: 1, 64, 32>}, {transform_indices = @transform_10, window_bounds = array<i64: 1, 8, 96>}, {transform_indices = @transform_11, window_bounds = array<i64: 1, 32, 96>}, {transform_indices = @transform_12, window_bounds = array<i64: 1, 32, 32>}, {transform_indices = @transform_13, window_bounds = array<i64: 1, 32, 64>}, {transform_indices = @transform_14, window_bounds = array<i64: 1, 64, 32>}, {transform_indices = @transform_15, window_bounds = array<i64: 1, 8, 96>}, {transform_indices = @transform_16, window_bounds = array<i64: 1, 32, 64>}, {transform_indices = @transform_17, window_bounds = array<i64: 1, 16, 64>}, {transform_indices = @transform_18, window_bounds = array<i64: 1, 64, 32>}, {transform_indices = @transform_19, window_bounds = array<i64: 1, 3, 64>}, {pipeline_mode = #tpu.pipeline_mode<synchronous>, transform_indices = @transform_20, window_bounds = array<i64: 1, 32>}, {pipeline_mode = #tpu.pipeline_mode<synchronous>, transform_indices = @transform_21, window_bounds = array<i64: 1, 1>}, {transform_indices = @transform_22, window_bounds = array<i64: 1, 1, 32>}]} {
    %c0_i32 = arith.constant 0 : i32
    %0 = arith.cmpi eq, %arg1, %c0_i32 : i32
    %1 = arith.extui %0 : i1 to i32
    %c0_i32_0 = arith.constant 0 : i32
    %2 = arith.cmpi ne, %1, %c0_i32_0 : i32
    scf.if %2 {
      %c0_161 = arith.constant 0 : index
      %c0_162 = arith.constant 0 : index
      %416 = vector.load %arg2[%c0_161, %c0_162] : memref<32x4xf32, #tpu.memory_space<vmem>>, vector<32x4xf32>
      %c0_163 = arith.constant 0 : index
      %c0_164 = arith.constant 0 : index
      %417 = vector.load %arg6[%c0_163, %c0_164] : memref<4x32xf32, #tpu.memory_space<vmem>>, vector<4x32xf32>
      %cst_165 = arith.constant dense<0.000000e+00> : vector<32x32xf32>
      %418 = tpu.matmul %416, %417, %cst_165 {dimension_numbers = #tpu.dot_dimension_numbers<[1], [0], [0], [1], [0, 0, 1, 1], [], []>} : vector<32x4xf32>, vector<4x32xf32>, vector<32x32xf32> -> vector<32x32xf32>
      %c0_166 = arith.constant 0 : index
      %c0_167 = arith.constant 0 : index
      %419 = vector.load %arg7[%c0_166, %c0_167] : memref<1x32xf32, #tpu.memory_space<vmem>>, vector<1x32xf32>
      %420 = vector.broadcast %419 : vector<1x32xf32> to vector<32x32xf32>
      %421 = arith.addf %418, %420 : vector<32x32xf32>
      %c0_168 = arith.constant 0 : index
      %c0_169 = arith.constant 0 : index
      %422 = vector.load %arg25[%c0_168, %c0_169] : memref<32x32xf32, #tpu.memory_space<vmem>>, vector<32x32xf32>
      tpu.vector_store %arg25[%c0_168, %c0_169], %421 {strides = array<i32>} : memref<32x32xf32, #tpu.memory_space<vmem>>, vector<32x32xf32>,
    } else {
    }
    %c0 = arith.constant 0 : index
    %c0_1 = arith.constant 0 : index
    %3 = vector.load %arg25[%c0, %c0_1] : memref<32x32xf32, #tpu.memory_space<vmem>>, vector<32x32xf32>
    %c0_2 = arith.constant 0 : index
    %c0_3 = arith.constant 0 : index
    %c0_4 = arith.constant 0 : index
    %4 = vector.load %arg21[%c0_2, %c0_3, %c0_4] : memref<1x3x64xf32, #tpu.memory_space<vmem>>, vector<1x3x64xf32>
    %5 = vector.shape_cast %4 : vector<1x3x64xf32> to vector<3x64xf32>
    %c0_5 = arith.constant 0 : index
    %c0_6 = arith.constant 0 : index
    %c0_7 = arith.constant 0 : index
    %6 = vector.load %arg8[%c0_5, %c0_6, %c0_7] : memref<1x32x96xf32, #tpu.memory_space<vmem>>, vector<1x32x96xf32>
    %7 = vector.shape_cast %6 : vector<1x32x96xf32> to vector<32x96xf32>
    %c0_8 = arith.constant 0 : index
    %c0_9 = arith.constant 0 : index
    %c0_10 = arith.constant 0 : index
    %8 = vector.load %arg9[%c0_8, %c0_9, %c0_10] : memref<1x32x32xf32, #tpu.memory_space<vmem>>, vector<1x32x32xf32>
    %9 = vector.shape_cast %8 : vector<1x32x32xf32> to vector<32x32xf32>
    %c0_11 = arith.constant 0 : index
    %c0_12 = arith.constant 0 : index
    %c0_13 = arith.constant 0 : index
    %10 = vector.load %arg10[%c0_11, %c0_12, %c0_13] : memref<1x32x64xf32, #tpu.memory_space<vmem>>, vector<1x32x64xf32>
    %11 = vector.shape_cast %10 : vector<1x32x64xf32> to vector<32x64xf32>
    %c0_14 = arith.constant 0 : index
    %c0_15 = arith.constant 0 : index
    %c0_16 = arith.constant 0 : index
    %12 = vector.load %arg11[%c0_14, %c0_15, %c0_16] : memref<1x64x32xf32, #tpu.memory_space<vmem>>, vector<1x64x32xf32>
    %13 = vector.shape_cast %12 : vector<1x64x32xf32> to vector<64x32xf32>
    %c0_17 = arith.constant 0 : index
    %c0_18 = arith.constant 0 : index
    %c0_19 = arith.constant 0 : index
    %14 = vector.load %arg12[%c0_17, %c0_18, %c0_19] : memref<1x8x96xf32, #tpu.memory_space<vmem>>, vector<1x8x96xf32>
    %15 = vector.shape_cast %14 : vector<1x8x96xf32> to vector<8x96xf32>
    %c0_20 = arith.constant 0 : index
    %c0_21 = arith.constant 0 : index
    %16 = vector.load %arg4[%c0_20, %c0_21] : memref<32x32xf32, #tpu.memory_space<vmem>>, vector<32x32xf32>
    %cst = arith.constant dense<0.000000e+00> : vector<32x96xf32>
    %17 = tpu.matmul %3, %7, %cst {dimension_numbers = #tpu.dot_dimension_numbers<[1], [0], [0], [1], [0, 0, 1, 1], [], []>} : vector<32x32xf32>, vector<32x96xf32>, vector<32x96xf32> -> vector<32x96xf32>
    %18 = vector.extract_strided_slice %15 {offsets = [0, 0], sizes = [1, 96], strides = [1, 1]} : vector<8x96xf32> to vector<1x96xf32>
    %19 = vector.broadcast %18 : vector<1x96xf32> to vector<32x96xf32>
    %20 = arith.addf %17, %19 : vector<32x96xf32>
    %cst_22 = arith.constant 0.000000e+00 : f32
    %21 = vector.broadcast %cst_22 : f32 to vector<32x32xf32>
    %22 = vector.extract_strided_slice %20 {offsets = [0, 0], sizes = [32, 8], strides = [1, 1]} : vector<32x96xf32> to vector<32x8xf32>
    %cst_23 = arith.constant 0.353553385 : f32
    %23 = vector.broadcast %cst_23 : f32 to vector<32x8xf32>
    %24 = arith.mulf %22, %23 : vector<32x8xf32>
    %25 = vector.extract_strided_slice %20 {offsets = [0, 32], sizes = [32, 8], strides = [1, 1]} : vector<32x96xf32> to vector<32x8xf32>
    %26 = vector.extract_strided_slice %20 {offsets = [0, 64], sizes = [32, 8], strides = [1, 1]} : vector<32x96xf32> to vector<32x8xf32>
    %cst_24 = arith.constant dense<0.000000e+00> : vector<32x32xf32>
    %27 = tpu.matmul %24, %25, %cst_24 {dimension_numbers = #tpu.dot_dimension_numbers<[1], [1], [0], [0], [0, 0, 1, 0], [], []>} : vector<32x8xf32>, vector<32x8xf32>, vector<32x32xf32> -> vector<32x32xf32>
    %28 = arith.addf %27, %16 : vector<32x32xf32>
    %cst_25 = arith.constant dense<0xFF800000> : vector<32xf32>
    %29 = vector.multi_reduction <maximumf>, %28, %cst_25 [1] : vector<32x32xf32> to vector<32xf32>
    %30 = vector.shape_cast %29 : vector<32xf32> to vector<32x1xf32>
    %31 = vector.broadcast %30 : vector<32x1xf32> to vector<32x32xf32>
    %32 = arith.subf %28, %31 : vector<32x32xf32>
    %33 = math.exp %32 : vector<32x32xf32>
    %cst_26 = arith.constant dense<0.000000e+00> : vector<32xf32>
    %34 = vector.multi_reduction <add>, %33, %cst_26 [1] : vector<32x32xf32> to vector<32xf32>
    %35 = vector.shape_cast %34 : vector<32xf32> to vector<32x1xf32>
    %36 = vector.broadcast %35 : vector<32x1xf32> to vector<32x32xf32>
    %37 = arith.divf %33, %36 : vector<32x32xf32>
    %cst_27 = arith.constant dense<0.000000e+00> : vector<32x8xf32>
    %38 = tpu.matmul %37, %26, %cst_27 {dimension_numbers = #tpu.dot_dimension_numbers<[1], [0], [0], [1], [0, 0, 1, 1], [], []>} : vector<32x32xf32>, vector<32x8xf32>, vector<32x8xf32> -> vector<32x8xf32>
    %39 = vector.extract_strided_slice %9 {offsets = [0, 0], sizes = [8, 32], strides = [1, 1]} : vector<32x32xf32> to vector<8x32xf32>
    %cst_28 = arith.constant dense<0.000000e+00> : vector<32x32xf32>
    %40 = tpu.matmul %38, %39, %cst_28 {dimension_numbers = #tpu.dot_dimension_numbers<[1], [0], [0], [1], [0, 0, 1, 1], [], []>} : vector<32x8xf32>, vector<8x32xf32>, vector<32x32xf32> -> vector<32x32xf32>
    %41 = arith.addf %21, %40 : vector<32x32xf32>
    %42 = vector.extract_strided_slice %20 {offsets = [0, 8], sizes = [32, 8], strides = [1, 1]} : vector<32x96xf32> to vector<32x8xf32>
    %cst_29 = arith.constant 0.353553385 : f32
    %43 = vector.broadcast %cst_29 : f32 to vector<32x8xf32>
    %44 = arith.mulf %42, %43 : vector<32x8xf32>
    %45 = vector.extract_strided_slice %20 {offsets = [0, 40], sizes = [32, 8], strides = [1, 1]} : vector<32x96xf32> to vector<32x8xf32>
    %46 = vector.extract_strided_slice %20 {offsets = [0, 72], sizes = [32, 8], strides = [1, 1]} : vector<32x96xf32> to vector<32x8xf32>
    %cst_30 = arith.constant dense<0.000000e+00> : vector<32x32xf32>
    %47 = tpu.matmul %44, %45, %cst_30 {dimension_numbers = #tpu.dot_dimension_numbers<[1], [1], [0], [0], [0, 0, 1, 0], [], []>} : vector<32x8xf32>, vector<32x8xf32>, vector<32x32xf32> -> vector<32x32xf32>
    %48 = arith.addf %47, %16 : vector<32x32xf32>
    %cst_31 = arith.constant dense<0xFF800000> : vector<32xf32>
    %49 = vector.multi_reduction <maximumf>, %48, %cst_31 [1] : vector<32x32xf32> to vector<32xf32>
    %50 = vector.shape_cast %49 : vector<32xf32> to vector<32x1xf32>
    %51 = vector.broadcast %50 : vector<32x1xf32> to vector<32x32xf32>
    %52 = arith.subf %48, %51 : vector<32x32xf32>
    %53 = math.exp %52 : vector<32x32xf32>
    %cst_32 = arith.constant dense<0.000000e+00> : vector<32xf32>
    %54 = vector.multi_reduction <add>, %53, %cst_32 [1] : vector<32x32xf32> to vector<32xf32>
    %55 = vector.shape_cast %54 : vector<32xf32> to vector<32x1xf32>
    %56 = vector.broadcast %55 : vector<32x1xf32> to vector<32x32xf32>
    %57 = arith.divf %53, %56 : vector<32x32xf32>
    %cst_33 = arith.constant dense<0.000000e+00> : vector<32x8xf32>
    %58 = tpu.matmul %57, %46, %cst_33 {dimension_numbers = #tpu.dot_dimension_numbers<[1], [0], [0], [1], [0, 0, 1, 1], [], []>} : vector<32x32xf32>, vector<32x8xf32>, vector<32x8xf32> -> vector<32x8xf32>
    %59 = vector.extract_strided_slice %9 {offsets = [8, 0], sizes = [8, 32], strides = [1, 1]} : vector<32x32xf32> to vector<8x32xf32>
    %cst_34 = arith.constant dense<0.000000e+00> : vector<32x32xf32>
    %60 = tpu.matmul %58, %59, %cst_34 {dimension_numbers = #tpu.dot_dimension_numbers<[1], [0], [0], [1], [0, 0, 1, 1], [], []>} : vector<32x8xf32>, vector<8x32xf32>, vector<32x32xf32> -> vector<32x32xf32>
    %61 = arith.addf %41, %60 : vector<32x32xf32>
    %62 = vector.extract_strided_slice %20 {offsets = [0, 16], sizes = [32, 8], strides = [1, 1]} : vector<32x96xf32> to vector<32x8xf32>
    %cst_35 = arith.constant 0.353553385 : f32
    %63 = vector.broadcast %cst_35 : f32 to vector<32x8xf32>
    %64 = arith.mulf %62, %63 : vector<32x8xf32>
    %65 = vector.extract_strided_slice %20 {offsets = [0, 48], sizes = [32, 8], strides = [1, 1]} : vector<32x96xf32> to vector<32x8xf32>
    %66 = vector.extract_strided_slice %20 {offsets = [0, 80], sizes = [32, 8], strides = [1, 1]} : vector<32x96xf32> to vector<32x8xf32>
    %cst_36 = arith.constant dense<0.000000e+00> : vector<32x32xf32>
    %67 = tpu.matmul %64, %65, %cst_36 {dimension_numbers = #tpu.dot_dimension_numbers<[1], [1], [0], [0], [0, 0, 1, 0], [], []>} : vector<32x8xf32>, vector<32x8xf32>, vector<32x32xf32> -> vector<32x32xf32>
    %68 = arith.addf %67, %16 : vector<32x32xf32>
    %cst_37 = arith.constant dense<0xFF800000> : vector<32xf32>
    %69 = vector.multi_reduction <maximumf>, %68, %cst_37 [1] : vector<32x32xf32> to vector<32xf32>
    %70 = vector.shape_cast %69 : vector<32xf32> to vector<32x1xf32>
    %71 = vector.broadcast %70 : vector<32x1xf32> to vector<32x32xf32>
    %72 = arith.subf %68, %71 : vector<32x32xf32>
    %73 = math.exp %72 : vector<32x32xf32>
    %cst_38 = arith.constant dense<0.000000e+00> : vector<32xf32>
    %74 = vector.multi_reduction <add>, %73, %cst_38 [1] : vector<32x32xf32> to vector<32xf32>
    %75 = vector.shape_cast %74 : vector<32xf32> to vector<32x1xf32>
    %76 = vector.broadcast %75 : vector<32x1xf32> to vector<32x32xf32>
    %77 = arith.divf %73, %76 : vector<32x32xf32>
    %cst_39 = arith.constant dense<0.000000e+00> : vector<32x8xf32>
    %78 = tpu.matmul %77, %66, %cst_39 {dimension_numbers = #tpu.dot_dimension_numbers<[1], [0], [0], [1], [0, 0, 1, 1], [], []>} : vector<32x32xf32>, vector<32x8xf32>, vector<32x8xf32> -> vector<32x8xf32>
    %79 = vector.extract_strided_slice %9 {offsets = [16, 0], sizes = [8, 32], strides = [1, 1]} : vector<32x32xf32> to vector<8x32xf32>
    %cst_40 = arith.constant dense<0.000000e+00> : vector<32x32xf32>
    %80 = tpu.matmul %78, %79, %cst_40 {dimension_numbers = #tpu.dot_dimension_numbers<[1], [0], [0], [1], [0, 0, 1, 1], [], []>} : vector<32x8xf32>, vector<8x32xf32>, vector<32x32xf32> -> vector<32x32xf32>
    %81 = arith.addf %61, %80 : vector<32x32xf32>
    %82 = vector.extract_strided_slice %20 {offsets = [0, 24], sizes = [32, 8], strides = [1, 1]} : vector<32x96xf32> to vector<32x8xf32>
    %cst_41 = arith.constant 0.353553385 : f32
    %83 = vector.broadcast %cst_41 : f32 to vector<32x8xf32>
    %84 = arith.mulf %82, %83 : vector<32x8xf32>
    %85 = vector.extract_strided_slice %20 {offsets = [0, 56], sizes = [32, 8], strides = [1, 1]} : vector<32x96xf32> to vector<32x8xf32>
    %86 = vector.extract_strided_slice %20 {offsets = [0, 88], sizes = [32, 8], strides = [1, 1]} : vector<32x96xf32> to vector<32x8xf32>
    %cst_42 = arith.constant dense<0.000000e+00> : vector<32x32xf32>
    %87 = tpu.matmul %84, %85, %cst_42 {dimension_numbers = #tpu.dot_dimension_numbers<[1], [1], [0], [0], [0, 0, 1, 0], [], []>} : vector<32x8xf32>, vector<32x8xf32>, vector<32x32xf32> -> vector<32x32xf32>
    %88 = arith.addf %87, %16 : vector<32x32xf32>
    %cst_43 = arith.constant dense<0xFF800000> : vector<32xf32>
    %89 = vector.multi_reduction <maximumf>, %88, %cst_43 [1] : vector<32x32xf32> to vector<32xf32>
    %90 = vector.shape_cast %89 : vector<32xf32> to vector<32x1xf32>
    %91 = vector.broadcast %90 : vector<32x1xf32> to vector<32x32xf32>
    %92 = arith.subf %88, %91 : vector<32x32xf32>
    %93 = math.exp %92 : vector<32x32xf32>
    %cst_44 = arith.constant dense<0.000000e+00> : vector<32xf32>
    %94 = vector.multi_reduction <add>, %93, %cst_44 [1] : vector<32x32xf32> to vector<32xf32>
    %95 = vector.shape_cast %94 : vector<32xf32> to vector<32x1xf32>
    %96 = vector.broadcast %95 : vector<32x1xf32> to vector<32x32xf32>
    %97 = arith.divf %93, %96 : vector<32x32xf32>
    %cst_45 = arith.constant dense<0.000000e+00> : vector<32x8xf32>
    %98 = tpu.matmul %97, %86, %cst_45 {dimension_numbers = #tpu.dot_dimension_numbers<[1], [0], [0], [1], [0, 0, 1, 1], [], []>} : vector<32x32xf32>, vector<32x8xf32>, vector<32x8xf32> -> vector<32x8xf32>
    %99 = vector.extract_strided_slice %9 {offsets = [24, 0], sizes = [8, 32], strides = [1, 1]} : vector<32x32xf32> to vector<8x32xf32>
    %cst_46 = arith.constant dense<0.000000e+00> : vector<32x32xf32>
    %100 = tpu.matmul %98, %99, %cst_46 {dimension_numbers = #tpu.dot_dimension_numbers<[1], [0], [0], [1], [0, 0, 1, 1], [], []>} : vector<32x8xf32>, vector<8x32xf32>, vector<32x32xf32> -> vector<32x32xf32>
    %101 = arith.addf %81, %100 : vector<32x32xf32>
    %102 = vector.extract_strided_slice %15 {offsets = [1, 0], sizes = [1, 32], strides = [1, 1]} : vector<8x96xf32> to vector<1x32xf32>
    %103 = vector.broadcast %102 : vector<1x32xf32> to vector<32x32xf32>
    %104 = arith.addf %101, %103 : vector<32x32xf32>
    %105 = arith.addf %3, %104 : vector<32x32xf32>
    %106 = vector.extract_strided_slice %15 {offsets = [4, 0], sizes = [1, 32], strides = [1, 1]} : vector<8x96xf32> to vector<1x32xf32>
    %107 = vector.extract_strided_slice %15 {offsets = [5, 0], sizes = [1, 32], strides = [1, 1]} : vector<8x96xf32> to vector<1x32xf32>
    %cst_47 = arith.constant dense<0.000000e+00> : vector<32xf32>
    %108 = vector.multi_reduction <add>, %105, %cst_47 [1] : vector<32x32xf32> to vector<32xf32>
    %109 = vector.shape_cast %108 : vector<32xf32> to vector<32x1xf32>
    %cst_48 = arith.constant 3.200000e+01 : f32
    %110 = vector.broadcast %cst_48 : f32 to vector<32x1xf32>
    %111 = arith.divf %109, %110 : vector<32x1xf32>
    %112 = vector.broadcast %111 : vector<32x1xf32> to vector<32x32xf32>
    %113 = arith.subf %105, %112 : vector<32x32xf32>
    %114 = arith.mulf %113, %113 : vector<32x32xf32>
    %cst_49 = arith.constant dense<0.000000e+00> : vector<32xf32>
    %115 = vector.multi_reduction <add>, %114, %cst_49 [1] : vector<32x32xf32> to vector<32xf32>
    %116 = vector.shape_cast %115 : vector<32xf32> to vector<32x1xf32>
    %cst_50 = arith.constant 3.200000e+01 : f32
    %117 = vector.broadcast %cst_50 : f32 to vector<32x1xf32>
    %118 = arith.divf %116, %117 : vector<32x1xf32>
    %cst_51 = arith.constant 9.99999974E-6 : f32
    %119 = vector.broadcast %cst_51 : f32 to vector<32x1xf32>
    %120 = arith.addf %118, %119 : vector<32x1xf32>
    %121 = math.rsqrt %120 : vector<32x1xf32>
    %122 = vector.broadcast %121 : vector<32x1xf32> to vector<32x32xf32>
    %123 = arith.mulf %113, %122 : vector<32x32xf32>
    %124 = vector.broadcast %106 : vector<1x32xf32> to vector<32x32xf32>
    %125 = arith.mulf %123, %124 : vector<32x32xf32>
    %126 = vector.broadcast %107 : vector<1x32xf32> to vector<32x32xf32>
    %127 = arith.addf %125, %126 : vector<32x32xf32>
    %cst_52 = arith.constant dense<0.000000e+00> : vector<32x64xf32>
    %128 = tpu.matmul %127, %11, %cst_52 {dimension_numbers = #tpu.dot_dimension_numbers<[1], [0], [0], [1], [0, 0, 1, 1], [], []>} : vector<32x32xf32>, vector<32x64xf32>, vector<32x64xf32> -> vector<32x64xf32>
    %129 = vector.extract_strided_slice %15 {offsets = [2, 0], sizes = [1, 64], strides = [1, 1]} : vector<8x96xf32> to vector<1x64xf32>
    %130 = vector.broadcast %129 : vector<1x64xf32> to vector<32x64xf32>
    %131 = arith.addf %128, %130 : vector<32x64xf32>
    %cst_53 = arith.constant 0.707106769 : f32
    %132 = vector.broadcast %cst_53 : f32 to vector<32x64xf32>
    %133 = arith.mulf %131, %132 : vector<32x64xf32>
    %134 = math.absf %133 : vector<32x64xf32>
    %cst_54 = arith.constant 0.327591091 : f32
    %135 = vector.broadcast %cst_54 : f32 to vector<32x64xf32>
    %136 = arith.mulf %135, %134 : vector<32x64xf32>
    %cst_55 = arith.constant 1.000000e+00 : f32
    %137 = vector.broadcast %cst_55 : f32 to vector<32x64xf32>
    %138 = arith.addf %137, %136 : vector<32x64xf32>
    %cst_56 = arith.constant 1.000000e+00 : f32
    %139 = vector.broadcast %cst_56 : f32 to vector<32x64xf32>
    %140 = arith.divf %139, %138 : vector<32x64xf32>
    %cst_57 = arith.constant 1.06140542 : f32
    %141 = vector.broadcast %cst_57 : f32 to vector<32x64xf32>
    %142 = arith.mulf %141, %140 : vector<32x64xf32>
    %cst_58 = arith.constant 1.45315206 : f32
    %143 = vector.broadcast %cst_58 : f32 to vector<32x64xf32>
    %144 = arith.subf %142, %143 : vector<32x64xf32>
    %145 = arith.mulf %144, %140 : vector<32x64xf32>
    %cst_59 = arith.constant 1.42141378 : f32
    %146 = vector.broadcast %cst_59 : f32 to vector<32x64xf32>
    %147 = arith.addf %145, %146 : vector<32x64xf32>
    %148 = arith.mulf %147, %140 : vector<32x64xf32>
    %cst_60 = arith.constant 0.284496725 : f32
    %149 = vector.broadcast %cst_60 : f32 to vector<32x64xf32>
    %150 = arith.subf %148, %149 : vector<32x64xf32>
    %151 = arith.mulf %150, %140 : vector<32x64xf32>
    %cst_61 = arith.constant 0.254829586 : f32
    %152 = vector.broadcast %cst_61 : f32 to vector<32x64xf32>
    %153 = arith.addf %151, %152 : vector<32x64xf32>
    %154 = arith.mulf %153, %140 : vector<32x64xf32>
    %cst_62 = arith.constant 0.000000e+00 : f32
    %155 = vector.broadcast %cst_62 : f32 to vector<32x64xf32>
    %156 = arith.subf %155, %134 : vector<32x64xf32>
    %157 = arith.mulf %156, %134 : vector<32x64xf32>
    %158 = math.exp %157 : vector<32x64xf32>
    %159 = arith.mulf %154, %158 : vector<32x64xf32>
    %cst_63 = arith.constant 1.000000e+00 : f32
    %160 = vector.broadcast %cst_63 : f32 to vector<32x64xf32>
    %161 = arith.subf %160, %159 : vector<32x64xf32>
    %cst_64 = arith.constant 0.000000e+00 : f32
    %162 = vector.broadcast %cst_64 : f32 to vector<32x64xf32>
    %163 = arith.cmpf oge, %133, %162 : vector<32x64xf32>
    %cst_65 = arith.constant 0.000000e+00 : f32
    %164 = vector.broadcast %cst_65 : f32 to vector<32x64xf32>
    %165 = arith.subf %164, %161 : vector<32x64xf32>
    %166 = arith.select %163, %161, %165 : vector<32x64xi1>, vector<32x64xf32>
    %cst_66 = arith.constant 5.000000e-01 : f32
    %167 = vector.broadcast %cst_66 : f32 to vector<32x64xf32>
    %168 = arith.mulf %167, %131 : vector<32x64xf32>
    %cst_67 = arith.constant 1.000000e+00 : f32
    %169 = vector.broadcast %cst_67 : f32 to vector<32x64xf32>
    %170 = arith.addf %169, %166 : vector<32x64xf32>
    %171 = arith.mulf %168, %170 : vector<32x64xf32>
    %cst_68 = arith.constant dense<0.000000e+00> : vector<32x32xf32>
    %172 = tpu.matmul %171, %13, %cst_68 {dimension_numbers = #tpu.dot_dimension_numbers<[1], [0], [0], [1], [0, 0, 1, 1], [], []>} : vector<32x64xf32>, vector<64x32xf32>, vector<32x32xf32> -> vector<32x32xf32>
    %173 = vector.extract_strided_slice %15 {offsets = [3, 0], sizes = [1, 32], strides = [1, 1]} : vector<8x96xf32> to vector<1x32xf32>
    %174 = vector.broadcast %173 : vector<1x32xf32> to vector<32x32xf32>
    %175 = arith.addf %172, %174 : vector<32x32xf32>
    %176 = arith.addf %127, %175 : vector<32x32xf32>
    %177 = vector.extract_strided_slice %15 {offsets = [6, 0], sizes = [1, 32], strides = [1, 1]} : vector<8x96xf32> to vector<1x32xf32>
    %178 = vector.extract_strided_slice %15 {offsets = [7, 0], sizes = [1, 32], strides = [1, 1]} : vector<8x96xf32> to vector<1x32xf32>
    %cst_69 = arith.constant dense<0.000000e+00> : vector<32xf32>
    %179 = vector.multi_reduction <add>, %176, %cst_69 [1] : vector<32x32xf32> to vector<32xf32>
    %180 = vector.shape_cast %179 : vector<32xf32> to vector<32x1xf32>
    %cst_70 = arith.constant 3.200000e+01 : f32
    %181 = vector.broadcast %cst_70 : f32 to vector<32x1xf32>
    %182 = arith.divf %180, %181 : vector<32x1xf32>
    %183 = vector.broadcast %182 : vector<32x1xf32> to vector<32x32xf32>
    %184 = arith.subf %176, %183 : vector<32x32xf32>
    %185 = arith.mulf %184, %184 : vector<32x32xf32>
    %cst_71 = arith.constant dense<0.000000e+00> : vector<32xf32>
    %186 = vector.multi_reduction <add>, %185, %cst_71 [1] : vector<32x32xf32> to vector<32xf32>
    %187 = vector.shape_cast %186 : vector<32xf32> to vector<32x1xf32>
    %cst_72 = arith.constant 3.200000e+01 : f32
    %188 = vector.broadcast %cst_72 : f32 to vector<32x1xf32>
    %189 = arith.divf %187, %188 : vector<32x1xf32>
    %cst_73 = arith.constant 9.99999974E-6 : f32
    %190 = vector.broadcast %cst_73 : f32 to vector<32x1xf32>
    %191 = arith.addf %189, %190 : vector<32x1xf32>
    %192 = math.rsqrt %191 : vector<32x1xf32>
    %193 = vector.broadcast %192 : vector<32x1xf32> to vector<32x32xf32>
    %194 = arith.mulf %184, %193 : vector<32x32xf32>
    %195 = vector.broadcast %177 : vector<1x32xf32> to vector<32x32xf32>
    %196 = arith.mulf %194, %195 : vector<32x32xf32>
    %197 = vector.broadcast %178 : vector<1x32xf32> to vector<32x32xf32>
    %198 = arith.addf %196, %197 : vector<32x32xf32>
    %c0_74 = arith.constant 0 : index
    %c0_75 = arith.constant 0 : index
    %c0_76 = arith.constant 0 : index
    %199 = vector.load %arg13[%c0_74, %c0_75, %c0_76] : memref<1x32x96xf32, #tpu.memory_space<vmem>>, vector<1x32x96xf32>
    %200 = vector.shape_cast %199 : vector<1x32x96xf32> to vector<32x96xf32>
    %c0_77 = arith.constant 0 : index
    %c0_78 = arith.constant 0 : index
    %c0_79 = arith.constant 0 : index
    %201 = vector.load %arg14[%c0_77, %c0_78, %c0_79] : memref<1x32x32xf32, #tpu.memory_space<vmem>>, vector<1x32x32xf32>
    %202 = vector.shape_cast %201 : vector<1x32x32xf32> to vector<32x32xf32>
    %c0_80 = arith.constant 0 : index
    %c0_81 = arith.constant 0 : index
    %c0_82 = arith.constant 0 : index
    %203 = vector.load %arg15[%c0_80, %c0_81, %c0_82] : memref<1x32x64xf32, #tpu.memory_space<vmem>>, vector<1x32x64xf32>
    %204 = vector.shape_cast %203 : vector<1x32x64xf32> to vector<32x64xf32>
    %c0_83 = arith.constant 0 : index
    %c0_84 = arith.constant 0 : index
    %c0_85 = arith.constant 0 : index
    %205 = vector.load %arg16[%c0_83, %c0_84, %c0_85] : memref<1x64x32xf32, #tpu.memory_space<vmem>>, vector<1x64x32xf32>
    %206 = vector.shape_cast %205 : vector<1x64x32xf32> to vector<64x32xf32>
    %c0_86 = arith.constant 0 : index
    %c0_87 = arith.constant 0 : index
    %c0_88 = arith.constant 0 : index
    %207 = vector.load %arg17[%c0_86, %c0_87, %c0_88] : memref<1x8x96xf32, #tpu.memory_space<vmem>>, vector<1x8x96xf32>
    %208 = vector.shape_cast %207 : vector<1x8x96xf32> to vector<8x96xf32>
    %c0_89 = arith.constant 0 : index
    %c0_90 = arith.constant 0 : index
    %209 = vector.load %arg5[%c0_89, %c0_90] : memref<32x32xf32, #tpu.memory_space<vmem>>, vector<32x32xf32>
    %cst_91 = arith.constant dense<0.000000e+00> : vector<32x96xf32>
    %210 = tpu.matmul %198, %200, %cst_91 {dimension_numbers = #tpu.dot_dimension_numbers<[1], [0], [0], [1], [0, 0, 1, 1], [], []>} : vector<32x32xf32>, vector<32x96xf32>, vector<32x96xf32> -> vector<32x96xf32>
    %211 = vector.extract_strided_slice %208 {offsets = [0, 0], sizes = [1, 96], strides = [1, 1]} : vector<8x96xf32> to vector<1x96xf32>
    %212 = vector.broadcast %211 : vector<1x96xf32> to vector<32x96xf32>
    %213 = arith.addf %210, %212 : vector<32x96xf32>
    %cst_92 = arith.constant 0.000000e+00 : f32
    %214 = vector.broadcast %cst_92 : f32 to vector<32x32xf32>
    %215 = vector.extract_strided_slice %213 {offsets = [0, 0], sizes = [32, 8], strides = [1, 1]} : vector<32x96xf32> to vector<32x8xf32>
    %cst_93 = arith.constant 0.353553385 : f32
    %216 = vector.broadcast %cst_93 : f32 to vector<32x8xf32>
    %217 = arith.mulf %215, %216 : vector<32x8xf32>
    %218 = vector.extract_strided_slice %213 {offsets = [0, 32], sizes = [32, 8], strides = [1, 1]} : vector<32x96xf32> to vector<32x8xf32>
    %219 = vector.extract_strided_slice %213 {offsets = [0, 64], sizes = [32, 8], strides = [1, 1]} : vector<32x96xf32> to vector<32x8xf32>
    %cst_94 = arith.constant dense<0.000000e+00> : vector<32x32xf32>
    %220 = tpu.matmul %217, %218, %cst_94 {dimension_numbers = #tpu.dot_dimension_numbers<[1], [1], [0], [0], [0, 0, 1, 0], [], []>} : vector<32x8xf32>, vector<32x8xf32>, vector<32x32xf32> -> vector<32x32xf32>
    %221 = arith.addf %220, %209 : vector<32x32xf32>
    %cst_95 = arith.constant dense<0xFF800000> : vector<32xf32>
    %222 = vector.multi_reduction <maximumf>, %221, %cst_95 [1] : vector<32x32xf32> to vector<32xf32>
    %223 = vector.shape_cast %222 : vector<32xf32> to vector<32x1xf32>
    %224 = vector.broadcast %223 : vector<32x1xf32> to vector<32x32xf32>
    %225 = arith.subf %221, %224 : vector<32x32xf32>
    %226 = math.exp %225 : vector<32x32xf32>
    %cst_96 = arith.constant dense<0.000000e+00> : vector<32xf32>
    %227 = vector.multi_reduction <add>, %226, %cst_96 [1] : vector<32x32xf32> to vector<32xf32>
    %228 = vector.shape_cast %227 : vector<32xf32> to vector<32x1xf32>
    %229 = vector.broadcast %228 : vector<32x1xf32> to vector<32x32xf32>
    %230 = arith.divf %226, %229 : vector<32x32xf32>
    %cst_97 = arith.constant dense<0.000000e+00> : vector<32x8xf32>
    %231 = tpu.matmul %230, %219, %cst_97 {dimension_numbers = #tpu.dot_dimension_numbers<[1], [0], [0], [1], [0, 0, 1, 1], [], []>} : vector<32x32xf32>, vector<32x8xf32>, vector<32x8xf32> -> vector<32x8xf32>
    %232 = vector.extract_strided_slice %202 {offsets = [0, 0], sizes = [8, 32], strides = [1, 1]} : vector<32x32xf32> to vector<8x32xf32>
    %cst_98 = arith.constant dense<0.000000e+00> : vector<32x32xf32>
    %233 = tpu.matmul %231, %232, %cst_98 {dimension_numbers = #tpu.dot_dimension_numbers<[1], [0], [0], [1], [0, 0, 1, 1], [], []>} : vector<32x8xf32>, vector<8x32xf32>, vector<32x32xf32> -> vector<32x32xf32>
    %234 = arith.addf %214, %233 : vector<32x32xf32>
    %235 = vector.extract_strided_slice %213 {offsets = [0, 8], sizes = [32, 8], strides = [1, 1]} : vector<32x96xf32> to vector<32x8xf32>
    %cst_99 = arith.constant 0.353553385 : f32
    %236 = vector.broadcast %cst_99 : f32 to vector<32x8xf32>
    %237 = arith.mulf %235, %236 : vector<32x8xf32>
    %238 = vector.extract_strided_slice %213 {offsets = [0, 40], sizes = [32, 8], strides = [1, 1]} : vector<32x96xf32> to vector<32x8xf32>
    %239 = vector.extract_strided_slice %213 {offsets = [0, 72], sizes = [32, 8], strides = [1, 1]} : vector<32x96xf32> to vector<32x8xf32>
    %cst_100 = arith.constant dense<0.000000e+00> : vector<32x32xf32>
    %240 = tpu.matmul %237, %238, %cst_100 {dimension_numbers = #tpu.dot_dimension_numbers<[1], [1], [0], [0], [0, 0, 1, 0], [], []>} : vector<32x8xf32>, vector<32x8xf32>, vector<32x32xf32> -> vector<32x32xf32>
    %241 = arith.addf %240, %209 : vector<32x32xf32>
    %cst_101 = arith.constant dense<0xFF800000> : vector<32xf32>
    %242 = vector.multi_reduction <maximumf>, %241, %cst_101 [1] : vector<32x32xf32> to vector<32xf32>
    %243 = vector.shape_cast %242 : vector<32xf32> to vector<32x1xf32>
    %244 = vector.broadcast %243 : vector<32x1xf32> to vector<32x32xf32>
    %245 = arith.subf %241, %244 : vector<32x32xf32>
    %246 = math.exp %245 : vector<32x32xf32>
    %cst_102 = arith.constant dense<0.000000e+00> : vector<32xf32>
    %247 = vector.multi_reduction <add>, %246, %cst_102 [1] : vector<32x32xf32> to vector<32xf32>
    %248 = vector.shape_cast %247 : vector<32xf32> to vector<32x1xf32>
    %249 = vector.broadcast %248 : vector<32x1xf32> to vector<32x32xf32>
    %250 = arith.divf %246, %249 : vector<32x32xf32>
    %cst_103 = arith.constant dense<0.000000e+00> : vector<32x8xf32>
    %251 = tpu.matmul %250, %239, %cst_103 {dimension_numbers = #tpu.dot_dimension_numbers<[1], [0], [0], [1], [0, 0, 1, 1], [], []>} : vector<32x32xf32>, vector<32x8xf32>, vector<32x8xf32> -> vector<32x8xf32>
    %252 = vector.extract_strided_slice %202 {offsets = [8, 0], sizes = [8, 32], strides = [1, 1]} : vector<32x32xf32> to vector<8x32xf32>
    %cst_104 = arith.constant dense<0.000000e+00> : vector<32x32xf32>
    %253 = tpu.matmul %251, %252, %cst_104 {dimension_numbers = #tpu.dot_dimension_numbers<[1], [0], [0], [1], [0, 0, 1, 1], [], []>} : vector<32x8xf32>, vector<8x32xf32>, vector<32x32xf32> -> vector<32x32xf32>
    %254 = arith.addf %234, %253 : vector<32x32xf32>
    %255 = vector.extract_strided_slice %213 {offsets = [0, 16], sizes = [32, 8], strides = [1, 1]} : vector<32x96xf32> to vector<32x8xf32>
    %cst_105 = arith.constant 0.353553385 : f32
    %256 = vector.broadcast %cst_105 : f32 to vector<32x8xf32>
    %257 = arith.mulf %255, %256 : vector<32x8xf32>
    %258 = vector.extract_strided_slice %213 {offsets = [0, 48], sizes = [32, 8], strides = [1, 1]} : vector<32x96xf32> to vector<32x8xf32>
    %259 = vector.extract_strided_slice %213 {offsets = [0, 80], sizes = [32, 8], strides = [1, 1]} : vector<32x96xf32> to vector<32x8xf32>
    %cst_106 = arith.constant dense<0.000000e+00> : vector<32x32xf32>
    %260 = tpu.matmul %257, %258, %cst_106 {dimension_numbers = #tpu.dot_dimension_numbers<[1], [1], [0], [0], [0, 0, 1, 0], [], []>} : vector<32x8xf32>, vector<32x8xf32>, vector<32x32xf32> -> vector<32x32xf32>
    %261 = arith.addf %260, %209 : vector<32x32xf32>
    %cst_107 = arith.constant dense<0xFF800000> : vector<32xf32>
    %262 = vector.multi_reduction <maximumf>, %261, %cst_107 [1] : vector<32x32xf32> to vector<32xf32>
    %263 = vector.shape_cast %262 : vector<32xf32> to vector<32x1xf32>
    %264 = vector.broadcast %263 : vector<32x1xf32> to vector<32x32xf32>
    %265 = arith.subf %261, %264 : vector<32x32xf32>
    %266 = math.exp %265 : vector<32x32xf32>
    %cst_108 = arith.constant dense<0.000000e+00> : vector<32xf32>
    %267 = vector.multi_reduction <add>, %266, %cst_108 [1] : vector<32x32xf32> to vector<32xf32>
    %268 = vector.shape_cast %267 : vector<32xf32> to vector<32x1xf32>
    %269 = vector.broadcast %268 : vector<32x1xf32> to vector<32x32xf32>
    %270 = arith.divf %266, %269 : vector<32x32xf32>
    %cst_109 = arith.constant dense<0.000000e+00> : vector<32x8xf32>
    %271 = tpu.matmul %270, %259, %cst_109 {dimension_numbers = #tpu.dot_dimension_numbers<[1], [0], [0], [1], [0, 0, 1, 1], [], []>} : vector<32x32xf32>, vector<32x8xf32>, vector<32x8xf32> -> vector<32x8xf32>
    %272 = vector.extract_strided_slice %202 {offsets = [16, 0], sizes = [8, 32], strides = [1, 1]} : vector<32x32xf32> to vector<8x32xf32>
    %cst_110 = arith.constant dense<0.000000e+00> : vector<32x32xf32>
    %273 = tpu.matmul %271, %272, %cst_110 {dimension_numbers = #tpu.dot_dimension_numbers<[1], [0], [0], [1], [0, 0, 1, 1], [], []>} : vector<32x8xf32>, vector<8x32xf32>, vector<32x32xf32> -> vector<32x32xf32>
    %274 = arith.addf %254, %273 : vector<32x32xf32>
    %275 = vector.extract_strided_slice %213 {offsets = [0, 24], sizes = [32, 8], strides = [1, 1]} : vector<32x96xf32> to vector<32x8xf32>
    %cst_111 = arith.constant 0.353553385 : f32
    %276 = vector.broadcast %cst_111 : f32 to vector<32x8xf32>
    %277 = arith.mulf %275, %276 : vector<32x8xf32>
    %278 = vector.extract_strided_slice %213 {offsets = [0, 56], sizes = [32, 8], strides = [1, 1]} : vector<32x96xf32> to vector<32x8xf32>
    %279 = vector.extract_strided_slice %213 {offsets = [0, 88], sizes = [32, 8], strides = [1, 1]} : vector<32x96xf32> to vector<32x8xf32>
    %cst_112 = arith.constant dense<0.000000e+00> : vector<32x32xf32>
    %280 = tpu.matmul %277, %278, %cst_112 {dimension_numbers = #tpu.dot_dimension_numbers<[1], [1], [0], [0], [0, 0, 1, 0], [], []>} : vector<32x8xf32>, vector<32x8xf32>, vector<32x32xf32> -> vector<32x32xf32>
    %281 = arith.addf %280, %209 : vector<32x32xf32>
    %cst_113 = arith.constant dense<0xFF800000> : vector<32xf32>
    %282 = vector.multi_reduction <maximumf>, %281, %cst_113 [1] : vector<32x32xf32> to vector<32xf32>
    %283 = vector.shape_cast %282 : vector<32xf32> to vector<32x1xf32>
    %284 = vector.broadcast %283 : vector<32x1xf32> to vector<32x32xf32>
    %285 = arith.subf %281, %284 : vector<32x32xf32>
    %286 = math.exp %285 : vector<32x32xf32>
    %cst_114 = arith.constant dense<0.000000e+00> : vector<32xf32>
    %287 = vector.multi_reduction <add>, %286, %cst_114 [1] : vector<32x32xf32> to vector<32xf32>
    %288 = vector.shape_cast %287 : vector<32xf32> to vector<32x1xf32>
    %289 = vector.broadcast %288 : vector<32x1xf32> to vector<32x32xf32>
    %290 = arith.divf %286, %289 : vector<32x32xf32>
    %cst_115 = arith.constant dense<0.000000e+00> : vector<32x8xf32>
    %291 = tpu.matmul %290, %279, %cst_115 {dimension_numbers = #tpu.dot_dimension_numbers<[1], [0], [0], [1], [0, 0, 1, 1], [], []>} : vector<32x32xf32>, vector<32x8xf32>, vector<32x8xf32> -> vector<32x8xf32>
    %292 = vector.extract_strided_slice %202 {offsets = [24, 0], sizes = [8, 32], strides = [1, 1]} : vector<32x32xf32> to vector<8x32xf32>
    %cst_116 = arith.constant dense<0.000000e+00> : vector<32x32xf32>
    %293 = tpu.matmul %291, %292, %cst_116 {dimension_numbers = #tpu.dot_dimension_numbers<[1], [0], [0], [1], [0, 0, 1, 1], [], []>} : vector<32x8xf32>, vector<8x32xf32>, vector<32x32xf32> -> vector<32x32xf32>
    %294 = arith.addf %274, %293 : vector<32x32xf32>
    %295 = vector.extract_strided_slice %208 {offsets = [1, 0], sizes = [1, 32], strides = [1, 1]} : vector<8x96xf32> to vector<1x32xf32>
    %296 = vector.broadcast %295 : vector<1x32xf32> to vector<32x32xf32>
    %297 = arith.addf %294, %296 : vector<32x32xf32>
    %298 = arith.addf %198, %297 : vector<32x32xf32>
    %299 = vector.extract_strided_slice %208 {offsets = [4, 0], sizes = [1, 32], strides = [1, 1]} : vector<8x96xf32> to vector<1x32xf32>
    %300 = vector.extract_strided_slice %208 {offsets = [5, 0], sizes = [1, 32], strides = [1, 1]} : vector<8x96xf32> to vector<1x32xf32>
    %cst_117 = arith.constant dense<0.000000e+00> : vector<32xf32>
    %301 = vector.multi_reduction <add>, %298, %cst_117 [1] : vector<32x32xf32> to vector<32xf32>
    %302 = vector.shape_cast %301 : vector<32xf32> to vector<32x1xf32>
    %cst_118 = arith.constant 3.200000e+01 : f32
    %303 = vector.broadcast %cst_118 : f32 to vector<32x1xf32>
    %304 = arith.divf %302, %303 : vector<32x1xf32>
    %305 = vector.broadcast %304 : vector<32x1xf32> to vector<32x32xf32>
    %306 = arith.subf %298, %305 : vector<32x32xf32>
    %307 = arith.mulf %306, %306 : vector<32x32xf32>
    %cst_119 = arith.constant dense<0.000000e+00> : vector<32xf32>
    %308 = vector.multi_reduction <add>, %307, %cst_119 [1] : vector<32x32xf32> to vector<32xf32>
    %309 = vector.shape_cast %308 : vector<32xf32> to vector<32x1xf32>
    %cst_120 = arith.constant 3.200000e+01 : f32
    %310 = vector.broadcast %cst_120 : f32 to vector<32x1xf32>
    %311 = arith.divf %309, %310 : vector<32x1xf32>
    %cst_121 = arith.constant 9.99999974E-6 : f32
    %312 = vector.broadcast %cst_121 : f32 to vector<32x1xf32>
    %313 = arith.addf %311, %312 : vector<32x1xf32>
    %314 = math.rsqrt %313 : vector<32x1xf32>
    %315 = vector.broadcast %314 : vector<32x1xf32> to vector<32x32xf32>
    %316 = arith.mulf %306, %315 : vector<32x32xf32>
    %317 = vector.broadcast %299 : vector<1x32xf32> to vector<32x32xf32>
    %318 = arith.mulf %316, %317 : vector<32x32xf32>
    %319 = vector.broadcast %300 : vector<1x32xf32> to vector<32x32xf32>
    %320 = arith.addf %318, %319 : vector<32x32xf32>
    %cst_122 = arith.constant dense<0.000000e+00> : vector<32x64xf32>
    %321 = tpu.matmul %320, %204, %cst_122 {dimension_numbers = #tpu.dot_dimension_numbers<[1], [0], [0], [1], [0, 0, 1, 1], [], []>} : vector<32x32xf32>, vector<32x64xf32>, vector<32x64xf32> -> vector<32x64xf32>
    %322 = vector.extract_strided_slice %208 {offsets = [2, 0], sizes = [1, 64], strides = [1, 1]} : vector<8x96xf32> to vector<1x64xf32>
    %323 = vector.broadcast %322 : vector<1x64xf32> to vector<32x64xf32>
    %324 = arith.addf %321, %323 : vector<32x64xf32>
    %cst_123 = arith.constant 0.707106769 : f32
    %325 = vector.broadcast %cst_123 : f32 to vector<32x64xf32>
    %326 = arith.mulf %324, %325 : vector<32x64xf32>
    %327 = math.absf %326 : vector<32x64xf32>
    %cst_124 = arith.constant 0.327591091 : f32
    %328 = vector.broadcast %cst_124 : f32 to vector<32x64xf32>
    %329 = arith.mulf %328, %327 : vector<32x64xf32>
    %cst_125 = arith.constant 1.000000e+00 : f32
    %330 = vector.broadcast %cst_125 : f32 to vector<32x64xf32>
    %331 = arith.addf %330, %329 : vector<32x64xf32>
    %cst_126 = arith.constant 1.000000e+00 : f32
    %332 = vector.broadcast %cst_126 : f32 to vector<32x64xf32>
    %333 = arith.divf %332, %331 : vector<32x64xf32>
    %cst_127 = arith.constant 1.06140542 : f32
    %334 = vector.broadcast %cst_127 : f32 to vector<32x64xf32>
    %335 = arith.mulf %334, %333 : vector<32x64xf32>
    %cst_128 = arith.constant 1.45315206 : f32
    %336 = vector.broadcast %cst_128 : f32 to vector<32x64xf32>
    %337 = arith.subf %335, %336 : vector<32x64xf32>
    %338 = arith.mulf %337, %333 : vector<32x64xf32>
    %cst_129 = arith.constant 1.42141378 : f32
    %339 = vector.broadcast %cst_129 : f32 to vector<32x64xf32>
    %340 = arith.addf %338, %339 : vector<32x64xf32>
    %341 = arith.mulf %340, %333 : vector<32x64xf32>
    %cst_130 = arith.constant 0.284496725 : f32
    %342 = vector.broadcast %cst_130 : f32 to vector<32x64xf32>
    %343 = arith.subf %341, %342 : vector<32x64xf32>
    %344 = arith.mulf %343, %333 : vector<32x64xf32>
    %cst_131 = arith.constant 0.254829586 : f32
    %345 = vector.broadcast %cst_131 : f32 to vector<32x64xf32>
    %346 = arith.addf %344, %345 : vector<32x64xf32>
    %347 = arith.mulf %346, %333 : vector<32x64xf32>
    %cst_132 = arith.constant 0.000000e+00 : f32
    %348 = vector.broadcast %cst_132 : f32 to vector<32x64xf32>
    %349 = arith.subf %348, %327 : vector<32x64xf32>
    %350 = arith.mulf %349, %327 : vector<32x64xf32>
    %351 = math.exp %350 : vector<32x64xf32>
    %352 = arith.mulf %347, %351 : vector<32x64xf32>
    %cst_133 = arith.constant 1.000000e+00 : f32
    %353 = vector.broadcast %cst_133 : f32 to vector<32x64xf32>
    %354 = arith.subf %353, %352 : vector<32x64xf32>
    %cst_134 = arith.constant 0.000000e+00 : f32
    %355 = vector.broadcast %cst_134 : f32 to vector<32x64xf32>
    %356 = arith.cmpf oge, %326, %355 : vector<32x64xf32>
    %cst_135 = arith.constant 0.000000e+00 : f32
    %357 = vector.broadcast %cst_135 : f32 to vector<32x64xf32>
    %358 = arith.subf %357, %354 : vector<32x64xf32>
    %359 = arith.select %356, %354, %358 : vector<32x64xi1>, vector<32x64xf32>
    %cst_136 = arith.constant 5.000000e-01 : f32
    %360 = vector.broadcast %cst_136 : f32 to vector<32x64xf32>
    %361 = arith.mulf %360, %324 : vector<32x64xf32>
    %cst_137 = arith.constant 1.000000e+00 : f32
    %362 = vector.broadcast %cst_137 : f32 to vector<32x64xf32>
    %363 = arith.addf %362, %359 : vector<32x64xf32>
    %364 = arith.mulf %361, %363 : vector<32x64xf32>
    %cst_138 = arith.constant dense<0.000000e+00> : vector<32x32xf32>
    %365 = tpu.matmul %364, %206, %cst_138 {dimension_numbers = #tpu.dot_dimension_numbers<[1], [0], [0], [1], [0, 0, 1, 1], [], []>} : vector<32x64xf32>, vector<64x32xf32>, vector<32x32xf32> -> vector<32x32xf32>
    %366 = vector.extract_strided_slice %208 {offsets = [3, 0], sizes = [1, 32], strides = [1, 1]} : vector<8x96xf32> to vector<1x32xf32>
    %367 = vector.broadcast %366 : vector<1x32xf32> to vector<32x32xf32>
    %368 = arith.addf %365, %367 : vector<32x32xf32>
    %369 = arith.addf %320, %368 : vector<32x32xf32>
    %370 = vector.extract_strided_slice %208 {offsets = [6, 0], sizes = [1, 32], strides = [1, 1]} : vector<8x96xf32> to vector<1x32xf32>
    %371 = vector.extract_strided_slice %208 {offsets = [7, 0], sizes = [1, 32], strides = [1, 1]} : vector<8x96xf32> to vector<1x32xf32>
    %cst_139 = arith.constant dense<0.000000e+00> : vector<32xf32>
    %372 = vector.multi_reduction <add>, %369, %cst_139 [1] : vector<32x32xf32> to vector<32xf32>
    %373 = vector.shape_cast %372 : vector<32xf32> to vector<32x1xf32>
    %cst_140 = arith.constant 3.200000e+01 : f32
    %374 = vector.broadcast %cst_140 : f32 to vector<32x1xf32>
    %375 = arith.divf %373, %374 : vector<32x1xf32>
    %376 = vector.broadcast %375 : vector<32x1xf32> to vector<32x32xf32>
    %377 = arith.subf %369, %376 : vector<32x32xf32>
    %378 = arith.mulf %377, %377 : vector<32x32xf32>
    %cst_141 = arith.constant dense<0.000000e+00> : vector<32xf32>
    %379 = vector.multi_reduction <add>, %378, %cst_141 [1] : vector<32x32xf32> to vector<32xf32>
    %380 = vector.shape_cast %379 : vector<32xf32> to vector<32x1xf32>
    %cst_142 = arith.constant 3.200000e+01 : f32
    %381 = vector.broadcast %cst_142 : f32 to vector<32x1xf32>
    %382 = arith.divf %380, %381 : vector<32x1xf32>
    %cst_143 = arith.constant 9.99999974E-6 : f32
    %383 = vector.broadcast %cst_143 : f32 to vector<32x1xf32>
    %384 = arith.addf %382, %383 : vector<32x1xf32>
    %385 = math.rsqrt %384 : vector<32x1xf32>
    %386 = vector.broadcast %385 : vector<32x1xf32> to vector<32x32xf32>
    %387 = arith.mulf %377, %386 : vector<32x32xf32>
    %388 = vector.broadcast %370 : vector<1x32xf32> to vector<32x32xf32>
    %389 = arith.mulf %387, %388 : vector<32x32xf32>
    %390 = vector.broadcast %371 : vector<1x32xf32> to vector<32x32xf32>
    %391 = arith.addf %389, %390 : vector<32x32xf32>
    %c0_144 = arith.constant 0 : index
    %c0_145 = arith.constant 0 : index
    %c0_146 = arith.constant 0 : index
    %392 = vector.load %arg18[%c0_144, %c0_145, %c0_146] : memref<1x32x64xf32, #tpu.memory_space<vmem>>, vector<1x32x64xf32>
    %393 = vector.shape_cast %392 : vector<1x32x64xf32> to vector<32x64xf32>
    %cst_147 = arith.constant dense<0.000000e+00> : vector<32x64xf32>
    %394 = tpu.matmul %391, %393, %cst_147 {dimension_numbers = #tpu.dot_dimension_numbers<[1], [0], [0], [1], [0, 0, 1, 1], [], []>} : vector<32x32xf32>, vector<32x64xf32>, vector<32x64xf32> -> vector<32x64xf32>
    %395 = vector.extract_strided_slice %5 {offsets = [0, 0], sizes = [1, 64], strides = [1, 1]} : vector<3x64xf32> to vector<1x64xf32>
    %396 = vector.broadcast %395 : vector<1x64xf32> to vector<32x64xf32>
    %397 = arith.addf %394, %396 : vector<32x64xf32>
    %c0_148 = arith.constant 0 : index
    %c0_149 = arith.constant 0 : index
    %398 = vector.load %arg3[%c0_148, %c0_149] : memref<32x16xf32, #tpu.memory_space<vmem>>, vector<32x16xf32>
    %c0_150 = arith.constant 0 : index
    %c0_151 = arith.constant 0 : index
    %c0_152 = arith.constant 0 : index
    %399 = vector.load %arg19[%c0_150, %c0_151, %c0_152] : memref<1x16x64xf32, #tpu.memory_space<vmem>>, vector<1x16x64xf32>
    %400 = vector.shape_cast %399 : vector<1x16x64xf32> to vector<16x64xf32>
    %cst_153 = arith.constant dense<0.000000e+00> : vector<32x64xf32>
    %401 = tpu.matmul %398, %400, %cst_153 {dimension_numbers = #tpu.dot_dimension_numbers<[1], [0], [0], [1], [0, 0, 1, 1], [], []>} : vector<32x16xf32>, vector<16x64xf32>, vector<32x64xf32> -> vector<32x64xf32>
    %402 = arith.addf %397, %401 : vector<32x64xf32>
    %403 = vector.extract_strided_slice %5 {offsets = [1, 0], sizes = [1, 64], strides = [1, 1]} : vector<3x64xf32> to vector<1x64xf32>
    %404 = vector.broadcast %403 : vector<1x64xf32> to vector<32x64xf32>
    %405 = arith.addf %402, %404 : vector<32x64xf32>
    %c0_154 = arith.constant 0 : index
    %c0_155 = arith.constant 0 : index
    %c0_156 = arith.constant 0 : index
    %406 = vector.load %arg20[%c0_154, %c0_155, %c0_156] : memref<1x64x32xf32, #tpu.memory_space<vmem>>, vector<1x64x32xf32>
    %407 = vector.shape_cast %406 : vector<1x64x32xf32> to vector<64x32xf32>
    %cst_157 = arith.constant dense<0.000000e+00> : vector<32x32xf32>
    %408 = tpu.matmul %405, %407, %cst_157 {dimension_numbers = #tpu.dot_dimension_numbers<[1], [0], [0], [1], [0, 0, 1, 1], [], []>} : vector<32x64xf32>, vector<64x32xf32>, vector<32x32xf32> -> vector<32x32xf32>
    %409 = vector.extract_strided_slice %5 {offsets = [2, 0], sizes = [1, 32], strides = [1, 1]} : vector<3x64xf32> to vector<1x32xf32>
    %410 = vector.broadcast %409 : vector<1x32xf32> to vector<32x32xf32>
    %411 = arith.addf %408, %410 : vector<32x32xf32>
    %c0_158 = arith.constant 0 : index
    %c0_159 = arith.constant 0 : index
    %412 = vector.load %arg25[%c0_158, %c0_159] : memref<32x32xf32, #tpu.memory_space<vmem>>, vector<32x32xf32>
    tpu.vector_store %arg25[%c0_158, %c0_159], %411 {strides = array<i32>} : memref<32x32xf32, #tpu.memory_space<vmem>>, vector<32x32xf32>,
    %c1_i32 = arith.constant 1 : i32
    %413 = arith.cmpi eq, %arg1, %c1_i32 : i32
    %414 = arith.extui %413 : i1 to i32
    %c0_i32_160 = arith.constant 0 : i32
    %415 = arith.cmpi ne, %414, %c0_i32_160 : i32
    scf.if %415 {
      %cst_161 = arith.constant 0.000000e+00 : f32
      %416 = vector.broadcast %cst_161 : f32 to vector<32x32xf32>
      %417 = arith.maximumf %411, %416 : vector<32x32xf32>
      %c0_162 = arith.constant 0 : index
      %c0_163 = arith.constant 0 : index
      %418 = vector.load %arg22[%c0_162, %c0_163] : memref<1x32xf32, #tpu.memory_space<vmem>>, vector<1x32xf32>
      %cst_164 = arith.constant dense<0.000000e+00> : vector<1x32xf32>
      %419 = tpu.matmul %418, %417, %cst_164 {dimension_numbers = #tpu.dot_dimension_numbers<[1], [1], [0], [0], [0, 0, 1, 0], [], []>} : vector<1x32xf32>, vector<32x32xf32>, vector<1x32xf32> -> vector<1x32xf32>
      %c0_165 = arith.constant 0 : index
      %c0_166 = arith.constant 0 : index
      %420 = vector.load %arg23[%c0_165, %c0_166] : memref<1x1xf32, #tpu.memory_space<vmem>>, vector<1x1xf32>
      %421 = vector.broadcast %420 : vector<1x1xf32> to vector<1x32xf32>
      %422 = arith.addf %419, %421 : vector<1x32xf32>
      %423 = vector.shape_cast %422 : vector<1x32xf32> to vector<1x1x32xf32>
      %c0_167 = arith.constant 0 : index
      %c0_168 = arith.constant 0 : index
      %c0_169 = arith.constant 0 : index
      %424 = vector.load %arg24[%c0_167, %c0_168, %c0_169] : memref<1x1x32xf32, #tpu.memory_space<vmem>>, vector<1x1x32xf32>
      tpu.vector_store %arg24[%c0_167, %c0_168, %c0_169], %423 {strides = array<i32>} : memref<1x1x32xf32, #tpu.memory_space<vmem>>, vector<1x1x32xf32>,
    } else {
    }
    return
  }
  func.func @transform_0(%arg0: i32, %arg1: i32) -> (i32, i32) {
    %c0_i32 = arith.constant 0 : i32
    %c0_i32_0 = arith.constant 0 : i32
    return %arg0, %c0_i32 : i32, i32
  }
  func.func @transform_1(%arg0: i32, %arg1: i32) -> (i32, i32) {
    %c0_i32 = arith.constant 0 : i32
    %c0_i32_0 = arith.constant 0 : i32
    return %arg0, %c0_i32 : i32, i32
  }
  func.func @transform_2(%arg0: i32, %arg1: i32) -> (i32, i32) {
    %c0_i32 = arith.constant 0 : i32
    %c0_i32_0 = arith.constant 0 : i32
    %c0_i32_1 = arith.constant 0 : i32
    return %c0_i32, %c0_i32_0 : i32, i32
  }
  func.func @transform_3(%arg0: i32, %arg1: i32) -> (i32, i32) {
    %c0_i32 = arith.constant 0 : i32
    %c0_i32_0 = arith.constant 0 : i32
    %c0_i32_1 = arith.constant 0 : i32
    return %c0_i32, %c0_i32_0 : i32, i32
  }
  func.func @transform_4(%arg0: i32, %arg1: i32) -> (i32, i32) {
    %c0_i32 = arith.constant 0 : i32
    %c0_i32_0 = arith.constant 0 : i32
    %c0_i32_1 = arith.constant 0 : i32
    return %c0_i32, %c0_i32_0 : i32, i32
  }
  func.func @transform_5(%arg0: i32, %arg1: i32) -> (i32, i32) {
    %c0_i32 = arith.constant 0 : i32
    %c0_i32_0 = arith.constant 0 : i32
    %c0_i32_1 = arith.constant 0 : i32
    return %c0_i32, %c0_i32_0 : i32, i32
  }
  func.func @transform_6(%arg0: i32, %arg1: i32) -> (i32, i32, i32) {
    %c0_i32 = arith.constant 0 : i32
    %c0_i32_0 = arith.constant 0 : i32
    %c0_i32_1 = arith.constant 0 : i32
    return %arg1, %c0_i32, %c0_i32_0 : i32, i32, i32
  }
  func.func @transform_7(%arg0: i32, %arg1: i32) -> (i32, i32, i32) {
    %c0_i32 = arith.constant 0 : i32
    %c0_i32_0 = arith.constant 0 : i32
    %c0_i32_1 = arith.constant 0 : i32
    return %arg1, %c0_i32, %c0_i32_0 : i32, i32, i32
  }
  func.func @transform_8(%arg0: i32, %arg1: i32) -> (i32, i32, i32) {
    %c0_i32 = arith.constant 0 : i32
    %c0_i32_0 = arith.constant 0 : i32
    %c0_i32_1 = arith.constant 0 : i32
    return %arg1, %c0_i32, %c0_i32_0 : i32, i32, i32
  }
  func.func @transform_9(%arg0: i32, %arg1: i32) -> (i32, i32, i32) {
    %c0_i32 = arith.constant 0 : i32
    %c0_i32_0 = arith.constant 0 : i32
    %c0_i32_1 = arith.constant 0 : i32
    return %arg1, %c0_i32, %c0_i32_0 : i32, i32, i32
  }
  func.func @transform_10(%arg0: i32, %arg1: i32) -> (i32, i32, i32) {
    %c0_i32 = arith.constant 0 : i32
    %c0_i32_0 = arith.constant 0 : i32
    %c0_i32_1 = arith.constant 0 : i32
    return %arg1, %c0_i32, %c0_i32_0 : i32, i32, i32
  }
  func.func @transform_11(%arg0: i32, %arg1: i32) -> (i32, i32, i32) {
    %c0_i32 = arith.constant 0 : i32
    %c0_i32_0 = arith.constant 0 : i32
    %c0_i32_1 = arith.constant 0 : i32
    return %arg1, %c0_i32, %c0_i32_0 : i32, i32, i32
  }
  func.func @transform_12(%arg0: i32, %arg1: i32) -> (i32, i32, i32) {
    %c0_i32 = arith.constant 0 : i32
    %c0_i32_0 = arith.constant 0 : i32
    %c0_i32_1 = arith.constant 0 : i32
    return %arg1, %c0_i32, %c0_i32_0 : i32, i32, i32
  }
  func.func @transform_13(%arg0: i32, %arg1: i32) -> (i32, i32, i32) {
    %c0_i32 = arith.constant 0 : i32
    %c0_i32_0 = arith.constant 0 : i32
    %c0_i32_1 = arith.constant 0 : i32
    return %arg1, %c0_i32, %c0_i32_0 : i32, i32, i32
  }
  func.func @transform_14(%arg0: i32, %arg1: i32) -> (i32, i32, i32) {
    %c0_i32 = arith.constant 0 : i32
    %c0_i32_0 = arith.constant 0 : i32
    %c0_i32_1 = arith.constant 0 : i32
    return %arg1, %c0_i32, %c0_i32_0 : i32, i32, i32
  }
  func.func @transform_15(%arg0: i32, %arg1: i32) -> (i32, i32, i32) {
    %c0_i32 = arith.constant 0 : i32
    %c0_i32_0 = arith.constant 0 : i32
    %c0_i32_1 = arith.constant 0 : i32
    return %arg1, %c0_i32, %c0_i32_0 : i32, i32, i32
  }
  func.func @transform_16(%arg0: i32, %arg1: i32) -> (i32, i32, i32) {
    %c0_i32 = arith.constant 0 : i32
    %c0_i32_0 = arith.constant 0 : i32
    %c0_i32_1 = arith.constant 0 : i32
    return %arg1, %c0_i32, %c0_i32_0 : i32, i32, i32
  }
  func.func @transform_17(%arg0: i32, %arg1: i32) -> (i32, i32, i32) {
    %c0_i32 = arith.constant 0 : i32
    %c0_i32_0 = arith.constant 0 : i32
    %c0_i32_1 = arith.constant 0 : i32
    return %arg1, %c0_i32, %c0_i32_0 : i32, i32, i32
  }
  func.func @transform_18(%arg0: i32, %arg1: i32) -> (i32, i32, i32) {
    %c0_i32 = arith.constant 0 : i32
    %c0_i32_0 = arith.constant 0 : i32
    %c0_i32_1 = arith.constant 0 : i32
    return %arg1, %c0_i32, %c0_i32_0 : i32, i32, i32
  }
  func.func @transform_19(%arg0: i32, %arg1: i32) -> (i32, i32, i32) {
    %c0_i32 = arith.constant 0 : i32
    %c0_i32_0 = arith.constant 0 : i32
    %c0_i32_1 = arith.constant 0 : i32
    return %arg1, %c0_i32, %c0_i32_0 : i32, i32, i32
  }
  func.func @transform_20(%arg0: i32, %arg1: i32) -> (i32, i32) {
    %c0_i32 = arith.constant 0 : i32
    %c0_i32_0 = arith.constant 0 : i32
    %c0_i32_1 = arith.constant 0 : i32
    return %c0_i32, %c0_i32_0 : i32, i32
  }
  func.func @transform_21(%arg0: i32, %arg1: i32) -> (i32, i32) {
    %c0_i32 = arith.constant 0 : i32
    %c0_i32_0 = arith.constant 0 : i32
    %c0_i32_1 = arith.constant 0 : i32
    return %c0_i32, %c0_i32_0 : i32, i32
  }
  func.func @transform_22(%arg0: i32, %arg1: i32) -> (i32, i32, i32) {
    %c0_i32 = arith.constant 0 : i32
    %c0_i32_0 = arith.constant 0 : i32
    %c0_i32_1 = arith.constant 0 : i32
    return %arg0, %c0_i32, %c0_i32_0 : i32, i32, i32
  }
}

</mosaic_0001>

<llo_original>
// kernel: _lambda_.2
$region0: #{_lambda_.2}
  #allocation0 [shape = 'u32[]', space=smem, size = 0x4, offset = 0x4, fixed_abs, tag = 'smem constant byte address 0x4 - core index']
  #allocation1 [shape = 'u32[144,128]{1,0:T(1,128)}', space=vmem, size = 0x12000, scoped, tag = 'internal scratch']
  %s0 = inlined_call_operand.vmem [shape: f32[8,16], index: 0, kind: input, shape index: {}]
  %s1 = inlined_call_operand.vmem [shape: f32[16,32], index: 1, kind: input, shape index: {}]
  %s2 = inlined_call_operand.vmem [shape: f32[1,32], index: 2, kind: input, shape index: {}]
  %s3 = inlined_call_operand.vmem [shape: f32[8,32], index: 3, kind: output, shape index: {}]
  %s4 = sld [smem:[#allocation0]]
  $region22: #{_lambda_.2} parent=0
    _
  %s6 = ssub.s32 1, %s4
  %s7 = scalar_select 0, %s6, %s4
  // Predicated region
  $region2: #{_lambda_.2} parent=0 // pred_check
    _
  $region3: #{_lambda_.2} parent=0 // pred_check_branch
    %9 = sbr.rel (0) target = $region5
  $region4: #{_lambda_.2} parent=0 // pred_region
    _
  $region5: #{_lambda_.2} parent=0 // pred_fallthru
    _
  // Predicated region
  $region6: #{_lambda_.2} parent=0 // pred_check
    _
  $region7: #{_lambda_.2} parent=0 // pred_check_branch
    %11 = sbr.rel (0) target = $region9
  $region8: #{_lambda_.2} parent=0 // pred_region
    _
  $region9: #{_lambda_.2} parent=0 // pred_fallthru
    _
  // Predicated region
  $region10: #{_lambda_.2} parent=0 // pred_check
    _
  $region11: #{_lambda_.2} parent=0 // pred_check_branch
    %13 = sbr.rel (0) target = $region13
  $region12: #{_lambda_.2} parent=0 // pred_region
    _
  $region13: #{_lambda_.2} parent=0 // pred_fallthru
    _
  %v14 = vld [vmem:[%s0] sm:$0xff]
  %v15 = vld [vmem:[%s1] sm:$0xff]
  %v16 = vld [vmem:[%s1 + $0x8] sm:$0xff]
  %v17 = vld [vmem:[%s2] sm:$0x1]
  %v19 = vlaneseq
  %v20 = vshrl.u32 %v19, 7
  %v21 = vsub.s32 0, %v20
  %v22 = vrot.slane %v17, %v21
  %vm24 = vcmask 130048
  %v26 = vsel %vm24, %v14, 0
  %28 = vmatprep.subr.mxu0 0.0
  %29 = vmatpush1.msra.mxu0 %v15
  %30 = vmatprep.subr.mxu0 0.0
  %31 = vmatpush1.msra.mxu0 %v16
  %32 = vmatprep.subr.mxu0 0.0
  %33 = vmatpush1.msra.mxu0 0.0
  %34 = vmatprep.subr.mxu0 0.0
  %35 = vmatpush1.msra.mxu0 0.0
  %36 = vmatprep.subr.mxu0 0.0
  %37 = vmatpush1.msra.mxu0 0.0
  %38 = vmatprep.subr.mxu0 0.0
  %39 = vmatpush1.msra.mxu0 0.0
  %40 = vmatprep.subr.mxu0 0.0
  %41 = vmatpush1.msra.mxu0 0.0
  %42 = vmatprep.subr.mxu0 0.0
  %43 = vmatpush1.msra.mxu0 0.0
  %44 = vmatprep.subr.mxu0 0.0
  %45 = vmatpush1.msra.mxu0 0.0
  %46 = vmatprep.subr.mxu0 0.0
  %47 = vmatpush1.msra.mxu0 0.0
  %48 = vmatprep.subr.mxu0 0.0
  %49 = vmatpush1.msra.mxu0 0.0
  %50 = vmatprep.subr.mxu0 0.0
  %51 = vmatpush1.msra.mxu0 0.0
  %52 = vmatprep.subr.mxu0 0.0
  %53 = vmatpush1.msra.mxu0 0.0
  %54 = vmatprep.subr.mxu0 0.0
  %55 = vmatpush1.msra.mxu0 0.0
  %56 = vmatprep.subr.mxu0 0.0
  %57 = vmatpush1.msra.mxu0 0.0
  %58 = vmatprep.subr.mxu0 0.0
  %59 = vmatpush1.msra.mxu0 0.0
  %60 = vmatprep.subr.mxu0 0.0
  %61 = vmatpush1.msra.mxu0 0.0
  %62 = vmatprep.subr.mxu0 0.0
  %63 = vmatpush1.msra.mxu0 0.0
  %64 = vmatprep.subr.mxu0 0.0
  %65 = vmatpush1.msra.mxu0 0.0
  %66 = vmatprep.subr.mxu0 0.0
  %67 = vmatpush1.msra.mxu0 0.0
  %68 = vmatprep.subr.mxu0 0.0
  %69 = vmatpush1.msra.mxu0 0.0
  %70 = vmatprep.subr.mxu0 0.0
  %71 = vmatpush1.msra.mxu0 0.0
  %72 = vmatprep.subr.mxu0 0.0
  %73 = vmatpush1.msra.mxu0 0.0
  %74 = vmatprep.subr.mxu0 0.0
  %75 = vmatpush1.msra.mxu0 0.0
  %76 = vmatprep.subr.mxu0 0.0
  %77 = vmatpush1.msra.mxu0 0.0
  %78 = vmatprep.subr.mxu0 0.0
  %79 = vmatpush1.msra.mxu0 0.0
  %80 = vmatprep.subr.mxu0 0.0
  %81 = vmatpush1.msra.mxu0 0.0
  %82 = vmatprep.subr.mxu0 0.0
  %83 = vmatpush1.msra.mxu0 0.0
  %84 = vmatprep.subr.mxu0 0.0
  %85 = vmatpush1.msra.mxu0 0.0
  %86 = vmatprep.subr.mxu0 0.0
  %87 = vmatpush1.msra.mxu0 0.0
  %88 = vmatprep.subr.mxu0 0.0
  %89 = vmatpush1.msra.mxu0 0.0
  %90 = vmatprep.subr.mxu0 0.0
  %91 = vmatpush1.msra.mxu0 0.0
  %92 = vmatprep.mubr.f32.mxu0 0.0
  %93 = vmatmul.mubr.f32.gmra.mrb[0].mxu0 %v26
  %v94 = vpop.f32.mrb[0].mxu0
  %v95 = vadd.f32 %v22, %v94
  %v96 = vpop.f32.mrb[0].mxu0
  %97 = vdwg.mxu0
  %vm98 = vcmask 261120
  %99 = vst.msk [vmem:[%s3] sm:$0xff] %vm98, %v95
  // Predicated region
  $region14: #{_lambda_.2} parent=0 // pred_check
    _
  $region15: #{_lambda_.2} parent=0 // pred_check_branch
    %101 = sbr.rel (0) target = $region17
  $region16: #{_lambda_.2} parent=0 // pred_region
    _
  $region17: #{_lambda_.2} parent=0 // pred_fallthru
    _
  // Predicated region
  $region18: #{_lambda_.2} parent=0 // pred_check
    _
  $region19: #{_lambda_.2} parent=0 // pred_check_branch
    %103 = sbr.rel (0) target = $region21
  $region20: #{_lambda_.2} parent=0 // pred_region
    _
  $region21: #{_lambda_.2} parent=0 // pred_fallthru
    _

// kernel: _lambda_.3
$region0: #{_lambda_.3}
  #allocation0 [shape = 'u32[]', space=smem, size = 0x4, offset = 0x4, fixed_abs, tag = 'smem constant byte address 0x4 - core index']
  #allocation1 [shape = 'u32[144,128]{1,0:T(1,128)}', space=vmem, size = 0x12000, scoped, tag = 'internal scratch']
  #allocation2 [shape = 'f32[32,32]{1,0:T(8,128)}', space=vmem, size = 0x4000, scoped, tag = 'scratch operand']
  #allocation3 [shape = 'f32[1,1]{1,0:T(1,128)S(1)}', space=vmem, size = 0x200, scoped, tag = 'scoped memory for _lambda_.3']
  %s0 = inlined_call_operand.vmem [shape: f32[64,4], index: 0, kind: input, shape index: {}]
  %s1 = inlined_call_operand.vmem [shape: f32[64,16], index: 1, kind: input, shape index: {}]
  %s2 = inlined_call_operand.vmem [shape: f32[32,32], index: 2, kind: input, shape index: {}]
  %s3 = inlined_call_operand.vmem [shape: f32[32,32], index: 3, kind: input, shape index: {}]
  %s4 = inlined_call_operand.vmem [shape: f32[4,32], index: 4, kind: input, shape index: {}]
  %s5 = inlined_call_operand.vmem [shape: f32[1,32], index: 5, kind: input, shape index: {}]
  %s6 = inlined_call_operand.vmem [shape: f32[2,32,96], index: 6, kind: input, shape index: {}]
  %s7 = inlined_call_operand.vmem [shape: f32[2,32,32], index: 7, kind: input, shape index: {}]
  %s8 = inlined_call_operand.vmem [shape: f32[2,32,64], index: 8, kind: input, shape index: {}]
  %s9 = inlined_call_operand.vmem [shape: f32[2,64,32], index: 9, kind: input, shape index: {}]
  %s10 = inlined_call_operand.vmem [shape: f32[2,8,96], index: 10, kind: input, shape index: {}]
  %s11 = inlined_call_operand.vmem [shape: f32[2,32,96], index: 11, kind: input, shape index: {}]
  %s12 = inlined_call_operand.vmem [shape: f32[2,32,32], index: 12, kind: input, shape index: {}]
  %s13 = inlined_call_operand.vmem [shape: f32[2,32,64], index: 13, kind: input, shape index: {}]
  %s14 = inlined_call_operand.vmem [shape: f32[2,64,32], index: 14, kind: input, shape index: {}]
  %s15 = inlined_call_operand.vmem [shape: f32[2,8,96], index: 15, kind: input, shape index: {}]
  %s16 = inlined_call_operand.vmem [shape: f32[2,32,64], index: 16, kind: input, shape index: {}]
  %s17 = inlined_call_operand.vmem [shape: f32[2,16,64], index: 17, kind: input, shape index: {}]
  %s18 = inlined_call_operand.vmem [shape: f32[2,64,32], index: 18, kind: input, shape index: {}]
  %s19 = inlined_call_operand.vmem [shape: f32[2,3,64], index: 19, kind: input, shape index: {}]
  %s20 = inlined_call_operand.vmem [shape: f32[1,32], index: 20, kind: input, shape index: {}]
  %s21 = inlined_call_operand.<no memory space> [shape: f32[1,1], index: 21, kind: input, shape index: {}]
  %s22 = inlined_call_operand.vmem [shape: f32[2,1,32], index: 22, kind: output, shape index: {}]
  %s23 = sld [smem:[#allocation0]]
  $region129: #{_lambda_.3} parent=0
    _
  %s25 = ssub.s32 1, %s23
  %s26 = scalar_select 0, %s25, %s23
  %v27 = vstv %s21
  %28 = vst [vmem:[#allocation3] sm:$0x1] %v27
  loop: start=0, step=1, limit=6
  $region2: #{_lambda_.3} parent=0 // loop_pre_header
    _
  $region3: #{_lambda_.3} parent=0 // loop_header
    %s30 = sphi 0, %s34
    %p31 = scmp.ge.s32.totalorder %s30, 6
    %s37 = sphi 0, %s49
    %s38 = sphi 0, %s45
    %s39 = sphi 0, %s37
    %s40 = sphi 0, %s38
    %s41 = sphi 0, %s39
    %s42 = sphi 0, %s40
    %s52 = sphi 0, %s54
    %s55 = sphi 0, %s52
    %s56 = sphi 0, %s55
    %s72 = sphi 0, %s56
    %s78 = sphi 0, %s80
    %s81 = sphi 0, %s78
    %s82 = sphi 0, %s81
    %s98 = sphi 0, %s82
    %s102 = sphi 0, %s102
    %s104 = sphi 0, %s102
    %s105 = sphi 0, %s104
    %s119 = sphi 0, %s105
    %s123 = sphi 0, %s123
    %s125 = sphi 0, %s123
    %s126 = sphi 0, %s125
    %s140 = sphi 0, %s126
    %s144 = sphi 0, %s144
    %s146 = sphi 0, %s144
    %s147 = sphi 0, %s146
    %s161 = sphi 0, %s147
    %s165 = sphi 0, %s165
    %s167 = sphi 0, %s165
    %s168 = sphi 0, %s167
    %s182 = sphi 0, %s168
    %s188 = sphi 0, %s190
    %s191 = sphi 0, %s188
    %s192 = sphi 0, %s191
    %s208 = sphi 0, %s192
    %s214 = sphi 0, %s216
    %s217 = sphi 0, %s214
    %s218 = sphi 0, %s217
    %s234 = sphi 0, %s218
    %s240 = sphi 0, %s242
    %s243 = sphi 0, %s240
    %s244 = sphi 0, %s243
    %s260 = sphi 0, %s244
    %s266 = sphi 0, %s268
    %s269 = sphi 0, %s266
    %s270 = sphi 0, %s269
    %s286 = sphi 0, %s270
    %s292 = sphi 0, %s294
    %s295 = sphi 0, %s292
    %s296 = sphi 0, %s295
    %s312 = sphi 0, %s296
    %s318 = sphi 0, %s320
    %s321 = sphi 0, %s318
    %s322 = sphi 0, %s321
    %s338 = sphi 0, %s322
    %s344 = sphi 0, %s346
    %s347 = sphi 0, %s344
    %s348 = sphi 0, %s347
    %s364 = sphi 0, %s348
    %s370 = sphi 0, %s372
    %s373 = sphi 0, %s370
    %s374 = sphi 0, %s373
    %s390 = sphi 0, %s374
    %s396 = sphi 0, %s398
    %s399 = sphi 0, %s396
    %s400 = sphi 0, %s399
    %s416 = sphi 0, %s400
    %s422 = sphi 0, %s424
    %s425 = sphi 0, %s422
    %s426 = sphi 0, %s425
    %s442 = sphi 0, %s426
    %s448 = sphi 0, %s450
    %s451 = sphi 0, %s448
    %s452 = sphi 0, %s451
    %s468 = sphi 0, %s452
    %s474 = sphi 0, %s476
    %s477 = sphi 0, %s474
    %s478 = sphi 0, %s477
    %s494 = sphi 0, %s478
    %s500 = sphi 0, %s502
    %s503 = sphi 0, %s500
    %s504 = sphi 0, %s503
    %s520 = sphi 0, %s504
    %s526 = sphi 0, %s528
    %s529 = sphi 0, %s526
    %s530 = sphi 0, %s529
    %s546 = sphi 0, %s530
    %s550 = sphi 0, %s550
    %s552 = sphi 0, %s550
    %s553 = sphi 0, %s552
    %s567 = sphi 0, %s553
    %s571 = sphi 0, %s571
    %s573 = sphi 0, %s571
    %s574 = sphi 0, %s573
    %s588 = sphi 0, %s574
    %s594 = sphi 0, %s596
    %s597 = sphi 0, %s594
    %s598 = sphi 0, %s597
    %s614 = sphi 0, %s598
  $region4: #{_lambda_.3} parent=0 // loop_header_branch
    %33 = sbr.rel (%p31) target = $region8
  $region5: #{_lambda_.3} parent=0 // loop_body
    %s35 = ssub.s32 %s30, 1
    %s36 = ssub.s32 %s30, 2
    %s43 = sadd.s32 1, %s38
    %p44 = scmp.ge.s32.totalorder %s43, 2
    %s45 = scalar_select %p44, 0, %s43
    %s46 = sadd.s32 1, %s37
    %s47 = scalar_select %p44, %s46, %s37
    %p48 = scmp.ge.s32.totalorder %s47, 2
    %s49 = scalar_select %p48, 0, %s47
    %s50 = ssub.s32 %s37, %s49
    %p51 = scmp.eq.s32.totalorder %s50, 0
    %s53 = sadd.s32 %s52, 1
    %s54 = scalar_select %p51, %s52, %s53
    %p57 = pneg %p51
    %p58 = scmp.eq.s32.totalorder %s30, 3
    %p59 = por %p57, %p58
    %p60 = scmp.ne.s32.totalorder %s52, %s55
    %p61 = scmp.eq.s32.totalorder %s30, 0
    %p62 = por %p60, %p61
    %p63 = scmp.ne.s32.totalorder %s52, %s55
    %p64 = scmp.eq.s32.totalorder %s35, 3
    %p65 = por %p63, %p64
    %p66 = scmp.ne.s32.totalorder %s55, %s56
    %p67 = scmp.eq.s32.totalorder %s35, 0
    %p68 = por %p66, %p67
    %p69 = scmp.ne.s32.totalorder %s55, %s56
    %p70 = scmp.eq.s32.totalorder %s36, 3
    %p71 = por %p69, %p70
    %p73 = scmp.ne.s32.totalorder %s56, %s72
    %p74 = scmp.eq.s32.totalorder %s36, 0
    %p75 = por %p73, %p74
    %s76 = ssub.s32 %s37, %s49
    %p77 = scmp.eq.s32.totalorder %s76, 0
    %s79 = sadd.s32 %s78, 1
    %s80 = scalar_select %p77, %s78, %s79
    %p83 = pneg %p77
    %p84 = scmp.eq.s32.totalorder %s30, 3
    %p85 = por %p83, %p84
    %p86 = scmp.ne.s32.totalorder %s78, %s81
    %p87 = scmp.eq.s32.totalorder %s30, 0
    %p88 = por %p86, %p87
    %p89 = scmp.ne.s32.totalorder %s78, %s81
    %p90 = scmp.eq.s32.totalorder %s35, 3
    %p91 = por %p89, %p90
    %p92 = scmp.ne.s32.totalorder %s81, %s82
    %p93 = scmp.eq.s32.totalorder %s35, 0
    %p94 = por %p92, %p93
    %p95 = scmp.ne.s32.totalorder %s81, %s82
    %p96 = scmp.eq.s32.totalorder %s36, 3
    %p97 = por %p95, %p96
    %p99 = scmp.ne.s32.totalorder %s82, %s98
    %p100 = scmp.eq.s32.totalorder %s36, 0
    %p101 = por %p99, %p100
    %s103 = sadd.s32 %s102, 1
    %p106 = scmp.eq.s32.totalorder %s30, 3
    %p107 = scmp.ne.s32.totalorder %s102, %s104
    %p108 = scmp.eq.s32.totalorder %s30, 0
    %p109 = por %p107, %p108
    %p110 = scmp.ne.s32.totalorder %s102, %s104
    %p111 = scmp.eq.s32.totalorder %s35, 3
    %p112 = por %p110, %p111
    %p113 = scmp.ne.s32.totalorder %s104, %s105
    %p114 = scmp.eq.s32.totalorder %s35, 0
    %p115 = por %p113, %p114
    %p116 = scmp.ne.s32.totalorder %s104, %s105
    %p117 = scmp.eq.s32.totalorder %s36, 3
    %p118 = por %p116, %p117
    %p120 = scmp.ne.s32.totalorder %s105, %s119
    %p121 = scmp.eq.s32.totalorder %s36, 0
    %p122 = por %p120, %p121
    %s124 = sadd.s32 %s123, 1
    %p127 = scmp.eq.s32.totalorder %s30, 3
    %p128 = scmp.ne.s32.totalorder %s123, %s125
    %p129 = scmp.eq.s32.totalorder %s30, 0
    %p130 = por %p128, %p129
    %p131 = scmp.ne.s32.totalorder %s123, %s125
    %p132 = scmp.eq.s32.totalorder %s35, 3
    %p133 = por %p131, %p132
    %p134 = scmp.ne.s32.totalorder %s125, %s126
    %p135 = scmp.eq.s32.totalorder %s35, 0
    %p136 = por %p134, %p135
    %p137 = scmp.ne.s32.totalorder %s125, %s126
    %p138 = scmp.eq.s32.totalorder %s36, 3
    %p139 = por %p137, %p138
    %p141 = scmp.ne.s32.totalorder %s126, %s140
    %p142 = scmp.eq.s32.totalorder %s36, 0
    %p143 = por %p141, %p142
    %s145 = sadd.s32 %s144, 1
    %p148 = scmp.eq.s32.totalorder %s30, 3
    %p149 = scmp.ne.s32.totalorder %s144, %s146
    %p150 = scmp.eq.s32.totalorder %s30, 0
    %p151 = por %p149, %p150
    %p152 = scmp.ne.s32.totalorder %s144, %s146
    %p153 = scmp.eq.s32.totalorder %s35, 3
    %p154 = por %p152, %p153
    %p155 = scmp.ne.s32.totalorder %s146, %s147
    %p156 = scmp.eq.s32.totalorder %s35, 0
    %p157 = por %p155, %p156
    %p158 = scmp.ne.s32.totalorder %s146, %s147
    %p159 = scmp.eq.s32.totalorder %s36, 3
    %p160 = por %p158, %p159
    %p162 = scmp.ne.s32.totalorder %s147, %s161
    %p163 = scmp.eq.s32.totalorder %s36, 0
    %p164 = por %p162, %p163
    %s166 = sadd.s32 %s165, 1
    %p169 = scmp.eq.s32.totalorder %s30, 3
    %p170 = scmp.ne.s32.totalorder %s165, %s167
    %p171 = scmp.eq.s32.totalorder %s30, 0
    %p172 = por %p170, %p171
    %p173 = scmp.ne.s32.totalorder %s165, %s167
    %p174 = scmp.eq.s32.totalorder %s35, 3
    %p175 = por %p173, %p174
    %p176 = scmp.ne.s32.totalorder %s167, %s168
    %p177 = scmp.eq.s32.totalorder %s35, 0
    %p178 = por %p176, %p177
    %p179 = scmp.ne.s32.totalorder %s167, %s168
    %p180 = scmp.eq.s32.totalorder %s36, 3
    %p181 = por %p179, %p180
    %p183 = scmp.ne.s32.totalorder %s168, %s182
    %p184 = scmp.eq.s32.totalorder %s36, 0
    %p185 = por %p183, %p184
    %s186 = ssub.s32 %s38, %s45
    %p187 = scmp.eq.s32.totalorder %s186, 0
    %s189 = sadd.s32 %s188, 1
    %s190 = scalar_select %p187, %s188, %s189
    %p193 = pneg %p187
    %p194 = scmp.eq.s32.totalorder %s30, 3
    %p195 = por %p193, %p194
    %p196 = scmp.ne.s32.totalorder %s188, %s191
    %p197 = scmp.eq.s32.totalorder %s30, 0
    %p198 = por %p196, %p197
    %p199 = scmp.ne.s32.totalorder %s188, %s191
    %p200 = scmp.eq.s32.totalorder %s35, 3
    %p201 = por %p199, %p200
    %p202 = scmp.ne.s32.totalorder %s191, %s192
    %p203 = scmp.eq.s32.totalorder %s35, 0
    %p204 = por %p202, %p203
    %p205 = scmp.ne.s32.totalorder %s191, %s192
    %p206 = scmp.eq.s32.totalorder %s36, 3
    %p207 = por %p205, %p206
    %p209 = scmp.ne.s32.totalorder %s192, %s208
    %p210 = scmp.eq.s32.totalorder %s36, 0
    %p211 = por %p209, %p210
    %s212 = ssub.s32 %s38, %s45
    %p213 = scmp.eq.s32.totalorder %s212, 0
    %s215 = sadd.s32 %s214, 1
    %s216 = scalar_select %p213, %s214, %s215
    %p219 = pneg %p213
    %p220 = scmp.eq.s32.totalorder %s30, 3
    %p221 = por %p219, %p220
    %p222 = scmp.ne.s32.totalorder %s214, %s217
    %p223 = scmp.eq.s32.totalorder %s30, 0
    %p224 = por %p222, %p223
    %p225 = scmp.ne.s32.totalorder %s214, %s217
    %p226 = scmp.eq.s32.totalorder %s35, 3
    %p227 = por %p225, %p226
    %p228 = scmp.ne.s32.totalorder %s217, %s218
    %p229 = scmp.eq.s32.totalorder %s35, 0
    %p230 = por %p228, %p229
    %p231 = scmp.ne.s32.totalorder %s217, %s218
    %p232 = scmp.eq.s32.totalorder %s36, 3
    %p233 = por %p231, %p232
    %p235 = scmp.ne.s32.totalorder %s218, %s234
    %p236 = scmp.eq.s32.totalorder %s36, 0
    %p237 = por %p235, %p236
    %s238 = ssub.s32 %s38, %s45
    %p239 = scmp.eq.s32.totalorder %s238, 0
    %s241 = sadd.s32 %s240, 1
    %s242 = scalar_select %p239, %s240, %s241
    %p245 = pneg %p239
    %p246 = scmp.eq.s32.totalorder %s30, 3
    %p247 = por %p245, %p246
    %p248 = scmp.ne.s32.totalorder %s240, %s243
    %p249 = scmp.eq.s32.totalorder %s30, 0
    %p250 = por %p248, %p249
    %p251 = scmp.ne.s32.totalorder %s240, %s243
    %p252 = scmp.eq.s32.totalorder %s35, 3
    %p253 = por %p251, %p252
    %p254 = scmp.ne.s32.totalorder %s243, %s244
    %p255 = scmp.eq.s32.totalorder %s35, 0
    %p256 = por %p254, %p255
    %p257 = scmp.ne.s32.totalorder %s243, %s244
    %p258 = scmp.eq.s32.totalorder %s36, 3
    %p259 = por %p257, %p258
    %p261 = scmp.ne.s32.totalorder %s244, %s260
    %p262 = scmp.eq.s32.totalorder %s36, 0
    %p263 = por %p261, %p262
    %s264 = ssub.s32 %s38, %s45
    %p265 = scmp.eq.s32.totalorder %s264, 0
    %s267 = sadd.s32 %s266, 1
    %s268 = scalar_select %p265, %s266, %s267
    %p271 = pneg %p265
    %p272 = scmp.eq.s32.totalorder %s30, 3
    %p273 = por %p271, %p272
    %p274 = scmp.ne.s32.totalorder %s266, %s269
    %p275 = scmp.eq.s32.totalorder %s30, 0
    %p276 = por %p274, %p275
    %p277 = scmp.ne.s32.totalorder %s266, %s269
    %p278 = scmp.eq.s32.totalorder %s35, 3
    %p279 = por %p277, %p278
    %p280 = scmp.ne.s32.totalorder %s269, %s270
    %p281 = scmp.eq.s32.totalorder %s35, 0
    %p282 = por %p280, %p281
    %p283 = scmp.ne.s32.totalorder %s269, %s270
    %p284 = scmp.eq.s32.totalorder %s36, 3
    %p285 = por %p283, %p284
    %p287 = scmp.ne.s32.totalorder %s270, %s286
    %p288 = scmp.eq.s32.totalorder %s36, 0
    %p289 = por %p287, %p288
    %s290 = ssub.s32 %s38, %s45
    %p291 = scmp.eq.s32.totalorder %s290, 0
    %s293 = sadd.s32 %s292, 1
    %s294 = scalar_select %p291, %s292, %s293
    %p297 = pneg %p291
    %p298 = scmp.eq.s32.totalorder %s30, 3
    %p299 = por %p297, %p298
    %p300 = scmp.ne.s32.totalorder %s292, %s295
    %p301 = scmp.eq.s32.totalorder %s30, 0
    %p302 = por %p300, %p301
    %p303 = scmp.ne.s32.totalorder %s292, %s295
    %p304 = scmp.eq.s32.totalorder %s35, 3
    %p305 = por %p303, %p304
    %p306 = scmp.ne.s32.totalorder %s295, %s296
    %p307 = scmp.eq.s32.totalorder %s35, 0
    %p308 = por %p306, %p307
    %p309 = scmp.ne.s32.totalorder %s295, %s296
    %p310 = scmp.eq.s32.totalorder %s36, 3
    %p311 = por %p309, %p310
    %p313 = scmp.ne.s32.totalorder %s296, %s312
    %p314 = scmp.eq.s32.totalorder %s36, 0
    %p315 = por %p313, %p314
    %s316 = ssub.s32 %s38, %s45
    %p317 = scmp.eq.s32.totalorder %s316, 0
    %s319 = sadd.s32 %s318, 1
    %s320 = scalar_select %p317, %s318, %s319
    %p323 = pneg %p317
    %p324 = scmp.eq.s32.totalorder %s30, 3
    %p325 = por %p323, %p324
    %p326 = scmp.ne.s32.totalorder %s318, %s321
    %p327 = scmp.eq.s32.totalorder %s30, 0
    %p328 = por %p326, %p327
    %p329 = scmp.ne.s32.totalorder %s318, %s321
    %p330 = scmp.eq.s32.totalorder %s35, 3
    %p331 = por %p329, %p330
    %p332 = scmp.ne.s32.totalorder %s321, %s322
    %p333 = scmp.eq.s32.totalorder %s35, 0
    %p334 = por %p332, %p333
    %p335 = scmp.ne.s32.totalorder %s321, %s322
    %p336 = scmp.eq.s32.totalorder %s36, 3
    %p337 = por %p335, %p336
    %p339 = scmp.ne.s32.totalorder %s322, %s338
    %p340 = scmp.eq.s32.totalorder %s36, 0
    %p341 = por %p339, %p340
    %s342 = ssub.s32 %s38, %s45
    %p343 = scmp.eq.s32.totalorder %s342, 0
    %s345 = sadd.s32 %s344, 1
    %s346 = scalar_select %p343, %s344, %s345
    %p349 = pneg %p343
    %p350 = scmp.eq.s32.totalorder %s30, 3
    %p351 = por %p349, %p350
    %p352 = scmp.ne.s32.totalorder %s344, %s347
    %p353 = scmp.eq.s32.totalorder %s30, 0
    %p354 = por %p352, %p353
    %p355 = scmp.ne.s32.totalorder %s344, %s347
    %p356 = scmp.eq.s32.totalorder %s35, 3
    %p357 = por %p355, %p356
    %p358 = scmp.ne.s32.totalorder %s347, %s348
    %p359 = scmp.eq.s32.totalorder %s35, 0
    %p360 = por %p358, %p359
    %p361 = scmp.ne.s32.totalorder %s347, %s348
    %p362 = scmp.eq.s32.totalorder %s36, 3
    %p363 = por %p361, %p362
    %p365 = scmp.ne.s32.totalorder %s348, %s364
    %p366 = scmp.eq.s32.totalorder %s36, 0
    %p367 = por %p365, %p366
    %s368 = ssub.s32 %s38, %s45
    %p369 = scmp.eq.s32.totalorder %s368, 0
    %s371 = sadd.s32 %s370, 1
    %s372 = scalar_select %p369, %s370, %s371
    %p375 = pneg %p369
    %p376 = scmp.eq.s32.totalorder %s30, 3
    %p377 = por %p375, %p376
    %p378 = scmp.ne.s32.totalorder %s370, %s373
    %p379 = scmp.eq.s32.totalorder %s30, 0
    %p380 = por %p378, %p379
    %p381 = scmp.ne.s32.totalorder %s370, %s373
    %p382 = scmp.eq.s32.totalorder %s35, 3
    %p383 = por %p381, %p382
    %p384 = scmp.ne.s32.totalorder %s373, %s374
    %p385 = scmp.eq.s32.totalorder %s35, 0
    %p386 = por %p384, %p385
    %p387 = scmp.ne.s32.totalorder %s373, %s374
    %p388 = scmp.eq.s32.totalorder %s36, 3
    %p389 = por %p387, %p388
    %p391 = scmp.ne.s32.totalorder %s374, %s390
    %p392 = scmp.eq.s32.totalorder %s36, 0
    %p393 = por %p391, %p392
    %s394 = ssub.s32 %s38, %s45
    %p395 = scmp.eq.s32.totalorder %s394, 0
    %s397 = sadd.s32 %s396, 1
    %s398 = scalar_select %p395, %s396, %s397
    %p401 = pneg %p395
    %p402 = scmp.eq.s32.totalorder %s30, 3
    %p403 = por %p401, %p402
    %p404 = scmp.ne.s32.totalorder %s396, %s399
    %p405 = scmp.eq.s32.totalorder %s30, 0
    %p406 = por %p404, %p405
    %p407 = scmp.ne.s32.totalorder %s396, %s399
    %p408 = scmp.eq.s32.totalorder %s35, 3
    %p409 = por %p407, %p408
    %p410 = scmp.ne.s32.totalorder %s399, %s400
    %p411 = scmp.eq.s32.totalorder %s35, 0
    %p412 = por %p410, %p411
    %p413 = scmp.ne.s32.totalorder %s399, %s400
    %p414 = scmp.eq.s32.totalorder %s36, 3
    %p415 = por %p413, %p414
    %p417 = scmp.ne.s32.totalorder %s400, %s416
    %p418 = scmp.eq.s32.totalorder %s36, 0
    %p419 = por %p417, %p418
    %s420 = ssub.s32 %s38, %s45
    %p421 = scmp.eq.s32.totalorder %s420, 0
    %s423 = sadd.s32 %s422, 1
    %s424 = scalar_select %p421, %s422, %s423
    %p427 = pneg %p421
    %p428 = scmp.eq.s32.totalorder %s30, 3
    %p429 = por %p427, %p428
    %p430 = scmp.ne.s32.totalorder %s422, %s425
    %p431 = scmp.eq.s32.totalorder %s30, 0
    %p432 = por %p430, %p431
    %p433 = scmp.ne.s32.totalorder %s422, %s425
    %p434 = scmp.eq.s32.totalorder %s35, 3
    %p435 = por %p433, %p434
    %p436 = scmp.ne.s32.totalorder %s425, %s426
    %p437 = scmp.eq.s32.totalorder %s35, 0
    %p438 = por %p436, %p437
    %p439 = scmp.ne.s32.totalorder %s425, %s426
    %p440 = scmp.eq.s32.totalorder %s36, 3
    %p441 = por %p439, %p440
    %p443 = scmp.ne.s32.totalorder %s426, %s442
    %p444 = scmp.eq.s32.totalorder %s36, 0
    %p445 = por %p443, %p444
    %s446 = ssub.s32 %s38, %s45
    %p447 = scmp.eq.s32.totalorder %s446, 0
    %s449 = sadd.s32 %s448, 1
    %s450 = scalar_select %p447, %s448, %s449
    %p453 = pneg %p447
    %p454 = scmp.eq.s32.totalorder %s30, 3
    %p455 = por %p453, %p454
    %p456 = scmp.ne.s32.totalorder %s448, %s451
    %p457 = scmp.eq.s32.totalorder %s30, 0
    %p458 = por %p456, %p457
    %p459 = scmp.ne.s32.totalorder %s448, %s451
    %p460 = scmp.eq.s32.totalorder %s35, 3
    %p461 = por %p459, %p460
    %p462 = scmp.ne.s32.totalorder %s451, %s452
    %p463 = scmp.eq.s32.totalorder %s35, 0
    %p464 = por %p462, %p463
    %p465 = scmp.ne.s32.totalorder %s451, %s452
    %p466 = scmp.eq.s32.totalorder %s36, 3
    %p467 = por %p465, %p466
    %p469 = scmp.ne.s32.totalorder %s452, %s468
    %p470 = scmp.eq.s32.totalorder %s36, 0
    %p471 = por %p469, %p470
    %s472 = ssub.s32 %s38, %s45
    %p473 = scmp.eq.s32.totalorder %s472, 0
    %s475 = sadd.s32 %s474, 1
    %s476 = scalar_select %p473, %s474, %s475
    %p479 = pneg %p473
    %p480 = scmp.eq.s32.totalorder %s30, 3
    %p481 = por %p479, %p480
    %p482 = scmp.ne.s32.totalorder %s474, %s477
    %p483 = scmp.eq.s32.totalorder %s30, 0
    %p484 = por %p482, %p483
    %p485 = scmp.ne.s32.totalorder %s474, %s477
    %p486 = scmp.eq.s32.totalorder %s35, 3
    %p487 = por %p485, %p486
    %p488 = scmp.ne.s32.totalorder %s477, %s478
    %p489 = scmp.eq.s32.totalorder %s35, 0
    %p490 = por %p488, %p489
    %p491 = scmp.ne.s32.totalorder %s477, %s478
    %p492 = scmp.eq.s32.totalorder %s36, 3
    %p493 = por %p491, %p492
    %p495 = scmp.ne.s32.totalorder %s478, %s494
    %p496 = scmp.eq.s32.totalorder %s36, 0
    %p497 = por %p495, %p496
    %s498 = ssub.s32 %s38, %s45
    %p499 = scmp.eq.s32.totalorder %s498, 0
    %s501 = sadd.s32 %s500, 1
    %s502 = scalar_select %p499, %s500, %s501
    %p505 = pneg %p499
    %p506 = scmp.eq.s32.totalorder %s30, 3
    %p507 = por %p505, %p506
    %p508 = scmp.ne.s32.totalorder %s500, %s503
    %p509 = scmp.eq.s32.totalorder %s30, 0
    %p510 = por %p508, %p509
    %p511 = scmp.ne.s32.totalorder %s500, %s503
    %p512 = scmp.eq.s32.totalorder %s35, 3
    %p513 = por %p511, %p512
    %p514 = scmp.ne.s32.totalorder %s503, %s504
    %p515 = scmp.eq.s32.totalorder %s35, 0
    %p516 = por %p514, %p515
    %p517 = scmp.ne.s32.totalorder %s503, %s504
    %p518 = scmp.eq.s32.totalorder %s36, 3
    %p519 = por %p517, %p518
    %p521 = scmp.ne.s32.totalorder %s504, %s520
    %p522 = scmp.eq.s32.totalorder %s36, 0
    %p523 = por %p521, %p522
    %s524 = ssub.s32 %s38, %s45
    %p525 = scmp.eq.s32.totalorder %s524, 0
    %s527 = sadd.s32 %s526, 1
    %s528 = scalar_select %p525, %s526, %s527
    %p531 = pneg %p525
    %p532 = scmp.eq.s32.totalorder %s30, 3
    %p533 = por %p531, %p532
    %p534 = scmp.ne.s32.totalorder %s526, %s529
    %p535 = scmp.eq.s32.totalorder %s30, 0
    %p536 = por %p534, %p535
    %p537 = scmp.ne.s32.totalorder %s526, %s529
    %p538 = scmp.eq.s32.totalorder %s35, 3
    %p539 = por %p537, %p538
    %p540 = scmp.ne.s32.totalorder %s529, %s530
    %p541 = scmp.eq.s32.totalorder %s35, 0
    %p542 = por %p540, %p541
    %p543 = scmp.ne.s32.totalorder %s529, %s530
    %p544 = scmp.eq.s32.totalorder %s36, 3
    %p545 = por %p543, %p544
    %p547 = scmp.ne.s32.totalorder %s530, %s546
    %p548 = scmp.eq.s32.totalorder %s36, 0
    %p549 = por %p547, %p548
    %s551 = sadd.s32 %s550, 1
    %p554 = scmp.eq.s32.totalorder %s30, 3
    %p555 = scmp.ne.s32.totalorder %s550, %s552
    %p556 = scmp.eq.s32.totalorder %s30, 0
    %p557 = por %p555, %p556
    %p558 = scmp.ne.s32.totalorder %s550, %s552
    %p559 = scmp.eq.s32.totalorder %s35, 3
    %p560 = por %p558, %p559
    %p561 = scmp.ne.s32.totalorder %s552, %s553
    %p562 = scmp.eq.s32.totalorder %s35, 0
    %p563 = por %p561, %p562
    %p564 = scmp.ne.s32.totalorder %s552, %s553
    %p565 = scmp.eq.s32.totalorder %s36, 3
    %p566 = por %p564, %p565
    %p568 = scmp.ne.s32.totalorder %s553, %s567
    %p569 = scmp.eq.s32.totalorder %s36, 0
    %p570 = por %p568, %p569
    %s572 = sadd.s32 %s571, 1
    %p575 = scmp.eq.s32.totalorder %s30, 3
    %p576 = scmp.ne.s32.totalorder %s571, %s573
    %p577 = scmp.eq.s32.totalorder %s30, 0
    %p578 = por %p576, %p577
    %p579 = scmp.ne.s32.totalorder %s571, %s573
    %p580 = scmp.eq.s32.totalorder %s35, 3
    %p581 = por %p579, %p580
    %p582 = scmp.ne.s32.totalorder %s573, %s574
    %p583 = scmp.eq.s32.totalorder %s35, 0
    %p584 = por %p582, %p583
    %p585 = scmp.ne.s32.totalorder %s573, %s574
    %p586 = scmp.eq.s32.totalorder %s36, 3
    %p587 = por %p585, %p586
    %p589 = scmp.ne.s32.totalorder %s574, %s588
    %p590 = scmp.eq.s32.totalorder %s36, 0
    %p591 = por %p589, %p590
    %s592 = ssub.s32 %s37, %s49
    %p593 = scmp.eq.s32.totalorder %s592, 0
    %s595 = sadd.s32 %s594, 1
    %s596 = scalar_select %p593, %s594, %s595
    %p599 = pneg %p593
    %p600 = scmp.eq.s32.totalorder %s30, 3
    %p601 = por %p599, %p600
    %p602 = scmp.ne.s32.totalorder %s594, %s597
    %p603 = scmp.eq.s32.totalorder %s30, 0
    %p604 = por %p602, %p603
    %p605 = scmp.ne.s32.totalorder %s594, %s597
    %p606 = scmp.eq.s32.totalorder %s35, 3
    %p607 = por %p605, %p606
    %p608 = scmp.ne.s32.totalorder %s597, %s598
    %p609 = scmp.eq.s32.totalorder %s35, 0
    %p610 = por %p608, %p609
    %p611 = scmp.ne.s32.totalorder %s597, %s598
    %p612 = scmp.eq.s32.totalorder %s36, 3
    %p613 = por %p611, %p612
    %p615 = scmp.ne.s32.totalorder %s598, %s614
    %p616 = scmp.eq.s32.totalorder %s36, 0
    %p617 = por %p615, %p616
    %p618 = scmp.le.s32.totalorder 1, %s30
    %p619 = scmp.lt.s32.totalorder %s30, 5
    %p620 = pnand %p618, %p619
    %p621 = pneg %p620
    // Predicated region
    $region9: #{_lambda_.3} parent=5 // pred_check
      _
    $region10: #{_lambda_.3} parent=5 // pred_check_branch
      %623 = sbr.rel (%p620) target = $region12
    $region11: #{_lambda_.3} parent=5 // pred_region
      %s624 = ssub.s32 %s30, 1
      // Predicated region
      $region13: #{_lambda_.3} parent=11 // pred_check
        %p625 = pneg %p115
      $region14: #{_lambda_.3} parent=11 // pred_check_branch
        %627 = sbr.rel (%p625) target = $region16
      $region15: #{_lambda_.3} parent=11 // pred_region
        _
      $region16: #{_lambda_.3} parent=11 // pred_fallthru
        _
      // Predicated region
      $region17: #{_lambda_.3} parent=11 // pred_check
        %p628 = pneg %p136
      $region18: #{_lambda_.3} parent=11 // pred_check_branch
        %630 = sbr.rel (%p628) target = $region20
      $region19: #{_lambda_.3} parent=11 // pred_region
        _
      $region20: #{_lambda_.3} parent=11 // pred_fallthru
        _
      // Predicated region
      $region21: #{_lambda_.3} parent=11 // pred_check
        %p631 = pneg %p157
      $region22: #{_lambda_.3} parent=11 // pred_check_branch
        %633 = sbr.rel (%p631) target = $region24
      $region23: #{_lambda_.3} parent=11 // pred_region
        _
      $region24: #{_lambda_.3} parent=11 // pred_fallthru
        _
      // Predicated region
      $region25: #{_lambda_.3} parent=11 // pred_check
        %p634 = pneg %p178
      $region26: #{_lambda_.3} parent=11 // pred_check_branch
        %636 = sbr.rel (%p634) target = $region28
      $region27: #{_lambda_.3} parent=11 // pred_region
        _
      $region28: #{_lambda_.3} parent=11 // pred_fallthru
        _
      // Predicated region
      $region29: #{_lambda_.3} parent=11 // pred_check
        %p637 = pneg %p563
      $region30: #{_lambda_.3} parent=11 // pred_check_branch
        %639 = sbr.rel (%p637) target = $region32
      $region31: #{_lambda_.3} parent=11 // pred_region
        _
      $region32: #{_lambda_.3} parent=11 // pred_fallthru
        _
      // Predicated region
      $region33: #{_lambda_.3} parent=11 // pred_check
        %p640 = pneg %p584
      $region34: #{_lambda_.3} parent=11 // pred_check_branch
        %642 = sbr.rel (%p640) target = $region36
      $region35: #{_lambda_.3} parent=11 // pred_region
        _
      $region36: #{_lambda_.3} parent=11 // pred_fallthru
        _
    $region12: #{_lambda_.3} parent=5 // pred_fallthru
      _
    %p643 = scmp.lt.s32.totalorder %s30, 4
    // Predicated region
    $region37: #{_lambda_.3} parent=5 // pred_check
      %p644 = pneg %p643
    $region38: #{_lambda_.3} parent=5 // pred_check_branch
      %646 = sbr.rel (%p644) target = $region40
    $region39: #{_lambda_.3} parent=5 // pred_region
      // Predicated region
      $region41: #{_lambda_.3} parent=39 // pred_check
        %p647 = pneg %p62
      $region42: #{_lambda_.3} parent=39 // pred_check_branch
        %649 = sbr.rel (%p647) target = $region44
      $region43: #{_lambda_.3} parent=39 // pred_region
        %s650 = smul.u32 4, %s37
        %p651 = scmp.lt.s32.totalorder %s650, 7
        %s652 = scalar_select %p651, %s650, 7
        %s653 = smul.addr %s652, 8
        %s654 = scalar_lea.vmem %s0, %s653
        %s655 = smul.u32 4, %s37
      $region44: #{_lambda_.3} parent=39 // pred_fallthru
        _
      // Predicated region
      $region45: #{_lambda_.3} parent=39 // pred_check
        %p656 = pneg %p88
      $region46: #{_lambda_.3} parent=39 // pred_check_branch
        %658 = sbr.rel (%p656) target = $region48
      $region47: #{_lambda_.3} parent=39 // pred_region
        %s659 = smul.u32 4, %s37
        %p660 = scmp.lt.s32.totalorder %s659, 7
        %s661 = scalar_select %p660, %s659, 7
        %s662 = smul.addr %s661, 8
        %s663 = scalar_lea.vmem %s1, %s662
        %s664 = smul.u32 4, %s37
      $region48: #{_lambda_.3} parent=39 // pred_fallthru
        _
      // Predicated region
      $region49: #{_lambda_.3} parent=39 // pred_check
        %p665 = pneg %p198
      $region50: #{_lambda_.3} parent=39 // pred_check_branch
        %667 = sbr.rel (%p665) target = $region52
      $region51: #{_lambda_.3} parent=39 // pred_region
        %p668 = scmp.lt.s32.totalorder %s38, 1
        %s669 = scalar_select %p668, %s38, 1
        %s670 = smul.addr %s669, 4
        %s671 = smul.addr %s670, 8
        %s672 = scalar_lea.vmem %s6, %s671
      $region52: #{_lambda_.3} parent=39 // pred_fallthru
        _
      // Predicated region
      $region53: #{_lambda_.3} parent=39 // pred_check
        %p673 = pneg %p224
      $region54: #{_lambda_.3} parent=39 // pred_check_branch
        %675 = sbr.rel (%p673) target = $region56
      $region55: #{_lambda_.3} parent=39 // pred_region
        %p676 = scmp.lt.s32.totalorder %s38, 1
        %s677 = scalar_select %p676, %s38, 1
        %s678 = smul.addr %s677, 4
        %s679 = smul.addr %s678, 8
        %s680 = scalar_lea.vmem %s7, %s679
      $region56: #{_lambda_.3} parent=39 // pred_fallthru
        _
      // Predicated region
      $region57: #{_lambda_.3} parent=39 // pred_check
        %p681 = pneg %p250
      $region58: #{_lambda_.3} parent=39 // pred_check_branch
        %683 = sbr.rel (%p681) target = $region60
      $region59: #{_lambda_.3} parent=39 // pred_region
        %p684 = scmp.lt.s32.totalorder %s38, 1
        %s685 = scalar_select %p684, %s38, 1
        %s686 = smul.addr %s685, 4
        %s687 = smul.addr %s686, 8
        %s688 = scalar_lea.vmem %s8, %s687
      $region60: #{_lambda_.3} parent=39 // pred_fallthru
        _
      // Predicated region
      $region61: #{_lambda_.3} parent=39 // pred_check
        %p689 = pneg %p276
      $region62: #{_lambda_.3} parent=39 // pred_check_branch
        %691 = sbr.rel (%p689) target = $region64
      $region63: #{_lambda_.3} parent=39 // pred_region
        %p692 = scmp.lt.s32.totalorder %s38, 1
        %s693 = scalar_select %p692, %s38, 1
        %s694 = smul.addr %s693, 8
        %s695 = smul.addr %s694, 8
        %s696 = scalar_lea.vmem %s9, %s695
      $region64: #{_lambda_.3} parent=39 // pred_fallthru
        _
      // Predicated region
      $region65: #{_lambda_.3} parent=39 // pred_check
        %p697 = pneg %p302
      $region66: #{_lambda_.3} parent=39 // pred_check_branch
        %699 = sbr.rel (%p697) target = $region68
      $region67: #{_lambda_.3} parent=39 // pred_region
        %p700 = scmp.lt.s32.totalorder %s38, 1
        %s701 = scalar_select %p700, %s38, 1
        %s702 = smul.addr %s701, 8
        %s703 = scalar_lea.vmem %s10, %s702
      $region68: #{_lambda_.3} parent=39 // pred_fallthru
        _
      // Predicated region
      $region69: #{_lambda_.3} parent=39 // pred_check
        %p704 = pneg %p328
      $region70: #{_lambda_.3} parent=39 // pred_check_branch
        %706 = sbr.rel (%p704) target = $region72
      $region71: #{_lambda_.3} parent=39 // pred_region
        %p707 = scmp.lt.s32.totalorder %s38, 1
        %s708 = scalar_select %p707, %s38, 1
        %s709 = smul.addr %s708, 4
        %s710 = smul.addr %s709, 8
        %s711 = scalar_lea.vmem %s11, %s710
      $region72: #{_lambda_.3} parent=39 // pred_fallthru
        _
      // Predicated region
      $region73: #{_lambda_.3} parent=39 // pred_check
        %p712 = pneg %p354
      $region74: #{_lambda_.3} parent=39 // pred_check_branch
        %714 = sbr.rel (%p712) target = $region76
      $region75: #{_lambda_.3} parent=39 // pred_region
        %p715 = scmp.lt.s32.totalorder %s38, 1
        %s716 = scalar_select %p715, %s38, 1
        %s717 = smul.addr %s716, 4
        %s718 = smul.addr %s717, 8
        %s719 = scalar_lea.vmem %s12, %s718
      $region76: #{_lambda_.3} parent=39 // pred_fallthru
        _
      // Predicated region
      $region77: #{_lambda_.3} parent=39 // pred_check
        %p720 = pneg %p380
      $region78: #{_lambda_.3} parent=39 // pred_check_branch
        %722 = sbr.rel (%p720) target = $region80
      $region79: #{_lambda_.3} parent=39 // pred_region
        %p723 = scmp.lt.s32.totalorder %s38, 1
        %s724 = scalar_select %p723, %s38, 1
        %s725 = smul.addr %s724, 4
        %s726 = smul.addr %s725, 8
        %s727 = scalar_lea.vmem %s13, %s726
      $region80: #{_lambda_.3} parent=39 // pred_fallthru
        _
      // Predicated region
      $region81: #{_lambda_.3} parent=39 // pred_check
        %p728 = pneg %p406
      $region82: #{_lambda_.3} parent=39 // pred_check_branch
        %730 = sbr.rel (%p728) target = $region84
      $region83: #{_lambda_.3} parent=39 // pred_region
        %p731 = scmp.lt.s32.totalorder %s38, 1
        %s732 = scalar_select %p731, %s38, 1
        %s733 = smul.addr %s732, 8
        %s734 = smul.addr %s733, 8
        %s735 = scalar_lea.vmem %s14, %s734
      $region84: #{_lambda_.3} parent=39 // pred_fallthru
        _
      // Predicated region
      $region85: #{_lambda_.3} parent=39 // pred_check
        %p736 = pneg %p432
      $region86: #{_lambda_.3} parent=39 // pred_check_branch
        %738 = sbr.rel (%p736) target = $region88
      $region87: #{_lambda_.3} parent=39 // pred_region
        %p739 = scmp.lt.s32.totalorder %s38, 1
        %s740 = scalar_select %p739, %s38, 1
        %s741 = smul.addr %s740, 8
        %s742 = scalar_lea.vmem %s15, %s741
      $region88: #{_lambda_.3} parent=39 // pred_fallthru
        _
      // Predicated region
      $region89: #{_lambda_.3} parent=39 // pred_check
        %p743 = pneg %p458
      $region90: #{_lambda_.3} parent=39 // pred_check_branch
        %745 = sbr.rel (%p743) target = $region92
      $region91: #{_lambda_.3} parent=39 // pred_region
        %p746 = scmp.lt.s32.totalorder %s38, 1
        %s747 = scalar_select %p746, %s38, 1
        %s748 = smul.addr %s747, 4
        %s749 = smul.addr %s748, 8
        %s750 = scalar_lea.vmem %s16, %s749
      $region92: #{_lambda_.3} parent=39 // pred_fallthru
        _
      // Predicated region
      $region93: #{_lambda_.3} parent=39 // pred_check
        %p751 = pneg %p484
      $region94: #{_lambda_.3} parent=39 // pred_check_branch
        %753 = sbr.rel (%p751) target = $region96
      $region95: #{_lambda_.3} parent=39 // pred_region
        %p754 = scmp.lt.s32.totalorder %s38, 1
        %s755 = scalar_select %p754, %s38, 1
        %s756 = smul.addr %s755, 2
        %s757 = smul.addr %s756, 8
        %s758 = scalar_lea.vmem %s17, %s757
      $region96: #{_lambda_.3} parent=39 // pred_fallthru
        _
      // Predicated region
      $region97: #{_lambda_.3} parent=39 // pred_check
        %p759 = pneg %p510
      $region98: #{_lambda_.3} parent=39 // pred_check_branch
        %761 = sbr.rel (%p759) target = $region100
      $region99: #{_lambda_.3} parent=39 // pred_region
        %p762 = scmp.lt.s32.totalorder %s38, 1
        %s763 = scalar_select %p762, %s38, 1
        %s764 = smul.addr %s763, 8
        %s765 = smul.addr %s764, 8
        %s766 = scalar_lea.vmem %s18, %s765
      $region100: #{_lambda_.3} parent=39 // pred_fallthru
        _
      // Predicated region
      $region101: #{_lambda_.3} parent=39 // pred_check
        %p767 = pneg %p536
      $region102: #{_lambda_.3} parent=39 // pred_check_branch
        %769 = sbr.rel (%p767) target = $region104
      $region103: #{_lambda_.3} parent=39 // pred_region
        %p770 = scmp.lt.s32.totalorder %s38, 1
        %s771 = scalar_select %p770, %s38, 1
        %s772 = smul.addr %s771, 4
        %s773 = scalar_lea.vmem %s19, %s772
      $region104: #{_lambda_.3} parent=39 // pred_fallthru
        _
    $region40: #{_lambda_.3} parent=5 // pred_fallthru
      _
    %p774 = scmp.le.s32.totalorder 1, %s30
    %p775 = scmp.lt.s32.totalorder %s30, 5
    %p776 = pnand %p774, %p775
    %p777 = pneg %p776
    // Predicated region
    $region105: #{_lambda_.3} parent=5 // pred_check
      _
    $region106: #{_lambda_.3} parent=5 // pred_check_branch
      %779 = sbr.rel (%p776) target = $region108
    $region107: #{_lambda_.3} parent=5 // pred_region
      %s780 = ssub.s32 %s30, 1
      %s781 = smul.u32 4, %s39
      %p782 = scmp.lt.s32.totalorder %s781, 7
      %s783 = scalar_select %p782, %s781, 7
      %s784 = smul.addr %s783, 8
      %s785 = scalar_lea.vmem %s0, %s784
      %p786 = pneg %p68
      %p787 = pneg %p65
      %s788 = smul.u32 4, %s39
      %p789 = scmp.lt.s32.totalorder %s788, 7
      %s790 = scalar_select %p789, %s788, 7
      %s791 = smul.addr %s790, 8
      %s792 = scalar_lea.vmem %s1, %s791
      %p793 = pneg %p94
      %p794 = pneg %p91
      %p795 = pneg %p115
      %p796 = pneg %p112
      %p797 = pneg %p136
      %p798 = pneg %p133
      %p799 = pneg %p157
      %p800 = pneg %p154
      %p801 = pneg %p178
      %p802 = pneg %p175
      %p803 = scmp.lt.s32.totalorder %s40, 1
      %s804 = scalar_select %p803, %s40, 1
      %s805 = smul.addr %s804, 4
      %s806 = smul.addr %s805, 8
      %s807 = scalar_lea.vmem %s6, %s806
      %p808 = pneg %p204
      %p809 = pneg %p201
      %p810 = scmp.lt.s32.totalorder %s40, 1
      %s811 = scalar_select %p810, %s40, 1
      %s812 = smul.addr %s811, 4
      %s813 = smul.addr %s812, 8
      %s814 = scalar_lea.vmem %s7, %s813
      %p815 = pneg %p230
      %p816 = pneg %p227
      %p817 = scmp.lt.s32.totalorder %s40, 1
      %s818 = scalar_select %p817, %s40, 1
      %s819 = smul.addr %s818, 4
      %s820 = smul.addr %s819, 8
      %s821 = scalar_lea.vmem %s8, %s820
      %p822 = pneg %p256
      %p823 = pneg %p253
      %p824 = scmp.lt.s32.totalorder %s40, 1
      %s825 = scalar_select %p824, %s40, 1
      %s826 = smul.addr %s825, 8
      %s827 = smul.addr %s826, 8
      %s828 = scalar_lea.vmem %s9, %s827
      %p829 = pneg %p282
      %p830 = pneg %p279
      %p831 = scmp.lt.s32.totalorder %s40, 1
      %s832 = scalar_select %p831, %s40, 1
      %s833 = smul.addr %s832, 8
      %s834 = scalar_lea.vmem %s10, %s833
      %p835 = pneg %p308
      %p836 = pneg %p305
      %p837 = scmp.lt.s32.totalorder %s40, 1
      %s838 = scalar_select %p837, %s40, 1
      %s839 = smul.addr %s838, 4
      %s840 = smul.addr %s839, 8
      %s841 = scalar_lea.vmem %s11, %s840
      %p842 = pneg %p334
      %p843 = pneg %p331
      %p844 = scmp.lt.s32.totalorder %s40, 1
      %s845 = scalar_select %p844, %s40, 1
      %s846 = smul.addr %s845, 4
      %s847 = smul.addr %s846, 8
      %s848 = scalar_lea.vmem %s12, %s847
      %p849 = pneg %p360
      %p850 = pneg %p357
      %p851 = scmp.lt.s32.totalorder %s40, 1
      %s852 = scalar_select %p851, %s40, 1
      %s853 = smul.addr %s852, 4
      %s854 = smul.addr %s853, 8
      %s855 = scalar_lea.vmem %s13, %s854
      %p856 = pneg %p386
      %p857 = pneg %p383
      %p858 = scmp.lt.s32.totalorder %s40, 1
      %s859 = scalar_select %p858, %s40, 1
      %s860 = smul.addr %s859, 8
      %s861 = smul.addr %s860, 8
      %s862 = scalar_lea.vmem %s14, %s861
      %p863 = pneg %p412
      %p864 = pneg %p409
      %p865 = scmp.lt.s32.totalorder %s40, 1
      %s866 = scalar_select %p865, %s40, 1
      %s867 = smul.addr %s866, 8
      %s868 = scalar_lea.vmem %s15, %s867
      %p869 = pneg %p438
      %p870 = pneg %p435
      %p871 = scmp.lt.s32.totalorder %s40, 1
      %s872 = scalar_select %p871, %s40, 1
      %s873 = smul.addr %s872, 4
      %s874 = smul.addr %s873, 8
      %s875 = scalar_lea.vmem %s16, %s874
      %p876 = pneg %p464
      %p877 = pneg %p461
      %p878 = scmp.lt.s32.totalorder %s40, 1
      %s879 = scalar_select %p878, %s40, 1
      %s880 = smul.addr %s879, 2
      %s881 = smul.addr %s880, 8
      %s882 = scalar_lea.vmem %s17, %s881
      %p883 = pneg %p490
      %p884 = pneg %p487
      %p885 = scmp.lt.s32.totalorder %s40, 1
      %s886 = scalar_select %p885, %s40, 1
      %s887 = smul.addr %s886, 8
      %s888 = smul.addr %s887, 8
      %s889 = scalar_lea.vmem %s18, %s888
      %p890 = pneg %p516
      %p891 = pneg %p513
      %p892 = scmp.lt.s32.totalorder %s40, 1
      %s893 = scalar_select %p892, %s40, 1
      %s894 = smul.addr %s893, 4
      %s895 = scalar_lea.vmem %s19, %s894
      %p896 = pneg %p542
      %p897 = pneg %p539
      %p898 = pneg %p563
      %p899 = pneg %p560
      %p900 = pneg %p584
      %p901 = pneg %p581
      %p902 = pneg %p610
      %p903 = pneg %p607
      %p904 = scmp.lt.s32.totalorder %s39, 1
      %s905 = scalar_select %p904, %s39, 1
      %s906 = scalar_lea.vmem %s22, %s905
      %s907 = smul.u32 4, %s39
      %p908 = scmp.lt.s32.totalorder %s907, 7
      %s909 = scalar_select %p908, %s907, 7
      %s910 = smul.addr %s909, 8
      %s911 = scalar_lea.vmem %s0, %s910
      %s912 = smul.u32 4, %s39
      %s913 = smul.u32 4, %s39
      %p914 = scmp.lt.s32.totalorder %s913, 7
      %s915 = scalar_select %p914, %s913, 7
      %s916 = smul.addr %s915, 8
      %s917 = scalar_lea.vmem %s1, %s916
      %s918 = smul.u32 4, %s39
      %p919 = scmp.lt.s32.totalorder %s40, 1
      %s920 = scalar_select %p919, %s40, 1
      %s921 = smul.addr %s920, 4
      %s922 = smul.addr %s921, 8
      %s923 = scalar_lea.vmem %s6, %s922
      %p924 = scmp.lt.s32.totalorder %s40, 1
      %s925 = scalar_select %p924, %s40, 1
      %s926 = smul.addr %s925, 4
      %s927 = smul.addr %s926, 8
      %s928 = scalar_lea.vmem %s7, %s927
      %p929 = scmp.lt.s32.totalorder %s40, 1
      %s930 = scalar_select %p929, %s40, 1
      %s931 = smul.addr %s930, 4
      %s932 = smul.addr %s931, 8
      %s933 = scalar_lea.vmem %s8, %s932
      %p934 = scmp.lt.s32.totalorder %s40, 1
      %s935 = scalar_select %p934, %s40, 1
      %s936 = smul.addr %s935, 8
      %s937 = smul.addr %s936, 8
      %s938 = scalar_lea.vmem %s9, %s937
      %p939 = scmp.lt.s32.totalorder %s40, 1
      %s940 = scalar_select %p939, %s40, 1
      %s941 = smul.addr %s940, 8
      %s942 = scalar_lea.vmem %s10, %s941
      %p943 = scmp.lt.s32.totalorder %s40, 1
      %s944 = scalar_select %p943, %s40, 1
      %s945 = smul.addr %s944, 4
      %s946 = smul.addr %s945, 8
      %s947 = scalar_lea.vmem %s11, %s946
      %p948 = scmp.lt.s32.totalorder %s40, 1
      %s949 = scalar_select %p948, %s40, 1
      %s950 = smul.addr %s949, 4
      %s951 = smul.addr %s950, 8
      %s952 = scalar_lea.vmem %s12, %s951
      %p953 = scmp.lt.s32.totalorder %s40, 1
      %s954 = scalar_select %p953, %s40, 1
      %s955 = smul.addr %s954, 4
      %s956 = smul.addr %s955, 8
      %s957 = scalar_lea.vmem %s13, %s956
      %p958 = scmp.lt.s32.totalorder %s40, 1
      %s959 = scalar_select %p958, %s40, 1
      %s960 = smul.addr %s959, 8
      %s961 = smul.addr %s960, 8
      %s962 = scalar_lea.vmem %s14, %s961
      %p963 = scmp.lt.s32.totalorder %s40, 1
      %s964 = scalar_select %p963, %s40, 1
      %s965 = smul.addr %s964, 8
      %s966 = scalar_lea.vmem %s15, %s965
      %p967 = scmp.lt.s32.totalorder %s40, 1
      %s968 = scalar_select %p967, %s40, 1
      %s969 = smul.addr %s968, 4
      %s970 = smul.addr %s969, 8
      %s971 = scalar_lea.vmem %s16, %s970
      %p972 = scmp.lt.s32.totalorder %s40, 1
      %s973 = scalar_select %p972, %s40, 1
      %s974 = smul.addr %s973, 2
      %s975 = smul.addr %s974, 8
      %s976 = scalar_lea.vmem %s17, %s975
      %p977 = scmp.lt.s32.totalorder %s40, 1
      %s978 = scalar_select %p977, %s40, 1
      %s979 = smul.addr %s978, 8
      %s980 = smul.addr %s979, 8
      %s981 = scalar_lea.vmem %s18, %s980
      %p982 = scmp.lt.s32.totalorder %s40, 1
      %s983 = scalar_select %p982, %s40, 1
      %s984 = smul.addr %s983, 4
      %s985 = scalar_lea.vmem %s19, %s984
      %p986 = scmp.lt.s32.totalorder %s39, 1
      %s987 = scalar_select %p986, %s39, 1
      %s988 = scalar_lea.vmem %s22, %s987
      %p989 = scmp.eq.s32.totalorder %s40, 0
      // Predicated region
      $region109: #{_lambda_.3} parent=107 // pred_check
        %p990 = pneg %p989
      $region110: #{_lambda_.3} parent=107 // pred_check_branch
        %992 = sbr.rel (%p990) target = $region112
      $region111: #{_lambda_.3} parent=107 // pred_region
        %v993 = vld [vmem:[%s911] sm:$0xff]
        %v994 = vld [vmem:[%s911 + $0x8] sm:$0xff]
        %v995 = vld [vmem:[%s911 + $0x10] sm:$0xff]
        %v996 = vld [vmem:[%s911 + $0x18] sm:$0xff]
        %v997 = vld [vmem:[%s4] sm:$0xf]
        %v998 = vld [vmem:[%s5] sm:$0x1]
        %v1000 = vlaneseq
        %v1001 = vshrl.u32 %v1000, 7
        %v1002 = vsub.s32 0, %v1001
        %v1003 = vrot.slane %v998, %v1002
        %vm1005 = vcmask 31744
        %v1007 = vsel %vm1005, %v993, 0
        %v1010 = vsel %vm1005, %v994, 0
        %v1013 = vsel %vm1005, %v995, 0
        %v1016 = vsel %vm1005, %v996, 0
        %vm1018 = vcmask 1043456
        %v1020 = vsel %vm1018, %v997, 0
        %1022 = vmatprep.subr.mxu0 0.0
        %1023 = vmatpush1.msra.mxu0 %v1020
        %1024 = vmatprep.subr.mxu0 0.0
        %1025 = vmatpush1.msra.mxu0 0.0
        %1026 = vmatprep.subr.mxu0 0.0
        %1027 = vmatpush1.msra.mxu0 0.0
        %1028 = vmatprep.subr.mxu0 0.0
        %1029 = vmatpush1.msra.mxu0 0.0
        %1030 = vmatprep.subr.mxu0 0.0
        %1031 = vmatpush1.msra.mxu0 0.0
        %1032 = vmatprep.subr.mxu0 0.0
        %1033 = vmatpush1.msra.mxu0 0.0
        %1034 = vmatprep.subr.mxu0 0.0
        %1035 = vmatpush1.msra.mxu0 0.0
        %1036 = vmatprep.subr.mxu0 0.0
        %1037 = vmatpush1.msra.mxu0 0.0
        %1038 = vmatprep.subr.mxu0 0.0
        %1039 = vmatpush1.msra.mxu0 0.0
        %1040 = vmatprep.subr.mxu0 0.0
        %1041 = vmatpush1.msra.mxu0 0.0
        %1042 = vmatprep.subr.mxu0 0.0
        %1043 = vmatpush1.msra.mxu0 0.0
        %1044 = vmatprep.subr.mxu0 0.0
        %1045 = vmatpush1.msra.mxu0 0.0
        %1046 = vmatprep.subr.mxu0 0.0
        %1047 = vmatpush1.msra.mxu0 0.0
        %1048 = vmatprep.subr.mxu0 0.0
        %1049 = vmatpush1.msra.mxu0 0.0
        %1050 = vmatprep.subr.mxu0 0.0
        %1051 = vmatpush1.msra.mxu0 0.0
        %1052 = vmatprep.subr.mxu0 0.0
        %1053 = vmatpush1.msra.mxu0 0.0
        %1054 = vmatprep.subr.mxu0 0.0
        %1055 = vmatpush1.msra.mxu0 0.0
        %1056 = vmatprep.subr.mxu0 0.0
        %1057 = vmatpush1.msra.mxu0 0.0
        %1058 = vmatprep.subr.mxu0 0.0
        %1059 = vmatpush1.msra.mxu0 0.0
        %1060 = vmatprep.subr.mxu0 0.0
        %1061 = vmatpush1.msra.mxu0 0.0
        %1062 = vmatprep.subr.mxu0 0.0
        %1063 = vmatpush1.msra.mxu0 0.0
        %1064 = vmatprep.subr.mxu0 0.0
        %1065 = vmatpush1.msra.mxu0 0.0
        %1066 = vmatprep.subr.mxu0 0.0
        %1067 = vmatpush1.msra.mxu0 0.0
        %1068 = vmatprep.subr.mxu0 0.0
        %1069 = vmatpush1.msra.mxu0 0.0
        %1070 = vmatprep.subr.mxu0 0.0
        %1071 = vmatpush1.msra.mxu0 0.0
        %1072 = vmatprep.subr.mxu0 0.0
        %1073 = vmatpush1.msra.mxu0 0.0
        %1074 = vmatprep.subr.mxu0 0.0
        %1075 = vmatpush1.msra.mxu0 0.0
        %1076 = vmatprep.subr.mxu0 0.0
        %1077 = vmatpush1.msra.mxu0 0.0
        %1078 = vmatprep.subr.mxu0 0.0
        %1079 = vmatpush1.msra.mxu0 0.0
        %1080 = vmatprep.subr.mxu0 0.0
        %1081 = vmatpush1.msra.mxu0 0.0
        %1082 = vmatprep.subr.mxu0 0.0
        %1083 = vmatpush1.msra.mxu0 0.0
        %1084 = vmatprep.subr.mxu0 0.0
        %1085 = vmatpush1.msra.mxu0 0.0
        %1086 = vmatprep.mubr.f32.mxu0 0.0
        %1087 = vmatmul.mubr.f32.gmra.mrb[0].mxu0 %v1007
        %v1088 = vpop.f32.mrb[0].mxu0
        %v1089 = vadd.f32 %v1003, %v1088
        %v1090 = vpop.f32.mrb[0].mxu0
        %1091 = vmatprep.mubr.f32.mxu0 0.0
        %1092 = vmatmul.mubr.f32.gmra.mrb[0].mxu0 %v1010
        %v1093 = vpop.f32.mrb[0].mxu0
        %v1094 = vadd.f32 %v1003, %v1093
        %v1095 = vpop.f32.mrb[0].mxu0
        %1096 = vmatprep.mubr.f32.mxu0 0.0
        %1097 = vmatmul.mubr.f32.gmra.mrb[0].mxu0 %v1013
        %v1098 = vpop.f32.mrb[0].mxu0
        %v1099 = vadd.f32 %v1003, %v1098
        %v1100 = vpop.f32.mrb[0].mxu0
        %1101 = vmatprep.mubr.f32.mxu0 0.0
        %1102 = vmatmul.mubr.f32.gmra.mrb[0].mxu0 %v1016
        %v1103 = vpop.f32.mrb[0].mxu0
        %v1104 = vadd.f32 %v1003, %v1103
        %v1105 = vpop.f32.mrb[0].mxu0
        %1106 = vdwg.mxu0
        %vm1107 = vcmask 261120
        %1108 = vst.msk [vmem:[#allocation2] sm:$0xff] %vm1107, %v1089
        %1109 = vst.msk [vmem:[#allocation2 + $0x8] sm:$0xff] %vm1107, %v1094
        %1110 = vst.msk [vmem:[#allocation2 + $0x10] sm:$0xff] %vm1107, %v1099
        %1111 = vst.msk [vmem:[#allocation2 + $0x18] sm:$0xff] %vm1107, %v1104
      $region112: #{_lambda_.3} parent=107 // pred_fallthru
        _
      %v1112 = vld [vmem:[#allocation2] sm:$0xff]
      %v1113 = vld [vmem:[#allocation2 + $0x8] sm:$0xff]
      %v1114 = vld [vmem:[#allocation2 + $0x10] sm:$0xff]
      %v1115 = vld [vmem:[#allocation2 + $0x18] sm:$0xff]
      %v1116 = vld [vmem:[%s985] sm:$0x7]
      %v1117 = vld [vmem:[%s923] sm:$0xff]
      %v1118 = vld [vmem:[%s923 + $0x8] sm:$0xff]
      %v1119 = vld [vmem:[%s923 + $0x10] sm:$0xff]
      %v1120 = vld [vmem:[%s923 + $0x18] sm:$0xff]
      %v1121 = vld [vmem:[%s928] sm:$0xff]
      %v1122 = vld [vmem:[%s928 + $0x8] sm:$0xff]
      %v1123 = vld [vmem:[%s928 + $0x10] sm:$0xff]
      %v1124 = vld [vmem:[%s928 + $0x18] sm:$0xff]
      %v1125 = vld [vmem:[%s933] sm:$0xff]
      %v1126 = vld [vmem:[%s933 + $0x8] sm:$0xff]
      %v1127 = vld [vmem:[%s933 + $0x10] sm:$0xff]
      %v1128 = vld [vmem:[%s933 + $0x18] sm:$0xff]
      %v1129 = vld [vmem:[%s938] sm:$0xff]
      %v1130 = vld [vmem:[%s938 + $0x8] sm:$0xff]
      %v1131 = vld [vmem:[%s938 + $0x10] sm:$0xff]
      %v1132 = vld [vmem:[%s938 + $0x18] sm:$0xff]
      %v1133 = vld [vmem:[%s938 + $0x20] sm:$0xff]
      %v1134 = vld [vmem:[%s938 + $0x28] sm:$0xff]
      %v1135 = vld [vmem:[%s938 + $0x30] sm:$0xff]
      %v1136 = vld [vmem:[%s938 + $0x38] sm:$0xff]
      %v1137 = vld [vmem:[%s942] sm:$0xff]
      %v1138 = vld [vmem:[%s2] sm:$0xff]
      %v1139 = vld [vmem:[%s2 + $0x8] sm:$0xff]
      %v1140 = vld [vmem:[%s2 + $0x10] sm:$0xff]
      %v1141 = vld [vmem:[%s2 + $0x18] sm:$0xff]
      %v1142 = vlaneseq
      %v1143 = vshrl.u32 %v1142, 7
      %v1144 = vsub.s32 0, %v1143
      %v1145 = vrot.slane %v1137, %v1144
      %vm1146 = vcmask 261120
      %v1148 = vsel %vm1146, %v1112, 0
      %v1151 = vsel %vm1146, %v1113, 0
      %v1154 = vsel %vm1146, %v1114, 0
      %v1157 = vsel %vm1146, %v1115, 0
      %1159 = vmatprep.subr.mxu0 0.0
      %1160 = vmatpush1.msra.mxu0 %v1117
      %1161 = vmatprep.subr.mxu0 0.0
      %1162 = vmatpush1.msra.mxu0 %v1118
      %1163 = vmatprep.subr.mxu0 0.0
      %1164 = vmatpush1.msra.mxu0 %v1119
      %1165 = vmatprep.subr.mxu0 0.0
      %1166 = vmatpush1.msra.mxu0 %v1120
      %1167 = vmatprep.subr.mxu0 0.0
      %1168 = vmatpush1.msra.mxu0 0.0
      %1169 = vmatprep.subr.mxu0 0.0
      %1170 = vmatpush1.msra.mxu0 0.0
      %1171 = vmatprep.subr.mxu0 0.0
      %1172 = vmatpush1.msra.mxu0 0.0
      %1173 = vmatprep.subr.mxu0 0.0
      %1174 = vmatpush1.msra.mxu0 0.0
      %1175 = vmatprep.subr.mxu0 0.0
      %1176 = vmatpush1.msra.mxu0 0.0
      %1177 = vmatprep.subr.mxu0 0.0
      %1178 = vmatpush1.msra.mxu0 0.0
      %1179 = vmatprep.subr.mxu0 0.0
      %1180 = vmatpush1.msra.mxu0 0.0
      %1181 = vmatprep.subr.mxu0 0.0
      %1182 = vmatpush1.msra.mxu0 0.0
      %1183 = vmatprep.subr.mxu0 0.0
      %1184 = vmatpush1.msra.mxu0 0.0
      %1185 = vmatprep.subr.mxu0 0.0
      %1186 = vmatpush1.msra.mxu0 0.0
      %1187 = vmatprep.subr.mxu0 0.0
      %1188 = vmatpush1.msra.mxu0 0.0
      %1189 = vmatprep.subr.mxu0 0.0
      %1190 = vmatpush1.msra.mxu0 0.0
      %1191 = vmatprep.subr.mxu0 0.0
      %1192 = vmatpush1.msra.mxu0 0.0
      %1193 = vmatprep.subr.mxu0 0.0
      %1194 = vmatpush1.msra.mxu0 0.0
      %1195 = vmatprep.subr.mxu0 0.0
      %1196 = vmatpush1.msra.mxu0 0.0
      %1197 = vmatprep.subr.mxu0 0.0
      %1198 = vmatpush1.msra.mxu0 0.0
      %1199 = vmatprep.subr.mxu0 0.0
      %1200 = vmatpush1.msra.mxu0 0.0
      %1201 = vmatprep.subr.mxu0 0.0
      %1202 = vmatpush1.msra.mxu0 0.0
      %1203 = vmatprep.subr.mxu0 0.0
      %1204 = vmatpush1.msra.mxu0 0.0
      %1205 = vmatprep.subr.mxu0 0.0
      %1206 = vmatpush1.msra.mxu0 0.0
      %1207 = vmatprep.subr.mxu0 0.0
      %1208 = vmatpush1.msra.mxu0 0.0
      %1209 = vmatprep.subr.mxu0 0.0
      %1210 = vmatpush1.msra.mxu0 0.0
      %1211 = vmatprep.subr.mxu0 0.0
      %1212 = vmatpush1.msra.mxu0 0.0
      %1213 = vmatprep.subr.mxu0 0.0
      %1214 = vmatpush1.msra.mxu0 0.0
      %1215 = vmatprep.subr.mxu0 0.0
      %1216 = vmatpush1.msra.mxu0 0.0
      %1217 = vmatprep.subr.mxu0 0.0
      %1218 = vmatpush1.msra.mxu0 0.0
      %1219 = vmatprep.subr.mxu0 0.0
      %1220 = vmatpush1.msra.mxu0 0.0
      %1221 = vmatprep.subr.mxu0 0.0
      %1222 = vmatpush1.msra.mxu0 0.0
      %1223 = vmatprep.mubr.f32.mxu0 0.0
      %1224 = vmatmul.mubr.f32.gmra.mrb[0].mxu0 %v1148
      %v1225 = vpop.f32.mrb[0].mxu0
      %v1226 = vadd.f32 %v1145, %v1225
      %v1227 = vpop.f32.mrb[0].mxu0
      %1228 = vmatprep.mubr.f32.mxu0 0.0
      %1229 = vmatmul.mubr.f32.gmra.mrb[0].mxu0 %v1151
      %v1230 = vpop.f32.mrb[0].mxu0
      %v1231 = vadd.f32 %v1145, %v1230
      %v1232 = vpop.f32.mrb[0].mxu0
      %1233 = vmatprep.mubr.f32.mxu0 0.0
      %1234 = vmatmul.mubr.f32.gmra.mrb[0].mxu0 %v1154
      %v1235 = vpop.f32.mrb[0].mxu0
      %v1236 = vadd.f32 %v1145, %v1235
      %v1237 = vpop.f32.mrb[0].mxu0
      %1238 = vmatprep.mubr.f32.mxu0 0.0
      %1239 = vmatmul.mubr.f32.gmra.mrb[0].mxu0 %v1157
      %v1240 = vpop.f32.mrb[0].mxu0
      %v1241 = vadd.f32 %v1145, %v1240
      %v1242 = vpop.f32.mrb[0].mxu0
      %1243 = vdwg.mxu0
      %v1244 = vmul.f32 %v1226, 0.35355338
      %v1245 = vmul.f32 %v1231, 0.35355338
      %v1246 = vmul.f32 %v1236, 0.35355338
      %v1247 = vmul.f32 %v1241, 0.35355338
      %1252 = vrot.lane.b32.xlu0 %v1226, 96
      %v1253 = vpop.permute.xlu0 %1252
      %1254 = vrot.lane.b32.xlu0 %v1231, 96
      %v1255 = vpop.permute.xlu0 %1254
      %1256 = vrot.lane.b32.xlu0 %v1236, 96
      %v1257 = vpop.permute.xlu0 %1256
      %1258 = vrot.lane.b32.xlu0 %v1241, 96
      %v1259 = vpop.permute.xlu0 %1258
      %vm1260 = vcmask 64512
      %v1262 = vsel %vm1260, %v1244, 0
      %v1265 = vsel %vm1260, %v1245, 0
      %v1268 = vsel %vm1260, %v1246, 0
      %v1271 = vsel %vm1260, %v1247, 0
      %v1273 = vsel %vm1260, %v1253, 0
      %v1275 = vsel %vm1260, %v1255, 0
      %v1277 = vsel %vm1260, %v1257, 0
      %v1279 = vsel %vm1260, %v1259, 0
      %1281 = vmatprep.subr.mxu0 0.0
      %1282 = vmatpush1.xpose.msra.mxu0 %v1273
      %1283 = vmatprep.subr.mxu0 0.0
      %1284 = vmatpush1.xpose.msra.mxu0 %v1275
      %1285 = vmatprep.subr.mxu0 0.0
      %1286 = vmatpush1.xpose.msra.mxu0 %v1277
      %1287 = vmatprep.subr.mxu0 0.0
      %1288 = vmatpush1.xpose.msra.mxu0 %v1279
      %1289 = vmatprep.subr.mxu0 0.0
      %1290 = vmatpush1.xpose.msra.mxu0 0.0
      %1291 = vmatprep.subr.mxu0 0.0
      %1292 = vmatpush1.xpose.msra.mxu0 0.0
      %1293 = vmatprep.subr.mxu0 0.0
      %1294 = vmatpush1.xpose.msra.mxu0 0.0
      %1295 = vmatprep.subr.mxu0 0.0
      %1296 = vmatpush1.xpose.msra.mxu0 0.0
      %1297 = vmatprep.subr.mxu0 0.0
      %1298 = vmatpush1.xpose.msra.mxu0 0.0
      %1299 = vmatprep.subr.mxu0 0.0
      %1300 = vmatpush1.xpose.msra.mxu0 0.0
      %1301 = vmatprep.subr.mxu0 0.0
      %1302 = vmatpush1.xpose.msra.mxu0 0.0
      %1303 = vmatprep.subr.mxu0 0.0
      %1304 = vmatpush1.xpose.msra.mxu0 0.0
      %1305 = vmatprep.subr.mxu0 0.0
      %1306 = vmatpush1.xpose.msra.mxu0 0.0
      %1307 = vmatprep.subr.mxu0 0.0
      %1308 = vmatpush1.xpose.msra.mxu0 0.0
      %1309 = vmatprep.subr.mxu0 0.0
      %1310 = vmatpush1.xpose.msra.mxu0 0.0
      %1311 = vmatprep.subr.mxu0 0.0
      %1312 = vmatpush1.xpose.msra.mxu0 0.0
      %1313 = vmatprep.subr.mxu0 0.0
      %1314 = vmatpush1.xpose.msra.mxu0 0.0
      %1315 = vmatprep.subr.mxu0 0.0
      %1316 = vmatpush1.xpose.msra.mxu0 0.0
      %1317 = vmatprep.subr.mxu0 0.0
      %1318 = vmatpush1.xpose.msra.mxu0 0.0
      %1319 = vmatprep.subr.mxu0 0.0
      %1320 = vmatpush1.xpose.msra.mxu0 0.0
      %1321 = vmatprep.subr.mxu0 0.0
      %1322 = vmatpush1.xpose.msra.mxu0 0.0
      %1323 = vmatprep.subr.mxu0 0.0
      %1324 = vmatpush1.xpose.msra.mxu0 0.0
      %1325 = vmatprep.subr.mxu0 0.0
      %1326 = vmatpush1.xpose.msra.mxu0 0.0
      %1327 = vmatprep.subr.mxu0 0.0
      %1328 = vmatpush1.xpose.msra.mxu0 0.0
      %1329 = vmatprep.subr.mxu0 0.0
      %1330 = vmatpush1.xpose.msra.mxu0 0.0
      %1331 = vmatprep.subr.mxu0 0.0
      %1332 = vmatpush1.xpose.msra.mxu0 0.0
      %1333 = vmatprep.subr.mxu0 0.0
      %1334 = vmatpush1.xpose.msra.mxu0 0.0
      %1335 = vmatprep.subr.mxu0 0.0
      %1336 = vmatpush1.xpose.msra.mxu0 0.0
      %1337 = vmatprep.subr.mxu0 0.0
      %1338 = vmatpush1.xpose.msra.mxu0 0.0
      %1339 = vmatprep.subr.mxu0 0.0
      %1340 = vmatpush1.xpose.msra.mxu0 0.0
      %1341 = vmatprep.subr.mxu0 0.0
      %1342 = vmatpush1.xpose.msra.mxu0 0.0
      %1343 = vmatprep.subr.mxu0 0.0
      %1344 = vmatpush1.xpose.msra.mxu0 0.0
      %1345 = vmatprep.mubr.f32.mxu0 0.0
      %1346 = vmatmul.mubr.f32.gmra.mrb[0].mxu0 %v1262
      %v1347 = vpop.f32.mrb[0].mxu0
      %v1348 = vadd.f32 %v1138, %v1347
      %v1349 = vpop.f32.mrb[0].mxu0
      %1350 = vmatprep.mubr.f32.mxu0 0.0
      %1351 = vmatmul.mubr.f32.gmra.mrb[0].mxu0 %v1265
      %v1352 = vpop.f32.mrb[0].mxu0
      %v1353 = vadd.f32 %v1139, %v1352
      %v1354 = vpop.f32.mrb[0].mxu0
      %1355 = vmatprep.mubr.f32.mxu0 0.0
      %1356 = vmatmul.mubr.f32.gmra.mrb[0].mxu0 %v1268
      %v1357 = vpop.f32.mrb[0].mxu0
      %v1358 = vadd.f32 %v1140, %v1357
      %v1359 = vpop.f32.mrb[0].mxu0
      %1360 = vmatprep.mubr.f32.mxu0 0.0
      %1361 = vmatmul.mubr.f32.gmra.mrb[0].mxu0 %v1271
      %v1362 = vpop.f32.mrb[0].mxu0
      %v1363 = vadd.f32 %v1141, %v1362
      %v1364 = vpop.f32.mrb[0].mxu0
      %1365 = vdwg.mxu0
      %v1366 = vsel %vm1146, %v1348, -inf
      %1367 = vmax.xlane.f32.xlu0 %v1366
      %v1368 = vpop.xlane.xlu0 %1367
      %v1369 = vsel %vm1146, %v1353, -inf
      %1370 = vmax.xlane.f32.xlu0 %v1369
      %v1371 = vpop.xlane.xlu0 %1370
      %v1372 = vsel %vm1146, %v1358, -inf
      %1373 = vmax.xlane.f32.xlu0 %v1372
      %v1374 = vpop.xlane.xlu0 %1373
      %v1375 = vsel %vm1146, %v1363, -inf
      %1376 = vmax.xlane.f32.xlu0 %v1375
      %v1377 = vpop.xlane.xlu0 %1376
      %v1378 = vsub.f32 %v1348, %v1368
      %v1379 = vsub.f32 %v1353, %v1371
      %v1380 = vsub.f32 %v1358, %v1374
      %v1381 = vsub.f32 %v1363, %v1377
      %v1382 = vmul.f32 %v1378, 1.442695
      %v1383 = vpow.pop %v1382
      %v1384 = vmul.f32 %v1379, 1.442695
      %v1385 = vpow.pop %v1384
      %v1386 = vmul.f32 %v1380, 1.442695
      %v1387 = vpow.pop %v1386
      %v1388 = vmul.f32 %v1381, 1.442695
      %v1389 = vpow.pop %v1388
      %v1390 = vsel %vm1146, %v1383, 0.0
      %1391 = vadd.xlane.f32.xlu0 %v1390
      %v1392 = vpop.xlane.xlu0 %1391
      %v1393 = vsel %vm1146, %v1385, 0.0
      %1394 = vadd.xlane.f32.xlu0 %v1393
      %v1395 = vpop.xlane.xlu0 %1394
      %v1396 = vsel %vm1146, %v1387, 0.0
      %1397 = vadd.xlane.f32.xlu0 %v1396
      %v1398 = vpop.xlane.xlu0 %1397
      %v1399 = vsel %vm1146, %v1389, 0.0
      %1400 = vadd.xlane.f32.xlu0 %v1399
      %v1401 = vpop.xlane.xlu0 %1400
      %v1402 = vrcp.pop %v1392
      %v1403 = vmul.f32 %v1383, %v1402
      %v1404 = vrcp.pop %v1395
      %v1405 = vmul.f32 %v1385, %v1404
      %v1406 = vrcp.pop %v1398
      %v1407 = vmul.f32 %v1387, %v1406
      %v1408 = vrcp.pop %v1401
      %v1409 = vmul.f32 %v1389, %v1408
      %1410 = vrot.lane.b32.xlu0 %v1226, 64
      %v1411 = vpop.permute.xlu0 %1410
      %1412 = vrot.lane.b32.xlu0 %v1231, 64
      %v1413 = vpop.permute.xlu0 %1412
      %1414 = vrot.lane.b32.xlu0 %v1236, 64
      %v1415 = vpop.permute.xlu0 %1414
      %1416 = vrot.lane.b32.xlu0 %v1241, 64
      %v1417 = vpop.permute.xlu0 %1416
      %v1423 = vsel %vm1146, %v1403, 0
      %v1426 = vsel %vm1146, %v1405, 0
      %v1429 = vsel %vm1146, %v1407, 0
      %v1432 = vsel %vm1146, %v1409, 0
      %1434 = vmatprep.subr.mxu0 0.0
      %1435 = vmatpush1.msra.mxu0 %v1411
      %1436 = vmatprep.subr.mxu0 0.0
      %1437 = vmatpush1.msra.mxu0 %v1413
      %1438 = vmatprep.subr.mxu0 0.0
      %1439 = vmatpush1.msra.mxu0 %v1415
      %1440 = vmatprep.subr.mxu0 0.0
      %1441 = vmatpush1.msra.mxu0 %v1417
      %1442 = vmatprep.subr.mxu0 0.0
      %1443 = vmatpush1.msra.mxu0 0.0
      %1444 = vmatprep.subr.mxu0 0.0
      %1445 = vmatpush1.msra.mxu0 0.0
      %1446 = vmatprep.subr.mxu0 0.0
      %1447 = vmatpush1.msra.mxu0 0.0
      %1448 = vmatprep.subr.mxu0 0.0
      %1449 = vmatpush1.msra.mxu0 0.0
      %1450 = vmatprep.subr.mxu0 0.0
      %1451 = vmatpush1.msra.mxu0 0.0
      %1452 = vmatprep.subr.mxu0 0.0
      %1453 = vmatpush1.msra.mxu0 0.0
      %1454 = vmatprep.subr.mxu0 0.0
      %1455 = vmatpush1.msra.mxu0 0.0
      %1456 = vmatprep.subr.mxu0 0.0
      %1457 = vmatpush1.msra.mxu0 0.0
      %1458 = vmatprep.subr.mxu0 0.0
      %1459 = vmatpush1.msra.mxu0 0.0
      %1460 = vmatprep.subr.mxu0 0.0
      %1461 = vmatpush1.msra.mxu0 0.0
      %1462 = vmatprep.subr.mxu0 0.0
      %1463 = vmatpush1.msra.mxu0 0.0
      %1464 = vmatprep.subr.mxu0 0.0
      %1465 = vmatpush1.msra.mxu0 0.0
      %1466 = vmatprep.subr.mxu0 0.0
      %1467 = vmatpush1.msra.mxu0 0.0
      %1468 = vmatprep.subr.mxu0 0.0
      %1469 = vmatpush1.msra.mxu0 0.0
      %1470 = vmatprep.subr.mxu0 0.0
      %1471 = vmatpush1.msra.mxu0 0.0
      %1472 = vmatprep.subr.mxu0 0.0
      %1473 = vmatpush1.msra.mxu0 0.0
      %1474 = vmatprep.subr.mxu0 0.0
      %1475 = vmatpush1.msra.mxu0 0.0
      %1476 = vmatprep.subr.mxu0 0.0
      %1477 = vmatpush1.msra.mxu0 0.0
      %1478 = vmatprep.subr.mxu0 0.0
      %1479 = vmatpush1.msra.mxu0 0.0
      %1480 = vmatprep.subr.mxu0 0.0
      %1481 = vmatpush1.msra.mxu0 0.0
      %1482 = vmatprep.subr.mxu0 0.0
      %1483 = vmatpush1.msra.mxu0 0.0
      %1484 = vmatprep.subr.mxu0 0.0
      %1485 = vmatpush1.msra.mxu0 0.0
      %1486 = vmatprep.subr.mxu0 0.0
      %1487 = vmatpush1.msra.mxu0 0.0
      %1488 = vmatprep.subr.mxu0 0.0
      %1489 = vmatpush1.msra.mxu0 0.0
      %1490 = vmatprep.subr.mxu0 0.0
      %1491 = vmatpush1.msra.mxu0 0.0
      %1492 = vmatprep.subr.mxu0 0.0
      %1493 = vmatpush1.msra.mxu0 0.0
      %1494 = vmatprep.subr.mxu0 0.0
      %1495 = vmatpush1.msra.mxu0 0.0
      %1496 = vmatprep.subr.mxu0 0.0
      %1497 = vmatpush1.msra.mxu0 0.0
      %1498 = vmatprep.mubr.f32.mxu0 0.0
      %1499 = vmatmul.mubr.f32.gmra.mrb[0].mxu0 %v1423
      %v1500 = vpop.f32.mrb[0].mxu0
      %v1501 = vadd.f32 0.0, %v1500
      %v1502 = vpop.f32.mrb[0].mxu0
      %1503 = vmatprep.mubr.f32.mxu0 0.0
      %1504 = vmatmul.mubr.f32.gmra.mrb[0].mxu0 %v1426
      %v1505 = vpop.f32.mrb[0].mxu0
      %v1506 = vadd.f32 0.0, %v1505
      %v1507 = vpop.f32.mrb[0].mxu0
      %1508 = vmatprep.mubr.f32.mxu0 0.0
      %1509 = vmatmul.mubr.f32.gmra.mrb[0].mxu0 %v1429
      %v1510 = vpop.f32.mrb[0].mxu0
      %v1511 = vadd.f32 0.0, %v1510
      %v1512 = vpop.f32.mrb[0].mxu0
      %1513 = vmatprep.mubr.f32.mxu0 0.0
      %1514 = vmatmul.mubr.f32.gmra.mrb[0].mxu0 %v1432
      %v1515 = vpop.f32.mrb[0].mxu0
      %v1516 = vadd.f32 0.0, %v1515
      %v1517 = vpop.f32.mrb[0].mxu0
      %1518 = vdwg.mxu0
      %1519 = vrot.lane.b32.xlu0 %v1244, 120
      %v1520 = vpop.permute.xlu0 %1519
      %1521 = vrot.lane.b32.xlu0 %v1245, 120
      %v1522 = vpop.permute.xlu0 %1521
      %1523 = vrot.lane.b32.xlu0 %v1246, 120
      %v1524 = vpop.permute.xlu0 %1523
      %1525 = vrot.lane.b32.xlu0 %v1247, 120
      %v1526 = vpop.permute.xlu0 %1525
      %1527 = vrot.lane.b32.xlu0 %v1226, 88
      %v1528 = vpop.permute.xlu0 %1527
      %1529 = vrot.lane.b32.xlu0 %v1231, 88
      %v1530 = vpop.permute.xlu0 %1529
      %1531 = vrot.lane.b32.xlu0 %v1236, 88
      %v1532 = vpop.permute.xlu0 %1531
      %1533 = vrot.lane.b32.xlu0 %v1241, 88
      %v1534 = vpop.permute.xlu0 %1533
      %v1535 = vsel %vm1260, %v1520, 0
      %v1537 = vsel %vm1260, %v1522, 0
      %v1539 = vsel %vm1260, %v1524, 0
      %v1541 = vsel %vm1260, %v1526, 0
      %v1543 = vsel %vm1260, %v1528, 0
      %v1545 = vsel %vm1260, %v1530, 0
      %v1547 = vsel %vm1260, %v1532, 0
      %v1549 = vsel %vm1260, %v1534, 0
      %1551 = vmatprep.subr.mxu0 0.0
      %1552 = vmatpush1.xpose.msra.mxu0 %v1543
      %1553 = vmatprep.subr.mxu0 0.0
      %1554 = vmatpush1.xpose.msra.mxu0 %v1545
      %1555 = vmatprep.subr.mxu0 0.0
      %1556 = vmatpush1.xpose.msra.mxu0 %v1547
      %1557 = vmatprep.subr.mxu0 0.0
      %1558 = vmatpush1.xpose.msra.mxu0 %v1549
      %1559 = vmatprep.subr.mxu0 0.0
      %1560 = vmatpush1.xpose.msra.mxu0 0.0
      %1561 = vmatprep.subr.mxu0 0.0
      %1562 = vmatpush1.xpose.msra.mxu0 0.0
      %1563 = vmatprep.subr.mxu0 0.0
      %1564 = vmatpush1.xpose.msra.mxu0 0.0
      %1565 = vmatprep.subr.mxu0 0.0
      %1566 = vmatpush1.xpose.msra.mxu0 0.0
      %1567 = vmatprep.subr.mxu0 0.0
      %1568 = vmatpush1.xpose.msra.mxu0 0.0
      %1569 = vmatprep.subr.mxu0 0.0
      %1570 = vmatpush1.xpose.msra.mxu0 0.0
      %1571 = vmatprep.subr.mxu0 0.0
      %1572 = vmatpush1.xpose.msra.mxu0 0.0
      %1573 = vmatprep.subr.mxu0 0.0
      %1574 = vmatpush1.xpose.msra.mxu0 0.0
      %1575 = vmatprep.subr.mxu0 0.0
      %1576 = vmatpush1.xpose.msra.mxu0 0.0
      %1577 = vmatprep.subr.mxu0 0.0
      %1578 = vmatpush1.xpose.msra.mxu0 0.0
      %1579 = vmatprep.subr.mxu0 0.0
      %1580 = vmatpush1.xpose.msra.mxu0 0.0
      %1581 = vmatprep.subr.mxu0 0.0
      %1582 = vmatpush1.xpose.msra.mxu0 0.0
      %1583 = vmatprep.subr.mxu0 0.0
      %1584 = vmatpush1.xpose.msra.mxu0 0.0
      %1585 = vmatprep.subr.mxu0 0.0
      %1586 = vmatpush1.xpose.msra.mxu0 0.0
      %1587 = vmatprep.subr.mxu0 0.0
      %1588 = vmatpush1.xpose.msra.mxu0 0.0
      %1589 = vmatprep.subr.mxu0 0.0
      %1590 = vmatpush1.xpose.msra.mxu0 0.0
      %1591 = vmatprep.subr.mxu0 0.0
      %1592 = vmatpush1.xpose.msra.mxu0 0.0
      %1593 = vmatprep.subr.mxu0 0.0
      %1594 = vmatpush1.xpose.msra.mxu0 0.0
      %1595 = vmatprep.subr.mxu0 0.0
      %1596 = vmatpush1.xpose.msra.mxu0 0.0
      %1597 = vmatprep.subr.mxu0 0.0
      %1598 = vmatpush1.xpose.msra.mxu0 0.0
      %1599 = vmatprep.subr.mxu0 0.0
      %1600 = vmatpush1.xpose.msra.mxu0 0.0
      %1601 = vmatprep.subr.mxu0 0.0
      %1602 = vmatpush1.xpose.msra.mxu0 0.0
      %1603 = vmatprep.subr.mxu0 0.0
      %1604 = vmatpush1.xpose.msra.mxu0 0.0
      %1605 = vmatprep.subr.mxu0 0.0
      %1606 = vmatpush1.xpose.msra.mxu0 0.0
      %1607 = vmatprep.subr.mxu0 0.0
      %1608 = vmatpush1.xpose.msra.mxu0 0.0
      %1609 = vmatprep.subr.mxu0 0.0
      %1610 = vmatpush1.xpose.msra.mxu0 0.0
      %1611 = vmatprep.subr.mxu0 0.0
      %1612 = vmatpush1.xpose.msra.mxu0 0.0
      %1613 = vmatprep.subr.mxu0 0.0
      %1614 = vmatpush1.xpose.msra.mxu0 0.0
      %1615 = vmatprep.mubr.f32.mxu0 0.0
      %1616 = vmatmul.mubr.f32.gmra.mrb[0].mxu0 %v1535
      %v1617 = vpop.f32.mrb[0].mxu0
      %v1618 = vadd.f32 %v1138, %v1617
      %v1619 = vpop.f32.mrb[0].mxu0
      %1620 = vmatprep.mubr.f32.mxu0 0.0
      %1621 = vmatmul.mubr.f32.gmra.mrb[0].mxu0 %v1537
      %v1622 = vpop.f32.mrb[0].mxu0
      %v1623 = vadd.f32 %v1139, %v1622
      %v1624 = vpop.f32.mrb[0].mxu0
      %1625 = vmatprep.mubr.f32.mxu0 0.0
      %1626 = vmatmul.mubr.f32.gmra.mrb[0].mxu0 %v1539
      %v1627 = vpop.f32.mrb[0].mxu0
      %v1628 = vadd.f32 %v1140, %v1627
      %v1629 = vpop.f32.mrb[0].mxu0
      %1630 = vmatprep.mubr.f32.mxu0 0.0
      %1631 = vmatmul.mubr.f32.gmra.mrb[0].mxu0 %v1541
      %v1632 = vpop.f32.mrb[0].mxu0
      %v1633 = vadd.f32 %v1141, %v1632
      %v1634 = vpop.f32.mrb[0].mxu0
      %1635 = vdwg.mxu0
      %v1636 = vsel %vm1146, %v1618, -inf
      %1637 = vmax.xlane.f32.xlu0 %v1636
      %v1638 = vpop.xlane.xlu0 %1637
      %v1639 = vsel %vm1146, %v1623, -inf
      %1640 = vmax.xlane.f32.xlu0 %v1639
      %v1641 = vpop.xlane.xlu0 %1640
      %v1642 = vsel %vm1146, %v1628, -inf
      %1643 = vmax.xlane.f32.xlu0 %v1642
      %v1644 = vpop.xlane.xlu0 %1643
      %v1645 = vsel %vm1146, %v1633, -inf
      %1646 = vmax.xlane.f32.xlu0 %v1645
      %v1647 = vpop.xlane.xlu0 %1646
      %v1648 = vsub.f32 %v1618, %v1638
      %v1649 = vsub.f32 %v1623, %v1641
      %v1650 = vsub.f32 %v1628, %v1644
      %v1651 = vsub.f32 %v1633, %v1647
      %v1652 = vmul.f32 %v1648, 1.442695
      %v1653 = vpow.pop %v1652
      %v1654 = vmul.f32 %v1649, 1.442695
      %v1655 = vpow.pop %v1654
      %v1656 = vmul.f32 %v1650, 1.442695
      %v1657 = vpow.pop %v1656
      %v1658 = vmul.f32 %v1651, 1.442695
      %v1659 = vpow.pop %v1658
      %v1660 = vsel %vm1146, %v1653, 0.0
      %1661 = vadd.xlane.f32.xlu0 %v1660
      %v1662 = vpop.xlane.xlu0 %1661
      %v1663 = vsel %vm1146, %v1655, 0.0
      %1664 = vadd.xlane.f32.xlu0 %v1663
      %v1665 = vpop.xlane.xlu0 %1664
      %v1666 = vsel %vm1146, %v1657, 0.0
      %1667 = vadd.xlane.f32.xlu0 %v1666
      %v1668 = vpop.xlane.xlu0 %1667
      %v1669 = vsel %vm1146, %v1659, 0.0
      %1670 = vadd.xlane.f32.xlu0 %v1669
      %v1671 = vpop.xlane.xlu0 %1670
      %v1672 = vrcp.pop %v1662
      %v1673 = vmul.f32 %v1653, %v1672
      %v1674 = vrcp.pop %v1665
      %v1675 = vmul.f32 %v1655, %v1674
      %v1676 = vrcp.pop %v1668
      %v1677 = vmul.f32 %v1657, %v1676
      %v1678 = vrcp.pop %v1671
      %v1679 = vmul.f32 %v1659, %v1678
      %1680 = vrot.lane.b32.xlu0 %v1226, 56
      %v1681 = vpop.permute.xlu0 %1680
      %1682 = vrot.lane.b32.xlu0 %v1231, 56
      %v1683 = vpop.permute.xlu0 %1682
      %1684 = vrot.lane.b32.xlu0 %v1236, 56
      %v1685 = vpop.permute.xlu0 %1684
      %1686 = vrot.lane.b32.xlu0 %v1241, 56
      %v1687 = vpop.permute.xlu0 %1686
      %v1693 = vsel %vm1146, %v1673, 0
      %v1696 = vsel %vm1146, %v1675, 0
      %v1699 = vsel %vm1146, %v1677, 0
      %v1702 = vsel %vm1146, %v1679, 0
      %1704 = vmatprep.subr.mxu0 0.0
      %1705 = vmatpush1.msra.mxu0 %v1681
      %1706 = vmatprep.subr.mxu0 0.0
      %1707 = vmatpush1.msra.mxu0 %v1683
      %1708 = vmatprep.subr.mxu0 0.0
      %1709 = vmatpush1.msra.mxu0 %v1685
      %1710 = vmatprep.subr.mxu0 0.0
      %1711 = vmatpush1.msra.mxu0 %v1687
      %1712 = vmatprep.subr.mxu0 0.0
      %1713 = vmatpush1.msra.mxu0 0.0
      %1714 = vmatprep.subr.mxu0 0.0
      %1715 = vmatpush1.msra.mxu0 0.0
      %1716 = vmatprep.subr.mxu0 0.0
      %1717 = vmatpush1.msra.mxu0 0.0
      %1718 = vmatprep.subr.mxu0 0.0
      %1719 = vmatpush1.msra.mxu0 0.0
      %1720 = vmatprep.subr.mxu0 0.0
      %1721 = vmatpush1.msra.mxu0 0.0
      %1722 = vmatprep.subr.mxu0 0.0
      %1723 = vmatpush1.msra.mxu0 0.0
      %1724 = vmatprep.subr.mxu0 0.0
      %1725 = vmatpush1.msra.mxu0 0.0
      %1726 = vmatprep.subr.mxu0 0.0
      %1727 = vmatpush1.msra.mxu0 0.0
      %1728 = vmatprep.subr.mxu0 0.0
      %1729 = vmatpush1.msra.mxu0 0.0
      %1730 = vmatprep.subr.mxu0 0.0
      %1731 = vmatpush1.msra.mxu0 0.0
      %1732 = vmatprep.subr.mxu0 0.0
      %1733 = vmatpush1.msra.mxu0 0.0
      %1734 = vmatprep.subr.mxu0 0.0
      %1735 = vmatpush1.msra.mxu0 0.0
      %1736 = vmatprep.subr.mxu0 0.0
      %1737 = vmatpush1.msra.mxu0 0.0
      %1738 = vmatprep.subr.mxu0 0.0
      %1739 = vmatpush1.msra.mxu0 0.0
      %1740 = vmatprep.subr.mxu0 0.0
      %1741 = vmatpush1.msra.mxu0 0.0
      %1742 = vmatprep.subr.mxu0 0.0
      %1743 = vmatpush1.msra.mxu0 0.0
      %1744 = vmatprep.subr.mxu0 0.0
      %1745 = vmatpush1.msra.mxu0 0.0
      %1746 = vmatprep.subr.mxu0 0.0
      %1747 = vmatpush1.msra.mxu0 0.0
      %1748 = vmatprep.subr.mxu0 0.0
      %1749 = vmatpush1.msra.mxu0 0.0
      %1750 = vmatprep.subr.mxu0 0.0
      %1751 = vmatpush1.msra.mxu0 0.0
      %1752 = vmatprep.subr.mxu0 0.0
      %1753 = vmatpush1.msra.mxu0 0.0
      %1754 = vmatprep.subr.mxu0 0.0
      %1755 = vmatpush1.msra.mxu0 0.0
      %1756 = vmatprep.subr.mxu0 0.0
      %1757 = vmatpush1.msra.mxu0 0.0
      %1758 = vmatprep.subr.mxu0 0.0
      %1759 = vmatpush1.msra.mxu0 0.0
      %1760 = vmatprep.subr.mxu0 0.0
      %1761 = vmatpush1.msra.mxu0 0.0
      %1762 = vmatprep.subr.mxu0 0.0
      %1763 = vmatpush1.msra.mxu0 0.0
      %1764 = vmatprep.subr.mxu0 0.0
      %1765 = vmatpush1.msra.mxu0 0.0
      %1766 = vmatprep.subr.mxu0 0.0
      %1767 = vmatpush1.msra.mxu0 0.0
      %1768 = vmatprep.mubr.f32.mxu0 0.0
      %1769 = vmatmul.mubr.f32.gmra.mrb[0].mxu0 %v1693
      %v1770 = vpop.f32.mrb[0].mxu0
      %v1771 = vadd.f32 0.0, %v1770
      %v1772 = vpop.f32.mrb[0].mxu0
      %1773 = vmatprep.mubr.f32.mxu0 0.0
      %1774 = vmatmul.mubr.f32.gmra.mrb[0].mxu0 %v1696
      %v1775 = vpop.f32.mrb[0].mxu0
      %v1776 = vadd.f32 0.0, %v1775
      %v1777 = vpop.f32.mrb[0].mxu0
      %1778 = vmatprep.mubr.f32.mxu0 0.0
      %1779 = vmatmul.mubr.f32.gmra.mrb[0].mxu0 %v1699
      %v1780 = vpop.f32.mrb[0].mxu0
      %v1781 = vadd.f32 0.0, %v1780
      %v1782 = vpop.f32.mrb[0].mxu0
      %1783 = vmatprep.mubr.f32.mxu0 0.0
      %1784 = vmatmul.mubr.f32.gmra.mrb[0].mxu0 %v1702
      %v1785 = vpop.f32.mrb[0].mxu0
      %v1786 = vadd.f32 0.0, %v1785
      %v1787 = vpop.f32.mrb[0].mxu0
      %1788 = vdwg.mxu0
      %v1790 = vsel %vm1260, %v1771, 0
      %v1793 = vsel %vm1260, %v1776, 0
      %v1796 = vsel %vm1260, %v1781, 0
      %v1799 = vsel %vm1260, %v1786, 0
      %1801 = vmatprep.subr.mxu0 0.0
      %1802 = vmatpush1.msra.mxu0 %v1122
      %1803 = vmatprep.subr.mxu0 0.0
      %1804 = vmatpush1.msra.mxu0 0.0
      %1805 = vmatprep.subr.mxu0 0.0
      %1806 = vmatpush1.msra.mxu0 0.0
      %1807 = vmatprep.subr.mxu0 0.0
      %1808 = vmatpush1.msra.mxu0 0.0
      %1809 = vmatprep.subr.mxu0 0.0
      %1810 = vmatpush1.msra.mxu0 0.0
      %1811 = vmatprep.subr.mxu0 0.0
      %1812 = vmatpush1.msra.mxu0 0.0
      %1813 = vmatprep.subr.mxu0 0.0
      %1814 = vmatpush1.msra.mxu0 0.0
      %1815 = vmatprep.subr.mxu0 0.0
      %1816 = vmatpush1.msra.mxu0 0.0
      %1817 = vmatprep.subr.mxu0 0.0
      %1818 = vmatpush1.msra.mxu0 0.0
      %1819 = vmatprep.subr.mxu0 0.0
      %1820 = vmatpush1.msra.mxu0 0.0
      %1821 = vmatprep.subr.mxu0 0.0
      %1822 = vmatpush1.msra.mxu0 0.0
      %1823 = vmatprep.subr.mxu0 0.0
      %1824 = vmatpush1.msra.mxu0 0.0
      %1825 = vmatprep.subr.mxu0 0.0
      %1826 = vmatpush1.msra.mxu0 0.0
      %1827 = vmatprep.subr.mxu0 0.0
      %1828 = vmatpush1.msra.mxu0 0.0
      %1829 = vmatprep.subr.mxu0 0.0
      %1830 = vmatpush1.msra.mxu0 0.0
      %1831 = vmatprep.subr.mxu0 0.0
      %1832 = vmatpush1.msra.mxu0 0.0
      %1833 = vmatprep.subr.mxu0 0.0
      %1834 = vmatpush1.msra.mxu0 0.0
      %1835 = vmatprep.subr.mxu0 0.0
      %1836 = vmatpush1.msra.mxu0 0.0
      %1837 = vmatprep.subr.mxu0 0.0
      %1838 = vmatpush1.msra.mxu0 0.0
      %1839 = vmatprep.subr.mxu0 0.0
      %1840 = vmatpush1.msra.mxu0 0.0
      %1841 = vmatprep.subr.mxu0 0.0
      %1842 = vmatpush1.msra.mxu0 0.0
      %1843 = vmatprep.subr.mxu0 0.0
      %1844 = vmatpush1.msra.mxu0 0.0
      %1845 = vmatprep.subr.mxu0 0.0
      %1846 = vmatpush1.msra.mxu0 0.0
      %1847 = vmatprep.subr.mxu0 0.0
      %1848 = vmatpush1.msra.mxu0 0.0
      %1849 = vmatprep.subr.mxu0 0.0
      %1850 = vmatpush1.msra.mxu0 0.0
      %1851 = vmatprep.subr.mxu0 0.0
      %1852 = vmatpush1.msra.mxu0 0.0
      %1853 = vmatprep.subr.mxu0 0.0
      %1854 = vmatpush1.msra.mxu0 0.0
      %1855 = vmatprep.subr.mxu0 0.0
      %1856 = vmatpush1.msra.mxu0 0.0
      %1857 = vmatprep.subr.mxu0 0.0
      %1858 = vmatpush1.msra.mxu0 0.0
      %1859 = vmatprep.subr.mxu0 0.0
      %1860 = vmatpush1.msra.mxu0 0.0
      %1861 = vmatprep.subr.mxu0 0.0
      %1862 = vmatpush1.msra.mxu0 0.0
      %1863 = vmatprep.subr.mxu0 0.0
      %1864 = vmatpush1.msra.mxu0 0.0
      %1865 = vmatprep.mubr.f32.mxu0 0.0
      %1866 = vmatmul.mubr.f32.gmra.mrb[0].mxu0 %v1790
      %v1867 = vpop.f32.mrb[0].mxu0
      %v1868 = vadd.f32 0.0, %v1867
      %v1869 = vpop.f32.mrb[0].mxu0
      %1870 = vmatprep.mubr.f32.mxu0 0.0
      %1871 = vmatmul.mubr.f32.gmra.mrb[0].mxu0 %v1793
      %v1872 = vpop.f32.mrb[0].mxu0
      %v1873 = vadd.f32 0.0, %v1872
      %v1874 = vpop.f32.mrb[0].mxu0
      %1875 = vmatprep.mubr.f32.mxu0 0.0
      %1876 = vmatmul.mubr.f32.gmra.mrb[0].mxu0 %v1796
      %v1877 = vpop.f32.mrb[0].mxu0
      %v1878 = vadd.f32 0.0, %v1877
      %v1879 = vpop.f32.mrb[0].mxu0
      %1880 = vmatprep.mubr.f32.mxu0 0.0
      %1881 = vmatmul.mubr.f32.gmra.mrb[0].mxu0 %v1799
      %v1882 = vpop.f32.mrb[0].mxu0
      %v1883 = vadd.f32 0.0, %v1882
      %v1884 = vpop.f32.mrb[0].mxu0
      %1885 = vdwg.mxu0
      %v1887 = vsel %vm1260, %v1501, 0
      %v1890 = vsel %vm1260, %v1506, 0
      %v1893 = vsel %vm1260, %v1511, 0
      %v1896 = vsel %vm1260, %v1516, 0
      %1898 = vmatprep.subr.mxu0 0.0
      %1899 = vmatpush1.msra.mxu0 %v1121
      %1900 = vmatprep.subr.mxu0 0.0
      %1901 = vmatpush1.msra.mxu0 0.0
      %1902 = vmatprep.subr.mxu0 0.0
      %1903 = vmatpush1.msra.mxu0 0.0
      %1904 = vmatprep.subr.mxu0 0.0
      %1905 = vmatpush1.msra.mxu0 0.0
      %1906 = vmatprep.subr.mxu0 0.0
      %1907 = vmatpush1.msra.mxu0 0.0
      %1908 = vmatprep.subr.mxu0 0.0
      %1909 = vmatpush1.msra.mxu0 0.0
      %1910 = vmatprep.subr.mxu0 0.0
      %1911 = vmatpush1.msra.mxu0 0.0
      %1912 = vmatprep.subr.mxu0 0.0
      %1913 = vmatpush1.msra.mxu0 0.0
      %1914 = vmatprep.subr.mxu0 0.0
      %1915 = vmatpush1.msra.mxu0 0.0
      %1916 = vmatprep.subr.mxu0 0.0
      %1917 = vmatpush1.msra.mxu0 0.0
      %1918 = vmatprep.subr.mxu0 0.0
      %1919 = vmatpush1.msra.mxu0 0.0
      %1920 = vmatprep.subr.mxu0 0.0
      %1921 = vmatpush1.msra.mxu0 0.0
      %1922 = vmatprep.subr.mxu0 0.0
      %1923 = vmatpush1.msra.mxu0 0.0
      %1924 = vmatprep.subr.mxu0 0.0
      %1925 = vmatpush1.msra.mxu0 0.0
      %1926 = vmatprep.subr.mxu0 0.0
      %1927 = vmatpush1.msra.mxu0 0.0
      %1928 = vmatprep.subr.mxu0 0.0
      %1929 = vmatpush1.msra.mxu0 0.0
      %1930 = vmatprep.subr.mxu0 0.0
      %1931 = vmatpush1.msra.mxu0 0.0
      %1932 = vmatprep.subr.mxu0 0.0
      %1933 = vmatpush1.msra.mxu0 0.0
      %1934 = vmatprep.subr.mxu0 0.0
      %1935 = vmatpush1.msra.mxu0 0.0
      %1936 = vmatprep.subr.mxu0 0.0
      %1937 = vmatpush1.msra.mxu0 0.0
      %1938 = vmatprep.subr.mxu0 0.0
      %1939 = vmatpush1.msra.mxu0 0.0
      %1940 = vmatprep.subr.mxu0 0.0
      %1941 = vmatpush1.msra.mxu0 0.0
      %1942 = vmatprep.subr.mxu0 0.0
      %1943 = vmatpush1.msra.mxu0 0.0
      %1944 = vmatprep.subr.mxu0 0.0
      %1945 = vmatpush1.msra.mxu0 0.0
      %1946 = vmatprep.subr.mxu0 0.0
      %1947 = vmatpush1.msra.mxu0 0.0
      %1948 = vmatprep.subr.mxu0 0.0
      %1949 = vmatpush1.msra.mxu0 0.0
      %1950 = vmatprep.subr.mxu0 0.0
      %1951 = vmatpush1.msra.mxu0 0.0
      %1952 = vmatprep.subr.mxu0 0.0
      %1953 = vmatpush1.msra.mxu0 0.0
      %1954 = vmatprep.subr.mxu0 0.0
      %1955 = vmatpush1.msra.mxu0 0.0
      %1956 = vmatprep.subr.mxu0 0.0
      %1957 = vmatpush1.msra.mxu0 0.0
      %1958 = vmatprep.subr.mxu0 0.0
      %1959 = vmatpush1.msra.mxu0 0.0
      %1960 = vmatprep.subr.mxu0 0.0
      %1961 = vmatpush1.msra.mxu0 0.0
      %1962 = vmatprep.mubr.f32.mxu0 0.0
      %1963 = vmatmul.mubr.f32.gmra.mrb[0].mxu0 %v1887
      %v1964 = vpop.f32.mrb[0].mxu0
      %v1965 = vadd.f32 %v1868, %v1964
      %v1966 = vpop.f32.mrb[0].mxu0
      %1967 = vmatprep.mubr.f32.mxu0 0.0
      %1968 = vmatmul.mubr.f32.gmra.mrb[0].mxu0 %v1890
      %v1969 = vpop.f32.mrb[0].mxu0
      %v1970 = vadd.f32 %v1873, %v1969
      %v1971 = vpop.f32.mrb[0].mxu0
      %1972 = vmatprep.mubr.f32.mxu0 0.0
      %1973 = vmatmul.mubr.f32.gmra.mrb[0].mxu0 %v1893
      %v1974 = vpop.f32.mrb[0].mxu0
      %v1975 = vadd.f32 %v1878, %v1974
      %v1976 = vpop.f32.mrb[0].mxu0
      %1977 = vmatprep.mubr.f32.mxu0 0.0
      %1978 = vmatmul.mubr.f32.gmra.mrb[0].mxu0 %v1896
      %v1979 = vpop.f32.mrb[0].mxu0
      %v1980 = vadd.f32 %v1883, %v1979
      %v1981 = vpop.f32.mrb[0].mxu0
      %1982 = vdwg.mxu0
      %1983 = vrot.lane.b32.xlu0 %v1244, 112
      %v1984 = vpop.permute.xlu0 %1983
      %1985 = vrot.lane.b32.xlu0 %v1245, 112
      %v1986 = vpop.permute.xlu0 %1985
      %1987 = vrot.lane.b32.xlu0 %v1246, 112
      %v1988 = vpop.permute.xlu0 %1987
      %1989 = vrot.lane.b32.xlu0 %v1247, 112
      %v1990 = vpop.permute.xlu0 %1989
      %1991 = vrot.lane.b32.xlu0 %v1226, 80
      %v1992 = vpop.permute.xlu0 %1991
      %1993 = vrot.lane.b32.xlu0 %v1231, 80
      %v1994 = vpop.permute.xlu0 %1993
      %1995 = vrot.lane.b32.xlu0 %v1236, 80
      %v1996 = vpop.permute.xlu0 %1995
      %1997 = vrot.lane.b32.xlu0 %v1241, 80
      %v1998 = vpop.permute.xlu0 %1997
      %v1999 = vsel %vm1260, %v1984, 0
      %v2001 = vsel %vm1260, %v1986, 0
      %v2003 = vsel %vm1260, %v1988, 0
      %v2005 = vsel %vm1260, %v1990, 0
      %v2007 = vsel %vm1260, %v1992, 0
      %v2009 = vsel %vm1260, %v1994, 0
      %v2011 = vsel %vm1260, %v1996, 0
      %v2013 = vsel %vm1260, %v1998, 0
      %2015 = vmatprep.subr.mxu0 0.0
      %2016 = vmatpush1.xpose.msra.mxu0 %v2007
      %2017 = vmatprep.subr.mxu0 0.0
      %2018 = vmatpush1.xpose.msra.mxu0 %v2009
      %2019 = vmatprep.subr.mxu0 0.0
      %2020 = vmatpush1.xpose.msra.mxu0 %v2011
      %2021 = vmatprep.subr.mxu0 0.0
      %2022 = vmatpush1.xpose.msra.mxu0 %v2013
      %2023 = vmatprep.subr.mxu0 0.0
      %2024 = vmatpush1.xpose.msra.mxu0 0.0
      %2025 = vmatprep.subr.mxu0 0.0
      %2026 = vmatpush1.xpose.msra.mxu0 0.0
      %2027 = vmatprep.subr.mxu0 0.0
      %2028 = vmatpush1.xpose.msra.mxu0 0.0
      %2029 = vmatprep.subr.mxu0 0.0
      %2030 = vmatpush1.xpose.msra.mxu0 0.0
      %2031 = vmatprep.subr.mxu0 0.0
      %2032 = vmatpush1.xpose.msra.mxu0 0.0
      %2033 = vmatprep.subr.mxu0 0.0
      %2034 = vmatpush1.xpose.msra.mxu0 0.0
      %2035 = vmatprep.subr.mxu0 0.0
      %2036 = vmatpush1.xpose.msra.mxu0 0.0
      %2037 = vmatprep.subr.mxu0 0.0
      %2038 = vmatpush1.xpose.msra.mxu0 0.0
      %2039 = vmatprep.subr.mxu0 0.0
      %2040 = vmatpush1.xpose.msra.mxu0 0.0
      %2041 = vmatprep.subr.mxu0 0.0
      %2042 = vmatpush1.xpose.msra.mxu0 0.0
      %2043 = vmatprep.subr.mxu0 0.0
      %2044 = vmatpush1.xpose.msra.mxu0 0.0
      %2045 = vmatprep.subr.mxu0 0.0
      %2046 = vmatpush1.xpose.msra.mxu0 0.0
      %2047 = vmatprep.subr.mxu0 0.0
      %2048 = vmatpush1.xpose.msra.mxu0 0.0
      %2049 = vmatprep.subr.mxu0 0.0
      %2050 = vmatpush1.xpose.msra.mxu0 0.0
      %2051 = vmatprep.subr.mxu0 0.0
      %2052 = vmatpush1.xpose.msra.mxu0 0.0
      %2053 = vmatprep.subr.mxu0 0.0
      %2054 = vmatpush1.xpose.msra.mxu0 0.0
      %2055 = vmatprep.subr.mxu0 0.0
      %2056 = vmatpush1.xpose.msra.mxu0 0.0
      %2057 = vmatprep.subr.mxu0 0.0
      %2058 = vmatpush1.xpose.msra.mxu0 0.0
      %2059 = vmatprep.subr.mxu0 0.0
      %2060 = vmatpush1.xpose.msra.mxu0 0.0
      %2061 = vmatprep.subr.mxu0 0.0
      %2062 = vmatpush1.xpose.msra.mxu0 0.0
      %2063 = vmatprep.subr.mxu0 0.0
      %2064 = vmatpush1.xpose.msra.mxu0 0.0
      %2065 = vmatprep.subr.mxu0 0.0
      %2066 = vmatpush1.xpose.msra.mxu0 0.0
      %2067 = vmatprep.subr.mxu0 0.0
      %2068 = vmatpush1.xpose.msra.mxu0 0.0
      %2069 = vmatprep.subr.mxu0 0.0
      %2070 = vmatpush1.xpose.msra.mxu0 0.0
      %2071 = vmatprep.subr.mxu0 0.0
      %2072 = vmatpush1.xpose.msra.mxu0 0.0
      %2073 = vmatprep.subr.mxu0 0.0
      %2074 = vmatpush1.xpose.msra.mxu0 0.0
      %2075 = vmatprep.subr.mxu0 0.0
      %2076 = vmatpush1.xpose.msra.mxu0 0.0
      %2077 = vmatprep.subr.mxu0 0.0
      %2078 = vmatpush1.xpose.msra.mxu0 0.0
      %2079 = vmatprep.mubr.f32.mxu0 0.0
      %2080 = vmatmul.mubr.f32.gmra.mrb[0].mxu0 %v1999
      %v2081 = vpop.f32.mrb[0].mxu0
      %v2082 = vadd.f32 %v1138, %v2081
      %v2083 = vpop.f32.mrb[0].mxu0
      %2084 = vmatprep.mubr.f32.mxu0 0.0
      %2085 = vmatmul.mubr.f32.gmra.mrb[0].mxu0 %v2001
      %v2086 = vpop.f32.mrb[0].mxu0
      %v2087 = vadd.f32 %v1139, %v2086
      %v2088 = vpop.f32.mrb[0].mxu0
      %2089 = vmatprep.mubr.f32.mxu0 0.0
      %2090 = vmatmul.mubr.f32.gmra.mrb[0].mxu0 %v2003
      %v2091 = vpop.f32.mrb[0].mxu0
      %v2092 = vadd.f32 %v1140, %v2091
      %v2093 = vpop.f32.mrb[0].mxu0
      %2094 = vmatprep.mubr.f32.mxu0 0.0
      %2095 = vmatmul.mubr.f32.gmra.mrb[0].mxu0 %v2005
      %v2096 = vpop.f32.mrb[0].mxu0
      %v2097 = vadd.f32 %v1141, %v2096
      %v2098 = vpop.f32.mrb[0].mxu0
      %2099 = vdwg.mxu0
      %v2100 = vsel %vm1146, %v2082, -inf
      %2101 = vmax.xlane.f32.xlu0 %v2100
      %v2102 = vpop.xlane.xlu0 %2101
      %v2103 = vsel %vm1146, %v2087, -inf
      %2104 = vmax.xlane.f32.xlu0 %v2103
      %v2105 = vpop.xlane.xlu0 %2104
      %v2106 = vsel %vm1146, %v2092, -inf
      %2107 = vmax.xlane.f32.xlu0 %v2106
      %v2108 = vpop.xlane.xlu0 %2107
      %v2109 = vsel %vm1146, %v2097, -inf
      %2110 = vmax.xlane.f32.xlu0 %v2109
      %v2111 = vpop.xlane.xlu0 %2110
      %v2112 = vsub.f32 %v2082, %v2102
      %v2113 = vsub.f32 %v2087, %v2105
      %v2114 = vsub.f32 %v2092, %v2108
      %v2115 = vsub.f32 %v2097, %v2111
      %v2116 = vmul.f32 %v2112, 1.442695
      %v2117 = vpow.pop %v2116
      %v2118 = vmul.f32 %v2113, 1.442695
      %v2119 = vpow.pop %v2118
      %v2120 = vmul.f32 %v2114, 1.442695
      %v2121 = vpow.pop %v2120
      %v2122 = vmul.f32 %v2115, 1.442695
      %v2123 = vpow.pop %v2122
      %v2124 = vsel %vm1146, %v2117, 0.0
      %2125 = vadd.xlane.f32.xlu0 %v2124
      %v2126 = vpop.xlane.xlu0 %2125
      %v2127 = vsel %vm1146, %v2119, 0.0
      %2128 = vadd.xlane.f32.xlu0 %v2127
      %v2129 = vpop.xlane.xlu0 %2128
      %v2130 = vsel %vm1146, %v2121, 0.0
      %2131 = vadd.xlane.f32.xlu0 %v2130
      %v2132 = vpop.xlane.xlu0 %2131
      %v2133 = vsel %vm1146, %v2123, 0.0
      %2134 = vadd.xlane.f32.xlu0 %v2133
      %v2135 = vpop.xlane.xlu0 %2134
      %v2136 = vrcp.pop %v2126
      %v2137 = vmul.f32 %v2117, %v2136
      %v2138 = vrcp.pop %v2129
      %v2139 = vmul.f32 %v2119, %v2138
      %v2140 = vrcp.pop %v2132
      %v2141 = vmul.f32 %v2121, %v2140
      %v2142 = vrcp.pop %v2135
      %v2143 = vmul.f32 %v2123, %v2142
      %2144 = vrot.lane.b32.xlu0 %v1226, 48
      %v2145 = vpop.permute.xlu0 %2144
      %2146 = vrot.lane.b32.xlu0 %v1231, 48
      %v2147 = vpop.permute.xlu0 %2146
      %2148 = vrot.lane.b32.xlu0 %v1236, 48
      %v2149 = vpop.permute.xlu0 %2148
      %2150 = vrot.lane.b32.xlu0 %v1241, 48
      %v2151 = vpop.permute.xlu0 %2150
      %v2157 = vsel %vm1146, %v2137, 0
      %v2160 = vsel %vm1146, %v2139, 0
      %v2163 = vsel %vm1146, %v2141, 0
      %v2166 = vsel %vm1146, %v2143, 0
      %2168 = vmatprep.subr.mxu0 0.0
      %2169 = vmatpush1.msra.mxu0 %v2145
      %2170 = vmatprep.subr.mxu0 0.0
      %2171 = vmatpush1.msra.mxu0 %v2147
      %2172 = vmatprep.subr.mxu0 0.0
      %2173 = vmatpush1.msra.mxu0 %v2149
      %2174 = vmatprep.subr.mxu0 0.0
      %2175 = vmatpush1.msra.mxu0 %v2151
      %2176 = vmatprep.subr.mxu0 0.0
      %2177 = vmatpush1.msra.mxu0 0.0
      %2178 = vmatprep.subr.mxu0 0.0
      %2179 = vmatpush1.msra.mxu0 0.0
      %2180 = vmatprep.subr.mxu0 0.0
      %2181 = vmatpush1.msra.mxu0 0.0
      %2182 = vmatprep.subr.mxu0 0.0
      %2183 = vmatpush1.msra.mxu0 0.0
      %2184 = vmatprep.subr.mxu0 0.0
      %2185 = vmatpush1.msra.mxu0 0.0
      %2186 = vmatprep.subr.mxu0 0.0
      %2187 = vmatpush1.msra.mxu0 0.0
      %2188 = vmatprep.subr.mxu0 0.0
      %2189 = vmatpush1.msra.mxu0 0.0
      %2190 = vmatprep.subr.mxu0 0.0
      %2191 = vmatpush1.msra.mxu0 0.0
      %2192 = vmatprep.subr.mxu0 0.0
      %2193 = vmatpush1.msra.mxu0 0.0
      %2194 = vmatprep.subr.mxu0 0.0
      %2195 = vmatpush1.msra.mxu0 0.0
      %2196 = vmatprep.subr.mxu0 0.0
      %2197 = vmatpush1.msra.mxu0 0.0
      %2198 = vmatprep.subr.mxu0 0.0
      %2199 = vmatpush1.msra.mxu0 0.0
      %2200 = vmatprep.subr.mxu0 0.0
      %2201 = vmatpush1.msra.mxu0 0.0
      %2202 = vmatprep.subr.mxu0 0.0
      %2203 = vmatpush1.msra.mxu0 0.0
      %2204 = vmatprep.subr.mxu0 0.0
      %2205 = vmatpush1.msra.mxu0 0.0
      %2206 = vmatprep.subr.mxu0 0.0
      %2207 = vmatpush1.msra.mxu0 0.0
      %2208 = vmatprep.subr.mxu0 0.0
      %2209 = vmatpush1.msra.mxu0 0.0
      %2210 = vmatprep.subr.mxu0 0.0
      %2211 = vmatpush1.msra.mxu0 0.0
      %2212 = vmatprep.subr.mxu0 0.0
      %2213 = vmatpush1.msra.mxu0 0.0
      %2214 = vmatprep.subr.mxu0 0.0
      %2215 = vmatpush1.msra.mxu0 0.0
      %2216 = vmatprep.subr.mxu0 0.0
      %2217 = vmatpush1.msra.mxu0 0.0
      %2218 = vmatprep.subr.mxu0 0.0
      %2219 = vmatpush1.msra.mxu0 0.0
      %2220 = vmatprep.subr.mxu0 0.0
      %2221 = vmatpush1.msra.mxu0 0.0
      %2222 = vmatprep.subr.mxu0 0.0
      %2223 = vmatpush1.msra.mxu0 0.0
      %2224 = vmatprep.subr.mxu0 0.0
      %2225 = vmatpush1.msra.mxu0 0.0
      %2226 = vmatprep.subr.mxu0 0.0
      %2227 = vmatpush1.msra.mxu0 0.0
      %2228 = vmatprep.subr.mxu0 0.0
      %2229 = vmatpush1.msra.mxu0 0.0
      %2230 = vmatprep.subr.mxu0 0.0
      %2231 = vmatpush1.msra.mxu0 0.0
      %2232 = vmatprep.mubr.f32.mxu0 0.0
      %2233 = vmatmul.mubr.f32.gmra.mrb[0].mxu0 %v2157
      %v2234 = vpop.f32.mrb[0].mxu0
      %v2235 = vadd.f32 0.0, %v2234
      %v2236 = vpop.f32.mrb[0].mxu0
      %2237 = vmatprep.mubr.f32.mxu0 0.0
      %2238 = vmatmul.mubr.f32.gmra.mrb[0].mxu0 %v2160
      %v2239 = vpop.f32.mrb[0].mxu0
      %v2240 = vadd.f32 0.0, %v2239
      %v2241 = vpop.f32.mrb[0].mxu0
      %2242 = vmatprep.mubr.f32.mxu0 0.0
      %2243 = vmatmul.mubr.f32.gmra.mrb[0].mxu0 %v2163
      %v2244 = vpop.f32.mrb[0].mxu0
      %v2245 = vadd.f32 0.0, %v2244
      %v2246 = vpop.f32.mrb[0].mxu0
      %2247 = vmatprep.mubr.f32.mxu0 0.0
      %2248 = vmatmul.mubr.f32.gmra.mrb[0].mxu0 %v2166
      %v2249 = vpop.f32.mrb[0].mxu0
      %v2250 = vadd.f32 0.0, %v2249
      %v2251 = vpop.f32.mrb[0].mxu0
      %2252 = vdwg.mxu0
      %v2254 = vsel %vm1260, %v2235, 0
      %v2257 = vsel %vm1260, %v2240, 0
      %v2260 = vsel %vm1260, %v2245, 0
      %v2263 = vsel %vm1260, %v2250, 0
      %2265 = vmatprep.subr.mxu0 0.0
      %2266 = vmatpush1.msra.mxu0 %v1123
      %2267 = vmatprep.subr.mxu0 0.0
      %2268 = vmatpush1.msra.mxu0 0.0
      %2269 = vmatprep.subr.mxu0 0.0
      %2270 = vmatpush1.msra.mxu0 0.0
      %2271 = vmatprep.subr.mxu0 0.0
      %2272 = vmatpush1.msra.mxu0 0.0
      %2273 = vmatprep.subr.mxu0 0.0
      %2274 = vmatpush1.msra.mxu0 0.0
      %2275 = vmatprep.subr.mxu0 0.0
      %2276 = vmatpush1.msra.mxu0 0.0
      %2277 = vmatprep.subr.mxu0 0.0
      %2278 = vmatpush1.msra.mxu0 0.0
      %2279 = vmatprep.subr.mxu0 0.0
      %2280 = vmatpush1.msra.mxu0 0.0
      %2281 = vmatprep.subr.mxu0 0.0
      %2282 = vmatpush1.msra.mxu0 0.0
      %2283 = vmatprep.subr.mxu0 0.0
      %2284 = vmatpush1.msra.mxu0 0.0
      %2285 = vmatprep.subr.mxu0 0.0
      %2286 = vmatpush1.msra.mxu0 0.0
      %2287 = vmatprep.subr.mxu0 0.0
      %2288 = vmatpush1.msra.mxu0 0.0
      %2289 = vmatprep.subr.mxu0 0.0
      %2290 = vmatpush1.msra.mxu0 0.0
      %2291 = vmatprep.subr.mxu0 0.0
      %2292 = vmatpush1.msra.mxu0 0.0
      %2293 = vmatprep.subr.mxu0 0.0
      %2294 = vmatpush1.msra.mxu0 0.0
      %2295 = vmatprep.subr.mxu0 0.0
      %2296 = vmatpush1.msra.mxu0 0.0
      %2297 = vmatprep.subr.mxu0 0.0
      %2298 = vmatpush1.msra.mxu0 0.0
      %2299 = vmatprep.subr.mxu0 0.0
      %2300 = vmatpush1.msra.mxu0 0.0
      %2301 = vmatprep.subr.mxu0 0.0
      %2302 = vmatpush1.msra.mxu0 0.0
      %2303 = vmatprep.subr.mxu0 0.0
      %2304 = vmatpush1.msra.mxu0 0.0
      %2305 = vmatprep.subr.mxu0 0.0
      %2306 = vmatpush1.msra.mxu0 0.0
      %2307 = vmatprep.subr.mxu0 0.0
      %2308 = vmatpush1.msra.mxu0 0.0
      %2309 = vmatprep.subr.mxu0 0.0
      %2310 = vmatpush1.msra.mxu0 0.0
      %2311 = vmatprep.subr.mxu0 0.0
      %2312 = vmatpush1.msra.mxu0 0.0
      %2313 = vmatprep.subr.mxu0 0.0
      %2314 = vmatpush1.msra.mxu0 0.0
      %2315 = vmatprep.subr.mxu0 0.0
      %2316 = vmatpush1.msra.mxu0 0.0
      %2317 = vmatprep.subr.mxu0 0.0
      %2318 = vmatpush1.msra.mxu0 0.0
      %2319 = vmatprep.subr.mxu0 0.0
      %2320 = vmatpush1.msra.mxu0 0.0
      %2321 = vmatprep.subr.mxu0 0.0
      %2322 = vmatpush1.msra.mxu0 0.0
      %2323 = vmatprep.subr.mxu0 0.0
      %2324 = vmatpush1.msra.mxu0 0.0
      %2325 = vmatprep.subr.mxu0 0.0
      %2326 = vmatpush1.msra.mxu0 0.0
      %2327 = vmatprep.subr.mxu0 0.0
      %2328 = vmatpush1.msra.mxu0 0.0
      %2329 = vmatprep.mubr.f32.mxu0 0.0
      %2330 = vmatmul.mubr.f32.gmra.mrb[0].mxu0 %v2254
      %v2331 = vpop.f32.mrb[0].mxu0
      %v2332 = vadd.f32 0.0, %v2331
      %v2333 = vpop.f32.mrb[0].mxu0
      %2334 = vmatprep.mubr.f32.mxu0 0.0
      %2335 = vmatmul.mubr.f32.gmra.mrb[0].mxu0 %v2257
      %v2336 = vpop.f32.mrb[0].mxu0
      %v2337 = vadd.f32 0.0, %v2336
      %v2338 = vpop.f32.mrb[0].mxu0
      %2339 = vmatprep.mubr.f32.mxu0 0.0
      %2340 = vmatmul.mubr.f32.gmra.mrb[0].mxu0 %v2260
      %v2341 = vpop.f32.mrb[0].mxu0
      %v2342 = vadd.f32 0.0, %v2341
      %v2343 = vpop.f32.mrb[0].mxu0
      %2344 = vmatprep.mubr.f32.mxu0 0.0
      %2345 = vmatmul.mubr.f32.gmra.mrb[0].mxu0 %v2263
      %v2346 = vpop.f32.mrb[0].mxu0
      %v2347 = vadd.f32 0.0, %v2346
      %v2348 = vpop.f32.mrb[0].mxu0
      %2349 = vdwg.mxu0
      %v2350 = vadd.f32 %v1965, %v2332
      %v2351 = vadd.f32 %v1970, %v2337
      %v2352 = vadd.f32 %v1975, %v2342
      %v2353 = vadd.f32 %v1980, %v2347
      %2354 = vrot.lane.b32.xlu0 %v1244, 104
      %v2355 = vpop.permute.xlu0 %2354
      %2356 = vrot.lane.b32.xlu0 %v1245, 104
      %v2357 = vpop.permute.xlu0 %2356
      %2358 = vrot.lane.b32.xlu0 %v1246, 104
      %v2359 = vpop.permute.xlu0 %2358
      %2360 = vrot.lane.b32.xlu0 %v1247, 104
      %v2361 = vpop.permute.xlu0 %2360
      %2362 = vrot.lane.b32.xlu0 %v1226, 72
      %v2363 = vpop.permute.xlu0 %2362
      %2364 = vrot.lane.b32.xlu0 %v1231, 72
      %v2365 = vpop.permute.xlu0 %2364
      %2366 = vrot.lane.b32.xlu0 %v1236, 72
      %v2367 = vpop.permute.xlu0 %2366
      %2368 = vrot.lane.b32.xlu0 %v1241, 72
      %v2369 = vpop.permute.xlu0 %2368
      %v2370 = vsel %vm1260, %v2355, 0
      %v2372 = vsel %vm1260, %v2357, 0
      %v2374 = vsel %vm1260, %v2359, 0
      %v2376 = vsel %vm1260, %v2361, 0
      %v2378 = vsel %vm1260, %v2363, 0
      %v2380 = vsel %vm1260, %v2365, 0
      %v2382 = vsel %vm1260, %v2367, 0
      %v2384 = vsel %vm1260, %v2369, 0
      %2386 = vmatprep.subr.mxu0 0.0
      %2387 = vmatpush1.xpose.msra.mxu0 %v2378
      %2388 = vmatprep.subr.mxu0 0.0
      %2389 = vmatpush1.xpose.msra.mxu0 %v2380
      %2390 = vmatprep.subr.mxu0 0.0
      %2391 = vmatpush1.xpose.msra.mxu0 %v2382
      %2392 = vmatprep.subr.mxu0 0.0
      %2393 = vmatpush1.xpose.msra.mxu0 %v2384
      %2394 = vmatprep.subr.mxu0 0.0
      %2395 = vmatpush1.xpose.msra.mxu0 0.0
      %2396 = vmatprep.subr.mxu0 0.0
      %2397 = vmatpush1.xpose.msra.mxu0 0.0
      %2398 = vmatprep.subr.mxu0 0.0
      %2399 = vmatpush1.xpose.msra.mxu0 0.0
      %2400 = vmatprep.subr.mxu0 0.0
      %2401 = vmatpush1.xpose.msra.mxu0 0.0
      %2402 = vmatprep.subr.mxu0 0.0
      %2403 = vmatpush1.xpose.msra.mxu0 0.0
      %2404 = vmatprep.subr.mxu0 0.0
      %2405 = vmatpush1.xpose.msra.mxu0 0.0
      %2406 = vmatprep.subr.mxu0 0.0
      %2407 = vmatpush1.xpose.msra.mxu0 0.0
      %2408 = vmatprep.subr.mxu0 0.0
      %2409 = vmatpush1.xpose.msra.mxu0 0.0
      %2410 = vmatprep.subr.mxu0 0.0
      %2411 = vmatpush1.xpose.msra.mxu0 0.0
      %2412 = vmatprep.subr.mxu0 0.0
      %2413 = vmatpush1.xpose.msra.mxu0 0.0
      %2414 = vmatprep.subr.mxu0 0.0
      %2415 = vmatpush1.xpose.msra.mxu0 0.0
      %2416 = vmatprep.subr.mxu0 0.0
      %2417 = vmatpush1.xpose.msra.mxu0 0.0
      %2418 = vmatprep.subr.mxu0 0.0
      %2419 = vmatpush1.xpose.msra.mxu0 0.0
      %2420 = vmatprep.subr.mxu0 0.0
      %2421 = vmatpush1.xpose.msra.mxu0 0.0
      %2422 = vmatprep.subr.mxu0 0.0
      %2423 = vmatpush1.xpose.msra.mxu0 0.0
      %2424 = vmatprep.subr.mxu0 0.0
      %2425 = vmatpush1.xpose.msra.mxu0 0.0
      %2426 = vmatprep.subr.mxu0 0.0
      %2427 = vmatpush1.xpose.msra.mxu0 0.0
      %2428 = vmatprep.subr.mxu0 0.0
      %2429 = vmatpush1.xpose.msra.mxu0 0.0
      %2430 = vmatprep.subr.mxu0 0.0
      %2431 = vmatpush1.xpose.msra.mxu0 0.0
      %2432 = vmatprep.subr.mxu0 0.0
      %2433 = vmatpush1.xpose.msra.mxu0 0.0
      %2434 = vmatprep.subr.mxu0 0.0
      %2435 = vmatpush1.xpose.msra.mxu0 0.0
      %2436 = vmatprep.subr.mxu0 0.0
      %2437 = vmatpush1.xpose.msra.mxu0 0.0
      %2438 = vmatprep.subr.mxu0 0.0
      %2439 = vmatpush1.xpose.msra.mxu0 0.0
      %2440 = vmatprep.subr.mxu0 0.0
      %2441 = vmatpush1.xpose.msra.mxu0 0.0
      %2442 = vmatprep.subr.mxu0 0.0
      %2443 = vmatpush1.xpose.msra.mxu0 0.0
      %2444 = vmatprep.subr.mxu0 0.0
      %2445 = vmatpush1.xpose.msra.mxu0 0.0
      %2446 = vmatprep.subr.mxu0 0.0
      %2447 = vmatpush1.xpose.msra.mxu0 0.0
      %2448 = vmatprep.subr.mxu0 0.0
      %2449 = vmatpush1.xpose.msra.mxu0 0.0
      %2450 = vmatprep.mubr.f32.mxu0 0.0
      %2451 = vmatmul.mubr.f32.gmra.mrb[0].mxu0 %v2370
      %v2452 = vpop.f32.mrb[0].mxu0
      %v2453 = vadd.f32 %v1138, %v2452
      %v2454 = vpop.f32.mrb[0].mxu0
      %2455 = vmatprep.mubr.f32.mxu0 0.0
      %2456 = vmatmul.mubr.f32.gmra.mrb[0].mxu0 %v2372
      %v2457 = vpop.f32.mrb[0].mxu0
      %v2458 = vadd.f32 %v1139, %v2457
      %v2459 = vpop.f32.mrb[0].mxu0
      %2460 = vmatprep.mubr.f32.mxu0 0.0
      %2461 = vmatmul.mubr.f32.gmra.mrb[0].mxu0 %v2374
      %v2462 = vpop.f32.mrb[0].mxu0
      %v2463 = vadd.f32 %v1140, %v2462
      %v2464 = vpop.f32.mrb[0].mxu0
      %2465 = vmatprep.mubr.f32.mxu0 0.0
      %2466 = vmatmul.mubr.f32.gmra.mrb[0].mxu0 %v2376
      %v2467 = vpop.f32.mrb[0].mxu0
      %v2468 = vadd.f32 %v1141, %v2467
      %v2469 = vpop.f32.mrb[0].mxu0
      %2470 = vdwg.mxu0
      %v2471 = vsel %vm1146, %v2453, -inf
      %2472 = vmax.xlane.f32.xlu0 %v2471
      %v2473 = vpop.xlane.xlu0 %2472
      %v2474 = vsel %vm1146, %v2458, -inf
      %2475 = vmax.xlane.f32.xlu0 %v2474
      %v2476 = vpop.xlane.xlu0 %2475
      %v2477 = vsel %vm1146, %v2463, -inf
      %2478 = vmax.xlane.f32.xlu0 %v2477
      %v2479 = vpop.xlane.xlu0 %2478
      %v2480 = vsel %vm1146, %v2468, -inf
      %2481 = vmax.xlane.f32.xlu0 %v2480
      %v2482 = vpop.xlane.xlu0 %2481
      %v2483 = vsub.f32 %v2453, %v2473
      %v2484 = vsub.f32 %v2458, %v2476
      %v2485 = vsub.f32 %v2463, %v2479
      %v2486 = vsub.f32 %v2468, %v2482
      %v2487 = vmul.f32 %v2483, 1.442695
      %v2488 = vpow.pop %v2487
      %v2489 = vmul.f32 %v2484, 1.442695
      %v2490 = vpow.pop %v2489
      %v2491 = vmul.f32 %v2485, 1.442695
      %v2492 = vpow.pop %v2491
      %v2493 = vmul.f32 %v2486, 1.442695
      %v2494 = vpow.pop %v2493
      %v2495 = vsel %vm1146, %v2488, 0.0
      %2496 = vadd.xlane.f32.xlu0 %v2495
      %v2497 = vpop.xlane.xlu0 %2496
      %v2498 = vsel %vm1146, %v2490, 0.0
      %2499 = vadd.xlane.f32.xlu0 %v2498
      %v2500 = vpop.xlane.xlu0 %2499
      %v2501 = vsel %vm1146, %v2492, 0.0
      %2502 = vadd.xlane.f32.xlu0 %v2501
      %v2503 = vpop.xlane.xlu0 %2502
      %v2504 = vsel %vm1146, %v2494, 0.0
      %2505 = vadd.xlane.f32.xlu0 %v2504
      %v2506 = vpop.xlane.xlu0 %2505
      %v2507 = vrcp.pop %v2497
      %v2508 = vmul.f32 %v2488, %v2507
      %v2509 = vrcp.pop %v2500
      %v2510 = vmul.f32 %v2490, %v2509
      %v2511 = vrcp.pop %v2503
      %v2512 = vmul.f32 %v2492, %v2511
      %v2513 = vrcp.pop %v2506
      %v2514 = vmul.f32 %v2494, %v2513
      %2515 = vrot.lane.b32.xlu0 %v1226, 40
      %v2516 = vpop.permute.xlu0 %2515
      %2517 = vrot.lane.b32.xlu0 %v1231, 40
      %v2518 = vpop.permute.xlu0 %2517
      %2519 = vrot.lane.b32.xlu0 %v1236, 40
      %v2520 = vpop.permute.xlu0 %2519
      %2521 = vrot.lane.b32.xlu0 %v1241, 40
      %v2522 = vpop.permute.xlu0 %2521
      %v2528 = vsel %vm1146, %v2508, 0
      %v2531 = vsel %vm1146, %v2510, 0
      %v2534 = vsel %vm1146, %v2512, 0
      %v2537 = vsel %vm1146, %v2514, 0
      %2539 = vmatprep.subr.mxu0 0.0
      %2540 = vmatpush1.msra.mxu0 %v2516
      %2541 = vmatprep.subr.mxu0 0.0
      %2542 = vmatpush1.msra.mxu0 %v2518
      %2543 = vmatprep.subr.mxu0 0.0
      %2544 = vmatpush1.msra.mxu0 %v2520
      %2545 = vmatprep.subr.mxu0 0.0
      %2546 = vmatpush1.msra.mxu0 %v2522
      %2547 = vmatprep.subr.mxu0 0.0
      %2548 = vmatpush1.msra.mxu0 0.0
      %2549 = vmatprep.subr.mxu0 0.0
      %2550 = vmatpush1.msra.mxu0 0.0
      %2551 = vmatprep.subr.mxu0 0.0
      %2552 = vmatpush1.msra.mxu0 0.0
      %2553 = vmatprep.subr.mxu0 0.0
      %2554 = vmatpush1.msra.mxu0 0.0
      %2555 = vmatprep.subr.mxu0 0.0
      %2556 = vmatpush1.msra.mxu0 0.0
      %2557 = vmatprep.subr.mxu0 0.0
      %2558 = vmatpush1.msra.mxu0 0.0
      %2559 = vmatprep.subr.mxu0 0.0
      %2560 = vmatpush1.msra.mxu0 0.0
      %2561 = vmatprep.subr.mxu0 0.0
      %2562 = vmatpush1.msra.mxu0 0.0
      %2563 = vmatprep.subr.mxu0 0.0
      %2564 = vmatpush1.msra.mxu0 0.0
      %2565 = vmatprep.subr.mxu0 0.0
      %2566 = vmatpush1.msra.mxu0 0.0
      %2567 = vmatprep.subr.mxu0 0.0
      %2568 = vmatpush1.msra.mxu0 0.0
      %2569 = vmatprep.subr.mxu0 0.0
      %2570 = vmatpush1.msra.mxu0 0.0
      %2571 = vmatprep.subr.mxu0 0.0
      %2572 = vmatpush1.msra.mxu0 0.0
      %2573 = vmatprep.subr.mxu0 0.0
      %2574 = vmatpush1.msra.mxu0 0.0
      %2575 = vmatprep.subr.mxu0 0.0
      %2576 = vmatpush1.msra.mxu0 0.0
      %2577 = vmatprep.subr.mxu0 0.0
      %2578 = vmatpush1.msra.mxu0 0.0
      %2579 = vmatprep.subr.mxu0 0.0
      %2580 = vmatpush1.msra.mxu0 0.0
      %2581 = vmatprep.subr.mxu0 0.0
      %2582 = vmatpush1.msra.mxu0 0.0
      %2583 = vmatprep.subr.mxu0 0.0
      %2584 = vmatpush1.msra.mxu0 0.0
      %2585 = vmatprep.subr.mxu0 0.0
      %2586 = vmatpush1.msra.mxu0 0.0
      %2587 = vmatprep.subr.mxu0 0.0
      %2588 = vmatpush1.msra.mxu0 0.0
      %2589 = vmatprep.subr.mxu0 0.0
      %2590 = vmatpush1.msra.mxu0 0.0
      %2591 = vmatprep.subr.mxu0 0.0
      %2592 = vmatpush1.msra.mxu0 0.0
      %2593 = vmatprep.subr.mxu0 0.0
      %2594 = vmatpush1.msra.mxu0 0.0
      %2595 = vmatprep.subr.mxu0 0.0
      %2596 = vmatpush1.msra.mxu0 0.0
      %2597 = vmatprep.subr.mxu0 0.0
      %2598 = vmatpush1.msra.mxu0 0.0
      %2599 = vmatprep.subr.mxu0 0.0
      %2600 = vmatpush1.msra.mxu0 0.0
      %2601 = vmatprep.subr.mxu0 0.0
      %2602 = vmatpush1.msra.mxu0 0.0
      %2603 = vmatprep.mubr.f32.mxu0 0.0
      %2604 = vmatmul.mubr.f32.gmra.mrb[0].mxu0 %v2528
      %v2605 = vpop.f32.mrb[0].mxu0
      %v2606 = vadd.f32 0.0, %v2605
      %v2607 = vpop.f32.mrb[0].mxu0
      %2608 = vmatprep.mubr.f32.mxu0 0.0
      %2609 = vmatmul.mubr.f32.gmra.mrb[0].mxu0 %v2531
      %v2610 = vpop.f32.mrb[0].mxu0
      %v2611 = vadd.f32 0.0, %v2610
      %v2612 = vpop.f32.mrb[0].mxu0
      %2613 = vmatprep.mubr.f32.mxu0 0.0
      %2614 = vmatmul.mubr.f32.gmra.mrb[0].mxu0 %v2534
      %v2615 = vpop.f32.mrb[0].mxu0
      %v2616 = vadd.f32 0.0, %v2615
      %v2617 = vpop.f32.mrb[0].mxu0
      %2618 = vmatprep.mubr.f32.mxu0 0.0
      %2619 = vmatmul.mubr.f32.gmra.mrb[0].mxu0 %v2537
      %v2620 = vpop.f32.mrb[0].mxu0
      %v2621 = vadd.f32 0.0, %v2620
      %v2622 = vpop.f32.mrb[0].mxu0
      %2623 = vdwg.mxu0
      %v2625 = vsel %vm1260, %v2606, 0
      %v2628 = vsel %vm1260, %v2611, 0
      %v2631 = vsel %vm1260, %v2616, 0
      %v2634 = vsel %vm1260, %v2621, 0
      %2636 = vmatprep.subr.mxu0 0.0
      %2637 = vmatpush1.msra.mxu0 %v1124
      %2638 = vmatprep.subr.mxu0 0.0
      %2639 = vmatpush1.msra.mxu0 0.0
      %2640 = vmatprep.subr.mxu0 0.0
      %2641 = vmatpush1.msra.mxu0 0.0
      %2642 = vmatprep.subr.mxu0 0.0
      %2643 = vmatpush1.msra.mxu0 0.0
      %2644 = vmatprep.subr.mxu0 0.0
      %2645 = vmatpush1.msra.mxu0 0.0
      %2646 = vmatprep.subr.mxu0 0.0
      %2647 = vmatpush1.msra.mxu0 0.0
      %2648 = vmatprep.subr.mxu0 0.0
      %2649 = vmatpush1.msra.mxu0 0.0
      %2650 = vmatprep.subr.mxu0 0.0
      %2651 = vmatpush1.msra.mxu0 0.0
      %2652 = vmatprep.subr.mxu0 0.0
      %2653 = vmatpush1.msra.mxu0 0.0
      %2654 = vmatprep.subr.mxu0 0.0
      %2655 = vmatpush1.msra.mxu0 0.0
      %2656 = vmatprep.subr.mxu0 0.0
      %2657 = vmatpush1.msra.mxu0 0.0
      %2658 = vmatprep.subr.mxu0 0.0
      %2659 = vmatpush1.msra.mxu0 0.0
      %2660 = vmatprep.subr.mxu0 0.0
      %2661 = vmatpush1.msra.mxu0 0.0
      %2662 = vmatprep.subr.mxu0 0.0
      %2663 = vmatpush1.msra.mxu0 0.0
      %2664 = vmatprep.subr.mxu0 0.0
      %2665 = vmatpush1.msra.mxu0 0.0
      %2666 = vmatprep.subr.mxu0 0.0
      %2667 = vmatpush1.msra.mxu0 0.0
      %2668 = vmatprep.subr.mxu0 0.0
      %2669 = vmatpush1.msra.mxu0 0.0
      %2670 = vmatprep.subr.mxu0 0.0
      %2671 = vmatpush1.msra.mxu0 0.0
      %2672 = vmatprep.subr.mxu0 0.0
      %2673 = vmatpush1.msra.mxu0 0.0
      %2674 = vmatprep.subr.mxu0 0.0
      %2675 = vmatpush1.msra.mxu0 0.0
      %2676 = vmatprep.subr.mxu0 0.0
      %2677 = vmatpush1.msra.mxu0 0.0
      %2678 = vmatprep.subr.mxu0 0.0
      %2679 = vmatpush1.msra.mxu0 0.0
      %2680 = vmatprep.subr.mxu0 0.0
      %2681 = vmatpush1.msra.mxu0 0.0
      %2682 = vmatprep.subr.mxu0 0.0
      %2683 = vmatpush1.msra.mxu0 0.0
      %2684 = vmatprep.subr.mxu0 0.0
      %2685 = vmatpush1.msra.mxu0 0.0
      %2686 = vmatprep.subr.mxu0 0.0
      %2687 = vmatpush1.msra.mxu0 0.0
      %2688 = vmatprep.subr.mxu0 0.0
      %2689 = vmatpush1.msra.mxu0 0.0
      %2690 = vmatprep.subr.mxu0 0.0
      %2691 = vmatpush1.msra.mxu0 0.0
      %2692 = vmatprep.subr.mxu0 0.0
      %2693 = vmatpush1.msra.mxu0 0.0
      %2694 = vmatprep.subr.mxu0 0.0
      %2695 = vmatpush1.msra.mxu0 0.0
      %2696 = vmatprep.subr.mxu0 0.0
      %2697 = vmatpush1.msra.mxu0 0.0
      %2698 = vmatprep.subr.mxu0 0.0
      %2699 = vmatpush1.msra.mxu0 0.0
      %2700 = vmatprep.mubr.f32.mxu0 0.0
      %2701 = vmatmul.mubr.f32.gmra.mrb[0].mxu0 %v2625
      %v2702 = vpop.f32.mrb[0].mxu0
      %v2703 = vadd.f32 0.0, %v2702
      %v2704 = vpop.f32.mrb[0].mxu0
      %2705 = vmatprep.mubr.f32.mxu0 0.0
      %2706 = vmatmul.mubr.f32.gmra.mrb[0].mxu0 %v2628
      %v2707 = vpop.f32.mrb[0].mxu0
      %v2708 = vadd.f32 0.0, %v2707
      %v2709 = vpop.f32.mrb[0].mxu0
      %2710 = vmatprep.mubr.f32.mxu0 0.0
      %2711 = vmatmul.mubr.f32.gmra.mrb[0].mxu0 %v2631
      %v2712 = vpop.f32.mrb[0].mxu0
      %v2713 = vadd.f32 0.0, %v2712
      %v2714 = vpop.f32.mrb[0].mxu0
      %2715 = vmatprep.mubr.f32.mxu0 0.0
      %2716 = vmatmul.mubr.f32.gmra.mrb[0].mxu0 %v2634
      %v2717 = vpop.f32.mrb[0].mxu0
      %v2718 = vadd.f32 0.0, %v2717
      %v2719 = vpop.f32.mrb[0].mxu0
      %2720 = vdwg.mxu0
      %v2721 = vadd.f32 %v2350, %v2703
      %v2722 = vadd.f32 %v2351, %v2708
      %v2723 = vadd.f32 %v2352, %v2713
      %v2724 = vadd.f32 %v2353, %v2718
      %v2725 = vlaneseq
      %v2726 = vshrl.u32 %v2725, 7
      %v2727 = vsub.s32 1, %v2726
      %v2728 = vrot.slane %v1137, %v2727
      %v2729 = vadd.f32 %v2721, %v2728
      %v2730 = vadd.f32 %v2722, %v2728
      %v2731 = vadd.f32 %v2723, %v2728
      %v2732 = vadd.f32 %v2724, %v2728
      %v2733 = vadd.f32 %v1112, %v2729
      %v2734 = vadd.f32 %v1113, %v2730
      %v2735 = vadd.f32 %v1114, %v2731
      %v2736 = vadd.f32 %v1115, %v2732
      %v2737 = vsel %vm1146, %v2733, 0.0
      %2738 = vadd.xlane.f32.xlu0 %v2737
      %v2739 = vpop.xlane.xlu0 %2738
      %v2740 = vsel %vm1146, %v2734, 0.0
      %2741 = vadd.xlane.f32.xlu0 %v2740
      %v2742 = vpop.xlane.xlu0 %2741
      %v2743 = vsel %vm1146, %v2735, 0.0
      %2744 = vadd.xlane.f32.xlu0 %v2743
      %v2745 = vpop.xlane.xlu0 %2744
      %v2746 = vsel %vm1146, %v2736, 0.0
      %2747 = vadd.xlane.f32.xlu0 %v2746
      %v2748 = vpop.xlane.xlu0 %2747
      %v2749 = vrcp.pop 32.0
      %v2750 = vmul.f32 %v2739, %v2749
      %v2751 = vmul.f32 %v2742, %v2749
      %v2752 = vmul.f32 %v2745, %v2749
      %v2753 = vmul.f32 %v2748, %v2749
      %v2754 = vsub.f32 %v2733, %v2750
      %v2755 = vsub.f32 %v2734, %v2751
      %v2756 = vsub.f32 %v2735, %v2752
      %v2757 = vsub.f32 %v2736, %v2753
      %v2758 = vmul.f32 %v2754, %v2754
      %v2759 = vmul.f32 %v2755, %v2755
      %v2760 = vmul.f32 %v2756, %v2756
      %v2761 = vmul.f32 %v2757, %v2757
      %v2762 = vsel %vm1146, %v2758, 0.0
      %2763 = vadd.xlane.f32.xlu0 %v2762
      %v2764 = vpop.xlane.xlu0 %2763
      %v2765 = vsel %vm1146, %v2759, 0.0
      %2766 = vadd.xlane.f32.xlu0 %v2765
      %v2767 = vpop.xlane.xlu0 %2766
      %v2768 = vsel %vm1146, %v2760, 0.0
      %2769 = vadd.xlane.f32.xlu0 %v2768
      %v2770 = vpop.xlane.xlu0 %2769
      %v2771 = vsel %vm1146, %v2761, 0.0
      %2772 = vadd.xlane.f32.xlu0 %v2771
      %v2773 = vpop.xlane.xlu0 %2772
      %v2774 = vmul.f32 %v2764, %v2749
      %v2775 = vmul.f32 %v2767, %v2749
      %v2776 = vmul.f32 %v2770, %v2749
      %v2777 = vmul.f32 %v2773, %v2749
      %v2778 = vadd.f32 %v2774, 1e-05
      %v2779 = vadd.f32 %v2775, 1e-05
      %v2780 = vadd.f32 %v2776, 1e-05
      %v2781 = vadd.f32 %v2777, 1e-05
      %v2782 = vrsqrt.pop %v2778
      %v2783 = vrsqrt.pop %v2779
      %v2784 = vrsqrt.pop %v2780
      %v2785 = vrsqrt.pop %v2781
      %v2786 = vmul.f32 %v2754, %v2782
      %v2787 = vmul.f32 %v2755, %v2783
      %v2788 = vmul.f32 %v2756, %v2784
      %v2789 = vmul.f32 %v2757, %v2785
      %v2790 = vlaneseq
      %v2791 = vshrl.u32 %v2790, 7
      %v2792 = vsub.s32 4, %v2791
      %v2793 = vrot.slane %v1137, %v2792
      %v2794 = vmul.f32 %v2786, %v2793
      %v2795 = vmul.f32 %v2787, %v2793
      %v2796 = vmul.f32 %v2788, %v2793
      %v2797 = vmul.f32 %v2789, %v2793
      %v2798 = vlaneseq
      %v2799 = vshrl.u32 %v2798, 7
      %v2800 = vsub.s32 5, %v2799
      %v2801 = vrot.slane %v1137, %v2800
      %v2802 = vadd.f32 %v2794, %v2801
      %v2803 = vadd.f32 %v2795, %v2801
      %v2804 = vadd.f32 %v2796, %v2801
      %v2805 = vadd.f32 %v2797, %v2801
      %v2806 = vlaneseq
      %v2807 = vshrl.u32 %v2806, 7
      %v2808 = vsub.s32 2, %v2807
      %v2809 = vrot.slane %v1137, %v2808
      %v2811 = vsel %vm1146, %v2802, 0
      %v2814 = vsel %vm1146, %v2803, 0
      %v2817 = vsel %vm1146, %v2804, 0
      %v2820 = vsel %vm1146, %v2805, 0
      %2822 = vmatprep.subr.mxu0 0.0
      %2823 = vmatpush1.msra.mxu0 %v1125
      %2824 = vmatprep.subr.mxu0 0.0
      %2825 = vmatpush1.msra.mxu0 %v1126
      %2826 = vmatprep.subr.mxu0 0.0
      %2827 = vmatpush1.msra.mxu0 %v1127
      %2828 = vmatprep.subr.mxu0 0.0
      %2829 = vmatpush1.msra.mxu0 %v1128
      %2830 = vmatprep.subr.mxu0 0.0
      %2831 = vmatpush1.msra.mxu0 0.0
      %2832 = vmatprep.subr.mxu0 0.0
      %2833 = vmatpush1.msra.mxu0 0.0
      %2834 = vmatprep.subr.mxu0 0.0
      %2835 = vmatpush1.msra.mxu0 0.0
      %2836 = vmatprep.subr.mxu0 0.0
      %2837 = vmatpush1.msra.mxu0 0.0
      %2838 = vmatprep.subr.mxu0 0.0
      %2839 = vmatpush1.msra.mxu0 0.0
      %2840 = vmatprep.subr.mxu0 0.0
      %2841 = vmatpush1.msra.mxu0 0.0
      %2842 = vmatprep.subr.mxu0 0.0
      %2843 = vmatpush1.msra.mxu0 0.0
      %2844 = vmatprep.subr.mxu0 0.0
      %2845 = vmatpush1.msra.mxu0 0.0
      %2846 = vmatprep.subr.mxu0 0.0
      %2847 = vmatpush1.msra.mxu0 0.0
      %2848 = vmatprep.subr.mxu0 0.0
      %2849 = vmatpush1.msra.mxu0 0.0
      %2850 = vmatprep.subr.mxu0 0.0
      %2851 = vmatpush1.msra.mxu0 0.0
      %2852 = vmatprep.subr.mxu0 0.0
      %2853 = vmatpush1.msra.mxu0 0.0
      %2854 = vmatprep.subr.mxu0 0.0
      %2855 = vmatpush1.msra.mxu0 0.0
      %2856 = vmatprep.subr.mxu0 0.0
      %2857 = vmatpush1.msra.mxu0 0.0
      %2858 = vmatprep.subr.mxu0 0.0
      %2859 = vmatpush1.msra.mxu0 0.0
      %2860 = vmatprep.subr.mxu0 0.0
      %2861 = vmatpush1.msra.mxu0 0.0
      %2862 = vmatprep.subr.mxu0 0.0
      %2863 = vmatpush1.msra.mxu0 0.0
      %2864 = vmatprep.subr.mxu0 0.0
      %2865 = vmatpush1.msra.mxu0 0.0
      %2866 = vmatprep.subr.mxu0 0.0
      %2867 = vmatpush1.msra.mxu0 0.0
      %2868 = vmatprep.subr.mxu0 0.0
      %2869 = vmatpush1.msra.mxu0 0.0
      %2870 = vmatprep.subr.mxu0 0.0
      %2871 = vmatpush1.msra.mxu0 0.0
      %2872 = vmatprep.subr.mxu0 0.0
      %2873 = vmatpush1.msra.mxu0 0.0
      %2874 = vmatprep.subr.mxu0 0.0
      %2875 = vmatpush1.msra.mxu0 0.0
      %2876 = vmatprep.subr.mxu0 0.0
      %2877 = vmatpush1.msra.mxu0 0.0
      %2878 = vmatprep.subr.mxu0 0.0
      %2879 = vmatpush1.msra.mxu0 0.0
      %2880 = vmatprep.subr.mxu0 0.0
      %2881 = vmatpush1.msra.mxu0 0.0
      %2882 = vmatprep.subr.mxu0 0.0
      %2883 = vmatpush1.msra.mxu0 0.0
      %2884 = vmatprep.subr.mxu0 0.0
      %2885 = vmatpush1.msra.mxu0 0.0
      %2886 = vmatprep.mubr.f32.mxu0 0.0
      %2887 = vmatmul.mubr.f32.gmra.mrb[0].mxu0 %v2811
      %v2888 = vpop.f32.mrb[0].mxu0
      %v2889 = vadd.f32 %v2809, %v2888
      %v2890 = vpop.f32.mrb[0].mxu0
      %2891 = vmatprep.mubr.f32.mxu0 0.0
      %2892 = vmatmul.mubr.f32.gmra.mrb[0].mxu0 %v2814
      %v2893 = vpop.f32.mrb[0].mxu0
      %v2894 = vadd.f32 %v2809, %v2893
      %v2895 = vpop.f32.mrb[0].mxu0
      %2896 = vmatprep.mubr.f32.mxu0 0.0
      %2897 = vmatmul.mubr.f32.gmra.mrb[0].mxu0 %v2817
      %v2898 = vpop.f32.mrb[0].mxu0
      %v2899 = vadd.f32 %v2809, %v2898
      %v2900 = vpop.f32.mrb[0].mxu0
      %2901 = vmatprep.mubr.f32.mxu0 0.0
      %2902 = vmatmul.mubr.f32.gmra.mrb[0].mxu0 %v2820
      %v2903 = vpop.f32.mrb[0].mxu0
      %v2904 = vadd.f32 %v2809, %v2903
      %v2905 = vpop.f32.mrb[0].mxu0
      %2906 = vdwg.mxu0
      %v2907 = vmul.f32 %v2889, 0.70710677
      %v2908 = vmul.f32 %v2894, 0.70710677
      %v2909 = vmul.f32 %v2899, 0.70710677
      %v2910 = vmul.f32 %v2904, 0.70710677
      %v2911 = vand.u32 2147483647, %v2907
      %v2912 = vand.u32 2147483647, %v2908
      %v2913 = vand.u32 2147483647, %v2909
      %v2914 = vand.u32 2147483647, %v2910
      %v2915 = vmul.f32 %v2911, 0.3275911
      %v2916 = vmul.f32 %v2912, 0.3275911
      %v2917 = vmul.f32 %v2913, 0.3275911
      %v2918 = vmul.f32 %v2914, 0.3275911
      %v2919 = vadd.f32 %v2915, 1.0
      %v2920 = vadd.f32 %v2916, 1.0
      %v2921 = vadd.f32 %v2917, 1.0
      %v2922 = vadd.f32 %v2918, 1.0
      %v2923 = vrcp.pop %v2919
      %v2924 = vmul.f32 1.0, %v2923
      %v2925 = vrcp.pop %v2920
      %v2926 = vmul.f32 1.0, %v2925
      %v2927 = vrcp.pop %v2921
      %v2928 = vmul.f32 1.0, %v2927
      %v2929 = vrcp.pop %v2922
      %v2930 = vmul.f32 1.0, %v2929
      %v2931 = vmul.f32 %v2924, 1.0614054
      %v2932 = vmul.f32 %v2926, 1.0614054
      %v2933 = vmul.f32 %v2928, 1.0614054
      %v2934 = vmul.f32 %v2930, 1.0614054
      %v2935 = vsub.f32 %v2931, 1.4531521
      %v2936 = vsub.f32 %v2932, 1.4531521
      %v2937 = vsub.f32 %v2933, 1.4531521
      %v2938 = vsub.f32 %v2934, 1.4531521
      %v2939 = vmul.f32 %v2935, %v2924
      %v2940 = vmul.f32 %v2936, %v2926
      %v2941 = vmul.f32 %v2937, %v2928
      %v2942 = vmul.f32 %v2938, %v2930
      %v2943 = vadd.f32 %v2939, 1.4214138
      %v2944 = vadd.f32 %v2940, 1.4214138
      %v2945 = vadd.f32 %v2941, 1.4214138
      %v2946 = vadd.f32 %v2942, 1.4214138
      %v2947 = vmul.f32 %v2943, %v2924
      %v2948 = vmul.f32 %v2944, %v2926
      %v2949 = vmul.f32 %v2945, %v2928
      %v2950 = vmul.f32 %v2946, %v2930
      %v2951 = vsub.f32 %v2947, 0.28449672
      %v2952 = vsub.f32 %v2948, 0.28449672
      %v2953 = vsub.f32 %v2949, 0.28449672
      %v2954 = vsub.f32 %v2950, 0.28449672
      %v2955 = vmul.f32 %v2951, %v2924
      %v2956 = vmul.f32 %v2952, %v2926
      %v2957 = vmul.f32 %v2953, %v2928
      %v2958 = vmul.f32 %v2954, %v2930
      %v2959 = vadd.f32 %v2955, 0.2548296
      %v2960 = vadd.f32 %v2956, 0.2548296
      %v2961 = vadd.f32 %v2957, 0.2548296
      %v2962 = vadd.f32 %v2958, 0.2548296
      %v2963 = vmul.f32 %v2959, %v2924
      %v2964 = vmul.f32 %v2960, %v2926
      %v2965 = vmul.f32 %v2961, %v2928
      %v2966 = vmul.f32 %v2962, %v2930
      %v2967 = vsub.f32 0.0, %v2911
      %v2968 = vsub.f32 0.0, %v2912
      %v2969 = vsub.f32 0.0, %v2913
      %v2970 = vsub.f32 0.0, %v2914
      %v2971 = vmul.f32 %v2967, %v2911
      %v2972 = vmul.f32 %v2968, %v2912
      %v2973 = vmul.f32 %v2969, %v2913
      %v2974 = vmul.f32 %v2970, %v2914
      %v2975 = vmul.f32 %v2971, 1.442695
      %v2976 = vpow.pop %v2975
      %v2977 = vmul.f32 %v2972, 1.442695
      %v2978 = vpow.pop %v2977
      %v2979 = vmul.f32 %v2973, 1.442695
      %v2980 = vpow.pop %v2979
      %v2981 = vmul.f32 %v2974, 1.442695
      %v2982 = vpow.pop %v2981
      %v2983 = vmul.f32 %v2963, %v2976
      %v2984 = vmul.f32 %v2964, %v2978
      %v2985 = vmul.f32 %v2965, %v2980
      %v2986 = vmul.f32 %v2966, %v2982
      %v2987 = vsub.f32 1.0, %v2983
      %v2988 = vsub.f32 1.0, %v2984
      %v2989 = vsub.f32 1.0, %v2985
      %v2990 = vsub.f32 1.0, %v2986
      %vm2991 = vcmp.ge.f32.partialorder %v2907, 0.0
      %vm2992 = vcmp.ge.f32.partialorder %v2908, 0.0
      %vm2993 = vcmp.ge.f32.partialorder %v2909, 0.0
      %vm2994 = vcmp.ge.f32.partialorder %v2910, 0.0
      %v2995 = vsub.f32 0.0, %v2987
      %v2996 = vsub.f32 0.0, %v2988
      %v2997 = vsub.f32 0.0, %v2989
      %v2998 = vsub.f32 0.0, %v2990
      %v2999 = vsel %vm2991, %v2987, %v2995
      %v3000 = vsel %vm2992, %v2988, %v2996
      %v3001 = vsel %vm2993, %v2989, %v2997
      %v3002 = vsel %vm2994, %v2990, %v2998
      %v3003 = vmul.f32 %v2889, 0.5
      %v3004 = vmul.f32 %v2894, 0.5
      %v3005 = vmul.f32 %v2899, 0.5
      %v3006 = vmul.f32 %v2904, 0.5
      %v3007 = vadd.f32 %v2999, 1.0
      %v3008 = vadd.f32 %v3000, 1.0
      %v3009 = vadd.f32 %v3001, 1.0
      %v3010 = vadd.f32 %v3002, 1.0
      %v3011 = vmul.f32 %v3003, %v3007
      %v3012 = vmul.f32 %v3004, %v3008
      %v3013 = vmul.f32 %v3005, %v3009
      %v3014 = vmul.f32 %v3006, %v3010
      %v3015 = vlaneseq
      %v3016 = vshrl.u32 %v3015, 7
      %v3017 = vsub.s32 3, %v3016
      %v3018 = vrot.slane %v1137, %v3017
      %vm3019 = vcmask 523264
      %v3021 = vsel %vm3019, %v3011, 0
      %v3024 = vsel %vm3019, %v3012, 0
      %v3027 = vsel %vm3019, %v3013, 0
      %v3030 = vsel %vm3019, %v3014, 0
      %3032 = vmatprep.subr.mxu0 0.0
      %3033 = vmatpush1.msra.mxu0 %v1129
      %3034 = vmatprep.subr.mxu0 0.0
      %3035 = vmatpush1.msra.mxu0 %v1130
      %3036 = vmatprep.subr.mxu0 0.0
      %3037 = vmatpush1.msra.mxu0 %v1131
      %3038 = vmatprep.subr.mxu0 0.0
      %3039 = vmatpush1.msra.mxu0 %v1132
      %3040 = vmatprep.subr.mxu0 0.0
      %3041 = vmatpush1.msra.mxu0 %v1133
      %3042 = vmatprep.subr.mxu0 0.0
      %3043 = vmatpush1.msra.mxu0 %v1134
      %3044 = vmatprep.subr.mxu0 0.0
      %3045 = vmatpush1.msra.mxu0 %v1135
      %3046 = vmatprep.subr.mxu0 0.0
      %3047 = vmatpush1.msra.mxu0 %v1136
      %3048 = vmatprep.subr.mxu0 0.0
      %3049 = vmatpush1.msra.mxu0 0.0
      %3050 = vmatprep.subr.mxu0 0.0
      %3051 = vmatpush1.msra.mxu0 0.0
      %3052 = vmatprep.subr.mxu0 0.0
      %3053 = vmatpush1.msra.mxu0 0.0
      %3054 = vmatprep.subr.mxu0 0.0
      %3055 = vmatpush1.msra.mxu0 0.0
      %3056 = vmatprep.subr.mxu0 0.0
      %3057 = vmatpush1.msra.mxu0 0.0
      %3058 = vmatprep.subr.mxu0 0.0
      %3059 = vmatpush1.msra.mxu0 0.0
      %3060 = vmatprep.subr.mxu0 0.0
      %3061 = vmatpush1.msra.mxu0 0.0
      %3062 = vmatprep.subr.mxu0 0.0
      %3063 = vmatpush1.msra.mxu0 0.0
      %3064 = vmatprep.subr.mxu0 0.0
      %3065 = vmatpush1.msra.mxu0 0.0
      %3066 = vmatprep.subr.mxu0 0.0
      %3067 = vmatpush1.msra.mxu0 0.0
      %3068 = vmatprep.subr.mxu0 0.0
      %3069 = vmatpush1.msra.mxu0 0.0
      %3070 = vmatprep.subr.mxu0 0.0
      %3071 = vmatpush1.msra.mxu0 0.0
      %3072 = vmatprep.subr.mxu0 0.0
      %3073 = vmatpush1.msra.mxu0 0.0
      %3074 = vmatprep.subr.mxu0 0.0
      %3075 = vmatpush1.msra.mxu0 0.0
      %3076 = vmatprep.subr.mxu0 0.0
      %3077 = vmatpush1.msra.mxu0 0.0
      %3078 = vmatprep.subr.mxu0 0.0
      %3079 = vmatpush1.msra.mxu0 0.0
      %3080 = vmatprep.subr.mxu0 0.0
      %3081 = vmatpush1.msra.mxu0 0.0
      %3082 = vmatprep.subr.mxu0 0.0
      %3083 = vmatpush1.msra.mxu0 0.0
      %3084 = vmatprep.subr.mxu0 0.0
      %3085 = vmatpush1.msra.mxu0 0.0
      %3086 = vmatprep.subr.mxu0 0.0
      %3087 = vmatpush1.msra.mxu0 0.0
      %3088 = vmatprep.subr.mxu0 0.0
      %3089 = vmatpush1.msra.mxu0 0.0
      %3090 = vmatprep.subr.mxu0 0.0
      %3091 = vmatpush1.msra.mxu0 0.0
      %3092 = vmatprep.subr.mxu0 0.0
      %3093 = vmatpush1.msra.mxu0 0.0
      %3094 = vmatprep.subr.mxu0 0.0
      %3095 = vmatpush1.msra.mxu0 0.0
      %3096 = vmatprep.mubr.f32.mxu0 0.0
      %3097 = vmatmul.mubr.f32.gmra.mrb[0].mxu0 %v3021
      %v3098 = vpop.f32.mrb[0].mxu0
      %v3099 = vadd.f32 %v3018, %v3098
      %v3100 = vpop.f32.mrb[0].mxu0
      %3101 = vmatprep.mubr.f32.mxu0 0.0
      %3102 = vmatmul.mubr.f32.gmra.mrb[0].mxu0 %v3024
      %v3103 = vpop.f32.mrb[0].mxu0
      %v3104 = vadd.f32 %v3018, %v3103
      %v3105 = vpop.f32.mrb[0].mxu0
      %3106 = vmatprep.mubr.f32.mxu0 0.0
      %3107 = vmatmul.mubr.f32.gmra.mrb[0].mxu0 %v3027
      %v3108 = vpop.f32.mrb[0].mxu0
      %v3109 = vadd.f32 %v3018, %v3108
      %v3110 = vpop.f32.mrb[0].mxu0
      %3111 = vmatprep.mubr.f32.mxu0 0.0
      %3112 = vmatmul.mubr.f32.gmra.mrb[0].mxu0 %v3030
      %v3113 = vpop.f32.mrb[0].mxu0
      %v3114 = vadd.f32 %v3018, %v3113
      %v3115 = vpop.f32.mrb[0].mxu0
      %3116 = vdwg.mxu0
      %v3117 = vadd.f32 %v2802, %v3099
      %v3118 = vadd.f32 %v2803, %v3104
      %v3119 = vadd.f32 %v2804, %v3109
      %v3120 = vadd.f32 %v2805, %v3114
      %v3121 = vsel %vm1146, %v3117, 0.0
      %3122 = vadd.xlane.f32.xlu0 %v3121
      %v3123 = vpop.xlane.xlu0 %3122
      %v3124 = vsel %vm1146, %v3118, 0.0
      %3125 = vadd.xlane.f32.xlu0 %v3124
      %v3126 = vpop.xlane.xlu0 %3125
      %v3127 = vsel %vm1146, %v3119, 0.0
      %3128 = vadd.xlane.f32.xlu0 %v3127
      %v3129 = vpop.xlane.xlu0 %3128
      %v3130 = vsel %vm1146, %v3120, 0.0
      %3131 = vadd.xlane.f32.xlu0 %v3130
      %v3132 = vpop.xlane.xlu0 %3131
      %v3133 = vmul.f32 %v3123, %v2749
      %v3134 = vmul.f32 %v3126, %v2749
      %v3135 = vmul.f32 %v3129, %v2749
      %v3136 = vmul.f32 %v3132, %v2749
      %v3137 = vsub.f32 %v3117, %v3133
      %v3138 = vsub.f32 %v3118, %v3134
      %v3139 = vsub.f32 %v3119, %v3135
      %v3140 = vsub.f32 %v3120, %v3136
      %v3141 = vmul.f32 %v3137, %v3137
      %v3142 = vmul.f32 %v3138, %v3138
      %v3143 = vmul.f32 %v3139, %v3139
      %v3144 = vmul.f32 %v3140, %v3140
      %v3145 = vsel %vm1146, %v3141, 0.0
      %3146 = vadd.xlane.f32.xlu0 %v3145
      %v3147 = vpop.xlane.xlu0 %3146
      %v3148 = vsel %vm1146, %v3142, 0.0
      %3149 = vadd.xlane.f32.xlu0 %v3148
      %v3150 = vpop.xlane.xlu0 %3149
      %v3151 = vsel %vm1146, %v3143, 0.0
      %3152 = vadd.xlane.f32.xlu0 %v3151
      %v3153 = vpop.xlane.xlu0 %3152
      %v3154 = vsel %vm1146, %v3144, 0.0
      %3155 = vadd.xlane.f32.xlu0 %v3154
      %v3156 = vpop.xlane.xlu0 %3155
      %v3157 = vmul.f32 %v3147, %v2749
      %v3158 = vmul.f32 %v3150, %v2749
      %v3159 = vmul.f32 %v3153, %v2749
      %v3160 = vmul.f32 %v3156, %v2749
      %v3161 = vadd.f32 %v3157, 1e-05
      %v3162 = vadd.f32 %v3158, 1e-05
      %v3163 = vadd.f32 %v3159, 1e-05
      %v3164 = vadd.f32 %v3160, 1e-05
      %v3165 = vrsqrt.pop %v3161
      %v3166 = vrsqrt.pop %v3162
      %v3167 = vrsqrt.pop %v3163
      %v3168 = vrsqrt.pop %v3164
      %v3169 = vmul.f32 %v3137, %v3165
      %v3170 = vmul.f32 %v3138, %v3166
      %v3171 = vmul.f32 %v3139, %v3167
      %v3172 = vmul.f32 %v3140, %v3168
      %v3173 = vlaneseq
      %v3174 = vshrl.u32 %v3173, 7
      %v3175 = vsub.s32 6, %v3174
      %v3176 = vrot.slane %v1137, %v3175
      %v3177 = vmul.f32 %v3169, %v3176
      %v3178 = vmul.f32 %v3170, %v3176
      %v3179 = vmul.f32 %v3171, %v3176
      %v3180 = vmul.f32 %v3172, %v3176
      %v3181 = vlaneseq
      %v3182 = vshrl.u32 %v3181, 7
      %v3183 = vsub.s32 7, %v3182
      %v3184 = vrot.slane %v1137, %v3183
      %v3185 = vadd.f32 %v3177, %v3184
      %v3186 = vadd.f32 %v3178, %v3184
      %v3187 = vadd.f32 %v3179, %v3184
      %v3188 = vadd.f32 %v3180, %v3184
      %v3189 = vld [vmem:[%s947] sm:$0xff]
      %v3190 = vld [vmem:[%s947 + $0x8] sm:$0xff]
      %v3191 = vld [vmem:[%s947 + $0x10] sm:$0xff]
      %v3192 = vld [vmem:[%s947 + $0x18] sm:$0xff]
      %v3193 = vld [vmem:[%s952] sm:$0xff]
      %v3194 = vld [vmem:[%s952 + $0x8] sm:$0xff]
      %v3195 = vld [vmem:[%s952 + $0x10] sm:$0xff]
      %v3196 = vld [vmem:[%s952 + $0x18] sm:$0xff]
      %v3197 = vld [vmem:[%s957] sm:$0xff]
      %v3198 = vld [vmem:[%s957 + $0x8] sm:$0xff]
      %v3199 = vld [vmem:[%s957 + $0x10] sm:$0xff]
      %v3200 = vld [vmem:[%s957 + $0x18] sm:$0xff]
      %v3201 = vld [vmem:[%s962] sm:$0xff]
      %v3202 = vld [vmem:[%s962 + $0x8] sm:$0xff]
      %v3203 = vld [vmem:[%s962 + $0x10] sm:$0xff]
      %v3204 = vld [vmem:[%s962 + $0x18] sm:$0xff]
      %v3205 = vld [vmem:[%s962 + $0x20] sm:$0xff]
      %v3206 = vld [vmem:[%s962 + $0x28] sm:$0xff]
      %v3207 = vld [vmem:[%s962 + $0x30] sm:$0xff]
      %v3208 = vld [vmem:[%s962 + $0x38] sm:$0xff]
      %v3209 = vld [vmem:[%s966] sm:$0xff]
      %v3210 = vld [vmem:[%s3] sm:$0xff]
      %v3211 = vld [vmem:[%s3 + $0x8] sm:$0xff]
      %v3212 = vld [vmem:[%s3 + $0x10] sm:$0xff]
      %v3213 = vld [vmem:[%s3 + $0x18] sm:$0xff]
      %v3214 = vlaneseq
      %v3215 = vshrl.u32 %v3214, 7
      %v3216 = vsub.s32 0, %v3215
      %v3217 = vrot.slane %v3209, %v3216
      %v3219 = vsel %vm1146, %v3185, 0
      %v3222 = vsel %vm1146, %v3186, 0
      %v3225 = vsel %vm1146, %v3187, 0
      %v3228 = vsel %vm1146, %v3188, 0
      %3230 = vmatprep.subr.mxu0 0.0
      %3231 = vmatpush1.msra.mxu0 %v3189
      %3232 = vmatprep.subr.mxu0 0.0
      %3233 = vmatpush1.msra.mxu0 %v3190
      %3234 = vmatprep.subr.mxu0 0.0
      %3235 = vmatpush1.msra.mxu0 %v3191
      %3236 = vmatprep.subr.mxu0 0.0
      %3237 = vmatpush1.msra.mxu0 %v3192
      %3238 = vmatprep.subr.mxu0 0.0
      %3239 = vmatpush1.msra.mxu0 0.0
      %3240 = vmatprep.subr.mxu0 0.0
      %3241 = vmatpush1.msra.mxu0 0.0
      %3242 = vmatprep.subr.mxu0 0.0
      %3243 = vmatpush1.msra.mxu0 0.0
      %3244 = vmatprep.subr.mxu0 0.0
      %3245 = vmatpush1.msra.mxu0 0.0
      %3246 = vmatprep.subr.mxu0 0.0
      %3247 = vmatpush1.msra.mxu0 0.0
      %3248 = vmatprep.subr.mxu0 0.0
      %3249 = vmatpush1.msra.mxu0 0.0
      %3250 = vmatprep.subr.mxu0 0.0
      %3251 = vmatpush1.msra.mxu0 0.0
      %3252 = vmatprep.subr.mxu0 0.0
      %3253 = vmatpush1.msra.mxu0 0.0
      %3254 = vmatprep.subr.mxu0 0.0
      %3255 = vmatpush1.msra.mxu0 0.0
      %3256 = vmatprep.subr.mxu0 0.0
      %3257 = vmatpush1.msra.mxu0 0.0
      %3258 = vmatprep.subr.mxu0 0.0
      %3259 = vmatpush1.msra.mxu0 0.0
      %3260 = vmatprep.subr.mxu0 0.0
      %3261 = vmatpush1.msra.mxu0 0.0
      %3262 = vmatprep.subr.mxu0 0.0
      %3263 = vmatpush1.msra.mxu0 0.0
      %3264 = vmatprep.subr.mxu0 0.0
      %3265 = vmatpush1.msra.mxu0 0.0
      %3266 = vmatprep.subr.mxu0 0.0
      %3267 = vmatpush1.msra.mxu0 0.0
      %3268 = vmatprep.subr.mxu0 0.0
      %3269 = vmatpush1.msra.mxu0 0.0
      %3270 = vmatprep.subr.mxu0 0.0
      %3271 = vmatpush1.msra.mxu0 0.0
      %3272 = vmatprep.subr.mxu0 0.0
      %3273 = vmatpush1.msra.mxu0 0.0
      %3274 = vmatprep.subr.mxu0 0.0
      %3275 = vmatpush1.msra.mxu0 0.0
      %3276 = vmatprep.subr.mxu0 0.0
      %3277 = vmatpush1.msra.mxu0 0.0
      %3278 = vmatprep.subr.mxu0 0.0
      %3279 = vmatpush1.msra.mxu0 0.0
      %3280 = vmatprep.subr.mxu0 0.0
      %3281 = vmatpush1.msra.mxu0 0.0
      %3282 = vmatprep.subr.mxu0 0.0
      %3283 = vmatpush1.msra.mxu0 0.0
      %3284 = vmatprep.subr.mxu0 0.0
      %3285 = vmatpush1.msra.mxu0 0.0
      %3286 = vmatprep.subr.mxu0 0.0
      %3287 = vmatpush1.msra.mxu0 0.0
      %3288 = vmatprep.subr.mxu0 0.0
      %3289 = vmatpush1.msra.mxu0 0.0
      %3290 = vmatprep.subr.mxu0 0.0
      %3291 = vmatpush1.msra.mxu0 0.0
      %3292 = vmatprep.subr.mxu0 0.0
      %3293 = vmatpush1.msra.mxu0 0.0
      %3294 = vmatprep.mubr.f32.mxu0 0.0
      %3295 = vmatmul.mubr.f32.gmra.mrb[0].mxu0 %v3219
      %v3296 = vpop.f32.mrb[0].mxu0
      %v3297 = vadd.f32 %v3217, %v3296
      %v3298 = vpop.f32.mrb[0].mxu0
      %3299 = vmatprep.mubr.f32.mxu0 0.0
      %3300 = vmatmul.mubr.f32.gmra.mrb[0].mxu0 %v3222
      %v3301 = vpop.f32.mrb[0].mxu0
      %v3302 = vadd.f32 %v3217, %v3301
      %v3303 = vpop.f32.mrb[0].mxu0
      %3304 = vmatprep.mubr.f32.mxu0 0.0
      %3305 = vmatmul.mubr.f32.gmra.mrb[0].mxu0 %v3225
      %v3306 = vpop.f32.mrb[0].mxu0
      %v3307 = vadd.f32 %v3217, %v3306
      %v3308 = vpop.f32.mrb[0].mxu0
      %3309 = vmatprep.mubr.f32.mxu0 0.0
      %3310 = vmatmul.mubr.f32.gmra.mrb[0].mxu0 %v3228
      %v3311 = vpop.f32.mrb[0].mxu0
      %v3312 = vadd.f32 %v3217, %v3311
      %v3313 = vpop.f32.mrb[0].mxu0
      %3314 = vdwg.mxu0
      %v3315 = vmul.f32 %v3297, 0.35355338
      %v3316 = vmul.f32 %v3302, 0.35355338
      %v3317 = vmul.f32 %v3307, 0.35355338
      %v3318 = vmul.f32 %v3312, 0.35355338
      %3323 = vrot.lane.b32.xlu0 %v3297, 96
      %v3324 = vpop.permute.xlu0 %3323
      %3325 = vrot.lane.b32.xlu0 %v3302, 96
      %v3326 = vpop.permute.xlu0 %3325
      %3327 = vrot.lane.b32.xlu0 %v3307, 96
      %v3328 = vpop.permute.xlu0 %3327
      %3329 = vrot.lane.b32.xlu0 %v3312, 96
      %v3330 = vpop.permute.xlu0 %3329
      %v3332 = vsel %vm1260, %v3315, 0
      %v3335 = vsel %vm1260, %v3316, 0
      %v3338 = vsel %vm1260, %v3317, 0
      %v3341 = vsel %vm1260, %v3318, 0
      %v3343 = vsel %vm1260, %v3324, 0
      %v3345 = vsel %vm1260, %v3326, 0
      %v3347 = vsel %vm1260, %v3328, 0
      %v3349 = vsel %vm1260, %v3330, 0
      %3351 = vmatprep.subr.mxu0 0.0
      %3352 = vmatpush1.xpose.msra.mxu0 %v3343
      %3353 = vmatprep.subr.mxu0 0.0
      %3354 = vmatpush1.xpose.msra.mxu0 %v3345
      %3355 = vmatprep.subr.mxu0 0.0
      %3356 = vmatpush1.xpose.msra.mxu0 %v3347
      %3357 = vmatprep.subr.mxu0 0.0
      %3358 = vmatpush1.xpose.msra.mxu0 %v3349
      %3359 = vmatprep.subr.mxu0 0.0
      %3360 = vmatpush1.xpose.msra.mxu0 0.0
      %3361 = vmatprep.subr.mxu0 0.0
      %3362 = vmatpush1.xpose.msra.mxu0 0.0
      %3363 = vmatprep.subr.mxu0 0.0
      %3364 = vmatpush1.xpose.msra.mxu0 0.0
      %3365 = vmatprep.subr.mxu0 0.0
      %3366 = vmatpush1.xpose.msra.mxu0 0.0
      %3367 = vmatprep.subr.mxu0 0.0
      %3368 = vmatpush1.xpose.msra.mxu0 0.0
      %3369 = vmatprep.subr.mxu0 0.0
      %3370 = vmatpush1.xpose.msra.mxu0 0.0
      %3371 = vmatprep.subr.mxu0 0.0
      %3372 = vmatpush1.xpose.msra.mxu0 0.0
      %3373 = vmatprep.subr.mxu0 0.0
      %3374 = vmatpush1.xpose.msra.mxu0 0.0
      %3375 = vmatprep.subr.mxu0 0.0
      %3376 = vmatpush1.xpose.msra.mxu0 0.0
      %3377 = vmatprep.subr.mxu0 0.0
      %3378 = vmatpush1.xpose.msra.mxu0 0.0
      %3379 = vmatprep.subr.mxu0 0.0
      %3380 = vmatpush1.xpose.msra.mxu0 0.0
      %3381 = vmatprep.subr.mxu0 0.0
      %3382 = vmatpush1.xpose.msra.mxu0 0.0
      %3383 = vmatprep.subr.mxu0 0.0
      %3384 = vmatpush1.xpose.msra.mxu0 0.0
      %3385 = vmatprep.subr.mxu0 0.0
      %3386 = vmatpush1.xpose.msra.mxu0 0.0
      %3387 = vmatprep.subr.mxu0 0.0
      %3388 = vmatpush1.xpose.msra.mxu0 0.0
      %3389 = vmatprep.subr.mxu0 0.0
      %3390 = vmatpush1.xpose.msra.mxu0 0.0
      %3391 = vmatprep.subr.mxu0 0.0
      %3392 = vmatpush1.xpose.msra.mxu0 0.0
      %3393 = vmatprep.subr.mxu0 0.0
      %3394 = vmatpush1.xpose.msra.mxu0 0.0
      %3395 = vmatprep.subr.mxu0 0.0
      %3396 = vmatpush1.xpose.msra.mxu0 0.0
      %3397 = vmatprep.subr.mxu0 0.0
      %3398 = vmatpush1.xpose.msra.mxu0 0.0
      %3399 = vmatprep.subr.mxu0 0.0
      %3400 = vmatpush1.xpose.msra.mxu0 0.0
      %3401 = vmatprep.subr.mxu0 0.0
      %3402 = vmatpush1.xpose.msra.mxu0 0.0
      %3403 = vmatprep.subr.mxu0 0.0
      %3404 = vmatpush1.xpose.msra.mxu0 0.0
      %3405 = vmatprep.subr.mxu0 0.0
      %3406 = vmatpush1.xpose.msra.mxu0 0.0
      %3407 = vmatprep.subr.mxu0 0.0
      %3408 = vmatpush1.xpose.msra.mxu0 0.0
      %3409 = vmatprep.subr.mxu0 0.0
      %3410 = vmatpush1.xpose.msra.mxu0 0.0
      %3411 = vmatprep.subr.mxu0 0.0
      %3412 = vmatpush1.xpose.msra.mxu0 0.0
      %3413 = vmatprep.subr.mxu0 0.0
      %3414 = vmatpush1.xpose.msra.mxu0 0.0
      %3415 = vmatprep.mubr.f32.mxu0 0.0
      %3416 = vmatmul.mubr.f32.gmra.mrb[0].mxu0 %v3332
      %v3417 = vpop.f32.mrb[0].mxu0
      %v3418 = vadd.f32 %v3210, %v3417
      %v3419 = vpop.f32.mrb[0].mxu0
      %3420 = vmatprep.mubr.f32.mxu0 0.0
      %3421 = vmatmul.mubr.f32.gmra.mrb[0].mxu0 %v3335
      %v3422 = vpop.f32.mrb[0].mxu0
      %v3423 = vadd.f32 %v3211, %v3422
      %v3424 = vpop.f32.mrb[0].mxu0
      %3425 = vmatprep.mubr.f32.mxu0 0.0
      %3426 = vmatmul.mubr.f32.gmra.mrb[0].mxu0 %v3338
      %v3427 = vpop.f32.mrb[0].mxu0
      %v3428 = vadd.f32 %v3212, %v3427
      %v3429 = vpop.f32.mrb[0].mxu0
      %3430 = vmatprep.mubr.f32.mxu0 0.0
      %3431 = vmatmul.mubr.f32.gmra.mrb[0].mxu0 %v3341
      %v3432 = vpop.f32.mrb[0].mxu0
      %v3433 = vadd.f32 %v3213, %v3432
      %v3434 = vpop.f32.mrb[0].mxu0
      %3435 = vdwg.mxu0
      %v3436 = vsel %vm1146, %v3418, -inf
      %3437 = vmax.xlane.f32.xlu0 %v3436
      %v3438 = vpop.xlane.xlu0 %3437
      %v3439 = vsel %vm1146, %v3423, -inf
      %3440 = vmax.xlane.f32.xlu0 %v3439
      %v3441 = vpop.xlane.xlu0 %3440
      %v3442 = vsel %vm1146, %v3428, -inf
      %3443 = vmax.xlane.f32.xlu0 %v3442
      %v3444 = vpop.xlane.xlu0 %3443
      %v3445 = vsel %vm1146, %v3433, -inf
      %3446 = vmax.xlane.f32.xlu0 %v3445
      %v3447 = vpop.xlane.xlu0 %3446
      %v3448 = vsub.f32 %v3418, %v3438
      %v3449 = vsub.f32 %v3423, %v3441
      %v3450 = vsub.f32 %v3428, %v3444
      %v3451 = vsub.f32 %v3433, %v3447
      %v3452 = vmul.f32 %v3448, 1.442695
      %v3453 = vpow.pop %v3452
      %v3454 = vmul.f32 %v3449, 1.442695
      %v3455 = vpow.pop %v3454
      %v3456 = vmul.f32 %v3450, 1.442695
      %v3457 = vpow.pop %v3456
      %v3458 = vmul.f32 %v3451, 1.442695
      %v3459 = vpow.pop %v3458
      %v3460 = vsel %vm1146, %v3453, 0.0
      %3461 = vadd.xlane.f32.xlu0 %v3460
      %v3462 = vpop.xlane.xlu0 %3461
      %v3463 = vsel %vm1146, %v3455, 0.0
      %3464 = vadd.xlane.f32.xlu0 %v3463
      %v3465 = vpop.xlane.xlu0 %3464
      %v3466 = vsel %vm1146, %v3457, 0.0
      %3467 = vadd.xlane.f32.xlu0 %v3466
      %v3468 = vpop.xlane.xlu0 %3467
      %v3469 = vsel %vm1146, %v3459, 0.0
      %3470 = vadd.xlane.f32.xlu0 %v3469
      %v3471 = vpop.xlane.xlu0 %3470
      %v3472 = vrcp.pop %v3462
      %v3473 = vmul.f32 %v3453, %v3472
      %v3474 = vrcp.pop %v3465
      %v3475 = vmul.f32 %v3455, %v3474
      %v3476 = vrcp.pop %v3468
      %v3477 = vmul.f32 %v3457, %v3476
      %v3478 = vrcp.pop %v3471
      %v3479 = vmul.f32 %v3459, %v3478
      %3480 = vrot.lane.b32.xlu0 %v3297, 64
      %v3481 = vpop.permute.xlu0 %3480
      %3482 = vrot.lane.b32.xlu0 %v3302, 64
      %v3483 = vpop.permute.xlu0 %3482
      %3484 = vrot.lane.b32.xlu0 %v3307, 64
      %v3485 = vpop.permute.xlu0 %3484
      %3486 = vrot.lane.b32.xlu0 %v3312, 64
      %v3487 = vpop.permute.xlu0 %3486
      %v3493 = vsel %vm1146, %v3473, 0
      %v3496 = vsel %vm1146, %v3475, 0
      %v3499 = vsel %vm1146, %v3477, 0
      %v3502 = vsel %vm1146, %v3479, 0
      %3504 = vmatprep.subr.mxu0 0.0
      %3505 = vmatpush1.msra.mxu0 %v3481
      %3506 = vmatprep.subr.mxu0 0.0
      %3507 = vmatpush1.msra.mxu0 %v3483
      %3508 = vmatprep.subr.mxu0 0.0
      %3509 = vmatpush1.msra.mxu0 %v3485
      %3510 = vmatprep.subr.mxu0 0.0
      %3511 = vmatpush1.msra.mxu0 %v3487
      %3512 = vmatprep.subr.mxu0 0.0
      %3513 = vmatpush1.msra.mxu0 0.0
      %3514 = vmatprep.subr.mxu0 0.0
      %3515 = vmatpush1.msra.mxu0 0.0
      %3516 = vmatprep.subr.mxu0 0.0
      %3517 = vmatpush1.msra.mxu0 0.0
      %3518 = vmatprep.subr.mxu0 0.0
      %3519 = vmatpush1.msra.mxu0 0.0
      %3520 = vmatprep.subr.mxu0 0.0
      %3521 = vmatpush1.msra.mxu0 0.0
      %3522 = vmatprep.subr.mxu0 0.0
      %3523 = vmatpush1.msra.mxu0 0.0
      %3524 = vmatprep.subr.mxu0 0.0
      %3525 = vmatpush1.msra.mxu0 0.0
      %3526 = vmatprep.subr.mxu0 0.0
      %3527 = vmatpush1.msra.mxu0 0.0
      %3528 = vmatprep.subr.mxu0 0.0
      %3529 = vmatpush1.msra.mxu0 0.0
      %3530 = vmatprep.subr.mxu0 0.0
      %3531 = vmatpush1.msra.mxu0 0.0
      %3532 = vmatprep.subr.mxu0 0.0
      %3533 = vmatpush1.msra.mxu0 0.0
      %3534 = vmatprep.subr.mxu0 0.0
      %3535 = vmatpush1.msra.mxu0 0.0
      %3536 = vmatprep.subr.mxu0 0.0
      %3537 = vmatpush1.msra.mxu0 0.0
      %3538 = vmatprep.subr.mxu0 0.0
      %3539 = vmatpush1.msra.mxu0 0.0
      %3540 = vmatprep.subr.mxu0 0.0
      %3541 = vmatpush1.msra.mxu0 0.0
      %3542 = vmatprep.subr.mxu0 0.0
      %3543 = vmatpush1.msra.mxu0 0.0
      %3544 = vmatprep.subr.mxu0 0.0
      %3545 = vmatpush1.msra.mxu0 0.0
      %3546 = vmatprep.subr.mxu0 0.0
      %3547 = vmatpush1.msra.mxu0 0.0
      %3548 = vmatprep.subr.mxu0 0.0
      %3549 = vmatpush1.msra.mxu0 0.0
      %3550 = vmatprep.subr.mxu0 0.0
      %3551 = vmatpush1.msra.mxu0 0.0
      %3552 = vmatprep.subr.mxu0 0.0
      %3553 = vmatpush1.msra.mxu0 0.0
      %3554 = vmatprep.subr.mxu0 0.0
      %3555 = vmatpush1.msra.mxu0 0.0
      %3556 = vmatprep.subr.mxu0 0.0
      %3557 = vmatpush1.msra.mxu0 0.0
      %3558 = vmatprep.subr.mxu0 0.0
      %3559 = vmatpush1.msra.mxu0 0.0
      %3560 = vmatprep.subr.mxu0 0.0
      %3561 = vmatpush1.msra.mxu0 0.0
      %3562 = vmatprep.subr.mxu0 0.0
      %3563 = vmatpush1.msra.mxu0 0.0
      %3564 = vmatprep.subr.mxu0 0.0
      %3565 = vmatpush1.msra.mxu0 0.0
      %3566 = vmatprep.subr.mxu0 0.0
      %3567 = vmatpush1.msra.mxu0 0.0
      %3568 = vmatprep.mubr.f32.mxu0 0.0
      %3569 = vmatmul.mubr.f32.gmra.mrb[0].mxu0 %v3493
      %v3570 = vpop.f32.mrb[0].mxu0
      %v3571 = vadd.f32 0.0, %v3570
      %v3572 = vpop.f32.mrb[0].mxu0
      %3573 = vmatprep.mubr.f32.mxu0 0.0
      %3574 = vmatmul.mubr.f32.gmra.mrb[0].mxu0 %v3496
      %v3575 = vpop.f32.mrb[0].mxu0
      %v3576 = vadd.f32 0.0, %v3575
      %v3577 = vpop.f32.mrb[0].mxu0
      %3578 = vmatprep.mubr.f32.mxu0 0.0
      %3579 = vmatmul.mubr.f32.gmra.mrb[0].mxu0 %v3499
      %v3580 = vpop.f32.mrb[0].mxu0
      %v3581 = vadd.f32 0.0, %v3580
      %v3582 = vpop.f32.mrb[0].mxu0
      %3583 = vmatprep.mubr.f32.mxu0 0.0
      %3584 = vmatmul.mubr.f32.gmra.mrb[0].mxu0 %v3502
      %v3585 = vpop.f32.mrb[0].mxu0
      %v3586 = vadd.f32 0.0, %v3585
      %v3587 = vpop.f32.mrb[0].mxu0
      %3588 = vdwg.mxu0
      %3589 = vrot.lane.b32.xlu0 %v3315, 120
      %v3590 = vpop.permute.xlu0 %3589
      %3591 = vrot.lane.b32.xlu0 %v3316, 120
      %v3592 = vpop.permute.xlu0 %3591
      %3593 = vrot.lane.b32.xlu0 %v3317, 120
      %v3594 = vpop.permute.xlu0 %3593
      %3595 = vrot.lane.b32.xlu0 %v3318, 120
      %v3596 = vpop.permute.xlu0 %3595
      %3597 = vrot.lane.b32.xlu0 %v3297, 88
      %v3598 = vpop.permute.xlu0 %3597
      %3599 = vrot.lane.b32.xlu0 %v3302, 88
      %v3600 = vpop.permute.xlu0 %3599
      %3601 = vrot.lane.b32.xlu0 %v3307, 88
      %v3602 = vpop.permute.xlu0 %3601
      %3603 = vrot.lane.b32.xlu0 %v3312, 88
      %v3604 = vpop.permute.xlu0 %3603
      %v3605 = vsel %vm1260, %v3590, 0
      %v3607 = vsel %vm1260, %v3592, 0
      %v3609 = vsel %vm1260, %v3594, 0
      %v3611 = vsel %vm1260, %v3596, 0
      %v3613 = vsel %vm1260, %v3598, 0
      %v3615 = vsel %vm1260, %v3600, 0
      %v3617 = vsel %vm1260, %v3602, 0
      %v3619 = vsel %vm1260, %v3604, 0
      %3621 = vmatprep.subr.mxu0 0.0
      %3622 = vmatpush1.xpose.msra.mxu0 %v3613
      %3623 = vmatprep.subr.mxu0 0.0
      %3624 = vmatpush1.xpose.msra.mxu0 %v3615
      %3625 = vmatprep.subr.mxu0 0.0
      %3626 = vmatpush1.xpose.msra.mxu0 %v3617
      %3627 = vmatprep.subr.mxu0 0.0
      %3628 = vmatpush1.xpose.msra.mxu0 %v3619
      %3629 = vmatprep.subr.mxu0 0.0
      %3630 = vmatpush1.xpose.msra.mxu0 0.0
      %3631 = vmatprep.subr.mxu0 0.0
      %3632 = vmatpush1.xpose.msra.mxu0 0.0
      %3633 = vmatprep.subr.mxu0 0.0
      %3634 = vmatpush1.xpose.msra.mxu0 0.0
      %3635 = vmatprep.subr.mxu0 0.0
      %3636 = vmatpush1.xpose.msra.mxu0 0.0
      %3637 = vmatprep.subr.mxu0 0.0
      %3638 = vmatpush1.xpose.msra.mxu0 0.0
      %3639 = vmatprep.subr.mxu0 0.0
      %3640 = vmatpush1.xpose.msra.mxu0 0.0
      %3641 = vmatprep.subr.mxu0 0.0
      %3642 = vmatpush1.xpose.msra.mxu0 0.0
      %3643 = vmatprep.subr.mxu0 0.0
      %3644 = vmatpush1.xpose.msra.mxu0 0.0
      %3645 = vmatprep.subr.mxu0 0.0
      %3646 = vmatpush1.xpose.msra.mxu0 0.0
      %3647 = vmatprep.subr.mxu0 0.0
      %3648 = vmatpush1.xpose.msra.mxu0 0.0
      %3649 = vmatprep.subr.mxu0 0.0
      %3650 = vmatpush1.xpose.msra.mxu0 0.0
      %3651 = vmatprep.subr.mxu0 0.0
      %3652 = vmatpush1.xpose.msra.mxu0 0.0
      %3653 = vmatprep.subr.mxu0 0.0
      %3654 = vmatpush1.xpose.msra.mxu0 0.0
      %3655 = vmatprep.subr.mxu0 0.0
      %3656 = vmatpush1.xpose.msra.mxu0 0.0
      %3657 = vmatprep.subr.mxu0 0.0
      %3658 = vmatpush1.xpose.msra.mxu0 0.0
      %3659 = vmatprep.subr.mxu0 0.0
      %3660 = vmatpush1.xpose.msra.mxu0 0.0
      %3661 = vmatprep.subr.mxu0 0.0
      %3662 = vmatpush1.xpose.msra.mxu0 0.0
      %3663 = vmatprep.subr.mxu0 0.0
      %3664 = vmatpush1.xpose.msra.mxu0 0.0
      %3665 = vmatprep.subr.mxu0 0.0
      %3666 = vmatpush1.xpose.msra.mxu0 0.0
      %3667 = vmatprep.subr.mxu0 0.0
      %3668 = vmatpush1.xpose.msra.mxu0 0.0
      %3669 = vmatprep.subr.mxu0 0.0
      %3670 = vmatpush1.xpose.msra.mxu0 0.0
      %3671 = vmatprep.subr.mxu0 0.0
      %3672 = vmatpush1.xpose.msra.mxu0 0.0
      %3673 = vmatprep.subr.mxu0 0.0
      %3674 = vmatpush1.xpose.msra.mxu0 0.0
      %3675 = vmatprep.subr.mxu0 0.0
      %3676 = vmatpush1.xpose.msra.mxu0 0.0
      %3677 = vmatprep.subr.mxu0 0.0
      %3678 = vmatpush1.xpose.msra.mxu0 0.0
      %3679 = vmatprep.subr.mxu0 0.0
      %3680 = vmatpush1.xpose.msra.mxu0 0.0
      %3681 = vmatprep.subr.mxu0 0.0
      %3682 = vmatpush1.xpose.msra.mxu0 0.0
      %3683 = vmatprep.subr.mxu0 0.0
      %3684 = vmatpush1.xpose.msra.mxu0 0.0
      %3685 = vmatprep.mubr.f32.mxu0 0.0
      %3686 = vmatmul.mubr.f32.gmra.mrb[0].mxu0 %v3605
      %v3687 = vpop.f32.mrb[0].mxu0
      %v3688 = vadd.f32 %v3210, %v3687
      %v3689 = vpop.f32.mrb[0].mxu0
      %3690 = vmatprep.mubr.f32.mxu0 0.0
      %3691 = vmatmul.mubr.f32.gmra.mrb[0].mxu0 %v3607
      %v3692 = vpop.f32.mrb[0].mxu0
      %v3693 = vadd.f32 %v3211, %v3692
      %v3694 = vpop.f32.mrb[0].mxu0
      %3695 = vmatprep.mubr.f32.mxu0 0.0
      %3696 = vmatmul.mubr.f32.gmra.mrb[0].mxu0 %v3609
      %v3697 = vpop.f32.mrb[0].mxu0
      %v3698 = vadd.f32 %v3212, %v3697
      %v3699 = vpop.f32.mrb[0].mxu0
      %3700 = vmatprep.mubr.f32.mxu0 0.0
      %3701 = vmatmul.mubr.f32.gmra.mrb[0].mxu0 %v3611
      %v3702 = vpop.f32.mrb[0].mxu0
      %v3703 = vadd.f32 %v3213, %v3702
      %v3704 = vpop.f32.mrb[0].mxu0
      %3705 = vdwg.mxu0
      %v3706 = vsel %vm1146, %v3688, -inf
      %3707 = vmax.xlane.f32.xlu0 %v3706
      %v3708 = vpop.xlane.xlu0 %3707
      %v3709 = vsel %vm1146, %v3693, -inf
      %3710 = vmax.xlane.f32.xlu0 %v3709
      %v3711 = vpop.xlane.xlu0 %3710
      %v3712 = vsel %vm1146, %v3698, -inf
      %3713 = vmax.xlane.f32.xlu0 %v3712
      %v3714 = vpop.xlane.xlu0 %3713
      %v3715 = vsel %vm1146, %v3703, -inf
      %3716 = vmax.xlane.f32.xlu0 %v3715
      %v3717 = vpop.xlane.xlu0 %3716
      %v3718 = vsub.f32 %v3688, %v3708
      %v3719 = vsub.f32 %v3693, %v3711
      %v3720 = vsub.f32 %v3698, %v3714
      %v3721 = vsub.f32 %v3703, %v3717
      %v3722 = vmul.f32 %v3718, 1.442695
      %v3723 = vpow.pop %v3722
      %v3724 = vmul.f32 %v3719, 1.442695
      %v3725 = vpow.pop %v3724
      %v3726 = vmul.f32 %v3720, 1.442695
      %v3727 = vpow.pop %v3726
      %v3728 = vmul.f32 %v3721, 1.442695
      %v3729 = vpow.pop %v3728
      %v3730 = vsel %vm1146, %v3723, 0.0
      %3731 = vadd.xlane.f32.xlu0 %v3730
      %v3732 = vpop.xlane.xlu0 %3731
      %v3733 = vsel %vm1146, %v3725, 0.0
      %3734 = vadd.xlane.f32.xlu0 %v3733
      %v3735 = vpop.xlane.xlu0 %3734
      %v3736 = vsel %vm1146, %v3727, 0.0
      %3737 = vadd.xlane.f32.xlu0 %v3736
      %v3738 = vpop.xlane.xlu0 %3737
      %v3739 = vsel %vm1146, %v3729, 0.0
      %3740 = vadd.xlane.f32.xlu0 %v3739
      %v3741 = vpop.xlane.xlu0 %3740
      %v3742 = vrcp.pop %v3732
      %v3743 = vmul.f32 %v3723, %v3742
      %v3744 = vrcp.pop %v3735
      %v3745 = vmul.f32 %v3725, %v3744
      %v3746 = vrcp.pop %v3738
      %v3747 = vmul.f32 %v3727, %v3746
      %v3748 = vrcp.pop %v3741
      %v3749 = vmul.f32 %v3729, %v3748
      %3750 = vrot.lane.b32.xlu0 %v3297, 56
      %v3751 = vpop.permute.xlu0 %3750
      %3752 = vrot.lane.b32.xlu0 %v3302, 56
      %v3753 = vpop.permute.xlu0 %3752
      %3754 = vrot.lane.b32.xlu0 %v3307, 56
      %v3755 = vpop.permute.xlu0 %3754
      %3756 = vrot.lane.b32.xlu0 %v3312, 56
      %v3757 = vpop.permute.xlu0 %3756
      %v3763 = vsel %vm1146, %v3743, 0
      %v3766 = vsel %vm1146, %v3745, 0
      %v3769 = vsel %vm1146, %v3747, 0
      %v3772 = vsel %vm1146, %v3749, 0
      %3774 = vmatprep.subr.mxu0 0.0
      %3775 = vmatpush1.msra.mxu0 %v3751
      %3776 = vmatprep.subr.mxu0 0.0
      %3777 = vmatpush1.msra.mxu0 %v3753
      %3778 = vmatprep.subr.mxu0 0.0
      %3779 = vmatpush1.msra.mxu0 %v3755
      %3780 = vmatprep.subr.mxu0 0.0
      %3781 = vmatpush1.msra.mxu0 %v3757
      %3782 = vmatprep.subr.mxu0 0.0
      %3783 = vmatpush1.msra.mxu0 0.0
      %3784 = vmatprep.subr.mxu0 0.0
      %3785 = vmatpush1.msra.mxu0 0.0
      %3786 = vmatprep.subr.mxu0 0.0
      %3787 = vmatpush1.msra.mxu0 0.0
      %3788 = vmatprep.subr.mxu0 0.0
      %3789 = vmatpush1.msra.mxu0 0.0
      %3790 = vmatprep.subr.mxu0 0.0
      %3791 = vmatpush1.msra.mxu0 0.0
      %3792 = vmatprep.subr.mxu0 0.0
      %3793 = vmatpush1.msra.mxu0 0.0
      %3794 = vmatprep.subr.mxu0 0.0
      %3795 = vmatpush1.msra.mxu0 0.0
      %3796 = vmatprep.subr.mxu0 0.0
      %3797 = vmatpush1.msra.mxu0 0.0
      %3798 = vmatprep.subr.mxu0 0.0
      %3799 = vmatpush1.msra.mxu0 0.0
      %3800 = vmatprep.subr.mxu0 0.0
      %3801 = vmatpush1.msra.mxu0 0.0
      %3802 = vmatprep.subr.mxu0 0.0
      %3803 = vmatpush1.msra.mxu0 0.0
      %3804 = vmatprep.subr.mxu0 0.0
      %3805 = vmatpush1.msra.mxu0 0.0
      %3806 = vmatprep.subr.mxu0 0.0
      %3807 = vmatpush1.msra.mxu0 0.0
      %3808 = vmatprep.subr.mxu0 0.0
      %3809 = vmatpush1.msra.mxu0 0.0
      %3810 = vmatprep.subr.mxu0 0.0
      %3811 = vmatpush1.msra.mxu0 0.0
      %3812 = vmatprep.subr.mxu0 0.0
      %3813 = vmatpush1.msra.mxu0 0.0
      %3814 = vmatprep.subr.mxu0 0.0
      %3815 = vmatpush1.msra.mxu0 0.0
      %3816 = vmatprep.subr.mxu0 0.0
      %3817 = vmatpush1.msra.mxu0 0.0
      %3818 = vmatprep.subr.mxu0 0.0
      %3819 = vmatpush1.msra.mxu0 0.0
      %3820 = vmatprep.subr.mxu0 0.0
      %3821 = vmatpush1.msra.mxu0 0.0
      %3822 = vmatprep.subr.mxu0 0.0
      %3823 = vmatpush1.msra.mxu0 0.0
      %3824 = vmatprep.subr.mxu0 0.0
      %3825 = vmatpush1.msra.mxu0 0.0
      %3826 = vmatprep.subr.mxu0 0.0
      %3827 = vmatpush1.msra.mxu0 0.0
      %3828 = vmatprep.subr.mxu0 0.0
      %3829 = vmatpush1.msra.mxu0 0.0
      %3830 = vmatprep.subr.mxu0 0.0
      %3831 = vmatpush1.msra.mxu0 0.0
      %3832 = vmatprep.subr.mxu0 0.0
      %3833 = vmatpush1.msra.mxu0 0.0
      %3834 = vmatprep.subr.mxu0 0.0
      %3835 = vmatpush1.msra.mxu0 0.0
      %3836 = vmatprep.subr.mxu0 0.0
      %3837 = vmatpush1.msra.mxu0 0.0
      %3838 = vmatprep.mubr.f32.mxu0 0.0
      %3839 = vmatmul.mubr.f32.gmra.mrb[0].mxu0 %v3763
      %v3840 = vpop.f32.mrb[0].mxu0
      %v3841 = vadd.f32 0.0, %v3840
      %v3842 = vpop.f32.mrb[0].mxu0
      %3843 = vmatprep.mubr.f32.mxu0 0.0
      %3844 = vmatmul.mubr.f32.gmra.mrb[0].mxu0 %v3766
      %v3845 = vpop.f32.mrb[0].mxu0
      %v3846 = vadd.f32 0.0, %v3845
      %v3847 = vpop.f32.mrb[0].mxu0
      %3848 = vmatprep.mubr.f32.mxu0 0.0
      %3849 = vmatmul.mubr.f32.gmra.mrb[0].mxu0 %v3769
      %v3850 = vpop.f32.mrb[0].mxu0
      %v3851 = vadd.f32 0.0, %v3850
      %v3852 = vpop.f32.mrb[0].mxu0
      %3853 = vmatprep.mubr.f32.mxu0 0.0
      %3854 = vmatmul.mubr.f32.gmra.mrb[0].mxu0 %v3772
      %v3855 = vpop.f32.mrb[0].mxu0
      %v3856 = vadd.f32 0.0, %v3855
      %v3857 = vpop.f32.mrb[0].mxu0
      %3858 = vdwg.mxu0
      %v3860 = vsel %vm1260, %v3841, 0
      %v3863 = vsel %vm1260, %v3846, 0
      %v3866 = vsel %vm1260, %v3851, 0
      %v3869 = vsel %vm1260, %v3856, 0
      %3871 = vmatprep.subr.mxu0 0.0
      %3872 = vmatpush1.msra.mxu0 %v3194
      %3873 = vmatprep.subr.mxu0 0.0
      %3874 = vmatpush1.msra.mxu0 0.0
      %3875 = vmatprep.subr.mxu0 0.0
      %3876 = vmatpush1.msra.mxu0 0.0
      %3877 = vmatprep.subr.mxu0 0.0
      %3878 = vmatpush1.msra.mxu0 0.0
      %3879 = vmatprep.subr.mxu0 0.0
      %3880 = vmatpush1.msra.mxu0 0.0
      %3881 = vmatprep.subr.mxu0 0.0
      %3882 = vmatpush1.msra.mxu0 0.0
      %3883 = vmatprep.subr.mxu0 0.0
      %3884 = vmatpush1.msra.mxu0 0.0
      %3885 = vmatprep.subr.mxu0 0.0
      %3886 = vmatpush1.msra.mxu0 0.0
      %3887 = vmatprep.subr.mxu0 0.0
      %3888 = vmatpush1.msra.mxu0 0.0
      %3889 = vmatprep.subr.mxu0 0.0
      %3890 = vmatpush1.msra.mxu0 0.0
      %3891 = vmatprep.subr.mxu0 0.0
      %3892 = vmatpush1.msra.mxu0 0.0
      %3893 = vmatprep.subr.mxu0 0.0
      %3894 = vmatpush1.msra.mxu0 0.0
      %3895 = vmatprep.subr.mxu0 0.0
      %3896 = vmatpush1.msra.mxu0 0.0
      %3897 = vmatprep.subr.mxu0 0.0
      %3898 = vmatpush1.msra.mxu0 0.0
      %3899 = vmatprep.subr.mxu0 0.0
      %3900 = vmatpush1.msra.mxu0 0.0
      %3901 = vmatprep.subr.mxu0 0.0
      %3902 = vmatpush1.msra.mxu0 0.0
      %3903 = vmatprep.subr.mxu0 0.0
      %3904 = vmatpush1.msra.mxu0 0.0
      %3905 = vmatprep.subr.mxu0 0.0
      %3906 = vmatpush1.msra.mxu0 0.0
      %3907 = vmatprep.subr.mxu0 0.0
      %3908 = vmatpush1.msra.mxu0 0.0
      %3909 = vmatprep.subr.mxu0 0.0
      %3910 = vmatpush1.msra.mxu0 0.0
      %3911 = vmatprep.subr.mxu0 0.0
      %3912 = vmatpush1.msra.mxu0 0.0
      %3913 = vmatprep.subr.mxu0 0.0
      %3914 = vmatpush1.msra.mxu0 0.0
      %3915 = vmatprep.subr.mxu0 0.0
      %3916 = vmatpush1.msra.mxu0 0.0
      %3917 = vmatprep.subr.mxu0 0.0
      %3918 = vmatpush1.msra.mxu0 0.0
      %3919 = vmatprep.subr.mxu0 0.0
      %3920 = vmatpush1.msra.mxu0 0.0
      %3921 = vmatprep.subr.mxu0 0.0
      %3922 = vmatpush1.msra.mxu0 0.0
      %3923 = vmatprep.subr.mxu0 0.0
      %3924 = vmatpush1.msra.mxu0 0.0
      %3925 = vmatprep.subr.mxu0 0.0
      %3926 = vmatpush1.msra.mxu0 0.0
      %3927 = vmatprep.subr.mxu0 0.0
      %3928 = vmatpush1.msra.mxu0 0.0
      %3929 = vmatprep.subr.mxu0 0.0
      %3930 = vmatpush1.msra.mxu0 0.0
      %3931 = vmatprep.subr.mxu0 0.0
      %3932 = vmatpush1.msra.mxu0 0.0
      %3933 = vmatprep.subr.mxu0 0.0
      %3934 = vmatpush1.msra.mxu0 0.0
      %3935 = vmatprep.mubr.f32.mxu0 0.0
      %3936 = vmatmul.mubr.f32.gmra.mrb[0].mxu0 %v3860
      %v3937 = vpop.f32.mrb[0].mxu0
      %v3938 = vadd.f32 0.0, %v3937
      %v3939 = vpop.f32.mrb[0].mxu0
      %3940 = vmatprep.mubr.f32.mxu0 0.0
      %3941 = vmatmul.mubr.f32.gmra.mrb[0].mxu0 %v3863
      %v3942 = vpop.f32.mrb[0].mxu0
      %v3943 = vadd.f32 0.0, %v3942
      %v3944 = vpop.f32.mrb[0].mxu0
      %3945 = vmatprep.mubr.f32.mxu0 0.0
      %3946 = vmatmul.mubr.f32.gmra.mrb[0].mxu0 %v3866
      %v3947 = vpop.f32.mrb[0].mxu0
      %v3948 = vadd.f32 0.0, %v3947
      %v3949 = vpop.f32.mrb[0].mxu0
      %3950 = vmatprep.mubr.f32.mxu0 0.0
      %3951 = vmatmul.mubr.f32.gmra.mrb[0].mxu0 %v3869
      %v3952 = vpop.f32.mrb[0].mxu0
      %v3953 = vadd.f32 0.0, %v3952
      %v3954 = vpop.f32.mrb[0].mxu0
      %3955 = vdwg.mxu0
      %v3957 = vsel %vm1260, %v3571, 0
      %v3960 = vsel %vm1260, %v3576, 0
      %v3963 = vsel %vm1260, %v3581, 0
      %v3966 = vsel %vm1260, %v3586, 0
      %3968 = vmatprep.subr.mxu0 0.0
      %3969 = vmatpush1.msra.mxu0 %v3193
      %3970 = vmatprep.subr.mxu0 0.0
      %3971 = vmatpush1.msra.mxu0 0.0
      %3972 = vmatprep.subr.mxu0 0.0
      %3973 = vmatpush1.msra.mxu0 0.0
      %3974 = vmatprep.subr.mxu0 0.0
      %3975 = vmatpush1.msra.mxu0 0.0
      %3976 = vmatprep.subr.mxu0 0.0
      %3977 = vmatpush1.msra.mxu0 0.0
      %3978 = vmatprep.subr.mxu0 0.0
      %3979 = vmatpush1.msra.mxu0 0.0
      %3980 = vmatprep.subr.mxu0 0.0
      %3981 = vmatpush1.msra.mxu0 0.0
      %3982 = vmatprep.subr.mxu0 0.0
      %3983 = vmatpush1.msra.mxu0 0.0
      %3984 = vmatprep.subr.mxu0 0.0
      %3985 = vmatpush1.msra.mxu0 0.0
      %3986 = vmatprep.subr.mxu0 0.0
      %3987 = vmatpush1.msra.mxu0 0.0
      %3988 = vmatprep.subr.mxu0 0.0
      %3989 = vmatpush1.msra.mxu0 0.0
      %3990 = vmatprep.subr.mxu0 0.0
      %3991 = vmatpush1.msra.mxu0 0.0
      %3992 = vmatprep.subr.mxu0 0.0
      %3993 = vmatpush1.msra.mxu0 0.0
      %3994 = vmatprep.subr.mxu0 0.0
      %3995 = vmatpush1.msra.mxu0 0.0
      %3996 = vmatprep.subr.mxu0 0.0
      %3997 = vmatpush1.msra.mxu0 0.0
      %3998 = vmatprep.subr.mxu0 0.0
      %3999 = vmatpush1.msra.mxu0 0.0
      %4000 = vmatprep.subr.mxu0 0.0
      %4001 = vmatpush1.msra.mxu0 0.0
      %4002 = vmatprep.subr.mxu0 0.0
      %4003 = vmatpush1.msra.mxu0 0.0
      %4004 = vmatprep.subr.mxu0 0.0
      %4005 = vmatpush1.msra.mxu0 0.0
      %4006 = vmatprep.subr.mxu0 0.0
      %4007 = vmatpush1.msra.mxu0 0.0
      %4008 = vmatprep.subr.mxu0 0.0
      %4009 = vmatpush1.msra.mxu0 0.0
      %4010 = vmatprep.subr.mxu0 0.0
      %4011 = vmatpush1.msra.mxu0 0.0
      %4012 = vmatprep.subr.mxu0 0.0
      %4013 = vmatpush1.msra.mxu0 0.0
      %4014 = vmatprep.subr.mxu0 0.0
      %4015 = vmatpush1.msra.mxu0 0.0
      %4016 = vmatprep.subr.mxu0 0.0
      %4017 = vmatpush1.msra.mxu0 0.0
      %4018 = vmatprep.subr.mxu0 0.0
      %4019 = vmatpush1.msra.mxu0 0.0
      %4020 = vmatprep.subr.mxu0 0.0
      %4021 = vmatpush1.msra.mxu0 0.0
      %4022 = vmatprep.subr.mxu0 0.0
      %4023 = vmatpush1.msra.mxu0 0.0
      %4024 = vmatprep.subr.mxu0 0.0
      %4025 = vmatpush1.msra.mxu0 0.0
      %4026 = vmatprep.subr.mxu0 0.0
      %4027 = vmatpush1.msra.mxu0 0.0
      %4028 = vmatprep.subr.mxu0 0.0
      %4029 = vmatpush1.msra.mxu0 0.0
      %4030 = vmatprep.subr.mxu0 0.0
      %4031 = vmatpush1.msra.mxu0 0.0
      %4032 = vmatprep.mubr.f32.mxu0 0.0
      %4033 = vmatmul.mubr.f32.gmra.mrb[0].mxu0 %v3957
      %v4034 = vpop.f32.mrb[0].mxu0
      %v4035 = vadd.f32 %v3938, %v4034
      %v4036 = vpop.f32.mrb[0].mxu0
      %4037 = vmatprep.mubr.f32.mxu0 0.0
      %4038 = vmatmul.mubr.f32.gmra.mrb[0].mxu0 %v3960
      %v4039 = vpop.f32.mrb[0].mxu0
      %v4040 = vadd.f32 %v3943, %v4039
      %v4041 = vpop.f32.mrb[0].mxu0
      %4042 = vmatprep.mubr.f32.mxu0 0.0
      %4043 = vmatmul.mubr.f32.gmra.mrb[0].mxu0 %v3963
      %v4044 = vpop.f32.mrb[0].mxu0
      %v4045 = vadd.f32 %v3948, %v4044
      %v4046 = vpop.f32.mrb[0].mxu0
      %4047 = vmatprep.mubr.f32.mxu0 0.0
      %4048 = vmatmul.mubr.f32.gmra.mrb[0].mxu0 %v3966
      %v4049 = vpop.f32.mrb[0].mxu0
      %v4050 = vadd.f32 %v3953, %v4049
      %v4051 = vpop.f32.mrb[0].mxu0
      %4052 = vdwg.mxu0
      %4053 = vrot.lane.b32.xlu0 %v3315, 112
      %v4054 = vpop.permute.xlu0 %4053
      %4055 = vrot.lane.b32.xlu0 %v3316, 112
      %v4056 = vpop.permute.xlu0 %4055
      %4057 = vrot.lane.b32.xlu0 %v3317, 112
      %v4058 = vpop.permute.xlu0 %4057
      %4059 = vrot.lane.b32.xlu0 %v3318, 112
      %v4060 = vpop.permute.xlu0 %4059
      %4061 = vrot.lane.b32.xlu0 %v3297, 80
      %v4062 = vpop.permute.xlu0 %4061
      %4063 = vrot.lane.b32.xlu0 %v3302, 80
      %v4064 = vpop.permute.xlu0 %4063
      %4065 = vrot.lane.b32.xlu0 %v3307, 80
      %v4066 = vpop.permute.xlu0 %4065
      %4067 = vrot.lane.b32.xlu0 %v3312, 80
      %v4068 = vpop.permute.xlu0 %4067
      %v4069 = vsel %vm1260, %v4054, 0
      %v4071 = vsel %vm1260, %v4056, 0
      %v4073 = vsel %vm1260, %v4058, 0
      %v4075 = vsel %vm1260, %v4060, 0
      %v4077 = vsel %vm1260, %v4062, 0
      %v4079 = vsel %vm1260, %v4064, 0
      %v4081 = vsel %vm1260, %v4066, 0
      %v4083 = vsel %vm1260, %v4068, 0
      %4085 = vmatprep.subr.mxu0 0.0
      %4086 = vmatpush1.xpose.msra.mxu0 %v4077
      %4087 = vmatprep.subr.mxu0 0.0
      %4088 = vmatpush1.xpose.msra.mxu0 %v4079
      %4089 = vmatprep.subr.mxu0 0.0
      %4090 = vmatpush1.xpose.msra.mxu0 %v4081
      %4091 = vmatprep.subr.mxu0 0.0
      %4092 = vmatpush1.xpose.msra.mxu0 %v4083
      %4093 = vmatprep.subr.mxu0 0.0
      %4094 = vmatpush1.xpose.msra.mxu0 0.0
      %4095 = vmatprep.subr.mxu0 0.0
      %4096 = vmatpush1.xpose.msra.mxu0 0.0
      %4097 = vmatprep.subr.mxu0 0.0
      %4098 = vmatpush1.xpose.msra.mxu0 0.0
      %4099 = vmatprep.subr.mxu0 0.0
      %4100 = vmatpush1.xpose.msra.mxu0 0.0
      %4101 = vmatprep.subr.mxu0 0.0
      %4102 = vmatpush1.xpose.msra.mxu0 0.0
      %4103 = vmatprep.subr.mxu0 0.0
      %4104 = vmatpush1.xpose.msra.mxu0 0.0
      %4105 = vmatprep.subr.mxu0 0.0
      %4106 = vmatpush1.xpose.msra.mxu0 0.0
      %4107 = vmatprep.subr.mxu0 0.0
      %4108 = vmatpush1.xpose.msra.mxu0 0.0
      %4109 = vmatprep.subr.mxu0 0.0
      %4110 = vmatpush1.xpose.msra.mxu0 0.0
      %4111 = vmatprep.subr.mxu0 0.0
      %4112 = vmatpush1.xpose.msra.mxu0 0.0
      %4113 = vmatprep.subr.mxu0 0.0
      %4114 = vmatpush1.xpose.msra.mxu0 0.0
      %4115 = vmatprep.subr.mxu0 0.0
      %4116 = vmatpush1.xpose.msra.mxu0 0.0
      %4117 = vmatprep.subr.mxu0 0.0
      %4118 = vmatpush1.xpose.msra.mxu0 0.0
      %4119 = vmatprep.subr.mxu0 0.0
      %4120 = vmatpush1.xpose.msra.mxu0 0.0
      %4121 = vmatprep.subr.mxu0 0.0
      %4122 = vmatpush1.xpose.msra.mxu0 0.0
      %4123 = vmatprep.subr.mxu0 0.0
      %4124 = vmatpush1.xpose.msra.mxu0 0.0
      %4125 = vmatprep.subr.mxu0 0.0
      %4126 = vmatpush1.xpose.msra.mxu0 0.0
      %4127 = vmatprep.subr.mxu0 0.0
      %4128 = vmatpush1.xpose.msra.mxu0 0.0
      %4129 = vmatprep.subr.mxu0 0.0
      %4130 = vmatpush1.xpose.msra.mxu0 0.0
      %4131 = vmatprep.subr.mxu0 0.0
      %4132 = vmatpush1.xpose.msra.mxu0 0.0
      %4133 = vmatprep.subr.mxu0 0.0
      %4134 = vmatpush1.xpose.msra.mxu0 0.0
      %4135 = vmatprep.subr.mxu0 0.0
      %4136 = vmatpush1.xpose.msra.mxu0 0.0
      %4137 = vmatprep.subr.mxu0 0.0
      %4138 = vmatpush1.xpose.msra.mxu0 0.0
      %4139 = vmatprep.subr.mxu0 0.0
      %4140 = vmatpush1.xpose.msra.mxu0 0.0
      %4141 = vmatprep.subr.mxu0 0.0
      %4142 = vmatpush1.xpose.msra.mxu0 0.0
      %4143 = vmatprep.subr.mxu0 0.0
      %4144 = vmatpush1.xpose.msra.mxu0 0.0
      %4145 = vmatprep.subr.mxu0 0.0
      %4146 = vmatpush1.xpose.msra.mxu0 0.0
      %4147 = vmatprep.subr.mxu0 0.0
      %4148 = vmatpush1.xpose.msra.mxu0 0.0
      %4149 = vmatprep.mubr.f32.mxu0 0.0
      %4150 = vmatmul.mubr.f32.gmra.mrb[0].mxu0 %v4069
      %v4151 = vpop.f32.mrb[0].mxu0
      %v4152 = vadd.f32 %v3210, %v4151
      %v4153 = vpop.f32.mrb[0].mxu0
      %4154 = vmatprep.mubr.f32.mxu0 0.0
      %4155 = vmatmul.mubr.f32.gmra.mrb[0].mxu0 %v4071
      %v4156 = vpop.f32.mrb[0].mxu0
      %v4157 = vadd.f32 %v3211, %v4156
      %v4158 = vpop.f32.mrb[0].mxu0
      %4159 = vmatprep.mubr.f32.mxu0 0.0
      %4160 = vmatmul.mubr.f32.gmra.mrb[0].mxu0 %v4073
      %v4161 = vpop.f32.mrb[0].mxu0
      %v4162 = vadd.f32 %v3212, %v4161
      %v4163 = vpop.f32.mrb[0].mxu0
      %4164 = vmatprep.mubr.f32.mxu0 0.0
      %4165 = vmatmul.mubr.f32.gmra.mrb[0].mxu0 %v4075
      %v4166 = vpop.f32.mrb[0].mxu0
      %v4167 = vadd.f32 %v3213, %v4166
      %v4168 = vpop.f32.mrb[0].mxu0
      %4169 = vdwg.mxu0
      %v4170 = vsel %vm1146, %v4152, -inf
      %4171 = vmax.xlane.f32.xlu0 %v4170
      %v4172 = vpop.xlane.xlu0 %4171
      %v4173 = vsel %vm1146, %v4157, -inf
      %4174 = vmax.xlane.f32.xlu0 %v4173
      %v4175 = vpop.xlane.xlu0 %4174
      %v4176 = vsel %vm1146, %v4162, -inf
      %4177 = vmax.xlane.f32.xlu0 %v4176
      %v4178 = vpop.xlane.xlu0 %4177
      %v4179 = vsel %vm1146, %v4167, -inf
      %4180 = vmax.xlane.f32.xlu0 %v4179
      %v4181 = vpop.xlane.xlu0 %4180
      %v4182 = vsub.f32 %v4152, %v4172
      %v4183 = vsub.f32 %v4157, %v4175
      %v4184 = vsub.f32 %v4162, %v4178
      %v4185 = vsub.f32 %v4167, %v4181
      %v4186 = vmul.f32 %v4182, 1.442695
      %v4187 = vpow.pop %v4186
      %v4188 = vmul.f32 %v4183, 1.442695
      %v4189 = vpow.pop %v4188
      %v4190 = vmul.f32 %v4184, 1.442695
      %v4191 = vpow.pop %v4190
      %v4192 = vmul.f32 %v4185, 1.442695
      %v4193 = vpow.pop %v4192
      %v4194 = vsel %vm1146, %v4187, 0.0
      %4195 = vadd.xlane.f32.xlu0 %v4194
      %v4196 = vpop.xlane.xlu0 %4195
      %v4197 = vsel %vm1146, %v4189, 0.0
      %4198 = vadd.xlane.f32.xlu0 %v4197
      %v4199 = vpop.xlane.xlu0 %4198
      %v4200 = vsel %vm1146, %v4191, 0.0
      %4201 = vadd.xlane.f32.xlu0 %v4200
      %v4202 = vpop.xlane.xlu0 %4201
      %v4203 = vsel %vm1146, %v4193, 0.0
      %4204 = vadd.xlane.f32.xlu0 %v4203
      %v4205 = vpop.xlane.xlu0 %4204
      %v4206 = vrcp.pop %v4196
      %v4207 = vmul.f32 %v4187, %v4206
      %v4208 = vrcp.pop %v4199
      %v4209 = vmul.f32 %v4189, %v4208
      %v4210 = vrcp.pop %v4202
      %v4211 = vmul.f32 %v4191, %v4210
      %v4212 = vrcp.pop %v4205
      %v4213 = vmul.f32 %v4193, %v4212
      %4214 = vrot.lane.b32.xlu0 %v3297, 48
      %v4215 = vpop.permute.xlu0 %4214
      %4216 = vrot.lane.b32.xlu0 %v3302, 48
      %v4217 = vpop.permute.xlu0 %4216
      %4218 = vrot.lane.b32.xlu0 %v3307, 48
      %v4219 = vpop.permute.xlu0 %4218
      %4220 = vrot.lane.b32.xlu0 %v3312, 48
      %v4221 = vpop.permute.xlu0 %4220
      %v4227 = vsel %vm1146, %v4207, 0
      %v4230 = vsel %vm1146, %v4209, 0
      %v4233 = vsel %vm1146, %v4211, 0
      %v4236 = vsel %vm1146, %v4213, 0
      %4238 = vmatprep.subr.mxu0 0.0
      %4239 = vmatpush1.msra.mxu0 %v4215
      %4240 = vmatprep.subr.mxu0 0.0
      %4241 = vmatpush1.msra.mxu0 %v4217
      %4242 = vmatprep.subr.mxu0 0.0
      %4243 = vmatpush1.msra.mxu0 %v4219
      %4244 = vmatprep.subr.mxu0 0.0
      %4245 = vmatpush1.msra.mxu0 %v4221
      %4246 = vmatprep.subr.mxu0 0.0
      %4247 = vmatpush1.msra.mxu0 0.0
      %4248 = vmatprep.subr.mxu0 0.0
      %4249 = vmatpush1.msra.mxu0 0.0
      %4250 = vmatprep.subr.mxu0 0.0
      %4251 = vmatpush1.msra.mxu0 0.0
      %4252 = vmatprep.subr.mxu0 0.0
      %4253 = vmatpush1.msra.mxu0 0.0
      %4254 = vmatprep.subr.mxu0 0.0
      %4255 = vmatpush1.msra.mxu0 0.0
      %4256 = vmatprep.subr.mxu0 0.0
      %4257 = vmatpush1.msra.mxu0 0.0
      %4258 = vmatprep.subr.mxu0 0.0
      %4259 = vmatpush1.msra.mxu0 0.0
      %4260 = vmatprep.subr.mxu0 0.0
      %4261 = vmatpush1.msra.mxu0 0.0
      %4262 = vmatprep.subr.mxu0 0.0
      %4263 = vmatpush1.msra.mxu0 0.0
      %4264 = vmatprep.subr.mxu0 0.0
      %4265 = vmatpush1.msra.mxu0 0.0
      %4266 = vmatprep.subr.mxu0 0.0
      %4267 = vmatpush1.msra.mxu0 0.0
      %4268 = vmatprep.subr.mxu0 0.0
      %4269 = vmatpush1.msra.mxu0 0.0
      %4270 = vmatprep.subr.mxu0 0.0
      %4271 = vmatpush1.msra.mxu0 0.0
      %4272 = vmatprep.subr.mxu0 0.0
      %4273 = vmatpush1.msra.mxu0 0.0
      %4274 = vmatprep.subr.mxu0 0.0
      %4275 = vmatpush1.msra.mxu0 0.0
      %4276 = vmatprep.subr.mxu0 0.0
      %4277 = vmatpush1.msra.mxu0 0.0
      %4278 = vmatprep.subr.mxu0 0.0
      %4279 = vmatpush1.msra.mxu0 0.0
      %4280 = vmatprep.subr.mxu0 0.0
      %4281 = vmatpush1.msra.mxu0 0.0
      %4282 = vmatprep.subr.mxu0 0.0
      %4283 = vmatpush1.msra.mxu0 0.0
      %4284 = vmatprep.subr.mxu0 0.0
      %4285 = vmatpush1.msra.mxu0 0.0
      %4286 = vmatprep.subr.mxu0 0.0
      %4287 = vmatpush1.msra.mxu0 0.0
      %4288 = vmatprep.subr.mxu0 0.0
      %4289 = vmatpush1.msra.mxu0 0.0
      %4290 = vmatprep.subr.mxu0 0.0
      %4291 = vmatpush1.msra.mxu0 0.0
      %4292 = vmatprep.subr.mxu0 0.0
      %4293 = vmatpush1.msra.mxu0 0.0
      %4294 = vmatprep.subr.mxu0 0.0
      %4295 = vmatpush1.msra.mxu0 0.0
      %4296 = vmatprep.subr.mxu0 0.0
      %4297 = vmatpush1.msra.mxu0 0.0
      %4298 = vmatprep.subr.mxu0 0.0
      %4299 = vmatpush1.msra.mxu0 0.0
      %4300 = vmatprep.subr.mxu0 0.0
      %4301 = vmatpush1.msra.mxu0 0.0
      %4302 = vmatprep.mubr.f32.mxu0 0.0
      %4303 = vmatmul.mubr.f32.gmra.mrb[0].mxu0 %v4227
      %v4304 = vpop.f32.mrb[0].mxu0
      %v4305 = vadd.f32 0.0, %v4304
      %v4306 = vpop.f32.mrb[0].mxu0
      %4307 = vmatprep.mubr.f32.mxu0 0.0
      %4308 = vmatmul.mubr.f32.gmra.mrb[0].mxu0 %v4230
      %v4309 = vpop.f32.mrb[0].mxu0
      %v4310 = vadd.f32 0.0, %v4309
      %v4311 = vpop.f32.mrb[0].mxu0
      %4312 = vmatprep.mubr.f32.mxu0 0.0
      %4313 = vmatmul.mubr.f32.gmra.mrb[0].mxu0 %v4233
      %v4314 = vpop.f32.mrb[0].mxu0
      %v4315 = vadd.f32 0.0, %v4314
      %v4316 = vpop.f32.mrb[0].mxu0
      %4317 = vmatprep.mubr.f32.mxu0 0.0
      %4318 = vmatmul.mubr.f32.gmra.mrb[0].mxu0 %v4236
      %v4319 = vpop.f32.mrb[0].mxu0
      %v4320 = vadd.f32 0.0, %v4319
      %v4321 = vpop.f32.mrb[0].mxu0
      %4322 = vdwg.mxu0
      %v4324 = vsel %vm1260, %v4305, 0
      %v4327 = vsel %vm1260, %v4310, 0
      %v4330 = vsel %vm1260, %v4315, 0
      %v4333 = vsel %vm1260, %v4320, 0
      %4335 = vmatprep.subr.mxu0 0.0
      %4336 = vmatpush1.msra.mxu0 %v3195
      %4337 = vmatprep.subr.mxu0 0.0
      %4338 = vmatpush1.msra.mxu0 0.0
      %4339 = vmatprep.subr.mxu0 0.0
      %4340 = vmatpush1.msra.mxu0 0.0
      %4341 = vmatprep.subr.mxu0 0.0
      %4342 = vmatpush1.msra.mxu0 0.0
      %4343 = vmatprep.subr.mxu0 0.0
      %4344 = vmatpush1.msra.mxu0 0.0
      %4345 = vmatprep.subr.mxu0 0.0
      %4346 = vmatpush1.msra.mxu0 0.0
      %4347 = vmatprep.subr.mxu0 0.0
      %4348 = vmatpush1.msra.mxu0 0.0
      %4349 = vmatprep.subr.mxu0 0.0
      %4350 = vmatpush1.msra.mxu0 0.0
      %4351 = vmatprep.subr.mxu0 0.0
      %4352 = vmatpush1.msra.mxu0 0.0
      %4353 = vmatprep.subr.mxu0 0.0
      %4354 = vmatpush1.msra.mxu0 0.0
      %4355 = vmatprep.subr.mxu0 0.0
      %4356 = vmatpush1.msra.mxu0 0.0
      %4357 = vmatprep.subr.mxu0 0.0
      %4358 = vmatpush1.msra.mxu0 0.0
      %4359 = vmatprep.subr.mxu0 0.0
      %4360 = vmatpush1.msra.mxu0 0.0
      %4361 = vmatprep.subr.mxu0 0.0
      %4362 = vmatpush1.msra.mxu0 0.0
      %4363 = vmatprep.subr.mxu0 0.0
      %4364 = vmatpush1.msra.mxu0 0.0
      %4365 = vmatprep.subr.mxu0 0.0
      %4366 = vmatpush1.msra.mxu0 0.0
      %4367 = vmatprep.subr.mxu0 0.0
      %4368 = vmatpush1.msra.mxu0 0.0
      %4369 = vmatprep.subr.mxu0 0.0
      %4370 = vmatpush1.msra.mxu0 0.0
      %4371 = vmatprep.subr.mxu0 0.0
      %4372 = vmatpush1.msra.mxu0 0.0
      %4373 = vmatprep.subr.mxu0 0.0
      %4374 = vmatpush1.msra.mxu0 0.0
      %4375 = vmatprep.subr.mxu0 0.0
      %4376 = vmatpush1.msra.mxu0 0.0
      %4377 = vmatprep.subr.mxu0 0.0
      %4378 = vmatpush1.msra.mxu0 0.0
      %4379 = vmatprep.subr.mxu0 0.0
      %4380 = vmatpush1.msra.mxu0 0.0
      %4381 = vmatprep.subr.mxu0 0.0
      %4382 = vmatpush1.msra.mxu0 0.0
      %4383 = vmatprep.subr.mxu0 0.0
      %4384 = vmatpush1.msra.mxu0 0.0
      %4385 = vmatprep.subr.mxu0 0.0
      %4386 = vmatpush1.msra.mxu0 0.0
      %4387 = vmatprep.subr.mxu0 0.0
      %4388 = vmatpush1.msra.mxu0 0.0
      %4389 = vmatprep.subr.mxu0 0.0
      %4390 = vmatpush1.msra.mxu0 0.0
      %4391 = vmatprep.subr.mxu0 0.0
      %4392 = vmatpush1.msra.mxu0 0.0
      %4393 = vmatprep.subr.mxu0 0.0
      %4394 = vmatpush1.msra.mxu0 0.0
      %4395 = vmatprep.subr.mxu0 0.0
      %4396 = vmatpush1.msra.mxu0 0.0
      %4397 = vmatprep.subr.mxu0 0.0
      %4398 = vmatpush1.msra.mxu0 0.0
      %4399 = vmatprep.mubr.f32.mxu0 0.0
      %4400 = vmatmul.mubr.f32.gmra.mrb[0].mxu0 %v4324
      %v4401 = vpop.f32.mrb[0].mxu0
      %v4402 = vadd.f32 0.0, %v4401
      %v4403 = vpop.f32.mrb[0].mxu0
      %4404 = vmatprep.mubr.f32.mxu0 0.0
      %4405 = vmatmul.mubr.f32.gmra.mrb[0].mxu0 %v4327
      %v4406 = vpop.f32.mrb[0].mxu0
      %v4407 = vadd.f32 0.0, %v4406
      %v4408 = vpop.f32.mrb[0].mxu0
      %4409 = vmatprep.mubr.f32.mxu0 0.0
      %4410 = vmatmul.mubr.f32.gmra.mrb[0].mxu0 %v4330
      %v4411 = vpop.f32.mrb[0].mxu0
      %v4412 = vadd.f32 0.0, %v4411
      %v4413 = vpop.f32.mrb[0].mxu0
      %4414 = vmatprep.mubr.f32.mxu0 0.0
      %4415 = vmatmul.mubr.f32.gmra.mrb[0].mxu0 %v4333
      %v4416 = vpop.f32.mrb[0].mxu0
      %v4417 = vadd.f32 0.0, %v4416
      %v4418 = vpop.f32.mrb[0].mxu0
      %4419 = vdwg.mxu0
      %v4420 = vadd.f32 %v4035, %v4402
      %v4421 = vadd.f32 %v4040, %v4407
      %v4422 = vadd.f32 %v4045, %v4412
      %v4423 = vadd.f32 %v4050, %v4417
      %4424 = vrot.lane.b32.xlu0 %v3315, 104
      %v4425 = vpop.permute.xlu0 %4424
      %4426 = vrot.lane.b32.xlu0 %v3316, 104
      %v4427 = vpop.permute.xlu0 %4426
      %4428 = vrot.lane.b32.xlu0 %v3317, 104
      %v4429 = vpop.permute.xlu0 %4428
      %4430 = vrot.lane.b32.xlu0 %v3318, 104
      %v4431 = vpop.permute.xlu0 %4430
      %4432 = vrot.lane.b32.xlu0 %v3297, 72
      %v4433 = vpop.permute.xlu0 %4432
      %4434 = vrot.lane.b32.xlu0 %v3302, 72
      %v4435 = vpop.permute.xlu0 %4434
      %4436 = vrot.lane.b32.xlu0 %v3307, 72
      %v4437 = vpop.permute.xlu0 %4436
      %4438 = vrot.lane.b32.xlu0 %v3312, 72
      %v4439 = vpop.permute.xlu0 %4438
      %v4440 = vsel %vm1260, %v4425, 0
      %v4442 = vsel %vm1260, %v4427, 0
      %v4444 = vsel %vm1260, %v4429, 0
      %v4446 = vsel %vm1260, %v4431, 0
      %v4448 = vsel %vm1260, %v4433, 0
      %v4450 = vsel %vm1260, %v4435, 0
      %v4452 = vsel %vm1260, %v4437, 0
      %v4454 = vsel %vm1260, %v4439, 0
      %4456 = vmatprep.subr.mxu0 0.0
      %4457 = vmatpush1.xpose.msra.mxu0 %v4448
      %4458 = vmatprep.subr.mxu0 0.0
      %4459 = vmatpush1.xpose.msra.mxu0 %v4450
      %4460 = vmatprep.subr.mxu0 0.0
      %4461 = vmatpush1.xpose.msra.mxu0 %v4452
      %4462 = vmatprep.subr.mxu0 0.0
      %4463 = vmatpush1.xpose.msra.mxu0 %v4454
      %4464 = vmatprep.subr.mxu0 0.0
      %4465 = vmatpush1.xpose.msra.mxu0 0.0
      %4466 = vmatprep.subr.mxu0 0.0
      %4467 = vmatpush1.xpose.msra.mxu0 0.0
      %4468 = vmatprep.subr.mxu0 0.0
      %4469 = vmatpush1.xpose.msra.mxu0 0.0
      %4470 = vmatprep.subr.mxu0 0.0
      %4471 = vmatpush1.xpose.msra.mxu0 0.0
      %4472 = vmatprep.subr.mxu0 0.0
      %4473 = vmatpush1.xpose.msra.mxu0 0.0
      %4474 = vmatprep.subr.mxu0 0.0
      %4475 = vmatpush1.xpose.msra.mxu0 0.0
      %4476 = vmatprep.subr.mxu0 0.0
      %4477 = vmatpush1.xpose.msra.mxu0 0.0
      %4478 = vmatprep.subr.mxu0 0.0
      %4479 = vmatpush1.xpose.msra.mxu0 0.0
      %4480 = vmatprep.subr.mxu0 0.0
      %4481 = vmatpush1.xpose.msra.mxu0 0.0
      %4482 = vmatprep.subr.mxu0 0.0
      %4483 = vmatpush1.xpose.msra.mxu0 0.0
      %4484 = vmatprep.subr.mxu0 0.0
      %4485 = vmatpush1.xpose.msra.mxu0 0.0
      %4486 = vmatprep.subr.mxu0 0.0
      %4487 = vmatpush1.xpose.msra.mxu0 0.0
      %4488 = vmatprep.subr.mxu0 0.0
      %4489 = vmatpush1.xpose.msra.mxu0 0.0
      %4490 = vmatprep.subr.mxu0 0.0
      %4491 = vmatpush1.xpose.msra.mxu0 0.0
      %4492 = vmatprep.subr.mxu0 0.0
      %4493 = vmatpush1.xpose.msra.mxu0 0.0
      %4494 = vmatprep.subr.mxu0 0.0
      %4495 = vmatpush1.xpose.msra.mxu0 0.0
      %4496 = vmatprep.subr.mxu0 0.0
      %4497 = vmatpush1.xpose.msra.mxu0 0.0
      %4498 = vmatprep.subr.mxu0 0.0
      %4499 = vmatpush1.xpose.msra.mxu0 0.0
      %4500 = vmatprep.subr.mxu0 0.0
      %4501 = vmatpush1.xpose.msra.mxu0 0.0
      %4502 = vmatprep.subr.mxu0 0.0
      %4503 = vmatpush1.xpose.msra.mxu0 0.0
      %4504 = vmatprep.subr.mxu0 0.0
      %4505 = vmatpush1.xpose.msra.mxu0 0.0
      %4506 = vmatprep.subr.mxu0 0.0
      %4507 = vmatpush1.xpose.msra.mxu0 0.0
      %4508 = vmatprep.subr.mxu0 0.0
      %4509 = vmatpush1.xpose.msra.mxu0 0.0
      %4510 = vmatprep.subr.mxu0 0.0
      %4511 = vmatpush1.xpose.msra.mxu0 0.0
      %4512 = vmatprep.subr.mxu0 0.0
      %4513 = vmatpush1.xpose.msra.mxu0 0.0
      %4514 = vmatprep.subr.mxu0 0.0
      %4515 = vmatpush1.xpose.msra.mxu0 0.0
      %4516 = vmatprep.subr.mxu0 0.0
      %4517 = vmatpush1.xpose.msra.mxu0 0.0
      %4518 = vmatprep.subr.mxu0 0.0
      %4519 = vmatpush1.xpose.msra.mxu0 0.0
      %4520 = vmatprep.mubr.f32.mxu0 0.0
      %4521 = vmatmul.mubr.f32.gmra.mrb[0].mxu0 %v4440
      %v4522 = vpop.f32.mrb[0].mxu0
      %v4523 = vadd.f32 %v3210, %v4522
      %v4524 = vpop.f32.mrb[0].mxu0
      %4525 = vmatprep.mubr.f32.mxu0 0.0
      %4526 = vmatmul.mubr.f32.gmra.mrb[0].mxu0 %v4442
      %v4527 = vpop.f32.mrb[0].mxu0
      %v4528 = vadd.f32 %v3211, %v4527
      %v4529 = vpop.f32.mrb[0].mxu0
      %4530 = vmatprep.mubr.f32.mxu0 0.0
      %4531 = vmatmul.mubr.f32.gmra.mrb[0].mxu0 %v4444
      %v4532 = vpop.f32.mrb[0].mxu0
      %v4533 = vadd.f32 %v3212, %v4532
      %v4534 = vpop.f32.mrb[0].mxu0
      %4535 = vmatprep.mubr.f32.mxu0 0.0
      %4536 = vmatmul.mubr.f32.gmra.mrb[0].mxu0 %v4446
      %v4537 = vpop.f32.mrb[0].mxu0
      %v4538 = vadd.f32 %v3213, %v4537
      %v4539 = vpop.f32.mrb[0].mxu0
      %4540 = vdwg.mxu0
      %v4541 = vsel %vm1146, %v4523, -inf
      %4542 = vmax.xlane.f32.xlu0 %v4541
      %v4543 = vpop.xlane.xlu0 %4542
      %v4544 = vsel %vm1146, %v4528, -inf
      %4545 = vmax.xlane.f32.xlu0 %v4544
      %v4546 = vpop.xlane.xlu0 %4545
      %v4547 = vsel %vm1146, %v4533, -inf
      %4548 = vmax.xlane.f32.xlu0 %v4547
      %v4549 = vpop.xlane.xlu0 %4548
      %v4550 = vsel %vm1146, %v4538, -inf
      %4551 = vmax.xlane.f32.xlu0 %v4550
      %v4552 = vpop.xlane.xlu0 %4551
      %v4553 = vsub.f32 %v4523, %v4543
      %v4554 = vsub.f32 %v4528, %v4546
      %v4555 = vsub.f32 %v4533, %v4549
      %v4556 = vsub.f32 %v4538, %v4552
      %v4557 = vmul.f32 %v4553, 1.442695
      %v4558 = vpow.pop %v4557
      %v4559 = vmul.f32 %v4554, 1.442695
      %v4560 = vpow.pop %v4559
      %v4561 = vmul.f32 %v4555, 1.442695
      %v4562 = vpow.pop %v4561
      %v4563 = vmul.f32 %v4556, 1.442695
      %v4564 = vpow.pop %v4563
      %v4565 = vsel %vm1146, %v4558, 0.0
      %4566 = vadd.xlane.f32.xlu0 %v4565
      %v4567 = vpop.xlane.xlu0 %4566
      %v4568 = vsel %vm1146, %v4560, 0.0
      %4569 = vadd.xlane.f32.xlu0 %v4568
      %v4570 = vpop.xlane.xlu0 %4569
      %v4571 = vsel %vm1146, %v4562, 0.0
      %4572 = vadd.xlane.f32.xlu0 %v4571
      %v4573 = vpop.xlane.xlu0 %4572
      %v4574 = vsel %vm1146, %v4564, 0.0
      %4575 = vadd.xlane.f32.xlu0 %v4574
      %v4576 = vpop.xlane.xlu0 %4575
      %v4577 = vrcp.pop %v4567
      %v4578 = vmul.f32 %v4558, %v4577
      %v4579 = vrcp.pop %v4570
      %v4580 = vmul.f32 %v4560, %v4579
      %v4581 = vrcp.pop %v4573
      %v4582 = vmul.f32 %v4562, %v4581
      %v4583 = vrcp.pop %v4576
      %v4584 = vmul.f32 %v4564, %v4583
      %4585 = vrot.lane.b32.xlu0 %v3297, 40
      %v4586 = vpop.permute.xlu0 %4585
      %4587 = vrot.lane.b32.xlu0 %v3302, 40
      %v4588 = vpop.permute.xlu0 %4587
      %4589 = vrot.lane.b32.xlu0 %v3307, 40
      %v4590 = vpop.permute.xlu0 %4589
      %4591 = vrot.lane.b32.xlu0 %v3312, 40
      %v4592 = vpop.permute.xlu0 %4591
      %v4598 = vsel %vm1146, %v4578, 0
      %v4601 = vsel %vm1146, %v4580, 0
      %v4604 = vsel %vm1146, %v4582, 0
      %v4607 = vsel %vm1146, %v4584, 0
      %4609 = vmatprep.subr.mxu0 0.0
      %4610 = vmatpush1.msra.mxu0 %v4586
      %4611 = vmatprep.subr.mxu0 0.0
      %4612 = vmatpush1.msra.mxu0 %v4588
      %4613 = vmatprep.subr.mxu0 0.0
      %4614 = vmatpush1.msra.mxu0 %v4590
      %4615 = vmatprep.subr.mxu0 0.0
      %4616 = vmatpush1.msra.mxu0 %v4592
      %4617 = vmatprep.subr.mxu0 0.0
      %4618 = vmatpush1.msra.mxu0 0.0
      %4619 = vmatprep.subr.mxu0 0.0
      %4620 = vmatpush1.msra.mxu0 0.0
      %4621 = vmatprep.subr.mxu0 0.0
      %4622 = vmatpush1.msra.mxu0 0.0
      %4623 = vmatprep.subr.mxu0 0.0
      %4624 = vmatpush1.msra.mxu0 0.0
      %4625 = vmatprep.subr.mxu0 0.0
      %4626 = vmatpush1.msra.mxu0 0.0
      %4627 = vmatprep.subr.mxu0 0.0
      %4628 = vmatpush1.msra.mxu0 0.0
      %4629 = vmatprep.subr.mxu0 0.0
      %4630 = vmatpush1.msra.mxu0 0.0
      %4631 = vmatprep.subr.mxu0 0.0
      %4632 = vmatpush1.msra.mxu0 0.0
      %4633 = vmatprep.subr.mxu0 0.0
      %4634 = vmatpush1.msra.mxu0 0.0
      %4635 = vmatprep.subr.mxu0 0.0
      %4636 = vmatpush1.msra.mxu0 0.0
      %4637 = vmatprep.subr.mxu0 0.0
      %4638 = vmatpush1.msra.mxu0 0.0
      %4639 = vmatprep.subr.mxu0 0.0
      %4640 = vmatpush1.msra.mxu0 0.0
      %4641 = vmatprep.subr.mxu0 0.0
      %4642 = vmatpush1.msra.mxu0 0.0
      %4643 = vmatprep.subr.mxu0 0.0
      %4644 = vmatpush1.msra.mxu0 0.0
      %4645 = vmatprep.subr.mxu0 0.0
      %4646 = vmatpush1.msra.mxu0 0.0
      %4647 = vmatprep.subr.mxu0 0.0
      %4648 = vmatpush1.msra.mxu0 0.0
      %4649 = vmatprep.subr.mxu0 0.0
      %4650 = vmatpush1.msra.mxu0 0.0
      %4651 = vmatprep.subr.mxu0 0.0
      %4652 = vmatpush1.msra.mxu0 0.0
      %4653 = vmatprep.subr.mxu0 0.0
      %4654 = vmatpush1.msra.mxu0 0.0
      %4655 = vmatprep.subr.mxu0 0.0
      %4656 = vmatpush1.msra.mxu0 0.0
      %4657 = vmatprep.subr.mxu0 0.0
      %4658 = vmatpush1.msra.mxu0 0.0
      %4659 = vmatprep.subr.mxu0 0.0
      %4660 = vmatpush1.msra.mxu0 0.0
      %4661 = vmatprep.subr.mxu0 0.0
      %4662 = vmatpush1.msra.mxu0 0.0
      %4663 = vmatprep.subr.mxu0 0.0
      %4664 = vmatpush1.msra.mxu0 0.0
      %4665 = vmatprep.subr.mxu0 0.0
      %4666 = vmatpush1.msra.mxu0 0.0
      %4667 = vmatprep.subr.mxu0 0.0
      %4668 = vmatpush1.msra.mxu0 0.0
      %4669 = vmatprep.subr.mxu0 0.0
      %4670 = vmatpush1.msra.mxu0 0.0
      %4671 = vmatprep.subr.mxu0 0.0
      %4672 = vmatpush1.msra.mxu0 0.0
      %4673 = vmatprep.mubr.f32.mxu0 0.0
      %4674 = vmatmul.mubr.f32.gmra.mrb[0].mxu0 %v4598
      %v4675 = vpop.f32.mrb[0].mxu0
      %v4676 = vadd.f32 0.0, %v4675
      %v4677 = vpop.f32.mrb[0].mxu0
      %4678 = vmatprep.mubr.f32.mxu0 0.0
      %4679 = vmatmul.mubr.f32.gmra.mrb[0].mxu0 %v4601
      %v4680 = vpop.f32.mrb[0].mxu0
      %v4681 = vadd.f32 0.0, %v4680
      %v4682 = vpop.f32.mrb[0].mxu0
      %4683 = vmatprep.mubr.f32.mxu0 0.0
      %4684 = vmatmul.mubr.f32.gmra.mrb[0].mxu0 %v4604
      %v4685 = vpop.f32.mrb[0].mxu0
      %v4686 = vadd.f32 0.0, %v4685
      %v4687 = vpop.f32.mrb[0].mxu0
      %4688 = vmatprep.mubr.f32.mxu0 0.0
      %4689 = vmatmul.mubr.f32.gmra.mrb[0].mxu0 %v4607
      %v4690 = vpop.f32.mrb[0].mxu0
      %v4691 = vadd.f32 0.0, %v4690
      %v4692 = vpop.f32.mrb[0].mxu0
      %4693 = vdwg.mxu0
      %v4695 = vsel %vm1260, %v4676, 0
      %v4698 = vsel %vm1260, %v4681, 0
      %v4701 = vsel %vm1260, %v4686, 0
      %v4704 = vsel %vm1260, %v4691, 0
      %4706 = vmatprep.subr.mxu0 0.0
      %4707 = vmatpush1.msra.mxu0 %v3196
      %4708 = vmatprep.subr.mxu0 0.0
      %4709 = vmatpush1.msra.mxu0 0.0
      %4710 = vmatprep.subr.mxu0 0.0
      %4711 = vmatpush1.msra.mxu0 0.0
      %4712 = vmatprep.subr.mxu0 0.0
      %4713 = vmatpush1.msra.mxu0 0.0
      %4714 = vmatprep.subr.mxu0 0.0
      %4715 = vmatpush1.msra.mxu0 0.0
      %4716 = vmatprep.subr.mxu0 0.0
      %4717 = vmatpush1.msra.mxu0 0.0
      %4718 = vmatprep.subr.mxu0 0.0
      %4719 = vmatpush1.msra.mxu0 0.0
      %4720 = vmatprep.subr.mxu0 0.0
      %4721 = vmatpush1.msra.mxu0 0.0
      %4722 = vmatprep.subr.mxu0 0.0
      %4723 = vmatpush1.msra.mxu0 0.0
      %4724 = vmatprep.subr.mxu0 0.0
      %4725 = vmatpush1.msra.mxu0 0.0
      %4726 = vmatprep.subr.mxu0 0.0
      %4727 = vmatpush1.msra.mxu0 0.0
      %4728 = vmatprep.subr.mxu0 0.0
      %4729 = vmatpush1.msra.mxu0 0.0
      %4730 = vmatprep.subr.mxu0 0.0
      %4731 = vmatpush1.msra.mxu0 0.0
      %4732 = vmatprep.subr.mxu0 0.0
      %4733 = vmatpush1.msra.mxu0 0.0
      %4734 = vmatprep.subr.mxu0 0.0
      %4735 = vmatpush1.msra.mxu0 0.0
      %4736 = vmatprep.subr.mxu0 0.0
      %4737 = vmatpush1.msra.mxu0 0.0
      %4738 = vmatprep.subr.mxu0 0.0
      %4739 = vmatpush1.msra.mxu0 0.0
      %4740 = vmatprep.subr.mxu0 0.0
      %4741 = vmatpush1.msra.mxu0 0.0
      %4742 = vmatprep.subr.mxu0 0.0
      %4743 = vmatpush1.msra.mxu0 0.0
      %4744 = vmatprep.subr.mxu0 0.0
      %4745 = vmatpush1.msra.mxu0 0.0
      %4746 = vmatprep.subr.mxu0 0.0
      %4747 = vmatpush1.msra.mxu0 0.0
      %4748 = vmatprep.subr.mxu0 0.0
      %4749 = vmatpush1.msra.mxu0 0.0
      %4750 = vmatprep.subr.mxu0 0.0
      %4751 = vmatpush1.msra.mxu0 0.0
      %4752 = vmatprep.subr.mxu0 0.0
      %4753 = vmatpush1.msra.mxu0 0.0
      %4754 = vmatprep.subr.mxu0 0.0
      %4755 = vmatpush1.msra.mxu0 0.0
      %4756 = vmatprep.subr.mxu0 0.0
      %4757 = vmatpush1.msra.mxu0 0.0
      %4758 = vmatprep.subr.mxu0 0.0
      %4759 = vmatpush1.msra.mxu0 0.0
      %4760 = vmatprep.subr.mxu0 0.0
      %4761 = vmatpush1.msra.mxu0 0.0
      %4762 = vmatprep.subr.mxu0 0.0
      %4763 = vmatpush1.msra.mxu0 0.0
      %4764 = vmatprep.subr.mxu0 0.0
      %4765 = vmatpush1.msra.mxu0 0.0
      %4766 = vmatprep.subr.mxu0 0.0
      %4767 = vmatpush1.msra.mxu0 0.0
      %4768 = vmatprep.subr.mxu0 0.0
      %4769 = vmatpush1.msra.mxu0 0.0
      %4770 = vmatprep.mubr.f32.mxu0 0.0
      %4771 = vmatmul.mubr.f32.gmra.mrb[0].mxu0 %v4695
      %v4772 = vpop.f32.mrb[0].mxu0
      %v4773 = vadd.f32 0.0, %v4772
      %v4774 = vpop.f32.mrb[0].mxu0
      %4775 = vmatprep.mubr.f32.mxu0 0.0
      %4776 = vmatmul.mubr.f32.gmra.mrb[0].mxu0 %v4698
      %v4777 = vpop.f32.mrb[0].mxu0
      %v4778 = vadd.f32 0.0, %v4777
      %v4779 = vpop.f32.mrb[0].mxu0
      %4780 = vmatprep.mubr.f32.mxu0 0.0
      %4781 = vmatmul.mubr.f32.gmra.mrb[0].mxu0 %v4701
      %v4782 = vpop.f32.mrb[0].mxu0
      %v4783 = vadd.f32 0.0, %v4782
      %v4784 = vpop.f32.mrb[0].mxu0
      %4785 = vmatprep.mubr.f32.mxu0 0.0
      %4786 = vmatmul.mubr.f32.gmra.mrb[0].mxu0 %v4704
      %v4787 = vpop.f32.mrb[0].mxu0
      %v4788 = vadd.f32 0.0, %v4787
      %v4789 = vpop.f32.mrb[0].mxu0
      %4790 = vdwg.mxu0
      %v4791 = vadd.f32 %v4420, %v4773
      %v4792 = vadd.f32 %v4421, %v4778
      %v4793 = vadd.f32 %v4422, %v4783
      %v4794 = vadd.f32 %v4423, %v4788
      %v4795 = vlaneseq
      %v4796 = vshrl.u32 %v4795, 7
      %v4797 = vsub.s32 1, %v4796
      %v4798 = vrot.slane %v3209, %v4797
      %v4799 = vadd.f32 %v4791, %v4798
      %v4800 = vadd.f32 %v4792, %v4798
      %v4801 = vadd.f32 %v4793, %v4798
      %v4802 = vadd.f32 %v4794, %v4798
      %v4803 = vadd.f32 %v3185, %v4799
      %v4804 = vadd.f32 %v3186, %v4800
      %v4805 = vadd.f32 %v3187, %v4801
      %v4806 = vadd.f32 %v3188, %v4802
      %v4807 = vsel %vm1146, %v4803, 0.0
      %4808 = vadd.xlane.f32.xlu0 %v4807
      %v4809 = vpop.xlane.xlu0 %4808
      %v4810 = vsel %vm1146, %v4804, 0.0
      %4811 = vadd.xlane.f32.xlu0 %v4810
      %v4812 = vpop.xlane.xlu0 %4811
      %v4813 = vsel %vm1146, %v4805, 0.0
      %4814 = vadd.xlane.f32.xlu0 %v4813
      %v4815 = vpop.xlane.xlu0 %4814
      %v4816 = vsel %vm1146, %v4806, 0.0
      %4817 = vadd.xlane.f32.xlu0 %v4816
      %v4818 = vpop.xlane.xlu0 %4817
      %v4819 = vmul.f32 %v4809, %v2749
      %v4820 = vmul.f32 %v4812, %v2749
      %v4821 = vmul.f32 %v4815, %v2749
      %v4822 = vmul.f32 %v4818, %v2749
      %v4823 = vsub.f32 %v4803, %v4819
      %v4824 = vsub.f32 %v4804, %v4820
      %v4825 = vsub.f32 %v4805, %v4821
      %v4826 = vsub.f32 %v4806, %v4822
      %v4827 = vmul.f32 %v4823, %v4823
      %v4828 = vmul.f32 %v4824, %v4824
      %v4829 = vmul.f32 %v4825, %v4825
      %v4830 = vmul.f32 %v4826, %v4826
      %v4831 = vsel %vm1146, %v4827, 0.0
      %4832 = vadd.xlane.f32.xlu0 %v4831
      %v4833 = vpop.xlane.xlu0 %4832
      %v4834 = vsel %vm1146, %v4828, 0.0
      %4835 = vadd.xlane.f32.xlu0 %v4834
      %v4836 = vpop.xlane.xlu0 %4835
      %v4837 = vsel %vm1146, %v4829, 0.0
      %4838 = vadd.xlane.f32.xlu0 %v4837
      %v4839 = vpop.xlane.xlu0 %4838
      %v4840 = vsel %vm1146, %v4830, 0.0
      %4841 = vadd.xlane.f32.xlu0 %v4840
      %v4842 = vpop.xlane.xlu0 %4841
      %v4843 = vmul.f32 %v4833, %v2749
      %v4844 = vmul.f32 %v4836, %v2749
      %v4845 = vmul.f32 %v4839, %v2749
      %v4846 = vmul.f32 %v4842, %v2749
      %v4847 = vadd.f32 %v4843, 1e-05
      %v4848 = vadd.f32 %v4844, 1e-05
      %v4849 = vadd.f32 %v4845, 1e-05
      %v4850 = vadd.f32 %v4846, 1e-05
      %v4851 = vrsqrt.pop %v4847
      %v4852 = vrsqrt.pop %v4848
      %v4853 = vrsqrt.pop %v4849
      %v4854 = vrsqrt.pop %v4850
      %v4855 = vmul.f32 %v4823, %v4851
      %v4856 = vmul.f32 %v4824, %v4852
      %v4857 = vmul.f32 %v4825, %v4853
      %v4858 = vmul.f32 %v4826, %v4854
      %v4859 = vlaneseq
      %v4860 = vshrl.u32 %v4859, 7
      %v4861 = vsub.s32 4, %v4860
      %v4862 = vrot.slane %v3209, %v4861
      %v4863 = vmul.f32 %v4855, %v4862
      %v4864 = vmul.f32 %v4856, %v4862
      %v4865 = vmul.f32 %v4857, %v4862
      %v4866 = vmul.f32 %v4858, %v4862
      %v4867 = vlaneseq
      %v4868 = vshrl.u32 %v4867, 7
      %v4869 = vsub.s32 5, %v4868
      %v4870 = vrot.slane %v3209, %v4869
      %v4871 = vadd.f32 %v4863, %v4870
      %v4872 = vadd.f32 %v4864, %v4870
      %v4873 = vadd.f32 %v4865, %v4870
      %v4874 = vadd.f32 %v4866, %v4870
      %v4875 = vlaneseq
      %v4876 = vshrl.u32 %v4875, 7
      %v4877 = vsub.s32 2, %v4876
      %v4878 = vrot.slane %v3209, %v4877
      %v4880 = vsel %vm1146, %v4871, 0
      %v4883 = vsel %vm1146, %v4872, 0
      %v4886 = vsel %vm1146, %v4873, 0
      %v4889 = vsel %vm1146, %v4874, 0
      %4891 = vmatprep.subr.mxu0 0.0
      %4892 = vmatpush1.msra.mxu0 %v3197
      %4893 = vmatprep.subr.mxu0 0.0
      %4894 = vmatpush1.msra.mxu0 %v3198
      %4895 = vmatprep.subr.mxu0 0.0
      %4896 = vmatpush1.msra.mxu0 %v3199
      %4897 = vmatprep.subr.mxu0 0.0
      %4898 = vmatpush1.msra.mxu0 %v3200
      %4899 = vmatprep.subr.mxu0 0.0
      %4900 = vmatpush1.msra.mxu0 0.0
      %4901 = vmatprep.subr.mxu0 0.0
      %4902 = vmatpush1.msra.mxu0 0.0
      %4903 = vmatprep.subr.mxu0 0.0
      %4904 = vmatpush1.msra.mxu0 0.0
      %4905 = vmatprep.subr.mxu0 0.0
      %4906 = vmatpush1.msra.mxu0 0.0
      %4907 = vmatprep.subr.mxu0 0.0
      %4908 = vmatpush1.msra.mxu0 0.0
      %4909 = vmatprep.subr.mxu0 0.0
      %4910 = vmatpush1.msra.mxu0 0.0
      %4911 = vmatprep.subr.mxu0 0.0
      %4912 = vmatpush1.msra.mxu0 0.0
      %4913 = vmatprep.subr.mxu0 0.0
      %4914 = vmatpush1.msra.mxu0 0.0
      %4915 = vmatprep.subr.mxu0 0.0
      %4916 = vmatpush1.msra.mxu0 0.0
      %4917 = vmatprep.subr.mxu0 0.0
      %4918 = vmatpush1.msra.mxu0 0.0
      %4919 = vmatprep.subr.mxu0 0.0
      %4920 = vmatpush1.msra.mxu0 0.0
      %4921 = vmatprep.subr.mxu0 0.0
      %4922 = vmatpush1.msra.mxu0 0.0
      %4923 = vmatprep.subr.mxu0 0.0
      %4924 = vmatpush1.msra.mxu0 0.0
      %4925 = vmatprep.subr.mxu0 0.0
      %4926 = vmatpush1.msra.mxu0 0.0
      %4927 = vmatprep.subr.mxu0 0.0
      %4928 = vmatpush1.msra.mxu0 0.0
      %4929 = vmatprep.subr.mxu0 0.0
      %4930 = vmatpush1.msra.mxu0 0.0
      %4931 = vmatprep.subr.mxu0 0.0
      %4932 = vmatpush1.msra.mxu0 0.0
      %4933 = vmatprep.subr.mxu0 0.0
      %4934 = vmatpush1.msra.mxu0 0.0
      %4935 = vmatprep.subr.mxu0 0.0
      %4936 = vmatpush1.msra.mxu0 0.0
      %4937 = vmatprep.subr.mxu0 0.0
      %4938 = vmatpush1.msra.mxu0 0.0
      %4939 = vmatprep.subr.mxu0 0.0
      %4940 = vmatpush1.msra.mxu0 0.0
      %4941 = vmatprep.subr.mxu0 0.0
      %4942 = vmatpush1.msra.mxu0 0.0
      %4943 = vmatprep.subr.mxu0 0.0
      %4944 = vmatpush1.msra.mxu0 0.0
      %4945 = vmatprep.subr.mxu0 0.0
      %4946 = vmatpush1.msra.mxu0 0.0
      %4947 = vmatprep.subr.mxu0 0.0
      %4948 = vmatpush1.msra.mxu0 0.0
      %4949 = vmatprep.subr.mxu0 0.0
      %4950 = vmatpush1.msra.mxu0 0.0
      %4951 = vmatprep.subr.mxu0 0.0
      %4952 = vmatpush1.msra.mxu0 0.0
      %4953 = vmatprep.subr.mxu0 0.0
      %4954 = vmatpush1.msra.mxu0 0.0
      %4955 = vmatprep.mubr.f32.mxu0 0.0
      %4956 = vmatmul.mubr.f32.gmra.mrb[0].mxu0 %v4880
      %v4957 = vpop.f32.mrb[0].mxu0
      %v4958 = vadd.f32 %v4878, %v4957
      %v4959 = vpop.f32.mrb[0].mxu0
      %4960 = vmatprep.mubr.f32.mxu0 0.0
      %4961 = vmatmul.mubr.f32.gmra.mrb[0].mxu0 %v4883
      %v4962 = vpop.f32.mrb[0].mxu0
      %v4963 = vadd.f32 %v4878, %v4962
      %v4964 = vpop.f32.mrb[0].mxu0
      %4965 = vmatprep.mubr.f32.mxu0 0.0
      %4966 = vmatmul.mubr.f32.gmra.mrb[0].mxu0 %v4886
      %v4967 = vpop.f32.mrb[0].mxu0
      %v4968 = vadd.f32 %v4878, %v4967
      %v4969 = vpop.f32.mrb[0].mxu0
      %4970 = vmatprep.mubr.f32.mxu0 0.0
      %4971 = vmatmul.mubr.f32.gmra.mrb[0].mxu0 %v4889
      %v4972 = vpop.f32.mrb[0].mxu0
      %v4973 = vadd.f32 %v4878, %v4972
      %v4974 = vpop.f32.mrb[0].mxu0
      %4975 = vdwg.mxu0
      %v4976 = vmul.f32 %v4958, 0.70710677
      %v4977 = vmul.f32 %v4963, 0.70710677
      %v4978 = vmul.f32 %v4968, 0.70710677
      %v4979 = vmul.f32 %v4973, 0.70710677
      %v4980 = vand.u32 2147483647, %v4976
      %v4981 = vand.u32 2147483647, %v4977
      %v4982 = vand.u32 2147483647, %v4978
      %v4983 = vand.u32 2147483647, %v4979
      %v4984 = vmul.f32 %v4980, 0.3275911
      %v4985 = vmul.f32 %v4981, 0.3275911
      %v4986 = vmul.f32 %v4982, 0.3275911
      %v4987 = vmul.f32 %v4983, 0.3275911
      %v4988 = vadd.f32 %v4984, 1.0
      %v4989 = vadd.f32 %v4985, 1.0
      %v4990 = vadd.f32 %v4986, 1.0
      %v4991 = vadd.f32 %v4987, 1.0
      %v4992 = vrcp.pop %v4988
      %v4993 = vmul.f32 1.0, %v4992
      %v4994 = vrcp.pop %v4989
      %v4995 = vmul.f32 1.0, %v4994
      %v4996 = vrcp.pop %v4990
      %v4997 = vmul.f32 1.0, %v4996
      %v4998 = vrcp.pop %v4991
      %v4999 = vmul.f32 1.0, %v4998
      %v5000 = vmul.f32 %v4993, 1.0614054
      %v5001 = vmul.f32 %v4995, 1.0614054
      %v5002 = vmul.f32 %v4997, 1.0614054
      %v5003 = vmul.f32 %v4999, 1.0614054
      %v5004 = vsub.f32 %v5000, 1.4531521
      %v5005 = vsub.f32 %v5001, 1.4531521
      %v5006 = vsub.f32 %v5002, 1.4531521
      %v5007 = vsub.f32 %v5003, 1.4531521
      %v5008 = vmul.f32 %v5004, %v4993
      %v5009 = vmul.f32 %v5005, %v4995
      %v5010 = vmul.f32 %v5006, %v4997
      %v5011 = vmul.f32 %v5007, %v4999
      %v5012 = vadd.f32 %v5008, 1.4214138
      %v5013 = vadd.f32 %v5009, 1.4214138
      %v5014 = vadd.f32 %v5010, 1.4214138
      %v5015 = vadd.f32 %v5011, 1.4214138
      %v5016 = vmul.f32 %v5012, %v4993
      %v5017 = vmul.f32 %v5013, %v4995
      %v5018 = vmul.f32 %v5014, %v4997
      %v5019 = vmul.f32 %v5015, %v4999
      %v5020 = vsub.f32 %v5016, 0.28449672
      %v5021 = vsub.f32 %v5017, 0.28449672
      %v5022 = vsub.f32 %v5018, 0.28449672
      %v5023 = vsub.f32 %v5019, 0.28449672
      %v5024 = vmul.f32 %v5020, %v4993
      %v5025 = vmul.f32 %v5021, %v4995
      %v5026 = vmul.f32 %v5022, %v4997
      %v5027 = vmul.f32 %v5023, %v4999
      %v5028 = vadd.f32 %v5024, 0.2548296
      %v5029 = vadd.f32 %v5025, 0.2548296
      %v5030 = vadd.f32 %v5026, 0.2548296
      %v5031 = vadd.f32 %v5027, 0.2548296
      %v5032 = vmul.f32 %v5028, %v4993
      %v5033 = vmul.f32 %v5029, %v4995
      %v5034 = vmul.f32 %v5030, %v4997
      %v5035 = vmul.f32 %v5031, %v4999
      %v5036 = vsub.f32 0.0, %v4980
      %v5037 = vsub.f32 0.0, %v4981
      %v5038 = vsub.f32 0.0, %v4982
      %v5039 = vsub.f32 0.0, %v4983
      %v5040 = vmul.f32 %v5036, %v4980
      %v5041 = vmul.f32 %v5037, %v4981
      %v5042 = vmul.f32 %v5038, %v4982
      %v5043 = vmul.f32 %v5039, %v4983
      %v5044 = vmul.f32 %v5040, 1.442695
      %v5045 = vpow.pop %v5044
      %v5046 = vmul.f32 %v5041, 1.442695
      %v5047 = vpow.pop %v5046
      %v5048 = vmul.f32 %v5042, 1.442695
      %v5049 = vpow.pop %v5048
      %v5050 = vmul.f32 %v5043, 1.442695
      %v5051 = vpow.pop %v5050
      %v5052 = vmul.f32 %v5032, %v5045
      %v5053 = vmul.f32 %v5033, %v5047
      %v5054 = vmul.f32 %v5034, %v5049
      %v5055 = vmul.f32 %v5035, %v5051
      %v5056 = vsub.f32 1.0, %v5052
      %v5057 = vsub.f32 1.0, %v5053
      %v5058 = vsub.f32 1.0, %v5054
      %v5059 = vsub.f32 1.0, %v5055
      %vm5060 = vcmp.ge.f32.partialorder %v4976, 0.0
      %vm5061 = vcmp.ge.f32.partialorder %v4977, 0.0
      %vm5062 = vcmp.ge.f32.partialorder %v4978, 0.0
      %vm5063 = vcmp.ge.f32.partialorder %v4979, 0.0
      %v5064 = vsub.f32 0.0, %v5056
      %v5065 = vsub.f32 0.0, %v5057
      %v5066 = vsub.f32 0.0, %v5058
      %v5067 = vsub.f32 0.0, %v5059
      %v5068 = vsel %vm5060, %v5056, %v5064
      %v5069 = vsel %vm5061, %v5057, %v5065
      %v5070 = vsel %vm5062, %v5058, %v5066
      %v5071 = vsel %vm5063, %v5059, %v5067
      %v5072 = vmul.f32 %v4958, 0.5
      %v5073 = vmul.f32 %v4963, 0.5
      %v5074 = vmul.f32 %v4968, 0.5
      %v5075 = vmul.f32 %v4973, 0.5
      %v5076 = vadd.f32 %v5068, 1.0
      %v5077 = vadd.f32 %v5069, 1.0
      %v5078 = vadd.f32 %v5070, 1.0
      %v5079 = vadd.f32 %v5071, 1.0
      %v5080 = vmul.f32 %v5072, %v5076
      %v5081 = vmul.f32 %v5073, %v5077
      %v5082 = vmul.f32 %v5074, %v5078
      %v5083 = vmul.f32 %v5075, %v5079
      %v5084 = vlaneseq
      %v5085 = vshrl.u32 %v5084, 7
      %v5086 = vsub.s32 3, %v5085
      %v5087 = vrot.slane %v3209, %v5086
      %v5089 = vsel %vm3019, %v5080, 0
      %v5092 = vsel %vm3019, %v5081, 0
      %v5095 = vsel %vm3019, %v5082, 0
      %v5098 = vsel %vm3019, %v5083, 0
      %5100 = vmatprep.subr.mxu0 0.0
      %5101 = vmatpush1.msra.mxu0 %v3201
      %5102 = vmatprep.subr.mxu0 0.0
      %5103 = vmatpush1.msra.mxu0 %v3202
      %5104 = vmatprep.subr.mxu0 0.0
      %5105 = vmatpush1.msra.mxu0 %v3203
      %5106 = vmatprep.subr.mxu0 0.0
      %5107 = vmatpush1.msra.mxu0 %v3204
      %5108 = vmatprep.subr.mxu0 0.0
      %5109 = vmatpush1.msra.mxu0 %v3205
      %5110 = vmatprep.subr.mxu0 0.0
      %5111 = vmatpush1.msra.mxu0 %v3206
      %5112 = vmatprep.subr.mxu0 0.0
      %5113 = vmatpush1.msra.mxu0 %v3207
      %5114 = vmatprep.subr.mxu0 0.0
      %5115 = vmatpush1.msra.mxu0 %v3208
      %5116 = vmatprep.subr.mxu0 0.0
      %5117 = vmatpush1.msra.mxu0 0.0
      %5118 = vmatprep.subr.mxu0 0.0
      %5119 = vmatpush1.msra.mxu0 0.0
      %5120 = vmatprep.subr.mxu0 0.0
      %5121 = vmatpush1.msra.mxu0 0.0
      %5122 = vmatprep.subr.mxu0 0.0
      %5123 = vmatpush1.msra.mxu0 0.0
      %5124 = vmatprep.subr.mxu0 0.0
      %5125 = vmatpush1.msra.mxu0 0.0
      %5126 = vmatprep.subr.mxu0 0.0
      %5127 = vmatpush1.msra.mxu0 0.0
      %5128 = vmatprep.subr.mxu0 0.0
      %5129 = vmatpush1.msra.mxu0 0.0
      %5130 = vmatprep.subr.mxu0 0.0
      %5131 = vmatpush1.msra.mxu0 0.0
      %5132 = vmatprep.subr.mxu0 0.0
      %5133 = vmatpush1.msra.mxu0 0.0
      %5134 = vmatprep.subr.mxu0 0.0
      %5135 = vmatpush1.msra.mxu0 0.0
      %5136 = vmatprep.subr.mxu0 0.0
      %5137 = vmatpush1.msra.mxu0 0.0
      %5138 = vmatprep.subr.mxu0 0.0
      %5139 = vmatpush1.msra.mxu0 0.0
      %5140 = vmatprep.subr.mxu0 0.0
      %5141 = vmatpush1.msra.mxu0 0.0
      %5142 = vmatprep.subr.mxu0 0.0
      %5143 = vmatpush1.msra.mxu0 0.0
      %5144 = vmatprep.subr.mxu0 0.0
      %5145 = vmatpush1.msra.mxu0 0.0
      %5146 = vmatprep.subr.mxu0 0.0
      %5147 = vmatpush1.msra.mxu0 0.0
      %5148 = vmatprep.subr.mxu0 0.0
      %5149 = vmatpush1.msra.mxu0 0.0
      %5150 = vmatprep.subr.mxu0 0.0
      %5151 = vmatpush1.msra.mxu0 0.0
      %5152 = vmatprep.subr.mxu0 0.0
      %5153 = vmatpush1.msra.mxu0 0.0
      %5154 = vmatprep.subr.mxu0 0.0
      %5155 = vmatpush1.msra.mxu0 0.0
      %5156 = vmatprep.subr.mxu0 0.0
      %5157 = vmatpush1.msra.mxu0 0.0
      %5158 = vmatprep.subr.mxu0 0.0
      %5159 = vmatpush1.msra.mxu0 0.0
      %5160 = vmatprep.subr.mxu0 0.0
      %5161 = vmatpush1.msra.mxu0 0.0
      %5162 = vmatprep.subr.mxu0 0.0
      %5163 = vmatpush1.msra.mxu0 0.0
      %5164 = vmatprep.mubr.f32.mxu0 0.0
      %5165 = vmatmul.mubr.f32.gmra.mrb[0].mxu0 %v5089
      %v5166 = vpop.f32.mrb[0].mxu0
      %v5167 = vadd.f32 %v5087, %v5166
      %v5168 = vpop.f32.mrb[0].mxu0
      %5169 = vmatprep.mubr.f32.mxu0 0.0
      %5170 = vmatmul.mubr.f32.gmra.mrb[0].mxu0 %v5092
      %v5171 = vpop.f32.mrb[0].mxu0
      %v5172 = vadd.f32 %v5087, %v5171
      %v5173 = vpop.f32.mrb[0].mxu0
      %5174 = vmatprep.mubr.f32.mxu0 0.0
      %5175 = vmatmul.mubr.f32.gmra.mrb[0].mxu0 %v5095
      %v5176 = vpop.f32.mrb[0].mxu0
      %v5177 = vadd.f32 %v5087, %v5176
      %v5178 = vpop.f32.mrb[0].mxu0
      %5179 = vmatprep.mubr.f32.mxu0 0.0
      %5180 = vmatmul.mubr.f32.gmra.mrb[0].mxu0 %v5098
      %v5181 = vpop.f32.mrb[0].mxu0
      %v5182 = vadd.f32 %v5087, %v5181
      %v5183 = vpop.f32.mrb[0].mxu0
      %5184 = vdwg.mxu0
      %v5185 = vadd.f32 %v4871, %v5167
      %v5186 = vadd.f32 %v4872, %v5172
      %v5187 = vadd.f32 %v4873, %v5177
      %v5188 = vadd.f32 %v4874, %v5182
      %v5189 = vsel %vm1146, %v5185, 0.0
      %5190 = vadd.xlane.f32.xlu0 %v5189
      %v5191 = vpop.xlane.xlu0 %5190
      %v5192 = vsel %vm1146, %v5186, 0.0
      %5193 = vadd.xlane.f32.xlu0 %v5192
      %v5194 = vpop.xlane.xlu0 %5193
      %v5195 = vsel %vm1146, %v5187, 0.0
      %5196 = vadd.xlane.f32.xlu0 %v5195
      %v5197 = vpop.xlane.xlu0 %5196
      %v5198 = vsel %vm1146, %v5188, 0.0
      %5199 = vadd.xlane.f32.xlu0 %v5198
      %v5200 = vpop.xlane.xlu0 %5199
      %v5201 = vmul.f32 %v5191, %v2749
      %v5202 = vmul.f32 %v5194, %v2749
      %v5203 = vmul.f32 %v5197, %v2749
      %v5204 = vmul.f32 %v5200, %v2749
      %v5205 = vsub.f32 %v5185, %v5201
      %v5206 = vsub.f32 %v5186, %v5202
      %v5207 = vsub.f32 %v5187, %v5203
      %v5208 = vsub.f32 %v5188, %v5204
      %v5209 = vmul.f32 %v5205, %v5205
      %v5210 = vmul.f32 %v5206, %v5206
      %v5211 = vmul.f32 %v5207, %v5207
      %v5212 = vmul.f32 %v5208, %v5208
      %v5213 = vsel %vm1146, %v5209, 0.0
      %5214 = vadd.xlane.f32.xlu0 %v5213
      %v5215 = vpop.xlane.xlu0 %5214
      %v5216 = vsel %vm1146, %v5210, 0.0
      %5217 = vadd.xlane.f32.xlu0 %v5216
      %v5218 = vpop.xlane.xlu0 %5217
      %v5219 = vsel %vm1146, %v5211, 0.0
      %5220 = vadd.xlane.f32.xlu0 %v5219
      %v5221 = vpop.xlane.xlu0 %5220
      %v5222 = vsel %vm1146, %v5212, 0.0
      %5223 = vadd.xlane.f32.xlu0 %v5222
      %v5224 = vpop.xlane.xlu0 %5223
      %v5225 = vmul.f32 %v5215, %v2749
      %v5226 = vmul.f32 %v5218, %v2749
      %v5227 = vmul.f32 %v5221, %v2749
      %v5228 = vmul.f32 %v5224, %v2749
      %v5229 = vadd.f32 %v5225, 1e-05
      %v5230 = vadd.f32 %v5226, 1e-05
      %v5231 = vadd.f32 %v5227, 1e-05
      %v5232 = vadd.f32 %v5228, 1e-05
      %v5233 = vrsqrt.pop %v5229
      %v5234 = vrsqrt.pop %v5230
      %v5235 = vrsqrt.pop %v5231
      %v5236 = vrsqrt.pop %v5232
      %v5237 = vmul.f32 %v5205, %v5233
      %v5238 = vmul.f32 %v5206, %v5234
      %v5239 = vmul.f32 %v5207, %v5235
      %v5240 = vmul.f32 %v5208, %v5236
      %v5241 = vlaneseq
      %v5242 = vshrl.u32 %v5241, 7
      %v5243 = vsub.s32 6, %v5242
      %v5244 = vrot.slane %v3209, %v5243
      %v5245 = vmul.f32 %v5237, %v5244
      %v5246 = vmul.f32 %v5238, %v5244
      %v5247 = vmul.f32 %v5239, %v5244
      %v5248 = vmul.f32 %v5240, %v5244
      %v5249 = vlaneseq
      %v5250 = vshrl.u32 %v5249, 7
      %v5251 = vsub.s32 7, %v5250
      %v5252 = vrot.slane %v3209, %v5251
      %v5253 = vadd.f32 %v5245, %v5252
      %v5254 = vadd.f32 %v5246, %v5252
      %v5255 = vadd.f32 %v5247, %v5252
      %v5256 = vadd.f32 %v5248, %v5252
      %v5257 = vld [vmem:[%s971] sm:$0xff]
      %v5258 = vld [vmem:[%s971 + $0x8] sm:$0xff]
      %v5259 = vld [vmem:[%s971 + $0x10] sm:$0xff]
      %v5260 = vld [vmem:[%s971 + $0x18] sm:$0xff]
      %v5261 = vlaneseq
      %v5262 = vshrl.u32 %v5261, 7
      %v5263 = vsub.s32 0, %v5262
      %v5264 = vrot.slane %v1116, %v5263
      %v5266 = vsel %vm1146, %v5253, 0
      %v5269 = vsel %vm1146, %v5254, 0
      %v5272 = vsel %vm1146, %v5255, 0
      %v5275 = vsel %vm1146, %v5256, 0
      %5277 = vmatprep.subr.mxu0 0.0
      %5278 = vmatpush1.msra.mxu0 %v5257
      %5279 = vmatprep.subr.mxu0 0.0
      %5280 = vmatpush1.msra.mxu0 %v5258
      %5281 = vmatprep.subr.mxu0 0.0
      %5282 = vmatpush1.msra.mxu0 %v5259
      %5283 = vmatprep.subr.mxu0 0.0
      %5284 = vmatpush1.msra.mxu0 %v5260
      %5285 = vmatprep.subr.mxu0 0.0
      %5286 = vmatpush1.msra.mxu0 0.0
      %5287 = vmatprep.subr.mxu0 0.0
      %5288 = vmatpush1.msra.mxu0 0.0
      %5289 = vmatprep.subr.mxu0 0.0
      %5290 = vmatpush1.msra.mxu0 0.0
      %5291 = vmatprep.subr.mxu0 0.0
      %5292 = vmatpush1.msra.mxu0 0.0
      %5293 = vmatprep.subr.mxu0 0.0
      %5294 = vmatpush1.msra.mxu0 0.0
      %5295 = vmatprep.subr.mxu0 0.0
      %5296 = vmatpush1.msra.mxu0 0.0
      %5297 = vmatprep.subr.mxu0 0.0
      %5298 = vmatpush1.msra.mxu0 0.0
      %5299 = vmatprep.subr.mxu0 0.0
      %5300 = vmatpush1.msra.mxu0 0.0
      %5301 = vmatprep.subr.mxu0 0.0
      %5302 = vmatpush1.msra.mxu0 0.0
      %5303 = vmatprep.subr.mxu0 0.0
      %5304 = vmatpush1.msra.mxu0 0.0
      %5305 = vmatprep.subr.mxu0 0.0
      %5306 = vmatpush1.msra.mxu0 0.0
      %5307 = vmatprep.subr.mxu0 0.0
      %5308 = vmatpush1.msra.mxu0 0.0
      %5309 = vmatprep.subr.mxu0 0.0
      %5310 = vmatpush1.msra.mxu0 0.0
      %5311 = vmatprep.subr.mxu0 0.0
      %5312 = vmatpush1.msra.mxu0 0.0
      %5313 = vmatprep.subr.mxu0 0.0
      %5314 = vmatpush1.msra.mxu0 0.0
      %5315 = vmatprep.subr.mxu0 0.0
      %5316 = vmatpush1.msra.mxu0 0.0
      %5317 = vmatprep.subr.mxu0 0.0
      %5318 = vmatpush1.msra.mxu0 0.0
      %5319 = vmatprep.subr.mxu0 0.0
      %5320 = vmatpush1.msra.mxu0 0.0
      %5321 = vmatprep.subr.mxu0 0.0
      %5322 = vmatpush1.msra.mxu0 0.0
      %5323 = vmatprep.subr.mxu0 0.0
      %5324 = vmatpush1.msra.mxu0 0.0
      %5325 = vmatprep.subr.mxu0 0.0
      %5326 = vmatpush1.msra.mxu0 0.0
      %5327 = vmatprep.subr.mxu0 0.0
      %5328 = vmatpush1.msra.mxu0 0.0
      %5329 = vmatprep.subr.mxu0 0.0
      %5330 = vmatpush1.msra.mxu0 0.0
      %5331 = vmatprep.subr.mxu0 0.0
      %5332 = vmatpush1.msra.mxu0 0.0
      %5333 = vmatprep.subr.mxu0 0.0
      %5334 = vmatpush1.msra.mxu0 0.0
      %5335 = vmatprep.subr.mxu0 0.0
      %5336 = vmatpush1.msra.mxu0 0.0
      %5337 = vmatprep.subr.mxu0 0.0
      %5338 = vmatpush1.msra.mxu0 0.0
      %5339 = vmatprep.subr.mxu0 0.0
      %5340 = vmatpush1.msra.mxu0 0.0
      %5341 = vmatprep.mubr.f32.mxu0 0.0
      %5342 = vmatmul.mubr.f32.gmra.mrb[0].mxu0 %v5266
      %v5343 = vpop.f32.mrb[0].mxu0
      %v5344 = vadd.f32 %v5264, %v5343
      %v5345 = vpop.f32.mrb[0].mxu0
      %5346 = vmatprep.mubr.f32.mxu0 0.0
      %5347 = vmatmul.mubr.f32.gmra.mrb[0].mxu0 %v5269
      %v5348 = vpop.f32.mrb[0].mxu0
      %v5349 = vadd.f32 %v5264, %v5348
      %v5350 = vpop.f32.mrb[0].mxu0
      %5351 = vmatprep.mubr.f32.mxu0 0.0
      %5352 = vmatmul.mubr.f32.gmra.mrb[0].mxu0 %v5272
      %v5353 = vpop.f32.mrb[0].mxu0
      %v5354 = vadd.f32 %v5264, %v5353
      %v5355 = vpop.f32.mrb[0].mxu0
      %5356 = vmatprep.mubr.f32.mxu0 0.0
      %5357 = vmatmul.mubr.f32.gmra.mrb[0].mxu0 %v5275
      %v5358 = vpop.f32.mrb[0].mxu0
      %v5359 = vadd.f32 %v5264, %v5358
      %v5360 = vpop.f32.mrb[0].mxu0
      %5361 = vdwg.mxu0
      %v5362 = vld [vmem:[%s917] sm:$0xff]
      %v5363 = vld [vmem:[%s917 + $0x8] sm:$0xff]
      %v5364 = vld [vmem:[%s917 + $0x10] sm:$0xff]
      %v5365 = vld [vmem:[%s917 + $0x18] sm:$0xff]
      %v5366 = vld [vmem:[%s976] sm:$0xff]
      %v5367 = vld [vmem:[%s976 + $0x8] sm:$0xff]
      %vm5368 = vcmask 130048
      %v5370 = vsel %vm5368, %v5362, 0
      %v5373 = vsel %vm5368, %v5363, 0
      %v5376 = vsel %vm5368, %v5364, 0
      %v5379 = vsel %vm5368, %v5365, 0
      %5381 = vmatprep.subr.mxu0 0.0
      %5382 = vmatpush1.msra.mxu0 %v5366
      %5383 = vmatprep.subr.mxu0 0.0
      %5384 = vmatpush1.msra.mxu0 %v5367
      %5385 = vmatprep.subr.mxu0 0.0
      %5386 = vmatpush1.msra.mxu0 0.0
      %5387 = vmatprep.subr.mxu0 0.0
      %5388 = vmatpush1.msra.mxu0 0.0
      %5389 = vmatprep.subr.mxu0 0.0
      %5390 = vmatpush1.msra.mxu0 0.0
      %5391 = vmatprep.subr.mxu0 0.0
      %5392 = vmatpush1.msra.mxu0 0.0
      %5393 = vmatprep.subr.mxu0 0.0
      %5394 = vmatpush1.msra.mxu0 0.0
      %5395 = vmatprep.subr.mxu0 0.0
      %5396 = vmatpush1.msra.mxu0 0.0
      %5397 = vmatprep.subr.mxu0 0.0
      %5398 = vmatpush1.msra.mxu0 0.0
      %5399 = vmatprep.subr.mxu0 0.0
      %5400 = vmatpush1.msra.mxu0 0.0
      %5401 = vmatprep.subr.mxu0 0.0
      %5402 = vmatpush1.msra.mxu0 0.0
      %5403 = vmatprep.subr.mxu0 0.0
      %5404 = vmatpush1.msra.mxu0 0.0
      %5405 = vmatprep.subr.mxu0 0.0
      %5406 = vmatpush1.msra.mxu0 0.0
      %5407 = vmatprep.subr.mxu0 0.0
      %5408 = vmatpush1.msra.mxu0 0.0
      %5409 = vmatprep.subr.mxu0 0.0
      %5410 = vmatpush1.msra.mxu0 0.0
      %5411 = vmatprep.subr.mxu0 0.0
      %5412 = vmatpush1.msra.mxu0 0.0
      %5413 = vmatprep.subr.mxu0 0.0
      %5414 = vmatpush1.msra.mxu0 0.0
      %5415 = vmatprep.subr.mxu0 0.0
      %5416 = vmatpush1.msra.mxu0 0.0
      %5417 = vmatprep.subr.mxu0 0.0
      %5418 = vmatpush1.msra.mxu0 0.0
      %5419 = vmatprep.subr.mxu0 0.0
      %5420 = vmatpush1.msra.mxu0 0.0
      %5421 = vmatprep.subr.mxu0 0.0
      %5422 = vmatpush1.msra.mxu0 0.0
      %5423 = vmatprep.subr.mxu0 0.0
      %5424 = vmatpush1.msra.mxu0 0.0
      %5425 = vmatprep.subr.mxu0 0.0
      %5426 = vmatpush1.msra.mxu0 0.0
      %5427 = vmatprep.subr.mxu0 0.0
      %5428 = vmatpush1.msra.mxu0 0.0
      %5429 = vmatprep.subr.mxu0 0.0
      %5430 = vmatpush1.msra.mxu0 0.0
      %5431 = vmatprep.subr.mxu0 0.0
      %5432 = vmatpush1.msra.mxu0 0.0
      %5433 = vmatprep.subr.mxu0 0.0
      %5434 = vmatpush1.msra.mxu0 0.0
      %5435 = vmatprep.subr.mxu0 0.0
      %5436 = vmatpush1.msra.mxu0 0.0
      %5437 = vmatprep.subr.mxu0 0.0
      %5438 = vmatpush1.msra.mxu0 0.0
      %5439 = vmatprep.subr.mxu0 0.0
      %5440 = vmatpush1.msra.mxu0 0.0
      %5441 = vmatprep.subr.mxu0 0.0
      %5442 = vmatpush1.msra.mxu0 0.0
      %5443 = vmatprep.subr.mxu0 0.0
      %5444 = vmatpush1.msra.mxu0 0.0
      %5445 = vmatprep.mubr.f32.mxu0 0.0
      %5446 = vmatmul.mubr.f32.gmra.mrb[0].mxu0 %v5370
      %v5447 = vpop.f32.mrb[0].mxu0
      %v5448 = vadd.f32 0.0, %v5447
      %v5449 = vpop.f32.mrb[0].mxu0
      %5450 = vmatprep.mubr.f32.mxu0 0.0
      %5451 = vmatmul.mubr.f32.gmra.mrb[0].mxu0 %v5373
      %v5452 = vpop.f32.mrb[0].mxu0
      %v5453 = vadd.f32 0.0, %v5452
      %v5454 = vpop.f32.mrb[0].mxu0
      %5455 = vmatprep.mubr.f32.mxu0 0.0
      %5456 = vmatmul.mubr.f32.gmra.mrb[0].mxu0 %v5376
      %v5457 = vpop.f32.mrb[0].mxu0
      %v5458 = vadd.f32 0.0, %v5457
      %v5459 = vpop.f32.mrb[0].mxu0
      %5460 = vmatprep.mubr.f32.mxu0 0.0
      %5461 = vmatmul.mubr.f32.gmra.mrb[0].mxu0 %v5379
      %v5462 = vpop.f32.mrb[0].mxu0
      %v5463 = vadd.f32 0.0, %v5462
      %v5464 = vpop.f32.mrb[0].mxu0
      %5465 = vdwg.mxu0
      %v5466 = vadd.f32 %v5344, %v5448
      %v5467 = vadd.f32 %v5349, %v5453
      %v5468 = vadd.f32 %v5354, %v5458
      %v5469 = vadd.f32 %v5359, %v5463
      %v5470 = vlaneseq
      %v5471 = vshrl.u32 %v5470, 7
      %v5472 = vsub.s32 1, %v5471
      %v5473 = vrot.slane %v1116, %v5472
      %v5474 = vadd.f32 %v5466, %v5473
      %v5475 = vadd.f32 %v5467, %v5473
      %v5476 = vadd.f32 %v5468, %v5473
      %v5477 = vadd.f32 %v5469, %v5473
      %v5478 = vld [vmem:[%s981] sm:$0xff]
      %v5479 = vld [vmem:[%s981 + $0x8] sm:$0xff]
      %v5480 = vld [vmem:[%s981 + $0x10] sm:$0xff]
      %v5481 = vld [vmem:[%s981 + $0x18] sm:$0xff]
      %v5482 = vld [vmem:[%s981 + $0x20] sm:$0xff]
      %v5483 = vld [vmem:[%s981 + $0x28] sm:$0xff]
      %v5484 = vld [vmem:[%s981 + $0x30] sm:$0xff]
      %v5485 = vld [vmem:[%s981 + $0x38] sm:$0xff]
      %v5486 = vlaneseq
      %v5487 = vshrl.u32 %v5486, 7
      %v5488 = vsub.s32 2, %v5487
      %v5489 = vrot.slane %v1116, %v5488
      %v5491 = vsel %vm3019, %v5474, 0
      %v5494 = vsel %vm3019, %v5475, 0
      %v5497 = vsel %vm3019, %v5476, 0
      %v5500 = vsel %vm3019, %v5477, 0
      %5502 = vmatprep.subr.mxu0 0.0
      %5503 = vmatpush1.msra.mxu0 %v5478
      %5504 = vmatprep.subr.mxu0 0.0
      %5505 = vmatpush1.msra.mxu0 %v5479
      %5506 = vmatprep.subr.mxu0 0.0
      %5507 = vmatpush1.msra.mxu0 %v5480
      %5508 = vmatprep.subr.mxu0 0.0
      %5509 = vmatpush1.msra.mxu0 %v5481
      %5510 = vmatprep.subr.mxu0 0.0
      %5511 = vmatpush1.msra.mxu0 %v5482
      %5512 = vmatprep.subr.mxu0 0.0
      %5513 = vmatpush1.msra.mxu0 %v5483
      %5514 = vmatprep.subr.mxu0 0.0
      %5515 = vmatpush1.msra.mxu0 %v5484
      %5516 = vmatprep.subr.mxu0 0.0
      %5517 = vmatpush1.msra.mxu0 %v5485
      %5518 = vmatprep.subr.mxu0 0.0
      %5519 = vmatpush1.msra.mxu0 0.0
      %5520 = vmatprep.subr.mxu0 0.0
      %5521 = vmatpush1.msra.mxu0 0.0
      %5522 = vmatprep.subr.mxu0 0.0
      %5523 = vmatpush1.msra.mxu0 0.0
      %5524 = vmatprep.subr.mxu0 0.0
      %5525 = vmatpush1.msra.mxu0 0.0
      %5526 = vmatprep.subr.mxu0 0.0
      %5527 = vmatpush1.msra.mxu0 0.0
      %5528 = vmatprep.subr.mxu0 0.0
      %5529 = vmatpush1.msra.mxu0 0.0
      %5530 = vmatprep.subr.mxu0 0.0
      %5531 = vmatpush1.msra.mxu0 0.0
      %5532 = vmatprep.subr.mxu0 0.0
      %5533 = vmatpush1.msra.mxu0 0.0
      %5534 = vmatprep.subr.mxu0 0.0
      %5535 = vmatpush1.msra.mxu0 0.0
      %5536 = vmatprep.subr.mxu0 0.0
      %5537 = vmatpush1.msra.mxu0 0.0
      %5538 = vmatprep.subr.mxu0 0.0
      %5539 = vmatpush1.msra.mxu0 0.0
      %5540 = vmatprep.subr.mxu0 0.0
      %5541 = vmatpush1.msra.mxu0 0.0
      %5542 = vmatprep.subr.mxu0 0.0
      %5543 = vmatpush1.msra.mxu0 0.0
      %5544 = vmatprep.subr.mxu0 0.0
      %5545 = vmatpush1.msra.mxu0 0.0
      %5546 = vmatprep.subr.mxu0 0.0
      %5547 = vmatpush1.msra.mxu0 0.0
      %5548 = vmatprep.subr.mxu0 0.0
      %5549 = vmatpush1.msra.mxu0 0.0
      %5550 = vmatprep.subr.mxu0 0.0
      %5551 = vmatpush1.msra.mxu0 0.0
      %5552 = vmatprep.subr.mxu0 0.0
      %5553 = vmatpush1.msra.mxu0 0.0
      %5554 = vmatprep.subr.mxu0 0.0
      %5555 = vmatpush1.msra.mxu0 0.0
      %5556 = vmatprep.subr.mxu0 0.0
      %5557 = vmatpush1.msra.mxu0 0.0
      %5558 = vmatprep.subr.mxu0 0.0
      %5559 = vmatpush1.msra.mxu0 0.0
      %5560 = vmatprep.subr.mxu0 0.0
      %5561 = vmatpush1.msra.mxu0 0.0
      %5562 = vmatprep.subr.mxu0 0.0
      %5563 = vmatpush1.msra.mxu0 0.0
      %5564 = vmatprep.subr.mxu0 0.0
      %5565 = vmatpush1.msra.mxu0 0.0
      %5566 = vmatprep.mubr.f32.mxu0 0.0
      %5567 = vmatmul.mubr.f32.gmra.mrb[0].mxu0 %v5491
      %v5568 = vpop.f32.mrb[0].mxu0
      %v5569 = vadd.f32 %v5489, %v5568
      %v5570 = vpop.f32.mrb[0].mxu0
      %5571 = vmatprep.mubr.f32.mxu0 0.0
      %5572 = vmatmul.mubr.f32.gmra.mrb[0].mxu0 %v5494
      %v5573 = vpop.f32.mrb[0].mxu0
      %v5574 = vadd.f32 %v5489, %v5573
      %v5575 = vpop.f32.mrb[0].mxu0
      %5576 = vmatprep.mubr.f32.mxu0 0.0
      %5577 = vmatmul.mubr.f32.gmra.mrb[0].mxu0 %v5497
      %v5578 = vpop.f32.mrb[0].mxu0
      %v5579 = vadd.f32 %v5489, %v5578
      %v5580 = vpop.f32.mrb[0].mxu0
      %5581 = vmatprep.mubr.f32.mxu0 0.0
      %5582 = vmatmul.mubr.f32.gmra.mrb[0].mxu0 %v5500
      %v5583 = vpop.f32.mrb[0].mxu0
      %v5584 = vadd.f32 %v5489, %v5583
      %v5585 = vpop.f32.mrb[0].mxu0
      %5586 = vdwg.mxu0
      %5587 = vst.msk [vmem:[#allocation2] sm:$0xff] %vm1146, %v5569
      %5588 = vst.msk [vmem:[#allocation2 + $0x8] sm:$0xff] %vm1146, %v5574
      %5589 = vst.msk [vmem:[#allocation2 + $0x10] sm:$0xff] %vm1146, %v5579
      %5590 = vst.msk [vmem:[#allocation2 + $0x18] sm:$0xff] %vm1146, %v5584
      %p5591 = scmp.eq.s32.totalorder %s40, 1
      // Predicated region
      $region113: #{_lambda_.3} parent=107 // pred_check
        %p5592 = pneg %p5591
      $region114: #{_lambda_.3} parent=107 // pred_check_branch
        %5594 = sbr.rel (%p5592) target = $region116
      $region115: #{_lambda_.3} parent=107 // pred_region
        %v5595 = vmax.f32 %v5569, 0.0
        %v5596 = vmax.f32 %v5574, 0.0
        %v5597 = vmax.f32 %v5579, 0.0
        %v5598 = vmax.f32 %v5584, 0.0
        %v5599 = vld [vmem:[%s20] sm:$0x1]
        %v5600 = vld [vmem:[#allocation3] sm:$0x1]
        %5602 = vset.pattern.permute.xlu0 0
        %5603 = vperm.xlu0 %5602, %v5600
        %v5604 = vpop.permute.xlu0 %5603
        %v5606 = vlaneseq
        %v5607 = vshrl.u32 %v5606, 7
        %v5608 = vsub.s32 0, %v5607
        %v5609 = vrot.slane %v5604, %v5608
        %v5611 = vsel %vm1146, %v5599, 0
        %v5614 = vsel %vm1146, %v5595, 0
        %v5617 = vsel %vm1146, %v5596, 0
        %v5620 = vsel %vm1146, %v5597, 0
        %v5623 = vsel %vm1146, %v5598, 0
        %5625 = vmatprep.subr.mxu0 0.0
        %5626 = vmatpush1.xpose.msra.mxu0 %v5614
        %5627 = vmatprep.subr.mxu0 0.0
        %5628 = vmatpush1.xpose.msra.mxu0 %v5617
        %5629 = vmatprep.subr.mxu0 0.0
        %5630 = vmatpush1.xpose.msra.mxu0 %v5620
        %5631 = vmatprep.subr.mxu0 0.0
        %5632 = vmatpush1.xpose.msra.mxu0 %v5623
        %5633 = vmatprep.subr.mxu0 0.0
        %5634 = vmatpush1.xpose.msra.mxu0 0.0
        %5635 = vmatprep.subr.mxu0 0.0
        %5636 = vmatpush1.xpose.msra.mxu0 0.0
        %5637 = vmatprep.subr.mxu0 0.0
        %5638 = vmatpush1.xpose.msra.mxu0 0.0
        %5639 = vmatprep.subr.mxu0 0.0
        %5640 = vmatpush1.xpose.msra.mxu0 0.0
        %5641 = vmatprep.subr.mxu0 0.0
        %5642 = vmatpush1.xpose.msra.mxu0 0.0
        %5643 = vmatprep.subr.mxu0 0.0
        %5644 = vmatpush1.xpose.msra.mxu0 0.0
        %5645 = vmatprep.subr.mxu0 0.0
        %5646 = vmatpush1.xpose.msra.mxu0 0.0
        %5647 = vmatprep.subr.mxu0 0.0
        %5648 = vmatpush1.xpose.msra.mxu0 0.0
        %5649 = vmatprep.subr.mxu0 0.0
        %5650 = vmatpush1.xpose.msra.mxu0 0.0
        %5651 = vmatprep.subr.mxu0 0.0
        %5652 = vmatpush1.xpose.msra.mxu0 0.0
        %5653 = vmatprep.subr.mxu0 0.0
        %5654 = vmatpush1.xpose.msra.mxu0 0.0
        %5655 = vmatprep.subr.mxu0 0.0
        %5656 = vmatpush1.xpose.msra.mxu0 0.0
        %5657 = vmatprep.subr.mxu0 0.0
        %5658 = vmatpush1.xpose.msra.mxu0 0.0
        %5659 = vmatprep.subr.mxu0 0.0
        %5660 = vmatpush1.xpose.msra.mxu0 0.0
        %5661 = vmatprep.subr.mxu0 0.0
        %5662 = vmatpush1.xpose.msra.mxu0 0.0
        %5663 = vmatprep.subr.mxu0 0.0
        %5664 = vmatpush1.xpose.msra.mxu0 0.0
        %5665 = vmatprep.subr.mxu0 0.0
        %5666 = vmatpush1.xpose.msra.mxu0 0.0
        %5667 = vmatprep.subr.mxu0 0.0
        %5668 = vmatpush1.xpose.msra.mxu0 0.0
        %5669 = vmatprep.subr.mxu0 0.0
        %5670 = vmatpush1.xpose.msra.mxu0 0.0
        %5671 = vmatprep.subr.mxu0 0.0
        %5672 = vmatpush1.xpose.msra.mxu0 0.0
        %5673 = vmatprep.subr.mxu0 0.0
        %5674 = vmatpush1.xpose.msra.mxu0 0.0
        %5675 = vmatprep.subr.mxu0 0.0
        %5676 = vmatpush1.xpose.msra.mxu0 0.0
        %5677 = vmatprep.subr.mxu0 0.0
        %5678 = vmatpush1.xpose.msra.mxu0 0.0
        %5679 = vmatprep.subr.mxu0 0.0
        %5680 = vmatpush1.xpose.msra.mxu0 0.0
        %5681 = vmatprep.subr.mxu0 0.0
        %5682 = vmatpush1.xpose.msra.mxu0 0.0
        %5683 = vmatprep.subr.mxu0 0.0
        %5684 = vmatpush1.xpose.msra.mxu0 0.0
        %5685 = vmatprep.subr.mxu0 0.0
        %5686 = vmatpush1.xpose.msra.mxu0 0.0
        %5687 = vmatprep.subr.mxu0 0.0
        %5688 = vmatpush1.xpose.msra.mxu0 0.0
        %5689 = vmatprep.mubr.f32.mxu0 0.0
        %5690 = vmatmul.mubr.f32.gmra.mrb[0].mxu0 %v5611
        %v5691 = vpop.f32.mrb[0].mxu0
        %v5692 = vadd.f32 %v5609, %v5691
        %v5693 = vpop.f32.mrb[0].mxu0
        %5694 = vdwg.mxu0
        %vm5695 = vcmask 253952
        %5696 = vst.msk [vmem:[%s988] sm:$0x1] %vm5695, %v5692
      $region116: #{_lambda_.3} parent=107 // pred_fallthru
        _
      %p5697 = scmp.lt.s32.totalorder %s39, 1
      %s5698 = scalar_select %p5697, %s39, 1
      %s5699 = scalar_lea.vmem %s22, %s5698
      // Predicated region
      $region117: #{_lambda_.3} parent=107 // pred_check
        %p5700 = pneg %p607
      $region118: #{_lambda_.3} parent=107 // pred_check_branch
        %5702 = sbr.rel (%p5700) target = $region120
      $region119: #{_lambda_.3} parent=107 // pred_region
        _
      $region120: #{_lambda_.3} parent=107 // pred_fallthru
        _
    $region108: #{_lambda_.3} parent=5 // pred_fallthru
      _
    %p5703 = scmp.le.s32.totalorder 2, %s30
    // Predicated region
    $region121: #{_lambda_.3} parent=5 // pred_check
      %p5704 = pneg %p5703
    $region122: #{_lambda_.3} parent=5 // pred_check_branch
      %5706 = sbr.rel (%p5704) target = $region124
    $region123: #{_lambda_.3} parent=5 // pred_region
      %s5707 = ssub.s32 %s30, 2
      // Predicated region
      $region125: #{_lambda_.3} parent=123 // pred_check
        %p5708 = pneg %p613
      $region126: #{_lambda_.3} parent=123 // pred_check_branch
        %5710 = sbr.rel (%p5708) target = $region128
      $region127: #{_lambda_.3} parent=123 // pred_region
        %p5711 = scmp.lt.s32.totalorder %s41, 1
        %s5712 = scalar_select %p5711, %s41, 1
        %s5713 = scalar_lea.vmem %s22, %s5712
      $region128: #{_lambda_.3} parent=123 // pred_fallthru
        _
    $region124: #{_lambda_.3} parent=5 // pred_fallthru
      _
  $region6: #{_lambda_.3} parent=0 // loop_footer
    %s34 = sadd.s32 1, %s30
  $region7: #{_lambda_.3} parent=0 // loop_footer_branch
    %29 = sbr.rel target = $region3
  $region8: #{_lambda_.3} parent=0 // loop_exit
    _

</llo_original>
